<compile_context>
chip_gen: v7x
topology: tpu7x:2x2x1
jax: 0.10.0
libtpu: 0.0.40
codegen_flags: <defaults>
</compile_context>

<pallas_src>
import jax
import jax.numpy as jnp
import numpy as np
from jax.experimental import pallas as pl
from jax.experimental.pallas import tpu as pltpu

TB = 16  # images per grid step (rows per step = TB * 32)


# ----------------------------------------------------------------------------
# Fused kernel body
# ----------------------------------------------------------------------------
def _lenet_kernel(x_ref, w1_ref, b1_ref, w3_ref, b3_ref,
                  w5_ref, b5_ref, w6_ref, b6_ref, w7_ref, b7_ref, o_ref):
    f32 = jnp.float32
    tb = o_ref.shape[0]
    x2 = x_ref[...]                                   # (tb*32, 32)  rows=(b,h)

    def shift_rows(v, k):                             # result[r] = v[r+k]
        if k == 0:
            return v
        return jnp.concatenate([v[k:, :], v[:k, :]], axis=0)

    def shift_lanes(v, k):                            # result[:, l] = v[:, l+k]
        return jnp.concatenate([v[:, k:], v[:, :k]], axis=1)

    # ---- conv1 (5x5, 1->6) as ONE banded MXU matmul -------------------------
    # im2col over kh only: 5 row-shifted copies of x concatenated on lanes.
    a1 = jnp.concatenate([shift_rows(x2, kh) for kh in range(5)], axis=1)   # (R,160)
    # output lane = co*28 + ow  (168 lanes); rows b*32+oh valid for oh<28
    act1 = jnp.maximum(
        jnp.dot(a1, w1_ref[...], preferred_element_type=f32) + b1_ref[...], 0.0)

    # ---- 2x2 max pool #1: two pair-max ops ----------------------------------
    # valid result at rows b*32 + 2*oh2, lanes co*28 + 2*ow2 (other slots are
    # garbage and are never read by the next banded matmul).
    p1 = jnp.maximum(act1, shift_lanes(act1, 1))
    p1 = jnp.maximum(p1, shift_rows(p1, 1))

    # ---- conv3 (5x5, 6->16) as ONE banded MXU matmul ------------------------
    # kh bands of the (strided) pooled map concatenated on lanes; the (kw, ci)
    # contraction and the stride-2 lane layout are baked into w3.
    a3 = jnp.concatenate([shift_rows(p1, 2 * kh) for kh in range(5)], axis=1)  # (R,840)
    # output lane = co*10 + ow3 (160 lanes); valid rows b*32 + 2*oh3
    act3 = jnp.maximum(
        jnp.dot(a3, w3_ref[...], preferred_element_type=f32) + b3_ref[...], 0.0)

    # ---- 2x2 max pool #2 -----------------------------------------------------
    # valid result at rows b*32 + 4*oh4, lanes co*10 + 2*ow4.
    p2 = jnp.maximum(act3, shift_lanes(act3, 1))
    p2 = jnp.maximum(p2, shift_rows(p2, 2))

    # ---- flatten-free fc input ----------------------------------------------
    # Put the 5 valid row-bands of each image on lanes (800 lanes), then take
    # one row per image -> (tb, 800).  The PyTorch (C,H,W) flatten order is
    # baked into w5.
    fcin_all = jnp.concatenate([shift_rows(p2, 4 * oh4) for oh4 in range(5)],
                               axis=1)                                      # (R,800)
    fcin = jnp.concatenate([fcin_all[b * 32:b * 32 + 1, :] for b in range(tb)],
                           axis=0)                                          # (tb,800)

    # ---- fc5 -> relu -> fc6 -> relu -> fc7 (lane-padded to 128) -------------
    h5 = jnp.maximum(
        jnp.dot(fcin, w5_ref[...], preferred_element_type=f32) + b5_ref[...], 0.0)
    h6 = jnp.maximum(
        jnp.dot(h5, w6_ref[...], preferred_element_type=f32) + b6_ref[...], 0.0)
    o_ref[...] = jnp.dot(h6, w7_ref[...], preferred_element_type=f32) + b7_ref[...]


# ----------------------------------------------------------------------------
# One-time parameter preprocessing (hoisted out of the jitted forward):
# build the banded / lane-padded weight matrices the fused kernel expects.
# ----------------------------------------------------------------------------
def preprocess_params(p):
    cw1 = np.asarray(p["conv1_w"], np.float32)              # (6,1,5,5)
    cw3 = np.asarray(p["conv3_w"], np.float32)              # (16,6,5,5)
    fw5 = np.asarray(p["fc5_w"], np.float32).reshape(120, 16, 5, 5)
    fw6 = np.asarray(p["fc6_w"], np.float32)                # (84,120)
    fw7 = np.asarray(p["fc7_w"], np.float32)                # (10,84)

    # conv1: input lane (kh*32 + w_in) -> output lane (co*28 + ow)
    w1 = np.zeros((5 * 32, 6 * 28), np.float32)
    ar28 = np.arange(28)
    for co in range(6):
        for kh in range(5):
            for kw in range(5):
                w1[kh * 32 + ar28 + kw, co * 28 + ar28] = cw1[co, 0, kh, kw]
    b1 = np.repeat(np.asarray(p["conv1_b"], np.float32), 28)[None, :]        # (1,168)

    # conv3: input lane (kh*168 + ci*28 + 2*(ow3+kw)) -> output lane (co*10 + ow3)
    w3 = np.zeros((5 * 168, 16 * 10), np.float32)
    ar10 = np.arange(10)
    for co in range(16):
        for ci in range(6):
            for kh in range(5):
                for kw in range(5):
                    w3[kh * 168 + ci * 28 + 2 * (ar10 + kw),
                       co * 10 + ar10] = cw3[co, ci, kh, kw]
    b3 = np.repeat(np.asarray(p["conv3_b"], np.float32), 10)[None, :]        # (1,160)

    # fc5: input lane (oh4*160 + co*10 + 2*ow4) <- PyTorch flat idx co*25+oh4*5+ow4
    # output lanes padded 120 -> 128
    w5 = np.zeros((5 * 160, 128), np.float32)
    for oh in range(5):
        for ow in range(5):
            rows = oh * 160 + np.arange(16) * 10 + 2 * ow
            w5[rows[:, None], np.arange(120)[None, :]] = fw5[:, :, oh, ow].T
    b5 = np.zeros((1, 128), np.float32)
    b5[0, :120] = np.asarray(p["fc5_b"], np.float32)

    w6 = np.zeros((128, 128), np.float32)
    w6[:120, :84] = fw6.T
    b6 = np.zeros((1, 128), np.float32)
    b6[0, :84] = np.asarray(p["fc6_b"], np.float32)

    w7 = np.zeros((128, 128), np.float32)
    w7[:84, :10] = fw7.T
    b7 = np.zeros((1, 128), np.float32)
    b7[0, :10] = np.asarray(p["fc7_b"], np.float32)

    packed = dict(w1=w1, b1=b1, w3=w3, b3=b3, w5=w5, b5=b5,
                  w6=w6, b6=b6, w7=w7, b7=b7)
    return {k: jnp.asarray(v) for k, v in packed.items()}


# ----------------------------------------------------------------------------
# Fused forward pass: one pallas_call for the whole network
# ----------------------------------------------------------------------------
@jax.jit
def lenet_forward(x_nchw, pp):
    n = x_nchw.shape[0]
    n_pad = ((n + TB - 1) // TB) * TB
    x = x_nchw.reshape(n, 32, 32).astype(jnp.float32)
    if n_pad != n:
        x = jnp.concatenate(
            [x, jnp.zeros((n_pad - n, 32, 32), jnp.float32)], axis=0)
    x2 = x.reshape(n_pad * 32, 32)                    # rows = (image, row)

    out = pl.pallas_call(
        _lenet_kernel,
        out_shape=jax.ShapeDtypeStruct((n_pad, 128), jnp.float32),
        grid=(n_pad // TB,),
        in_specs=[
            pl.BlockSpec((TB * 32, 32), lambda i: (i, 0)),   # TB images
            pl.BlockSpec((160, 168), lambda i: (0, 0)),      # conv1 banded w
            pl.BlockSpec((1, 168), lambda i: (0, 0)),        # conv1 bias row
            pl.BlockSpec((840, 160), lambda i: (0, 0)),      # conv3 banded w
            pl.BlockSpec((1, 160), lambda i: (0, 0)),        # conv3 bias row
            pl.BlockSpec((800, 128), lambda i: (0, 0)),      # fc5 w (padded)
            pl.BlockSpec((1, 128), lambda i: (0, 0)),        # fc5 b
            pl.BlockSpec((128, 128), lambda i: (0, 0)),      # fc6 w (padded)
            pl.BlockSpec((1, 128), lambda i: (0, 0)),        # fc6 b
            pl.BlockSpec((128, 128), lambda i: (0, 0)),      # fc7 w (padded)
            pl.BlockSpec((1, 128), lambda i: (0, 0)),        # fc7 b
        ],
        out_specs=pl.BlockSpec((TB, 128), lambda i: (i, 0)),  # lane-dense out
        compiler_params=pltpu.CompilerParams(
            dimension_semantics=("parallel",)),
    )(x2, pp["w1"], pp["b1"], pp["w3"], pp["b3"],
      pp["w5"], pp["b5"], pp["w6"], pp["b6"], pp["w7"], pp["b7"])
    return out[:n, :10]


# ----------------------------------------------------------------------------
# Deterministic LeNet parameters (PyTorch-default-style uniform bounds)
# ----------------------------------------------------------------------------
def init_lenet_params(key):
    def uniform(key, shape, fan_in):
        bound = 1.0 / jnp.sqrt(float(fan_in))
        return jax.random.uniform(key, shape, jnp.float32, -bound, bound)

    ks = jax.random.split(key, 10)
    return {
        "conv1_w": uniform(ks[0], (6, 1, 5, 5), 1 * 5 * 5),
        "conv1_b": uniform(ks[1], (6,), 1 * 5 * 5),
        "conv3_w": uniform(ks[2], (16, 6, 5, 5), 6 * 5 * 5),
        "conv3_b": uniform(ks[3], (16,), 6 * 5 * 5),
        "fc5_w": uniform(ks[4], (120, 400), 400),
        "fc5_b": uniform(ks[5], (120,), 400),
        "fc6_w": uniform(ks[6], (84, 120), 120),
        "fc6_b": uniform(ks[7], (84,), 120),
        "fc7_w": uniform(ks[8], (10, 84), 84),
        "fc7_b": uniform(ks[9], (10,), 84),
    }


# ----------------------------------------------------------------------------
# Pure-JAX reference (mirrors PyTorch semantics) used as a built-in self-check
# ----------------------------------------------------------------------------
def _reference_forward(x_nchw, params):
    x = jnp.transpose(x_nchw, (0, 2, 3, 1)).astype(jnp.float32)

    def conv_relu(x_nhwc, w_oihw, b):
        Cout, Cin, KH, KW = w_oihw.shape
        N, H, W, C = x_nhwc.shape
        OH, OW = H - KH + 1, W - KW + 1
        patches = [x_nhwc[:, kh:kh + OH, kw:kw + OW, :]
                   for kh in range(KH) for kw in range(KW)]
        p = jnp.stack(patches, axis=3).reshape(N, OH, OW, KH, KW, C)
        p = jnp.transpose(p, (0, 1, 2, 5, 3, 4)).reshape(N * OH * OW, C * KH * KW)
        out = jnp.maximum(p @ w_oihw.reshape(Cout, -1).T + b[None, :], 0.0)
        return out.reshape(N, OH, OW, Cout)

    def pool(t):
        return jnp.maximum(
            jnp.maximum(t[:, 0::2, 0::2, :], t[:, 0::2, 1::2, :]),
            jnp.maximum(t[:, 1::2, 0::2, :], t[:, 1::2, 1::2, :]))

    x = pool(conv_relu(x, params["conv1_w"], params["conv1_b"]))
    x = pool(conv_relu(x, params["conv3_w"], params["conv3_b"]))
    x = jnp.transpose(x, (0, 3, 1, 2)).reshape(x.shape[0], -1)   # PyTorch view
    x = jnp.maximum(x @ params["fc5_w"].T + params["fc5_b"], 0.0)
    x = jnp.maximum(x @ params["fc6_w"].T + params["fc6_b"], 0.0)
    return x @ params["fc7_w"].T + params["fc7_b"]


if __name__ == "__main__":
    key = jax.random.PRNGKey(0)
    k_params, k_x = jax.random.split(key)

    params = init_lenet_params(k_params)
    pp = preprocess_params(params)            # one-time layout/band prep

    # Classic LeNet input: 1 channel, 32x32 spatial (NCHW). 32 images -> 2
    # grid steps of TB=16, so both TensorCores get work under "parallel".
    x = jax.random.normal(k_x, (32, 1, 32, 32), dtype=jnp.float32)

    out = jax.block_until_ready(lenet_forward(x, pp))
    assert out.shape == (32, 10)
    assert bool(jnp.all(jnp.isfinite(out)))

    ref = jax.block_until_ready(_reference_forward(x, params))
    # Tolerance accounts for MXU matmul accumulation/precision on the conv and
    # fc layers (all five layers now run on the MXU).
    assert jnp.allclose(out, ref, rtol=2e-2, atol=2e-2), (
        float(jnp.max(jnp.abs(out - ref))))

    print("KERNEL_OK")
</pallas_src>

<mosaic_0001>
module attributes {stable_mosaic.version = 11 : i64} {
  func.func @_lenet_kernel(%arg0: i32, %arg1: memref<512x32xf32, #tpu.memory_space<vmem>>, %arg2: memref<160x168xf32, #tpu.memory_space<vmem>>, %arg3: memref<1x168xf32, #tpu.memory_space<vmem>>, %arg4: memref<840x160xf32, #tpu.memory_space<vmem>>, %arg5: memref<1x160xf32, #tpu.memory_space<vmem>>, %arg6: memref<800x128xf32, #tpu.memory_space<vmem>>, %arg7: memref<1x128xf32, #tpu.memory_space<vmem>>, %arg8: memref<128x128xf32, #tpu.memory_space<vmem>>, %arg9: memref<1x128xf32, #tpu.memory_space<vmem>>, %arg10: memref<128x128xf32, #tpu.memory_space<vmem>>, %arg11: memref<1x128xf32, #tpu.memory_space<vmem>>, %arg12: memref<16x128xf32, #tpu.memory_space<vmem>>) attributes {dimension_semantics = [#tpu.dimension_semantics<parallel>], iteration_bounds = array<i64: 2>, scalar_prefetch = 0 : i64, scratch_operands = 0 : i64, tpu.core_type = #tpu.core_type<tc>, window_params = [{transform_indices = @transform_0, window_bounds = array<i64: 512, 32>}, {pipeline_mode = #tpu.pipeline_mode<synchronous>, transform_indices = @transform_1, window_bounds = array<i64: 160, 168>}, {pipeline_mode = #tpu.pipeline_mode<synchronous>, transform_indices = @transform_2, window_bounds = array<i64: 1, 168>}, {pipeline_mode = #tpu.pipeline_mode<synchronous>, transform_indices = @transform_3, window_bounds = array<i64: 840, 160>}, {pipeline_mode = #tpu.pipeline_mode<synchronous>, transform_indices = @transform_4, window_bounds = array<i64: 1, 160>}, {pipeline_mode = #tpu.pipeline_mode<synchronous>, transform_indices = @transform_5, window_bounds = array<i64: 800, 128>}, {pipeline_mode = #tpu.pipeline_mode<synchronous>, transform_indices = @transform_6, window_bounds = array<i64: 1, 128>}, {pipeline_mode = #tpu.pipeline_mode<synchronous>, transform_indices = @transform_7, window_bounds = array<i64: 128, 128>}, {pipeline_mode = #tpu.pipeline_mode<synchronous>, transform_indices = @transform_8, window_bounds = array<i64: 1, 128>}, {pipeline_mode = #tpu.pipeline_mode<synchronous>, transform_indices = @transform_9, window_bounds = array<i64: 128, 128>}, {pipeline_mode = #tpu.pipeline_mode<synchronous>, transform_indices = @transform_10, window_bounds = array<i64: 1, 128>}, {transform_indices = @transform_11, window_bounds = array<i64: 16, 128>}]} {
    %c0 = arith.constant 0 : index
    %c0_0 = arith.constant 0 : index
    %0 = vector.load %arg1[%c0, %c0_0] : memref<512x32xf32, #tpu.memory_space<vmem>>, vector<512x32xf32>
    %1 = vector.extract_strided_slice %0 {offsets = [1, 0], sizes = [511, 32], strides = [1, 1]} : vector<512x32xf32> to vector<511x32xf32>
    %2 = vector.extract_strided_slice %0 {offsets = [0, 0], sizes = [1, 32], strides = [1, 1]} : vector<512x32xf32> to vector<1x32xf32>
    %3 = tpu.concatenate %1, %2 in 0 : vector<511x32xf32>, vector<1x32xf32> -> vector<512x32xf32>
    %4 = vector.extract_strided_slice %0 {offsets = [2, 0], sizes = [510, 32], strides = [1, 1]} : vector<512x32xf32> to vector<510x32xf32>
    %5 = vector.extract_strided_slice %0 {offsets = [0, 0], sizes = [2, 32], strides = [1, 1]} : vector<512x32xf32> to vector<2x32xf32>
    %6 = tpu.concatenate %4, %5 in 0 : vector<510x32xf32>, vector<2x32xf32> -> vector<512x32xf32>
    %7 = vector.extract_strided_slice %0 {offsets = [3, 0], sizes = [509, 32], strides = [1, 1]} : vector<512x32xf32> to vector<509x32xf32>
    %8 = vector.extract_strided_slice %0 {offsets = [0, 0], sizes = [3, 32], strides = [1, 1]} : vector<512x32xf32> to vector<3x32xf32>
    %9 = tpu.concatenate %7, %8 in 0 : vector<509x32xf32>, vector<3x32xf32> -> vector<512x32xf32>
    %10 = vector.extract_strided_slice %0 {offsets = [4, 0], sizes = [508, 32], strides = [1, 1]} : vector<512x32xf32> to vector<508x32xf32>
    %11 = vector.extract_strided_slice %0 {offsets = [0, 0], sizes = [4, 32], strides = [1, 1]} : vector<512x32xf32> to vector<4x32xf32>
    %12 = tpu.concatenate %10, %11 in 0 : vector<508x32xf32>, vector<4x32xf32> -> vector<512x32xf32>
    %13 = tpu.concatenate %0, %3, %6, %9, %12 in 1 : vector<512x32xf32>, vector<512x32xf32>, vector<512x32xf32>, vector<512x32xf32>, vector<512x32xf32> -> vector<512x160xf32>
    %c0_1 = arith.constant 0 : index
    %c0_2 = arith.constant 0 : index
    %14 = vector.load %arg2[%c0_1, %c0_2] : memref<160x168xf32, #tpu.memory_space<vmem>>, vector<160x168xf32>
    %cst = arith.constant dense<0.000000e+00> : vector<512x168xf32>
    %15 = tpu.matmul %13, %14, %cst {dimension_numbers = #tpu.dot_dimension_numbers<[1], [0], [0], [1], [0, 0, 1, 1], [], []>} : vector<512x160xf32>, vector<160x168xf32>, vector<512x168xf32> -> vector<512x168xf32>
    %c0_3 = arith.constant 0 : index
    %c0_4 = arith.constant 0 : index
    %16 = vector.load %arg3[%c0_3, %c0_4] : memref<1x168xf32, #tpu.memory_space<vmem>>, vector<1x168xf32>
    %17 = vector.broadcast %16 : vector<1x168xf32> to vector<512x168xf32>
    %18 = arith.addf %15, %17 : vector<512x168xf32>
    %cst_5 = arith.constant 0.000000e+00 : f32
    %19 = vector.broadcast %cst_5 : f32 to vector<512x168xf32>
    %20 = arith.maximumf %18, %19 : vector<512x168xf32>
    %21 = vector.extract_strided_slice %20 {offsets = [0, 1], sizes = [512, 167], strides = [1, 1]} : vector<512x168xf32> to vector<512x167xf32>
    %22 = vector.extract_strided_slice %20 {offsets = [0, 0], sizes = [512, 1], strides = [1, 1]} : vector<512x168xf32> to vector<512x1xf32>
    %23 = tpu.concatenate %21, %22 in 1 : vector<512x167xf32>, vector<512x1xf32> -> vector<512x168xf32>
    %24 = arith.maximumf %20, %23 : vector<512x168xf32>
    %25 = vector.extract_strided_slice %24 {offsets = [1, 0], sizes = [511, 168], strides = [1, 1]} : vector<512x168xf32> to vector<511x168xf32>
    %26 = vector.extract_strided_slice %24 {offsets = [0, 0], sizes = [1, 168], strides = [1, 1]} : vector<512x168xf32> to vector<1x168xf32>
    %27 = tpu.concatenate %25, %26 in 0 : vector<511x168xf32>, vector<1x168xf32> -> vector<512x168xf32>
    %28 = arith.maximumf %24, %27 : vector<512x168xf32>
    %29 = vector.extract_strided_slice %28 {offsets = [2, 0], sizes = [510, 168], strides = [1, 1]} : vector<512x168xf32> to vector<510x168xf32>
    %30 = vector.extract_strided_slice %28 {offsets = [0, 0], sizes = [2, 168], strides = [1, 1]} : vector<512x168xf32> to vector<2x168xf32>
    %31 = tpu.concatenate %29, %30 in 0 : vector<510x168xf32>, vector<2x168xf32> -> vector<512x168xf32>
    %32 = vector.extract_strided_slice %28 {offsets = [4, 0], sizes = [508, 168], strides = [1, 1]} : vector<512x168xf32> to vector<508x168xf32>
    %33 = vector.extract_strided_slice %28 {offsets = [0, 0], sizes = [4, 168], strides = [1, 1]} : vector<512x168xf32> to vector<4x168xf32>
    %34 = tpu.concatenate %32, %33 in 0 : vector<508x168xf32>, vector<4x168xf32> -> vector<512x168xf32>
    %35 = vector.extract_strided_slice %28 {offsets = [6, 0], sizes = [506, 168], strides = [1, 1]} : vector<512x168xf32> to vector<506x168xf32>
    %36 = vector.extract_strided_slice %28 {offsets = [0, 0], sizes = [6, 168], strides = [1, 1]} : vector<512x168xf32> to vector<6x168xf32>
    %37 = tpu.concatenate %35, %36 in 0 : vector<506x168xf32>, vector<6x168xf32> -> vector<512x168xf32>
    %38 = vector.extract_strided_slice %28 {offsets = [8, 0], sizes = [504, 168], strides = [1, 1]} : vector<512x168xf32> to vector<504x168xf32>
    %39 = vector.extract_strided_slice %28 {offsets = [0, 0], sizes = [8, 168], strides = [1, 1]} : vector<512x168xf32> to vector<8x168xf32>
    %40 = tpu.concatenate %38, %39 in 0 : vector<504x168xf32>, vector<8x168xf32> -> vector<512x168xf32>
    %41 = tpu.concatenate %28, %31, %34, %37, %40 in 1 : vector<512x168xf32>, vector<512x168xf32>, vector<512x168xf32>, vector<512x168xf32>, vector<512x168xf32> -> vector<512x840xf32>
    %c0_6 = arith.constant 0 : index
    %c0_7 = arith.constant 0 : index
    %42 = vector.load %arg4[%c0_6, %c0_7] : memref<840x160xf32, #tpu.memory_space<vmem>>, vector<840x160xf32>
    %cst_8 = arith.constant dense<0.000000e+00> : vector<512x160xf32>
    %43 = tpu.matmul %41, %42, %cst_8 {dimension_numbers = #tpu.dot_dimension_numbers<[1], [0], [0], [1], [0, 0, 1, 1], [], []>} : vector<512x840xf32>, vector<840x160xf32>, vector<512x160xf32> -> vector<512x160xf32>
    %c0_9 = arith.constant 0 : index
    %c0_10 = arith.constant 0 : index
    %44 = vector.load %arg5[%c0_9, %c0_10] : memref<1x160xf32, #tpu.memory_space<vmem>>, vector<1x160xf32>
    %45 = vector.broadcast %44 : vector<1x160xf32> to vector<512x160xf32>
    %46 = arith.addf %43, %45 : vector<512x160xf32>
    %cst_11 = arith.constant 0.000000e+00 : f32
    %47 = vector.broadcast %cst_11 : f32 to vector<512x160xf32>
    %48 = arith.maximumf %46, %47 : vector<512x160xf32>
    %49 = vector.extract_strided_slice %48 {offsets = [0, 1], sizes = [512, 159], strides = [1, 1]} : vector<512x160xf32> to vector<512x159xf32>
    %50 = vector.extract_strided_slice %48 {offsets = [0, 0], sizes = [512, 1], strides = [1, 1]} : vector<512x160xf32> to vector<512x1xf32>
    %51 = tpu.concatenate %49, %50 in 1 : vector<512x159xf32>, vector<512x1xf32> -> vector<512x160xf32>
    %52 = arith.maximumf %48, %51 : vector<512x160xf32>
    %53 = vector.extract_strided_slice %52 {offsets = [2, 0], sizes = [510, 160], strides = [1, 1]} : vector<512x160xf32> to vector<510x160xf32>
    %54 = vector.extract_strided_slice %52 {offsets = [0, 0], sizes = [2, 160], strides = [1, 1]} : vector<512x160xf32> to vector<2x160xf32>
    %55 = tpu.concatenate %53, %54 in 0 : vector<510x160xf32>, vector<2x160xf32> -> vector<512x160xf32>
    %56 = arith.maximumf %52, %55 : vector<512x160xf32>
    %57 = vector.extract_strided_slice %56 {offsets = [4, 0], sizes = [508, 160], strides = [1, 1]} : vector<512x160xf32> to vector<508x160xf32>
    %58 = vector.extract_strided_slice %56 {offsets = [0, 0], sizes = [4, 160], strides = [1, 1]} : vector<512x160xf32> to vector<4x160xf32>
    %59 = tpu.concatenate %57, %58 in 0 : vector<508x160xf32>, vector<4x160xf32> -> vector<512x160xf32>
    %60 = vector.extract_strided_slice %56 {offsets = [8, 0], sizes = [504, 160], strides = [1, 1]} : vector<512x160xf32> to vector<504x160xf32>
    %61 = vector.extract_strided_slice %56 {offsets = [0, 0], sizes = [8, 160], strides = [1, 1]} : vector<512x160xf32> to vector<8x160xf32>
    %62 = tpu.concatenate %60, %61 in 0 : vector<504x160xf32>, vector<8x160xf32> -> vector<512x160xf32>
    %63 = vector.extract_strided_slice %56 {offsets = [12, 0], sizes = [500, 160], strides = [1, 1]} : vector<512x160xf32> to vector<500x160xf32>
    %64 = vector.extract_strided_slice %56 {offsets = [0, 0], sizes = [12, 160], strides = [1, 1]} : vector<512x160xf32> to vector<12x160xf32>
    %65 = tpu.concatenate %63, %64 in 0 : vector<500x160xf32>, vector<12x160xf32> -> vector<512x160xf32>
    %66 = vector.extract_strided_slice %56 {offsets = [16, 0], sizes = [496, 160], strides = [1, 1]} : vector<512x160xf32> to vector<496x160xf32>
    %67 = vector.extract_strided_slice %56 {offsets = [0, 0], sizes = [16, 160], strides = [1, 1]} : vector<512x160xf32> to vector<16x160xf32>
    %68 = tpu.concatenate %66, %67 in 0 : vector<496x160xf32>, vector<16x160xf32> -> vector<512x160xf32>
    %69 = tpu.concatenate %56, %59, %62, %65, %68 in 1 : vector<512x160xf32>, vector<512x160xf32>, vector<512x160xf32>, vector<512x160xf32>, vector<512x160xf32> -> vector<512x800xf32>
    %70 = vector.extract_strided_slice %69 {offsets = [0, 0], sizes = [1, 800], strides = [1, 1]} : vector<512x800xf32> to vector<1x800xf32>
    %71 = vector.extract_strided_slice %69 {offsets = [32, 0], sizes = [1, 800], strides = [1, 1]} : vector<512x800xf32> to vector<1x800xf32>
    %72 = vector.extract_strided_slice %69 {offsets = [64, 0], sizes = [1, 800], strides = [1, 1]} : vector<512x800xf32> to vector<1x800xf32>
    %73 = vector.extract_strided_slice %69 {offsets = [96, 0], sizes = [1, 800], strides = [1, 1]} : vector<512x800xf32> to vector<1x800xf32>
    %74 = vector.extract_strided_slice %69 {offsets = [128, 0], sizes = [1, 800], strides = [1, 1]} : vector<512x800xf32> to vector<1x800xf32>
    %75 = vector.extract_strided_slice %69 {offsets = [160, 0], sizes = [1, 800], strides = [1, 1]} : vector<512x800xf32> to vector<1x800xf32>
    %76 = vector.extract_strided_slice %69 {offsets = [192, 0], sizes = [1, 800], strides = [1, 1]} : vector<512x800xf32> to vector<1x800xf32>
    %77 = vector.extract_strided_slice %69 {offsets = [224, 0], sizes = [1, 800], strides = [1, 1]} : vector<512x800xf32> to vector<1x800xf32>
    %78 = vector.extract_strided_slice %69 {offsets = [256, 0], sizes = [1, 800], strides = [1, 1]} : vector<512x800xf32> to vector<1x800xf32>
    %79 = vector.extract_strided_slice %69 {offsets = [288, 0], sizes = [1, 800], strides = [1, 1]} : vector<512x800xf32> to vector<1x800xf32>
    %80 = vector.extract_strided_slice %69 {offsets = [320, 0], sizes = [1, 800], strides = [1, 1]} : vector<512x800xf32> to vector<1x800xf32>
    %81 = vector.extract_strided_slice %69 {offsets = [352, 0], sizes = [1, 800], strides = [1, 1]} : vector<512x800xf32> to vector<1x800xf32>
    %82 = vector.extract_strided_slice %69 {offsets = [384, 0], sizes = [1, 800], strides = [1, 1]} : vector<512x800xf32> to vector<1x800xf32>
    %83 = vector.extract_strided_slice %69 {offsets = [416, 0], sizes = [1, 800], strides = [1, 1]} : vector<512x800xf32> to vector<1x800xf32>
    %84 = vector.extract_strided_slice %69 {offsets = [448, 0], sizes = [1, 800], strides = [1, 1]} : vector<512x800xf32> to vector<1x800xf32>
    %85 = vector.extract_strided_slice %69 {offsets = [480, 0], sizes = [1, 800], strides = [1, 1]} : vector<512x800xf32> to vector<1x800xf32>
    %86 = tpu.concatenate %70, %71, %72, %73, %74, %75, %76, %77, %78, %79, %80, %81, %82, %83, %84, %85 in 0 : vector<1x800xf32>, vector<1x800xf32>, vector<1x800xf32>, vector<1x800xf32>, vector<1x800xf32>, vector<1x800xf32>, vector<1x800xf32>, vector<1x800xf32>, vector<1x800xf32>, vector<1x800xf32>, vector<1x800xf32>, vector<1x800xf32>, vector<1x800xf32>, vector<1x800xf32>, vector<1x800xf32>, vector<1x800xf32> -> vector<16x800xf32>
    %c0_12 = arith.constant 0 : index
    %c0_13 = arith.constant 0 : index
    %87 = vector.load %arg6[%c0_12, %c0_13] : memref<800x128xf32, #tpu.memory_space<vmem>>, vector<800x128xf32>
    %cst_14 = arith.constant dense<0.000000e+00> : vector<16x128xf32>
    %88 = tpu.matmul %86, %87, %cst_14 {dimension_numbers = #tpu.dot_dimension_numbers<[1], [0], [0], [1], [0, 0, 1, 1], [], []>} : vector<16x800xf32>, vector<800x128xf32>, vector<16x128xf32> -> vector<16x128xf32>
    %c0_15 = arith.constant 0 : index
    %c0_16 = arith.constant 0 : index
    %89 = vector.load %arg7[%c0_15, %c0_16] : memref<1x128xf32, #tpu.memory_space<vmem>>, vector<1x128xf32>
    %90 = vector.broadcast %89 : vector<1x128xf32> to vector<16x128xf32>
    %91 = arith.addf %88, %90 : vector<16x128xf32>
    %cst_17 = arith.constant 0.000000e+00 : f32
    %92 = vector.broadcast %cst_17 : f32 to vector<16x128xf32>
    %93 = arith.maximumf %91, %92 : vector<16x128xf32>
    %c0_18 = arith.constant 0 : index
    %c0_19 = arith.constant 0 : index
    %94 = vector.load %arg8[%c0_18, %c0_19] : memref<128x128xf32, #tpu.memory_space<vmem>>, vector<128x128xf32>
    %cst_20 = arith.constant dense<0.000000e+00> : vector<16x128xf32>
    %95 = tpu.matmul %93, %94, %cst_20 {dimension_numbers = #tpu.dot_dimension_numbers<[1], [0], [0], [1], [0, 0, 1, 1], [], []>} : vector<16x128xf32>, vector<128x128xf32>, vector<16x128xf32> -> vector<16x128xf32>
    %c0_21 = arith.constant 0 : index
    %c0_22 = arith.constant 0 : index
    %96 = vector.load %arg9[%c0_21, %c0_22] : memref<1x128xf32, #tpu.memory_space<vmem>>, vector<1x128xf32>
    %97 = vector.broadcast %96 : vector<1x128xf32> to vector<16x128xf32>
    %98 = arith.addf %95, %97 : vector<16x128xf32>
    %cst_23 = arith.constant 0.000000e+00 : f32
    %99 = vector.broadcast %cst_23 : f32 to vector<16x128xf32>
    %100 = arith.maximumf %98, %99 : vector<16x128xf32>
    %c0_24 = arith.constant 0 : index
    %c0_25 = arith.constant 0 : index
    %101 = vector.load %arg10[%c0_24, %c0_25] : memref<128x128xf32, #tpu.memory_space<vmem>>, vector<128x128xf32>
    %cst_26 = arith.constant dense<0.000000e+00> : vector<16x128xf32>
    %102 = tpu.matmul %100, %101, %cst_26 {dimension_numbers = #tpu.dot_dimension_numbers<[1], [0], [0], [1], [0, 0, 1, 1], [], []>} : vector<16x128xf32>, vector<128x128xf32>, vector<16x128xf32> -> vector<16x128xf32>
    %c0_27 = arith.constant 0 : index
    %c0_28 = arith.constant 0 : index
    %103 = vector.load %arg11[%c0_27, %c0_28] : memref<1x128xf32, #tpu.memory_space<vmem>>, vector<1x128xf32>
    %104 = vector.broadcast %103 : vector<1x128xf32> to vector<16x128xf32>
    %105 = arith.addf %102, %104 : vector<16x128xf32>
    %c0_29 = arith.constant 0 : index
    %c0_30 = arith.constant 0 : index
    %106 = vector.load %arg12[%c0_29, %c0_30] : memref<16x128xf32, #tpu.memory_space<vmem>>, vector<16x128xf32>
    tpu.vector_store %arg12[%c0_29, %c0_30], %105 {strides = array<i32>} : memref<16x128xf32, #tpu.memory_space<vmem>>, vector<16x128xf32>,
    return
  }
  func.func @transform_0(%arg0: i32) -> (i32, i32) {
    %c0_i32 = arith.constant 0 : i32
    %c0_i32_0 = arith.constant 0 : i32
    return %arg0, %c0_i32 : i32, i32
  }
  func.func @transform_1(%arg0: i32) -> (i32, i32) {
    %c0_i32 = arith.constant 0 : i32
    %c0_i32_0 = arith.constant 0 : i32
    %c0_i32_1 = arith.constant 0 : i32
    return %c0_i32, %c0_i32_0 : i32, i32
  }
  func.func @transform_2(%arg0: i32) -> (i32, i32) {
    %c0_i32 = arith.constant 0 : i32
    %c0_i32_0 = arith.constant 0 : i32
    %c0_i32_1 = arith.constant 0 : i32
    return %c0_i32, %c0_i32_0 : i32, i32
  }
  func.func @transform_3(%arg0: i32) -> (i32, i32) {
    %c0_i32 = arith.constant 0 : i32
    %c0_i32_0 = arith.constant 0 : i32
    %c0_i32_1 = arith.constant 0 : i32
    return %c0_i32, %c0_i32_0 : i32, i32
  }
  func.func @transform_4(%arg0: i32) -> (i32, i32) {
    %c0_i32 = arith.constant 0 : i32
    %c0_i32_0 = arith.constant 0 : i32
    %c0_i32_1 = arith.constant 0 : i32
    return %c0_i32, %c0_i32_0 : i32, i32
  }
  func.func @transform_5(%arg0: i32) -> (i32, i32) {
    %c0_i32 = arith.constant 0 : i32
    %c0_i32_0 = arith.constant 0 : i32
    %c0_i32_1 = arith.constant 0 : i32
    return %c0_i32, %c0_i32_0 : i32, i32
  }
  func.func @transform_6(%arg0: i32) -> (i32, i32) {
    %c0_i32 = arith.constant 0 : i32
    %c0_i32_0 = arith.constant 0 : i32
    %c0_i32_1 = arith.constant 0 : i32
    return %c0_i32, %c0_i32_0 : i32, i32
  }
  func.func @transform_7(%arg0: i32) -> (i32, i32) {
    %c0_i32 = arith.constant 0 : i32
    %c0_i32_0 = arith.constant 0 : i32
    %c0_i32_1 = arith.constant 0 : i32
    return %c0_i32, %c0_i32_0 : i32, i32
  }
  func.func @transform_8(%arg0: i32) -> (i32, i32) {
    %c0_i32 = arith.constant 0 : i32
    %c0_i32_0 = arith.constant 0 : i32
    %c0_i32_1 = arith.constant 0 : i32
    return %c0_i32, %c0_i32_0 : i32, i32
  }
  func.func @transform_9(%arg0: i32) -> (i32, i32) {
    %c0_i32 = arith.constant 0 : i32
    %c0_i32_0 = arith.constant 0 : i32
    %c0_i32_1 = arith.constant 0 : i32
    return %c0_i32, %c0_i32_0 : i32, i32
  }
  func.func @transform_10(%arg0: i32) -> (i32, i32) {
    %c0_i32 = arith.constant 0 : i32
    %c0_i32_0 = arith.constant 0 : i32
    %c0_i32_1 = arith.constant 0 : i32
    return %c0_i32, %c0_i32_0 : i32, i32
  }
  func.func @transform_11(%arg0: i32) -> (i32, i32) {
    %c0_i32 = arith.constant 0 : i32
    %c0_i32_0 = arith.constant 0 : i32
    return %arg0, %c0_i32 : i32, i32
  }
}

</mosaic_0001>

<llo_original>
// kernel: lenet_forward.1
$region0: #{lenet_forward.1}
  #allocation0 [shape = 'u32[]', space=smem, size = 0x4, offset = 0x4, fixed_abs, tag = 'smem constant byte address 0x4 - core index']
  #allocation1 [shape = 'u32[144,128]{1,0:T(1,128)}', space=vmem, size = 0x12000, scoped, tag = 'internal scratch']
  %s0 = inlined_call_operand.vmem [shape: f32[1024,32], index: 0, kind: input, shape index: {}]
  %s1 = inlined_call_operand.vmem [shape: f32[160,168], index: 1, kind: input, shape index: {}]
  %s2 = inlined_call_operand.vmem [shape: f32[1,168], index: 2, kind: input, shape index: {}]
  %s3 = inlined_call_operand.vmem [shape: f32[840,160], index: 3, kind: input, shape index: {}]
  %s4 = inlined_call_operand.vmem [shape: f32[1,160], index: 4, kind: input, shape index: {}]
  %s5 = inlined_call_operand.vmem [shape: f32[800,128], index: 5, kind: input, shape index: {}]
  %s6 = inlined_call_operand.vmem [shape: f32[1,128], index: 6, kind: input, shape index: {}]
  %s7 = inlined_call_operand.vmem [shape: f32[128,128], index: 7, kind: input, shape index: {}]
  %s8 = inlined_call_operand.vmem [shape: f32[1,128], index: 8, kind: input, shape index: {}]
  %s9 = inlined_call_operand.vmem [shape: f32[128,128], index: 9, kind: input, shape index: {}]
  %s10 = inlined_call_operand.vmem [shape: f32[1,128], index: 10, kind: input, shape index: {}]
  %s11 = inlined_call_operand.vmem [shape: f32[32,128], index: 11, kind: output, shape index: {}]
  %s12 = sld [smem:[#allocation0]]
  $region77: #{lenet_forward.1} parent=0
    _
  %s14 = ssub.s32 1, %s12
  %s15 = scalar_select 0, %s14, %s12
  loop: start=0, step=1, limit=4
  $region2: #{lenet_forward.1} parent=0 // loop_pre_header
    _
  $region3: #{lenet_forward.1} parent=0 // loop_header
    %s17 = sphi 0, %s21
    %p18 = scmp.ge.s32.totalorder %s17, 4
    %s27 = sphi 0, %s29
    %s30 = sphi 0, %s27
    %s31 = sphi 0, %s30
    %s47 = sphi 0, %s31
    %s51 = sphi 0, %s51
    %s53 = sphi 0, %s51
    %s54 = sphi 0, %s53
    %s68 = sphi 0, %s54
    %s72 = sphi 0, %s72
    %s74 = sphi 0, %s72
    %s75 = sphi 0, %s74
    %s89 = sphi 0, %s75
    %s93 = sphi 0, %s93
    %s95 = sphi 0, %s93
    %s96 = sphi 0, %s95
    %s110 = sphi 0, %s96
    %s114 = sphi 0, %s114
    %s116 = sphi 0, %s114
    %s117 = sphi 0, %s116
    %s131 = sphi 0, %s117
    %s135 = sphi 0, %s135
    %s137 = sphi 0, %s135
    %s138 = sphi 0, %s137
    %s152 = sphi 0, %s138
    %s156 = sphi 0, %s156
    %s158 = sphi 0, %s156
    %s159 = sphi 0, %s158
    %s173 = sphi 0, %s159
    %s177 = sphi 0, %s177
    %s179 = sphi 0, %s177
    %s180 = sphi 0, %s179
    %s194 = sphi 0, %s180
    %s198 = sphi 0, %s198
    %s200 = sphi 0, %s198
    %s201 = sphi 0, %s200
    %s215 = sphi 0, %s201
    %s219 = sphi 0, %s219
    %s221 = sphi 0, %s219
    %s222 = sphi 0, %s221
    %s236 = sphi 0, %s222
    %s240 = sphi 0, %s240
    %s242 = sphi 0, %s240
    %s243 = sphi 0, %s242
    %s257 = sphi 0, %s243
    %s263 = sphi 0, %s265
    %s266 = sphi 0, %s263
    %s267 = sphi 0, %s266
    %s283 = sphi 0, %s267
  $region4: #{lenet_forward.1} parent=0 // loop_header_branch
    %20 = sbr.rel (%p18) target = $region8
  $region5: #{lenet_forward.1} parent=0 // loop_body
    %s22 = ssub.s32 %s17, 1
    %s23 = ssub.s32 %s17, 2
    %s24 = sadd.s32 %s17, 1
    %s25 = ssub.s32 %s17, %s24
    %p26 = scmp.eq.s32.totalorder %s25, 0
    %s28 = sadd.s32 %s27, 1
    %s29 = scalar_select %p26, %s27, %s28
    %p32 = pneg %p26
    %p33 = scmp.eq.s32.totalorder %s17, 1
    %p34 = por %p32, %p33
    %p35 = scmp.ne.s32.totalorder %s27, %s30
    %p36 = scmp.eq.s32.totalorder %s17, 0
    %p37 = por %p35, %p36
    %p38 = scmp.ne.s32.totalorder %s27, %s30
    %p39 = scmp.eq.s32.totalorder %s22, 1
    %p40 = por %p38, %p39
    %p41 = scmp.ne.s32.totalorder %s30, %s31
    %p42 = scmp.eq.s32.totalorder %s22, 0
    %p43 = por %p41, %p42
    %p44 = scmp.ne.s32.totalorder %s30, %s31
    %p45 = scmp.eq.s32.totalorder %s23, 1
    %p46 = por %p44, %p45
    %p48 = scmp.ne.s32.totalorder %s31, %s47
    %p49 = scmp.eq.s32.totalorder %s23, 0
    %p50 = por %p48, %p49
    %s52 = sadd.s32 %s51, 1
    %p55 = scmp.eq.s32.totalorder %s17, 1
    %p56 = scmp.ne.s32.totalorder %s51, %s53
    %p57 = scmp.eq.s32.totalorder %s17, 0
    %p58 = por %p56, %p57
    %p59 = scmp.ne.s32.totalorder %s51, %s53
    %p60 = scmp.eq.s32.totalorder %s22, 1
    %p61 = por %p59, %p60
    %p62 = scmp.ne.s32.totalorder %s53, %s54
    %p63 = scmp.eq.s32.totalorder %s22, 0
    %p64 = por %p62, %p63
    %p65 = scmp.ne.s32.totalorder %s53, %s54
    %p66 = scmp.eq.s32.totalorder %s23, 1
    %p67 = por %p65, %p66
    %p69 = scmp.ne.s32.totalorder %s54, %s68
    %p70 = scmp.eq.s32.totalorder %s23, 0
    %p71 = por %p69, %p70
    %s73 = sadd.s32 %s72, 1
    %p76 = scmp.eq.s32.totalorder %s17, 1
    %p77 = scmp.ne.s32.totalorder %s72, %s74
    %p78 = scmp.eq.s32.totalorder %s17, 0
    %p79 = por %p77, %p78
    %p80 = scmp.ne.s32.totalorder %s72, %s74
    %p81 = scmp.eq.s32.totalorder %s22, 1
    %p82 = por %p80, %p81
    %p83 = scmp.ne.s32.totalorder %s74, %s75
    %p84 = scmp.eq.s32.totalorder %s22, 0
    %p85 = por %p83, %p84
    %p86 = scmp.ne.s32.totalorder %s74, %s75
    %p87 = scmp.eq.s32.totalorder %s23, 1
    %p88 = por %p86, %p87
    %p90 = scmp.ne.s32.totalorder %s75, %s89
    %p91 = scmp.eq.s32.totalorder %s23, 0
    %p92 = por %p90, %p91
    %s94 = sadd.s32 %s93, 1
    %p97 = scmp.eq.s32.totalorder %s17, 1
    %p98 = scmp.ne.s32.totalorder %s93, %s95
    %p99 = scmp.eq.s32.totalorder %s17, 0
    %p100 = por %p98, %p99
    %p101 = scmp.ne.s32.totalorder %s93, %s95
    %p102 = scmp.eq.s32.totalorder %s22, 1
    %p103 = por %p101, %p102
    %p104 = scmp.ne.s32.totalorder %s95, %s96
    %p105 = scmp.eq.s32.totalorder %s22, 0
    %p106 = por %p104, %p105
    %p107 = scmp.ne.s32.totalorder %s95, %s96
    %p108 = scmp.eq.s32.totalorder %s23, 1
    %p109 = por %p107, %p108
    %p111 = scmp.ne.s32.totalorder %s96, %s110
    %p112 = scmp.eq.s32.totalorder %s23, 0
    %p113 = por %p111, %p112
    %s115 = sadd.s32 %s114, 1
    %p118 = scmp.eq.s32.totalorder %s17, 1
    %p119 = scmp.ne.s32.totalorder %s114, %s116
    %p120 = scmp.eq.s32.totalorder %s17, 0
    %p121 = por %p119, %p120
    %p122 = scmp.ne.s32.totalorder %s114, %s116
    %p123 = scmp.eq.s32.totalorder %s22, 1
    %p124 = por %p122, %p123
    %p125 = scmp.ne.s32.totalorder %s116, %s117
    %p126 = scmp.eq.s32.totalorder %s22, 0
    %p127 = por %p125, %p126
    %p128 = scmp.ne.s32.totalorder %s116, %s117
    %p129 = scmp.eq.s32.totalorder %s23, 1
    %p130 = por %p128, %p129
    %p132 = scmp.ne.s32.totalorder %s117, %s131
    %p133 = scmp.eq.s32.totalorder %s23, 0
    %p134 = por %p132, %p133
    %s136 = sadd.s32 %s135, 1
    %p139 = scmp.eq.s32.totalorder %s17, 1
    %p140 = scmp.ne.s32.totalorder %s135, %s137
    %p141 = scmp.eq.s32.totalorder %s17, 0
    %p142 = por %p140, %p141
    %p143 = scmp.ne.s32.totalorder %s135, %s137
    %p144 = scmp.eq.s32.totalorder %s22, 1
    %p145 = por %p143, %p144
    %p146 = scmp.ne.s32.totalorder %s137, %s138
    %p147 = scmp.eq.s32.totalorder %s22, 0
    %p148 = por %p146, %p147
    %p149 = scmp.ne.s32.totalorder %s137, %s138
    %p150 = scmp.eq.s32.totalorder %s23, 1
    %p151 = por %p149, %p150
    %p153 = scmp.ne.s32.totalorder %s138, %s152
    %p154 = scmp.eq.s32.totalorder %s23, 0
    %p155 = por %p153, %p154
    %s157 = sadd.s32 %s156, 1
    %p160 = scmp.eq.s32.totalorder %s17, 1
    %p161 = scmp.ne.s32.totalorder %s156, %s158
    %p162 = scmp.eq.s32.totalorder %s17, 0
    %p163 = por %p161, %p162
    %p164 = scmp.ne.s32.totalorder %s156, %s158
    %p165 = scmp.eq.s32.totalorder %s22, 1
    %p166 = por %p164, %p165
    %p167 = scmp.ne.s32.totalorder %s158, %s159
    %p168 = scmp.eq.s32.totalorder %s22, 0
    %p169 = por %p167, %p168
    %p170 = scmp.ne.s32.totalorder %s158, %s159
    %p171 = scmp.eq.s32.totalorder %s23, 1
    %p172 = por %p170, %p171
    %p174 = scmp.ne.s32.totalorder %s159, %s173
    %p175 = scmp.eq.s32.totalorder %s23, 0
    %p176 = por %p174, %p175
    %s178 = sadd.s32 %s177, 1
    %p181 = scmp.eq.s32.totalorder %s17, 1
    %p182 = scmp.ne.s32.totalorder %s177, %s179
    %p183 = scmp.eq.s32.totalorder %s17, 0
    %p184 = por %p182, %p183
    %p185 = scmp.ne.s32.totalorder %s177, %s179
    %p186 = scmp.eq.s32.totalorder %s22, 1
    %p187 = por %p185, %p186
    %p188 = scmp.ne.s32.totalorder %s179, %s180
    %p189 = scmp.eq.s32.totalorder %s22, 0
    %p190 = por %p188, %p189
    %p191 = scmp.ne.s32.totalorder %s179, %s180
    %p192 = scmp.eq.s32.totalorder %s23, 1
    %p193 = por %p191, %p192
    %p195 = scmp.ne.s32.totalorder %s180, %s194
    %p196 = scmp.eq.s32.totalorder %s23, 0
    %p197 = por %p195, %p196
    %s199 = sadd.s32 %s198, 1
    %p202 = scmp.eq.s32.totalorder %s17, 1
    %p203 = scmp.ne.s32.totalorder %s198, %s200
    %p204 = scmp.eq.s32.totalorder %s17, 0
    %p205 = por %p203, %p204
    %p206 = scmp.ne.s32.totalorder %s198, %s200
    %p207 = scmp.eq.s32.totalorder %s22, 1
    %p208 = por %p206, %p207
    %p209 = scmp.ne.s32.totalorder %s200, %s201
    %p210 = scmp.eq.s32.totalorder %s22, 0
    %p211 = por %p209, %p210
    %p212 = scmp.ne.s32.totalorder %s200, %s201
    %p213 = scmp.eq.s32.totalorder %s23, 1
    %p214 = por %p212, %p213
    %p216 = scmp.ne.s32.totalorder %s201, %s215
    %p217 = scmp.eq.s32.totalorder %s23, 0
    %p218 = por %p216, %p217
    %s220 = sadd.s32 %s219, 1
    %p223 = scmp.eq.s32.totalorder %s17, 1
    %p224 = scmp.ne.s32.totalorder %s219, %s221
    %p225 = scmp.eq.s32.totalorder %s17, 0
    %p226 = por %p224, %p225
    %p227 = scmp.ne.s32.totalorder %s219, %s221
    %p228 = scmp.eq.s32.totalorder %s22, 1
    %p229 = por %p227, %p228
    %p230 = scmp.ne.s32.totalorder %s221, %s222
    %p231 = scmp.eq.s32.totalorder %s22, 0
    %p232 = por %p230, %p231
    %p233 = scmp.ne.s32.totalorder %s221, %s222
    %p234 = scmp.eq.s32.totalorder %s23, 1
    %p235 = por %p233, %p234
    %p237 = scmp.ne.s32.totalorder %s222, %s236
    %p238 = scmp.eq.s32.totalorder %s23, 0
    %p239 = por %p237, %p238
    %s241 = sadd.s32 %s240, 1
    %p244 = scmp.eq.s32.totalorder %s17, 1
    %p245 = scmp.ne.s32.totalorder %s240, %s242
    %p246 = scmp.eq.s32.totalorder %s17, 0
    %p247 = por %p245, %p246
    %p248 = scmp.ne.s32.totalorder %s240, %s242
    %p249 = scmp.eq.s32.totalorder %s22, 1
    %p250 = por %p248, %p249
    %p251 = scmp.ne.s32.totalorder %s242, %s243
    %p252 = scmp.eq.s32.totalorder %s22, 0
    %p253 = por %p251, %p252
    %p254 = scmp.ne.s32.totalorder %s242, %s243
    %p255 = scmp.eq.s32.totalorder %s23, 1
    %p256 = por %p254, %p255
    %p258 = scmp.ne.s32.totalorder %s243, %s257
    %p259 = scmp.eq.s32.totalorder %s23, 0
    %p260 = por %p258, %p259
    %s261 = ssub.s32 %s17, %s24
    %p262 = scmp.eq.s32.totalorder %s261, 0
    %s264 = sadd.s32 %s263, 1
    %s265 = scalar_select %p262, %s263, %s264
    %p268 = pneg %p262
    %p269 = scmp.eq.s32.totalorder %s17, 1
    %p270 = por %p268, %p269
    %p271 = scmp.ne.s32.totalorder %s263, %s266
    %p272 = scmp.eq.s32.totalorder %s17, 0
    %p273 = por %p271, %p272
    %p274 = scmp.ne.s32.totalorder %s263, %s266
    %p275 = scmp.eq.s32.totalorder %s22, 1
    %p276 = por %p274, %p275
    %p277 = scmp.ne.s32.totalorder %s266, %s267
    %p278 = scmp.eq.s32.totalorder %s22, 0
    %p279 = por %p277, %p278
    %p280 = scmp.ne.s32.totalorder %s266, %s267
    %p281 = scmp.eq.s32.totalorder %s23, 1
    %p282 = por %p280, %p281
    %p284 = scmp.ne.s32.totalorder %s267, %s283
    %p285 = scmp.eq.s32.totalorder %s23, 0
    %p286 = por %p284, %p285
    %p287 = scmp.le.s32.totalorder 1, %s17
    %p288 = scmp.lt.s32.totalorder %s17, 3
    %p289 = pnand %p287, %p288
    %p290 = pneg %p289
    // Predicated region
    $region9: #{lenet_forward.1} parent=5 // pred_check
      _
    $region10: #{lenet_forward.1} parent=5 // pred_check_branch
      %292 = sbr.rel (%p289) target = $region12
    $region11: #{lenet_forward.1} parent=5 // pred_region
      %s293 = ssub.s32 %s17, 1
      // Predicated region
      $region13: #{lenet_forward.1} parent=11 // pred_check
        %p294 = pneg %p64
      $region14: #{lenet_forward.1} parent=11 // pred_check_branch
        %296 = sbr.rel (%p294) target = $region16
      $region15: #{lenet_forward.1} parent=11 // pred_region
        _
      $region16: #{lenet_forward.1} parent=11 // pred_fallthru
        _
      // Predicated region
      $region17: #{lenet_forward.1} parent=11 // pred_check
        %p297 = pneg %p85
      $region18: #{lenet_forward.1} parent=11 // pred_check_branch
        %299 = sbr.rel (%p297) target = $region20
      $region19: #{lenet_forward.1} parent=11 // pred_region
        _
      $region20: #{lenet_forward.1} parent=11 // pred_fallthru
        _
      // Predicated region
      $region21: #{lenet_forward.1} parent=11 // pred_check
        %p300 = pneg %p106
      $region22: #{lenet_forward.1} parent=11 // pred_check_branch
        %302 = sbr.rel (%p300) target = $region24
      $region23: #{lenet_forward.1} parent=11 // pred_region
        _
      $region24: #{lenet_forward.1} parent=11 // pred_fallthru
        _
      // Predicated region
      $region25: #{lenet_forward.1} parent=11 // pred_check
        %p303 = pneg %p127
      $region26: #{lenet_forward.1} parent=11 // pred_check_branch
        %305 = sbr.rel (%p303) target = $region28
      $region27: #{lenet_forward.1} parent=11 // pred_region
        _
      $region28: #{lenet_forward.1} parent=11 // pred_fallthru
        _
      // Predicated region
      $region29: #{lenet_forward.1} parent=11 // pred_check
        %p306 = pneg %p148
      $region30: #{lenet_forward.1} parent=11 // pred_check_branch
        %308 = sbr.rel (%p306) target = $region32
      $region31: #{lenet_forward.1} parent=11 // pred_region
        _
      $region32: #{lenet_forward.1} parent=11 // pred_fallthru
        _
      // Predicated region
      $region33: #{lenet_forward.1} parent=11 // pred_check
        %p309 = pneg %p169
      $region34: #{lenet_forward.1} parent=11 // pred_check_branch
        %311 = sbr.rel (%p309) target = $region36
      $region35: #{lenet_forward.1} parent=11 // pred_region
        _
      $region36: #{lenet_forward.1} parent=11 // pred_fallthru
        _
      // Predicated region
      $region37: #{lenet_forward.1} parent=11 // pred_check
        %p312 = pneg %p190
      $region38: #{lenet_forward.1} parent=11 // pred_check_branch
        %314 = sbr.rel (%p312) target = $region40
      $region39: #{lenet_forward.1} parent=11 // pred_region
        _
      $region40: #{lenet_forward.1} parent=11 // pred_fallthru
        _
      // Predicated region
      $region41: #{lenet_forward.1} parent=11 // pred_check
        %p315 = pneg %p211
      $region42: #{lenet_forward.1} parent=11 // pred_check_branch
        %317 = sbr.rel (%p315) target = $region44
      $region43: #{lenet_forward.1} parent=11 // pred_region
        _
      $region44: #{lenet_forward.1} parent=11 // pred_fallthru
        _
      // Predicated region
      $region45: #{lenet_forward.1} parent=11 // pred_check
        %p318 = pneg %p232
      $region46: #{lenet_forward.1} parent=11 // pred_check_branch
        %320 = sbr.rel (%p318) target = $region48
      $region47: #{lenet_forward.1} parent=11 // pred_region
        _
      $region48: #{lenet_forward.1} parent=11 // pred_fallthru
        _
      // Predicated region
      $region49: #{lenet_forward.1} parent=11 // pred_check
        %p321 = pneg %p253
      $region50: #{lenet_forward.1} parent=11 // pred_check_branch
        %323 = sbr.rel (%p321) target = $region52
      $region51: #{lenet_forward.1} parent=11 // pred_region
        _
      $region52: #{lenet_forward.1} parent=11 // pred_fallthru
        _
    $region12: #{lenet_forward.1} parent=5 // pred_fallthru
      _
    %p324 = scmp.lt.s32.totalorder %s17, 2
    // Predicated region
    $region53: #{lenet_forward.1} parent=5 // pred_check
      %p325 = pneg %p324
    $region54: #{lenet_forward.1} parent=5 // pred_check_branch
      %327 = sbr.rel (%p325) target = $region56
    $region55: #{lenet_forward.1} parent=5 // pred_region
      // Predicated region
      $region57: #{lenet_forward.1} parent=55 // pred_check
        %p328 = pneg %p37
      $region58: #{lenet_forward.1} parent=55 // pred_check_branch
        %330 = sbr.rel (%p328) target = $region60
      $region59: #{lenet_forward.1} parent=55 // pred_region
        %s331 = smul.u32 64, %s17
        %p332 = scmp.lt.s32.totalorder %s331, 127
        %s333 = scalar_select %p332, %s331, 127
        %s334 = smul.addr %s333, 8
        %s335 = scalar_lea.vmem %s0, %s334
        %s336 = smul.u32 64, %s17
      $region60: #{lenet_forward.1} parent=55 // pred_fallthru
        _
    $region56: #{lenet_forward.1} parent=5 // pred_fallthru
      _
    %p337 = scmp.le.s32.totalorder 1, %s17
    %p338 = scmp.lt.s32.totalorder %s17, 3
    %p339 = pnand %p337, %p338
    %p340 = pneg %p339
    // Predicated region
    $region61: #{lenet_forward.1} parent=5 // pred_check
      _
    $region62: #{lenet_forward.1} parent=5 // pred_check_branch
      %342 = sbr.rel (%p339) target = $region64
    $region63: #{lenet_forward.1} parent=5 // pred_region
      %s343 = ssub.s32 %s17, 1
      %s344 = smul.u32 64, %s22
      %p345 = scmp.lt.s32.totalorder %s344, 127
      %s346 = scalar_select %p345, %s344, 127
      %s347 = smul.addr %s346, 8
      %s348 = scalar_lea.vmem %s0, %s347
      %p349 = pneg %p43
      %p350 = pneg %p40
      %p351 = pneg %p64
      %p352 = pneg %p61
      %p353 = pneg %p85
      %p354 = pneg %p82
      %p355 = pneg %p106
      %p356 = pneg %p103
      %p357 = pneg %p127
      %p358 = pneg %p124
      %p359 = pneg %p148
      %p360 = pneg %p145
      %p361 = pneg %p169
      %p362 = pneg %p166
      %p363 = pneg %p190
      %p364 = pneg %p187
      %p365 = pneg %p211
      %p366 = pneg %p208
      %p367 = pneg %p232
      %p368 = pneg %p229
      %p369 = pneg %p253
      %p370 = pneg %p250
      %p371 = pneg %p279
      %p372 = pneg %p276
      %s373 = smul.u32 2, %s22
      %p374 = scmp.lt.s32.totalorder %s373, 3
      %s375 = scalar_select %p374, %s373, 3
      %s376 = smul.addr %s375, 8
      %s377 = scalar_lea.vmem %s11, %s376
      %s378 = smul.u32 64, %s22
      %p379 = scmp.lt.s32.totalorder %s378, 127
      %s380 = scalar_select %p379, %s378, 127
      %s381 = smul.addr %s380, 8
      %s382 = scalar_lea.vmem %s0, %s381
      %s383 = smul.u32 64, %s22
      %s384 = smul.u32 2, %s22
      %p385 = scmp.lt.s32.totalorder %s384, 3
      %s386 = scalar_select %p385, %s384, 3
      %s387 = smul.addr %s386, 8
      %s388 = scalar_lea.vmem %s11, %s387
      %s389 = smul.u32 2, %s22
      %v390 = vld [vmem:[%s382] sm:$0xff]
      %v391 = vld [vmem:[%s382 + $0x8] sm:$0xff]
      %v392 = vld [vmem:[%s382 + $0x10] sm:$0xff]
      %v393 = vld [vmem:[%s382 + $0x18] sm:$0xff]
      %v394 = vld [vmem:[%s382 + $0x20] sm:$0xff]
      %v395 = vld [vmem:[%s382 + $0x28] sm:$0xff]
      %v396 = vld [vmem:[%s382 + $0x30] sm:$0xff]
      %v397 = vld [vmem:[%s382 + $0x38] sm:$0xff]
      %v398 = vld [vmem:[%s382 + $0x40] sm:$0xff]
      %v399 = vld [vmem:[%s382 + $0x48] sm:$0xff]
      %v400 = vld [vmem:[%s382 + $0x50] sm:$0xff]
      %v401 = vld [vmem:[%s382 + $0x58] sm:$0xff]
      %v402 = vld [vmem:[%s382 + $0x60] sm:$0xff]
      %v403 = vld [vmem:[%s382 + $0x68] sm:$0xff]
      %v404 = vld [vmem:[%s382 + $0x70] sm:$0xff]
      %v405 = vld [vmem:[%s382 + $0x78] sm:$0xff]
      %v406 = vld [vmem:[%s382 + $0x80] sm:$0xff]
      %v407 = vld [vmem:[%s382 + $0x88] sm:$0xff]
      %v408 = vld [vmem:[%s382 + $0x90] sm:$0xff]
      %v409 = vld [vmem:[%s382 + $0x98] sm:$0xff]
      %v410 = vld [vmem:[%s382 + $0xa0] sm:$0xff]
      %v411 = vld [vmem:[%s382 + $0xa8] sm:$0xff]
      %v412 = vld [vmem:[%s382 + $0xb0] sm:$0xff]
      %v413 = vld [vmem:[%s382 + $0xb8] sm:$0xff]
      %v414 = vld [vmem:[%s382 + $0xc0] sm:$0xff]
      %v415 = vld [vmem:[%s382 + $0xc8] sm:$0xff]
      %v416 = vld [vmem:[%s382 + $0xd0] sm:$0xff]
      %v417 = vld [vmem:[%s382 + $0xd8] sm:$0xff]
      %v418 = vld [vmem:[%s382 + $0xe0] sm:$0xff]
      %v419 = vld [vmem:[%s382 + $0xe8] sm:$0xff]
      %v420 = vld [vmem:[%s382 + $0xf0] sm:$0xff]
      %v421 = vld [vmem:[%s382 + $0xf8] sm:$0xff]
      %v422 = vld [vmem:[%s382 + $0x100] sm:$0xff]
      %v423 = vld [vmem:[%s382 + $0x108] sm:$0xff]
      %v424 = vld [vmem:[%s382 + $0x110] sm:$0xff]
      %v425 = vld [vmem:[%s382 + $0x118] sm:$0xff]
      %v426 = vld [vmem:[%s382 + $0x120] sm:$0xff]
      %v427 = vld [vmem:[%s382 + $0x128] sm:$0xff]
      %v428 = vld [vmem:[%s382 + $0x130] sm:$0xff]
      %v429 = vld [vmem:[%s382 + $0x138] sm:$0xff]
      %v430 = vld [vmem:[%s382 + $0x140] sm:$0xff]
      %v431 = vld [vmem:[%s382 + $0x148] sm:$0xff]
      %v432 = vld [vmem:[%s382 + $0x150] sm:$0xff]
      %v433 = vld [vmem:[%s382 + $0x158] sm:$0xff]
      %v434 = vld [vmem:[%s382 + $0x160] sm:$0xff]
      %v435 = vld [vmem:[%s382 + $0x168] sm:$0xff]
      %v436 = vld [vmem:[%s382 + $0x170] sm:$0xff]
      %v437 = vld [vmem:[%s382 + $0x178] sm:$0xff]
      %v438 = vld [vmem:[%s382 + $0x180] sm:$0xff]
      %v439 = vld [vmem:[%s382 + $0x188] sm:$0xff]
      %v440 = vld [vmem:[%s382 + $0x190] sm:$0xff]
      %v441 = vld [vmem:[%s382 + $0x198] sm:$0xff]
      %v442 = vld [vmem:[%s382 + $0x1a0] sm:$0xff]
      %v443 = vld [vmem:[%s382 + $0x1a8] sm:$0xff]
      %v444 = vld [vmem:[%s382 + $0x1b0] sm:$0xff]
      %v445 = vld [vmem:[%s382 + $0x1b8] sm:$0xff]
      %v446 = vld [vmem:[%s382 + $0x1c0] sm:$0xff]
      %v447 = vld [vmem:[%s382 + $0x1c8] sm:$0xff]
      %v448 = vld [vmem:[%s382 + $0x1d0] sm:$0xff]
      %v449 = vld [vmem:[%s382 + $0x1d8] sm:$0xff]
      %v450 = vld [vmem:[%s382 + $0x1e0] sm:$0xff]
      %v451 = vld [vmem:[%s382 + $0x1e8] sm:$0xff]
      %v452 = vld [vmem:[%s382 + $0x1f0] sm:$0xff]
      %v453 = vld [vmem:[%s382 + $0x1f8] sm:$0xff]
      %vm518 = vcmask 1046528
      %v519 = vrot.slane %v390, 1
      %v520 = vrot.slane %v391, 1
      %v521 = vsel %vm518, %v519, %v520
      %v522 = vrot.slane %v392, 1
      %v523 = vsel %vm518, %v520, %v522
      %v524 = vrot.slane %v393, 1
      %v525 = vsel %vm518, %v522, %v524
      %v526 = vrot.slane %v394, 1
      %v527 = vsel %vm518, %v524, %v526
      %v528 = vrot.slane %v395, 1
      %v529 = vsel %vm518, %v526, %v528
      %v530 = vrot.slane %v396, 1
      %v531 = vsel %vm518, %v528, %v530
      %v532 = vrot.slane %v397, 1
      %v533 = vsel %vm518, %v530, %v532
      %v534 = vrot.slane %v398, 1
      %v535 = vsel %vm518, %v532, %v534
      %v536 = vrot.slane %v399, 1
      %v537 = vsel %vm518, %v534, %v536
      %v538 = vrot.slane %v400, 1
      %v539 = vsel %vm518, %v536, %v538
      %v540 = vrot.slane %v401, 1
      %v541 = vsel %vm518, %v538, %v540
      %v542 = vrot.slane %v402, 1
      %v543 = vsel %vm518, %v540, %v542
      %v544 = vrot.slane %v403, 1
      %v545 = vsel %vm518, %v542, %v544
      %v546 = vrot.slane %v404, 1
      %v547 = vsel %vm518, %v544, %v546
      %v548 = vrot.slane %v405, 1
      %v549 = vsel %vm518, %v546, %v548
      %v550 = vrot.slane %v406, 1
      %v551 = vsel %vm518, %v548, %v550
      %v552 = vrot.slane %v407, 1
      %v553 = vsel %vm518, %v550, %v552
      %v554 = vrot.slane %v408, 1
      %v555 = vsel %vm518, %v552, %v554
      %v556 = vrot.slane %v409, 1
      %v557 = vsel %vm518, %v554, %v556
      %v558 = vrot.slane %v410, 1
      %v559 = vsel %vm518, %v556, %v558
      %v560 = vrot.slane %v411, 1
      %v561 = vsel %vm518, %v558, %v560
      %v562 = vrot.slane %v412, 1
      %v563 = vsel %vm518, %v560, %v562
      %v564 = vrot.slane %v413, 1
      %v565 = vsel %vm518, %v562, %v564
      %v566 = vrot.slane %v414, 1
      %v567 = vsel %vm518, %v564, %v566
      %v568 = vrot.slane %v415, 1
      %v569 = vsel %vm518, %v566, %v568
      %v570 = vrot.slane %v416, 1
      %v571 = vsel %vm518, %v568, %v570
      %v572 = vrot.slane %v417, 1
      %v573 = vsel %vm518, %v570, %v572
      %v574 = vrot.slane %v418, 1
      %v575 = vsel %vm518, %v572, %v574
      %v576 = vrot.slane %v419, 1
      %v577 = vsel %vm518, %v574, %v576
      %v578 = vrot.slane %v420, 1
      %v579 = vsel %vm518, %v576, %v578
      %v580 = vrot.slane %v421, 1
      %v581 = vsel %vm518, %v578, %v580
      %v582 = vrot.slane %v422, 1
      %v583 = vsel %vm518, %v580, %v582
      %v584 = vrot.slane %v423, 1
      %v585 = vsel %vm518, %v582, %v584
      %v586 = vrot.slane %v424, 1
      %v587 = vsel %vm518, %v584, %v586
      %v588 = vrot.slane %v425, 1
      %v589 = vsel %vm518, %v586, %v588
      %v590 = vrot.slane %v426, 1
      %v591 = vsel %vm518, %v588, %v590
      %v592 = vrot.slane %v427, 1
      %v593 = vsel %vm518, %v590, %v592
      %v594 = vrot.slane %v428, 1
      %v595 = vsel %vm518, %v592, %v594
      %v596 = vrot.slane %v429, 1
      %v597 = vsel %vm518, %v594, %v596
      %v598 = vrot.slane %v430, 1
      %v599 = vsel %vm518, %v596, %v598
      %v600 = vrot.slane %v431, 1
      %v601 = vsel %vm518, %v598, %v600
      %v602 = vrot.slane %v432, 1
      %v603 = vsel %vm518, %v600, %v602
      %v604 = vrot.slane %v433, 1
      %v605 = vsel %vm518, %v602, %v604
      %v606 = vrot.slane %v434, 1
      %v607 = vsel %vm518, %v604, %v606
      %v608 = vrot.slane %v435, 1
      %v609 = vsel %vm518, %v606, %v608
      %v610 = vrot.slane %v436, 1
      %v611 = vsel %vm518, %v608, %v610
      %v612 = vrot.slane %v437, 1
      %v613 = vsel %vm518, %v610, %v612
      %v614 = vrot.slane %v438, 1
      %v615 = vsel %vm518, %v612, %v614
      %v616 = vrot.slane %v439, 1
      %v617 = vsel %vm518, %v614, %v616
      %v618 = vrot.slane %v440, 1
      %v619 = vsel %vm518, %v616, %v618
      %v620 = vrot.slane %v441, 1
      %v621 = vsel %vm518, %v618, %v620
      %v622 = vrot.slane %v442, 1
      %v623 = vsel %vm518, %v620, %v622
      %v624 = vrot.slane %v443, 1
      %v625 = vsel %vm518, %v622, %v624
      %v626 = vrot.slane %v444, 1
      %v627 = vsel %vm518, %v624, %v626
      %v628 = vrot.slane %v445, 1
      %v629 = vsel %vm518, %v626, %v628
      %v630 = vrot.slane %v446, 1
      %v631 = vsel %vm518, %v628, %v630
      %v632 = vrot.slane %v447, 1
      %v633 = vsel %vm518, %v630, %v632
      %v634 = vrot.slane %v448, 1
      %v635 = vsel %vm518, %v632, %v634
      %v636 = vrot.slane %v449, 1
      %v637 = vsel %vm518, %v634, %v636
      %v638 = vrot.slane %v450, 1
      %v639 = vsel %vm518, %v636, %v638
      %v640 = vrot.slane %v451, 1
      %v641 = vsel %vm518, %v638, %v640
      %v642 = vrot.slane %v452, 1
      %v643 = vsel %vm518, %v640, %v642
      %v644 = vrot.slane %v453, 1
      %v645 = vsel %vm518, %v642, %v644
      %v648 = vsel %vm518, %v644, %v519
      %vm649 = vcmask 1045504
      %v650 = vrot.slane %v390, 2
      %v651 = vrot.slane %v391, 2
      %v652 = vsel %vm649, %v650, %v651
      %v653 = vrot.slane %v392, 2
      %v654 = vsel %vm649, %v651, %v653
      %v655 = vrot.slane %v393, 2
      %v656 = vsel %vm649, %v653, %v655
      %v657 = vrot.slane %v394, 2
      %v658 = vsel %vm649, %v655, %v657
      %v659 = vrot.slane %v395, 2
      %v660 = vsel %vm649, %v657, %v659
      %v661 = vrot.slane %v396, 2
      %v662 = vsel %vm649, %v659, %v661
      %v663 = vrot.slane %v397, 2
      %v664 = vsel %vm649, %v661, %v663
      %v665 = vrot.slane %v398, 2
      %v666 = vsel %vm649, %v663, %v665
      %v667 = vrot.slane %v399, 2
      %v668 = vsel %vm649, %v665, %v667
      %v669 = vrot.slane %v400, 2
      %v670 = vsel %vm649, %v667, %v669
      %v671 = vrot.slane %v401, 2
      %v672 = vsel %vm649, %v669, %v671
      %v673 = vrot.slane %v402, 2
      %v674 = vsel %vm649, %v671, %v673
      %v675 = vrot.slane %v403, 2
      %v676 = vsel %vm649, %v673, %v675
      %v677 = vrot.slane %v404, 2
      %v678 = vsel %vm649, %v675, %v677
      %v679 = vrot.slane %v405, 2
      %v680 = vsel %vm649, %v677, %v679
      %v681 = vrot.slane %v406, 2
      %v682 = vsel %vm649, %v679, %v681
      %v683 = vrot.slane %v407, 2
      %v684 = vsel %vm649, %v681, %v683
      %v685 = vrot.slane %v408, 2
      %v686 = vsel %vm649, %v683, %v685
      %v687 = vrot.slane %v409, 2
      %v688 = vsel %vm649, %v685, %v687
      %v689 = vrot.slane %v410, 2
      %v690 = vsel %vm649, %v687, %v689
      %v691 = vrot.slane %v411, 2
      %v692 = vsel %vm649, %v689, %v691
      %v693 = vrot.slane %v412, 2
      %v694 = vsel %vm649, %v691, %v693
      %v695 = vrot.slane %v413, 2
      %v696 = vsel %vm649, %v693, %v695
      %v697 = vrot.slane %v414, 2
      %v698 = vsel %vm649, %v695, %v697
      %v699 = vrot.slane %v415, 2
      %v700 = vsel %vm649, %v697, %v699
      %v701 = vrot.slane %v416, 2
      %v702 = vsel %vm649, %v699, %v701
      %v703 = vrot.slane %v417, 2
      %v704 = vsel %vm649, %v701, %v703
      %v705 = vrot.slane %v418, 2
      %v706 = vsel %vm649, %v703, %v705
      %v707 = vrot.slane %v419, 2
      %v708 = vsel %vm649, %v705, %v707
      %v709 = vrot.slane %v420, 2
      %v710 = vsel %vm649, %v707, %v709
      %v711 = vrot.slane %v421, 2
      %v712 = vsel %vm649, %v709, %v711
      %v713 = vrot.slane %v422, 2
      %v714 = vsel %vm649, %v711, %v713
      %v715 = vrot.slane %v423, 2
      %v716 = vsel %vm649, %v713, %v715
      %v717 = vrot.slane %v424, 2
      %v718 = vsel %vm649, %v715, %v717
      %v719 = vrot.slane %v425, 2
      %v720 = vsel %vm649, %v717, %v719
      %v721 = vrot.slane %v426, 2
      %v722 = vsel %vm649, %v719, %v721
      %v723 = vrot.slane %v427, 2
      %v724 = vsel %vm649, %v721, %v723
      %v725 = vrot.slane %v428, 2
      %v726 = vsel %vm649, %v723, %v725
      %v727 = vrot.slane %v429, 2
      %v728 = vsel %vm649, %v725, %v727
      %v729 = vrot.slane %v430, 2
      %v730 = vsel %vm649, %v727, %v729
      %v731 = vrot.slane %v431, 2
      %v732 = vsel %vm649, %v729, %v731
      %v733 = vrot.slane %v432, 2
      %v734 = vsel %vm649, %v731, %v733
      %v735 = vrot.slane %v433, 2
      %v736 = vsel %vm649, %v733, %v735
      %v737 = vrot.slane %v434, 2
      %v738 = vsel %vm649, %v735, %v737
      %v739 = vrot.slane %v435, 2
      %v740 = vsel %vm649, %v737, %v739
      %v741 = vrot.slane %v436, 2
      %v742 = vsel %vm649, %v739, %v741
      %v743 = vrot.slane %v437, 2
      %v744 = vsel %vm649, %v741, %v743
      %v745 = vrot.slane %v438, 2
      %v746 = vsel %vm649, %v743, %v745
      %v747 = vrot.slane %v439, 2
      %v748 = vsel %vm649, %v745, %v747
      %v749 = vrot.slane %v440, 2
      %v750 = vsel %vm649, %v747, %v749
      %v751 = vrot.slane %v441, 2
      %v752 = vsel %vm649, %v749, %v751
      %v753 = vrot.slane %v442, 2
      %v754 = vsel %vm649, %v751, %v753
      %v755 = vrot.slane %v443, 2
      %v756 = vsel %vm649, %v753, %v755
      %v757 = vrot.slane %v444, 2
      %v758 = vsel %vm649, %v755, %v757
      %v759 = vrot.slane %v445, 2
      %v760 = vsel %vm649, %v757, %v759
      %v761 = vrot.slane %v446, 2
      %v762 = vsel %vm649, %v759, %v761
      %v763 = vrot.slane %v447, 2
      %v764 = vsel %vm649, %v761, %v763
      %v765 = vrot.slane %v448, 2
      %v766 = vsel %vm649, %v763, %v765
      %v767 = vrot.slane %v449, 2
      %v768 = vsel %vm649, %v765, %v767
      %v769 = vrot.slane %v450, 2
      %v770 = vsel %vm649, %v767, %v769
      %v771 = vrot.slane %v451, 2
      %v772 = vsel %vm649, %v769, %v771
      %v773 = vrot.slane %v452, 2
      %v774 = vsel %vm649, %v771, %v773
      %v775 = vrot.slane %v453, 2
      %v776 = vsel %vm649, %v773, %v775
      %v779 = vsel %vm649, %v775, %v650
      %vm780 = vcmask 1044480
      %v781 = vrot.slane %v390, 3
      %v782 = vrot.slane %v391, 3
      %v783 = vsel %vm780, %v781, %v782
      %v784 = vrot.slane %v392, 3
      %v785 = vsel %vm780, %v782, %v784
      %v786 = vrot.slane %v393, 3
      %v787 = vsel %vm780, %v784, %v786
      %v788 = vrot.slane %v394, 3
      %v789 = vsel %vm780, %v786, %v788
      %v790 = vrot.slane %v395, 3
      %v791 = vsel %vm780, %v788, %v790
      %v792 = vrot.slane %v396, 3
      %v793 = vsel %vm780, %v790, %v792
      %v794 = vrot.slane %v397, 3
      %v795 = vsel %vm780, %v792, %v794
      %v796 = vrot.slane %v398, 3
      %v797 = vsel %vm780, %v794, %v796
      %v798 = vrot.slane %v399, 3
      %v799 = vsel %vm780, %v796, %v798
      %v800 = vrot.slane %v400, 3
      %v801 = vsel %vm780, %v798, %v800
      %v802 = vrot.slane %v401, 3
      %v803 = vsel %vm780, %v800, %v802
      %v804 = vrot.slane %v402, 3
      %v805 = vsel %vm780, %v802, %v804
      %v806 = vrot.slane %v403, 3
      %v807 = vsel %vm780, %v804, %v806
      %v808 = vrot.slane %v404, 3
      %v809 = vsel %vm780, %v806, %v808
      %v810 = vrot.slane %v405, 3
      %v811 = vsel %vm780, %v808, %v810
      %v812 = vrot.slane %v406, 3
      %v813 = vsel %vm780, %v810, %v812
      %v814 = vrot.slane %v407, 3
      %v815 = vsel %vm780, %v812, %v814
      %v816 = vrot.slane %v408, 3
      %v817 = vsel %vm780, %v814, %v816
      %v818 = vrot.slane %v409, 3
      %v819 = vsel %vm780, %v816, %v818
      %v820 = vrot.slane %v410, 3
      %v821 = vsel %vm780, %v818, %v820
      %v822 = vrot.slane %v411, 3
      %v823 = vsel %vm780, %v820, %v822
      %v824 = vrot.slane %v412, 3
      %v825 = vsel %vm780, %v822, %v824
      %v826 = vrot.slane %v413, 3
      %v827 = vsel %vm780, %v824, %v826
      %v828 = vrot.slane %v414, 3
      %v829 = vsel %vm780, %v826, %v828
      %v830 = vrot.slane %v415, 3
      %v831 = vsel %vm780, %v828, %v830
      %v832 = vrot.slane %v416, 3
      %v833 = vsel %vm780, %v830, %v832
      %v834 = vrot.slane %v417, 3
      %v835 = vsel %vm780, %v832, %v834
      %v836 = vrot.slane %v418, 3
      %v837 = vsel %vm780, %v834, %v836
      %v838 = vrot.slane %v419, 3
      %v839 = vsel %vm780, %v836, %v838
      %v840 = vrot.slane %v420, 3
      %v841 = vsel %vm780, %v838, %v840
      %v842 = vrot.slane %v421, 3
      %v843 = vsel %vm780, %v840, %v842
      %v844 = vrot.slane %v422, 3
      %v845 = vsel %vm780, %v842, %v844
      %v846 = vrot.slane %v423, 3
      %v847 = vsel %vm780, %v844, %v846
      %v848 = vrot.slane %v424, 3
      %v849 = vsel %vm780, %v846, %v848
      %v850 = vrot.slane %v425, 3
      %v851 = vsel %vm780, %v848, %v850
      %v852 = vrot.slane %v426, 3
      %v853 = vsel %vm780, %v850, %v852
      %v854 = vrot.slane %v427, 3
      %v855 = vsel %vm780, %v852, %v854
      %v856 = vrot.slane %v428, 3
      %v857 = vsel %vm780, %v854, %v856
      %v858 = vrot.slane %v429, 3
      %v859 = vsel %vm780, %v856, %v858
      %v860 = vrot.slane %v430, 3
      %v861 = vsel %vm780, %v858, %v860
      %v862 = vrot.slane %v431, 3
      %v863 = vsel %vm780, %v860, %v862
      %v864 = vrot.slane %v432, 3
      %v865 = vsel %vm780, %v862, %v864
      %v866 = vrot.slane %v433, 3
      %v867 = vsel %vm780, %v864, %v866
      %v868 = vrot.slane %v434, 3
      %v869 = vsel %vm780, %v866, %v868
      %v870 = vrot.slane %v435, 3
      %v871 = vsel %vm780, %v868, %v870
      %v872 = vrot.slane %v436, 3
      %v873 = vsel %vm780, %v870, %v872
      %v874 = vrot.slane %v437, 3
      %v875 = vsel %vm780, %v872, %v874
      %v876 = vrot.slane %v438, 3
      %v877 = vsel %vm780, %v874, %v876
      %v878 = vrot.slane %v439, 3
      %v879 = vsel %vm780, %v876, %v878
      %v880 = vrot.slane %v440, 3
      %v881 = vsel %vm780, %v878, %v880
      %v882 = vrot.slane %v441, 3
      %v883 = vsel %vm780, %v880, %v882
      %v884 = vrot.slane %v442, 3
      %v885 = vsel %vm780, %v882, %v884
      %v886 = vrot.slane %v443, 3
      %v887 = vsel %vm780, %v884, %v886
      %v888 = vrot.slane %v444, 3
      %v889 = vsel %vm780, %v886, %v888
      %v890 = vrot.slane %v445, 3
      %v891 = vsel %vm780, %v888, %v890
      %v892 = vrot.slane %v446, 3
      %v893 = vsel %vm780, %v890, %v892
      %v894 = vrot.slane %v447, 3
      %v895 = vsel %vm780, %v892, %v894
      %v896 = vrot.slane %v448, 3
      %v897 = vsel %vm780, %v894, %v896
      %v898 = vrot.slane %v449, 3
      %v899 = vsel %vm780, %v896, %v898
      %v900 = vrot.slane %v450, 3
      %v901 = vsel %vm780, %v898, %v900
      %v902 = vrot.slane %v451, 3
      %v903 = vsel %vm780, %v900, %v902
      %v904 = vrot.slane %v452, 3
      %v905 = vsel %vm780, %v902, %v904
      %v906 = vrot.slane %v453, 3
      %v907 = vsel %vm780, %v904, %v906
      %v910 = vsel %vm780, %v906, %v781
      %vm911 = vcmask 1043456
      %v912 = vrot.slane %v390, 4
      %v913 = vrot.slane %v391, 4
      %v914 = vsel %vm911, %v912, %v913
      %v915 = vrot.slane %v392, 4
      %v916 = vsel %vm911, %v913, %v915
      %v917 = vrot.slane %v393, 4
      %v918 = vsel %vm911, %v915, %v917
      %v919 = vrot.slane %v394, 4
      %v920 = vsel %vm911, %v917, %v919
      %v921 = vrot.slane %v395, 4
      %v922 = vsel %vm911, %v919, %v921
      %v923 = vrot.slane %v396, 4
      %v924 = vsel %vm911, %v921, %v923
      %v925 = vrot.slane %v397, 4
      %v926 = vsel %vm911, %v923, %v925
      %v927 = vrot.slane %v398, 4
      %v928 = vsel %vm911, %v925, %v927
      %v929 = vrot.slane %v399, 4
      %v930 = vsel %vm911, %v927, %v929
      %v931 = vrot.slane %v400, 4
      %v932 = vsel %vm911, %v929, %v931
      %v933 = vrot.slane %v401, 4
      %v934 = vsel %vm911, %v931, %v933
      %v935 = vrot.slane %v402, 4
      %v936 = vsel %vm911, %v933, %v935
      %v937 = vrot.slane %v403, 4
      %v938 = vsel %vm911, %v935, %v937
      %v939 = vrot.slane %v404, 4
      %v940 = vsel %vm911, %v937, %v939
      %v941 = vrot.slane %v405, 4
      %v942 = vsel %vm911, %v939, %v941
      %v943 = vrot.slane %v406, 4
      %v944 = vsel %vm911, %v941, %v943
      %v945 = vrot.slane %v407, 4
      %v946 = vsel %vm911, %v943, %v945
      %v947 = vrot.slane %v408, 4
      %v948 = vsel %vm911, %v945, %v947
      %v949 = vrot.slane %v409, 4
      %v950 = vsel %vm911, %v947, %v949
      %v951 = vrot.slane %v410, 4
      %v952 = vsel %vm911, %v949, %v951
      %v953 = vrot.slane %v411, 4
      %v954 = vsel %vm911, %v951, %v953
      %v955 = vrot.slane %v412, 4
      %v956 = vsel %vm911, %v953, %v955
      %v957 = vrot.slane %v413, 4
      %v958 = vsel %vm911, %v955, %v957
      %v959 = vrot.slane %v414, 4
      %v960 = vsel %vm911, %v957, %v959
      %v961 = vrot.slane %v415, 4
      %v962 = vsel %vm911, %v959, %v961
      %v963 = vrot.slane %v416, 4
      %v964 = vsel %vm911, %v961, %v963
      %v965 = vrot.slane %v417, 4
      %v966 = vsel %vm911, %v963, %v965
      %v967 = vrot.slane %v418, 4
      %v968 = vsel %vm911, %v965, %v967
      %v969 = vrot.slane %v419, 4
      %v970 = vsel %vm911, %v967, %v969
      %v971 = vrot.slane %v420, 4
      %v972 = vsel %vm911, %v969, %v971
      %v973 = vrot.slane %v421, 4
      %v974 = vsel %vm911, %v971, %v973
      %v975 = vrot.slane %v422, 4
      %v976 = vsel %vm911, %v973, %v975
      %v977 = vrot.slane %v423, 4
      %v978 = vsel %vm911, %v975, %v977
      %v979 = vrot.slane %v424, 4
      %v980 = vsel %vm911, %v977, %v979
      %v981 = vrot.slane %v425, 4
      %v982 = vsel %vm911, %v979, %v981
      %v983 = vrot.slane %v426, 4
      %v984 = vsel %vm911, %v981, %v983
      %v985 = vrot.slane %v427, 4
      %v986 = vsel %vm911, %v983, %v985
      %v987 = vrot.slane %v428, 4
      %v988 = vsel %vm911, %v985, %v987
      %v989 = vrot.slane %v429, 4
      %v990 = vsel %vm911, %v987, %v989
      %v991 = vrot.slane %v430, 4
      %v992 = vsel %vm911, %v989, %v991
      %v993 = vrot.slane %v431, 4
      %v994 = vsel %vm911, %v991, %v993
      %v995 = vrot.slane %v432, 4
      %v996 = vsel %vm911, %v993, %v995
      %v997 = vrot.slane %v433, 4
      %v998 = vsel %vm911, %v995, %v997
      %v999 = vrot.slane %v434, 4
      %v1000 = vsel %vm911, %v997, %v999
      %v1001 = vrot.slane %v435, 4
      %v1002 = vsel %vm911, %v999, %v1001
      %v1003 = vrot.slane %v436, 4
      %v1004 = vsel %vm911, %v1001, %v1003
      %v1005 = vrot.slane %v437, 4
      %v1006 = vsel %vm911, %v1003, %v1005
      %v1007 = vrot.slane %v438, 4
      %v1008 = vsel %vm911, %v1005, %v1007
      %v1009 = vrot.slane %v439, 4
      %v1010 = vsel %vm911, %v1007, %v1009
      %v1011 = vrot.slane %v440, 4
      %v1012 = vsel %vm911, %v1009, %v1011
      %v1013 = vrot.slane %v441, 4
      %v1014 = vsel %vm911, %v1011, %v1013
      %v1015 = vrot.slane %v442, 4
      %v1016 = vsel %vm911, %v1013, %v1015
      %v1017 = vrot.slane %v443, 4
      %v1018 = vsel %vm911, %v1015, %v1017
      %v1019 = vrot.slane %v444, 4
      %v1020 = vsel %vm911, %v1017, %v1019
      %v1021 = vrot.slane %v445, 4
      %v1022 = vsel %vm911, %v1019, %v1021
      %v1023 = vrot.slane %v446, 4
      %v1024 = vsel %vm911, %v1021, %v1023
      %v1025 = vrot.slane %v447, 4
      %v1026 = vsel %vm911, %v1023, %v1025
      %v1027 = vrot.slane %v448, 4
      %v1028 = vsel %vm911, %v1025, %v1027
      %v1029 = vrot.slane %v449, 4
      %v1030 = vsel %vm911, %v1027, %v1029
      %v1031 = vrot.slane %v450, 4
      %v1032 = vsel %vm911, %v1029, %v1031
      %v1033 = vrot.slane %v451, 4
      %v1034 = vsel %vm911, %v1031, %v1033
      %v1035 = vrot.slane %v452, 4
      %v1036 = vsel %vm911, %v1033, %v1035
      %v1037 = vrot.slane %v453, 4
      %v1038 = vsel %vm911, %v1035, %v1037
      %v1041 = vsel %vm911, %v1037, %v912
      %1043 = vrot.lane.b32.xlu0 %v521, 32
      %v1044 = vpop.permute.xlu0 %1043
      %1045 = vrot.lane.b32.xlu0 %v523, 32
      %v1046 = vpop.permute.xlu0 %1045
      %1047 = vrot.lane.b32.xlu0 %v525, 32
      %v1048 = vpop.permute.xlu0 %1047
      %1049 = vrot.lane.b32.xlu0 %v527, 32
      %v1050 = vpop.permute.xlu0 %1049
      %1051 = vrot.lane.b32.xlu0 %v529, 32
      %v1052 = vpop.permute.xlu0 %1051
      %1053 = vrot.lane.b32.xlu0 %v531, 32
      %v1054 = vpop.permute.xlu0 %1053
      %1055 = vrot.lane.b32.xlu0 %v533, 32
      %v1056 = vpop.permute.xlu0 %1055
      %1057 = vrot.lane.b32.xlu0 %v535, 32
      %v1058 = vpop.permute.xlu0 %1057
      %1059 = vrot.lane.b32.xlu0 %v537, 32
      %v1060 = vpop.permute.xlu0 %1059
      %1061 = vrot.lane.b32.xlu0 %v539, 32
      %v1062 = vpop.permute.xlu0 %1061
      %1063 = vrot.lane.b32.xlu0 %v541, 32
      %v1064 = vpop.permute.xlu0 %1063
      %1065 = vrot.lane.b32.xlu0 %v543, 32
      %v1066 = vpop.permute.xlu0 %1065
      %1067 = vrot.lane.b32.xlu0 %v545, 32
      %v1068 = vpop.permute.xlu0 %1067
      %1069 = vrot.lane.b32.xlu0 %v547, 32
      %v1070 = vpop.permute.xlu0 %1069
      %1071 = vrot.lane.b32.xlu0 %v549, 32
      %v1072 = vpop.permute.xlu0 %1071
      %1073 = vrot.lane.b32.xlu0 %v551, 32
      %v1074 = vpop.permute.xlu0 %1073
      %1075 = vrot.lane.b32.xlu0 %v553, 32
      %v1076 = vpop.permute.xlu0 %1075
      %1077 = vrot.lane.b32.xlu0 %v555, 32
      %v1078 = vpop.permute.xlu0 %1077
      %1079 = vrot.lane.b32.xlu0 %v557, 32
      %v1080 = vpop.permute.xlu0 %1079
      %1081 = vrot.lane.b32.xlu0 %v559, 32
      %v1082 = vpop.permute.xlu0 %1081
      %1083 = vrot.lane.b32.xlu0 %v561, 32
      %v1084 = vpop.permute.xlu0 %1083
      %1085 = vrot.lane.b32.xlu0 %v563, 32
      %v1086 = vpop.permute.xlu0 %1085
      %1087 = vrot.lane.b32.xlu0 %v565, 32
      %v1088 = vpop.permute.xlu0 %1087
      %1089 = vrot.lane.b32.xlu0 %v567, 32
      %v1090 = vpop.permute.xlu0 %1089
      %1091 = vrot.lane.b32.xlu0 %v569, 32
      %v1092 = vpop.permute.xlu0 %1091
      %1093 = vrot.lane.b32.xlu0 %v571, 32
      %v1094 = vpop.permute.xlu0 %1093
      %1095 = vrot.lane.b32.xlu0 %v573, 32
      %v1096 = vpop.permute.xlu0 %1095
      %1097 = vrot.lane.b32.xlu0 %v575, 32
      %v1098 = vpop.permute.xlu0 %1097
      %1099 = vrot.lane.b32.xlu0 %v577, 32
      %v1100 = vpop.permute.xlu0 %1099
      %1101 = vrot.lane.b32.xlu0 %v579, 32
      %v1102 = vpop.permute.xlu0 %1101
      %1103 = vrot.lane.b32.xlu0 %v581, 32
      %v1104 = vpop.permute.xlu0 %1103
      %1105 = vrot.lane.b32.xlu0 %v583, 32
      %v1106 = vpop.permute.xlu0 %1105
      %1107 = vrot.lane.b32.xlu0 %v585, 32
      %v1108 = vpop.permute.xlu0 %1107
      %1109 = vrot.lane.b32.xlu0 %v587, 32
      %v1110 = vpop.permute.xlu0 %1109
      %1111 = vrot.lane.b32.xlu0 %v589, 32
      %v1112 = vpop.permute.xlu0 %1111
      %1113 = vrot.lane.b32.xlu0 %v591, 32
      %v1114 = vpop.permute.xlu0 %1113
      %1115 = vrot.lane.b32.xlu0 %v593, 32
      %v1116 = vpop.permute.xlu0 %1115
      %1117 = vrot.lane.b32.xlu0 %v595, 32
      %v1118 = vpop.permute.xlu0 %1117
      %1119 = vrot.lane.b32.xlu0 %v597, 32
      %v1120 = vpop.permute.xlu0 %1119
      %1121 = vrot.lane.b32.xlu0 %v599, 32
      %v1122 = vpop.permute.xlu0 %1121
      %1123 = vrot.lane.b32.xlu0 %v601, 32
      %v1124 = vpop.permute.xlu0 %1123
      %1125 = vrot.lane.b32.xlu0 %v603, 32
      %v1126 = vpop.permute.xlu0 %1125
      %1127 = vrot.lane.b32.xlu0 %v605, 32
      %v1128 = vpop.permute.xlu0 %1127
      %1129 = vrot.lane.b32.xlu0 %v607, 32
      %v1130 = vpop.permute.xlu0 %1129
      %1131 = vrot.lane.b32.xlu0 %v609, 32
      %v1132 = vpop.permute.xlu0 %1131
      %1133 = vrot.lane.b32.xlu0 %v611, 32
      %v1134 = vpop.permute.xlu0 %1133
      %1135 = vrot.lane.b32.xlu0 %v613, 32
      %v1136 = vpop.permute.xlu0 %1135
      %1137 = vrot.lane.b32.xlu0 %v615, 32
      %v1138 = vpop.permute.xlu0 %1137
      %1139 = vrot.lane.b32.xlu0 %v617, 32
      %v1140 = vpop.permute.xlu0 %1139
      %1141 = vrot.lane.b32.xlu0 %v619, 32
      %v1142 = vpop.permute.xlu0 %1141
      %1143 = vrot.lane.b32.xlu0 %v621, 32
      %v1144 = vpop.permute.xlu0 %1143
      %1145 = vrot.lane.b32.xlu0 %v623, 32
      %v1146 = vpop.permute.xlu0 %1145
      %1147 = vrot.lane.b32.xlu0 %v625, 32
      %v1148 = vpop.permute.xlu0 %1147
      %1149 = vrot.lane.b32.xlu0 %v627, 32
      %v1150 = vpop.permute.xlu0 %1149
      %1151 = vrot.lane.b32.xlu0 %v629, 32
      %v1152 = vpop.permute.xlu0 %1151
      %1153 = vrot.lane.b32.xlu0 %v631, 32
      %v1154 = vpop.permute.xlu0 %1153
      %1155 = vrot.lane.b32.xlu0 %v633, 32
      %v1156 = vpop.permute.xlu0 %1155
      %1157 = vrot.lane.b32.xlu0 %v635, 32
      %v1158 = vpop.permute.xlu0 %1157
      %1159 = vrot.lane.b32.xlu0 %v637, 32
      %v1160 = vpop.permute.xlu0 %1159
      %1161 = vrot.lane.b32.xlu0 %v639, 32
      %v1162 = vpop.permute.xlu0 %1161
      %1163 = vrot.lane.b32.xlu0 %v641, 32
      %v1164 = vpop.permute.xlu0 %1163
      %1165 = vrot.lane.b32.xlu0 %v643, 32
      %v1166 = vpop.permute.xlu0 %1165
      %1167 = vrot.lane.b32.xlu0 %v645, 32
      %v1168 = vpop.permute.xlu0 %1167
      %1169 = vrot.lane.b32.xlu0 %v648, 32
      %v1170 = vpop.permute.xlu0 %1169
      %1236 = vrot.lane.b32.xlu0 %v652, 64
      %v1237 = vpop.permute.xlu0 %1236
      %1238 = vrot.lane.b32.xlu0 %v654, 64
      %v1239 = vpop.permute.xlu0 %1238
      %1240 = vrot.lane.b32.xlu0 %v656, 64
      %v1241 = vpop.permute.xlu0 %1240
      %1242 = vrot.lane.b32.xlu0 %v658, 64
      %v1243 = vpop.permute.xlu0 %1242
      %1244 = vrot.lane.b32.xlu0 %v660, 64
      %v1245 = vpop.permute.xlu0 %1244
      %1246 = vrot.lane.b32.xlu0 %v662, 64
      %v1247 = vpop.permute.xlu0 %1246
      %1248 = vrot.lane.b32.xlu0 %v664, 64
      %v1249 = vpop.permute.xlu0 %1248
      %1250 = vrot.lane.b32.xlu0 %v666, 64
      %v1251 = vpop.permute.xlu0 %1250
      %1252 = vrot.lane.b32.xlu0 %v668, 64
      %v1253 = vpop.permute.xlu0 %1252
      %1254 = vrot.lane.b32.xlu0 %v670, 64
      %v1255 = vpop.permute.xlu0 %1254
      %1256 = vrot.lane.b32.xlu0 %v672, 64
      %v1257 = vpop.permute.xlu0 %1256
      %1258 = vrot.lane.b32.xlu0 %v674, 64
      %v1259 = vpop.permute.xlu0 %1258
      %1260 = vrot.lane.b32.xlu0 %v676, 64
      %v1261 = vpop.permute.xlu0 %1260
      %1262 = vrot.lane.b32.xlu0 %v678, 64
      %v1263 = vpop.permute.xlu0 %1262
      %1264 = vrot.lane.b32.xlu0 %v680, 64
      %v1265 = vpop.permute.xlu0 %1264
      %1266 = vrot.lane.b32.xlu0 %v682, 64
      %v1267 = vpop.permute.xlu0 %1266
      %1268 = vrot.lane.b32.xlu0 %v684, 64
      %v1269 = vpop.permute.xlu0 %1268
      %1270 = vrot.lane.b32.xlu0 %v686, 64
      %v1271 = vpop.permute.xlu0 %1270
      %1272 = vrot.lane.b32.xlu0 %v688, 64
      %v1273 = vpop.permute.xlu0 %1272
      %1274 = vrot.lane.b32.xlu0 %v690, 64
      %v1275 = vpop.permute.xlu0 %1274
      %1276 = vrot.lane.b32.xlu0 %v692, 64
      %v1277 = vpop.permute.xlu0 %1276
      %1278 = vrot.lane.b32.xlu0 %v694, 64
      %v1279 = vpop.permute.xlu0 %1278
      %1280 = vrot.lane.b32.xlu0 %v696, 64
      %v1281 = vpop.permute.xlu0 %1280
      %1282 = vrot.lane.b32.xlu0 %v698, 64
      %v1283 = vpop.permute.xlu0 %1282
      %1284 = vrot.lane.b32.xlu0 %v700, 64
      %v1285 = vpop.permute.xlu0 %1284
      %1286 = vrot.lane.b32.xlu0 %v702, 64
      %v1287 = vpop.permute.xlu0 %1286
      %1288 = vrot.lane.b32.xlu0 %v704, 64
      %v1289 = vpop.permute.xlu0 %1288
      %1290 = vrot.lane.b32.xlu0 %v706, 64
      %v1291 = vpop.permute.xlu0 %1290
      %1292 = vrot.lane.b32.xlu0 %v708, 64
      %v1293 = vpop.permute.xlu0 %1292
      %1294 = vrot.lane.b32.xlu0 %v710, 64
      %v1295 = vpop.permute.xlu0 %1294
      %1296 = vrot.lane.b32.xlu0 %v712, 64
      %v1297 = vpop.permute.xlu0 %1296
      %1298 = vrot.lane.b32.xlu0 %v714, 64
      %v1299 = vpop.permute.xlu0 %1298
      %1300 = vrot.lane.b32.xlu0 %v716, 64
      %v1301 = vpop.permute.xlu0 %1300
      %1302 = vrot.lane.b32.xlu0 %v718, 64
      %v1303 = vpop.permute.xlu0 %1302
      %1304 = vrot.lane.b32.xlu0 %v720, 64
      %v1305 = vpop.permute.xlu0 %1304
      %1306 = vrot.lane.b32.xlu0 %v722, 64
      %v1307 = vpop.permute.xlu0 %1306
      %1308 = vrot.lane.b32.xlu0 %v724, 64
      %v1309 = vpop.permute.xlu0 %1308
      %1310 = vrot.lane.b32.xlu0 %v726, 64
      %v1311 = vpop.permute.xlu0 %1310
      %1312 = vrot.lane.b32.xlu0 %v728, 64
      %v1313 = vpop.permute.xlu0 %1312
      %1314 = vrot.lane.b32.xlu0 %v730, 64
      %v1315 = vpop.permute.xlu0 %1314
      %1316 = vrot.lane.b32.xlu0 %v732, 64
      %v1317 = vpop.permute.xlu0 %1316
      %1318 = vrot.lane.b32.xlu0 %v734, 64
      %v1319 = vpop.permute.xlu0 %1318
      %1320 = vrot.lane.b32.xlu0 %v736, 64
      %v1321 = vpop.permute.xlu0 %1320
      %1322 = vrot.lane.b32.xlu0 %v738, 64
      %v1323 = vpop.permute.xlu0 %1322
      %1324 = vrot.lane.b32.xlu0 %v740, 64
      %v1325 = vpop.permute.xlu0 %1324
      %1326 = vrot.lane.b32.xlu0 %v742, 64
      %v1327 = vpop.permute.xlu0 %1326
      %1328 = vrot.lane.b32.xlu0 %v744, 64
      %v1329 = vpop.permute.xlu0 %1328
      %1330 = vrot.lane.b32.xlu0 %v746, 64
      %v1331 = vpop.permute.xlu0 %1330
      %1332 = vrot.lane.b32.xlu0 %v748, 64
      %v1333 = vpop.permute.xlu0 %1332
      %1334 = vrot.lane.b32.xlu0 %v750, 64
      %v1335 = vpop.permute.xlu0 %1334
      %1336 = vrot.lane.b32.xlu0 %v752, 64
      %v1337 = vpop.permute.xlu0 %1336
      %1338 = vrot.lane.b32.xlu0 %v754, 64
      %v1339 = vpop.permute.xlu0 %1338
      %1340 = vrot.lane.b32.xlu0 %v756, 64
      %v1341 = vpop.permute.xlu0 %1340
      %1342 = vrot.lane.b32.xlu0 %v758, 64
      %v1343 = vpop.permute.xlu0 %1342
      %1344 = vrot.lane.b32.xlu0 %v760, 64
      %v1345 = vpop.permute.xlu0 %1344
      %1346 = vrot.lane.b32.xlu0 %v762, 64
      %v1347 = vpop.permute.xlu0 %1346
      %1348 = vrot.lane.b32.xlu0 %v764, 64
      %v1349 = vpop.permute.xlu0 %1348
      %1350 = vrot.lane.b32.xlu0 %v766, 64
      %v1351 = vpop.permute.xlu0 %1350
      %1352 = vrot.lane.b32.xlu0 %v768, 64
      %v1353 = vpop.permute.xlu0 %1352
      %1354 = vrot.lane.b32.xlu0 %v770, 64
      %v1355 = vpop.permute.xlu0 %1354
      %1356 = vrot.lane.b32.xlu0 %v772, 64
      %v1357 = vpop.permute.xlu0 %1356
      %1358 = vrot.lane.b32.xlu0 %v774, 64
      %v1359 = vpop.permute.xlu0 %1358
      %1360 = vrot.lane.b32.xlu0 %v776, 64
      %v1361 = vpop.permute.xlu0 %1360
      %1362 = vrot.lane.b32.xlu0 %v779, 64
      %v1363 = vpop.permute.xlu0 %1362
      %1429 = vrot.lane.b32.xlu0 %v783, 96
      %v1430 = vpop.permute.xlu0 %1429
      %1431 = vrot.lane.b32.xlu0 %v785, 96
      %v1432 = vpop.permute.xlu0 %1431
      %1433 = vrot.lane.b32.xlu0 %v787, 96
      %v1434 = vpop.permute.xlu0 %1433
      %1435 = vrot.lane.b32.xlu0 %v789, 96
      %v1436 = vpop.permute.xlu0 %1435
      %1437 = vrot.lane.b32.xlu0 %v791, 96
      %v1438 = vpop.permute.xlu0 %1437
      %1439 = vrot.lane.b32.xlu0 %v793, 96
      %v1440 = vpop.permute.xlu0 %1439
      %1441 = vrot.lane.b32.xlu0 %v795, 96
      %v1442 = vpop.permute.xlu0 %1441
      %1443 = vrot.lane.b32.xlu0 %v797, 96
      %v1444 = vpop.permute.xlu0 %1443
      %1445 = vrot.lane.b32.xlu0 %v799, 96
      %v1446 = vpop.permute.xlu0 %1445
      %1447 = vrot.lane.b32.xlu0 %v801, 96
      %v1448 = vpop.permute.xlu0 %1447
      %1449 = vrot.lane.b32.xlu0 %v803, 96
      %v1450 = vpop.permute.xlu0 %1449
      %1451 = vrot.lane.b32.xlu0 %v805, 96
      %v1452 = vpop.permute.xlu0 %1451
      %1453 = vrot.lane.b32.xlu0 %v807, 96
      %v1454 = vpop.permute.xlu0 %1453
      %1455 = vrot.lane.b32.xlu0 %v809, 96
      %v1456 = vpop.permute.xlu0 %1455
      %1457 = vrot.lane.b32.xlu0 %v811, 96
      %v1458 = vpop.permute.xlu0 %1457
      %1459 = vrot.lane.b32.xlu0 %v813, 96
      %v1460 = vpop.permute.xlu0 %1459
      %1461 = vrot.lane.b32.xlu0 %v815, 96
      %v1462 = vpop.permute.xlu0 %1461
      %1463 = vrot.lane.b32.xlu0 %v817, 96
      %v1464 = vpop.permute.xlu0 %1463
      %1465 = vrot.lane.b32.xlu0 %v819, 96
      %v1466 = vpop.permute.xlu0 %1465
      %1467 = vrot.lane.b32.xlu0 %v821, 96
      %v1468 = vpop.permute.xlu0 %1467
      %1469 = vrot.lane.b32.xlu0 %v823, 96
      %v1470 = vpop.permute.xlu0 %1469
      %1471 = vrot.lane.b32.xlu0 %v825, 96
      %v1472 = vpop.permute.xlu0 %1471
      %1473 = vrot.lane.b32.xlu0 %v827, 96
      %v1474 = vpop.permute.xlu0 %1473
      %1475 = vrot.lane.b32.xlu0 %v829, 96
      %v1476 = vpop.permute.xlu0 %1475
      %1477 = vrot.lane.b32.xlu0 %v831, 96
      %v1478 = vpop.permute.xlu0 %1477
      %1479 = vrot.lane.b32.xlu0 %v833, 96
      %v1480 = vpop.permute.xlu0 %1479
      %1481 = vrot.lane.b32.xlu0 %v835, 96
      %v1482 = vpop.permute.xlu0 %1481
      %1483 = vrot.lane.b32.xlu0 %v837, 96
      %v1484 = vpop.permute.xlu0 %1483
      %1485 = vrot.lane.b32.xlu0 %v839, 96
      %v1486 = vpop.permute.xlu0 %1485
      %1487 = vrot.lane.b32.xlu0 %v841, 96
      %v1488 = vpop.permute.xlu0 %1487
      %1489 = vrot.lane.b32.xlu0 %v843, 96
      %v1490 = vpop.permute.xlu0 %1489
      %1491 = vrot.lane.b32.xlu0 %v845, 96
      %v1492 = vpop.permute.xlu0 %1491
      %1493 = vrot.lane.b32.xlu0 %v847, 96
      %v1494 = vpop.permute.xlu0 %1493
      %1495 = vrot.lane.b32.xlu0 %v849, 96
      %v1496 = vpop.permute.xlu0 %1495
      %1497 = vrot.lane.b32.xlu0 %v851, 96
      %v1498 = vpop.permute.xlu0 %1497
      %1499 = vrot.lane.b32.xlu0 %v853, 96
      %v1500 = vpop.permute.xlu0 %1499
      %1501 = vrot.lane.b32.xlu0 %v855, 96
      %v1502 = vpop.permute.xlu0 %1501
      %1503 = vrot.lane.b32.xlu0 %v857, 96
      %v1504 = vpop.permute.xlu0 %1503
      %1505 = vrot.lane.b32.xlu0 %v859, 96
      %v1506 = vpop.permute.xlu0 %1505
      %1507 = vrot.lane.b32.xlu0 %v861, 96
      %v1508 = vpop.permute.xlu0 %1507
      %1509 = vrot.lane.b32.xlu0 %v863, 96
      %v1510 = vpop.permute.xlu0 %1509
      %1511 = vrot.lane.b32.xlu0 %v865, 96
      %v1512 = vpop.permute.xlu0 %1511
      %1513 = vrot.lane.b32.xlu0 %v867, 96
      %v1514 = vpop.permute.xlu0 %1513
      %1515 = vrot.lane.b32.xlu0 %v869, 96
      %v1516 = vpop.permute.xlu0 %1515
      %1517 = vrot.lane.b32.xlu0 %v871, 96
      %v1518 = vpop.permute.xlu0 %1517
      %1519 = vrot.lane.b32.xlu0 %v873, 96
      %v1520 = vpop.permute.xlu0 %1519
      %1521 = vrot.lane.b32.xlu0 %v875, 96
      %v1522 = vpop.permute.xlu0 %1521
      %1523 = vrot.lane.b32.xlu0 %v877, 96
      %v1524 = vpop.permute.xlu0 %1523
      %1525 = vrot.lane.b32.xlu0 %v879, 96
      %v1526 = vpop.permute.xlu0 %1525
      %1527 = vrot.lane.b32.xlu0 %v881, 96
      %v1528 = vpop.permute.xlu0 %1527
      %1529 = vrot.lane.b32.xlu0 %v883, 96
      %v1530 = vpop.permute.xlu0 %1529
      %1531 = vrot.lane.b32.xlu0 %v885, 96
      %v1532 = vpop.permute.xlu0 %1531
      %1533 = vrot.lane.b32.xlu0 %v887, 96
      %v1534 = vpop.permute.xlu0 %1533
      %1535 = vrot.lane.b32.xlu0 %v889, 96
      %v1536 = vpop.permute.xlu0 %1535
      %1537 = vrot.lane.b32.xlu0 %v891, 96
      %v1538 = vpop.permute.xlu0 %1537
      %1539 = vrot.lane.b32.xlu0 %v893, 96
      %v1540 = vpop.permute.xlu0 %1539
      %1541 = vrot.lane.b32.xlu0 %v895, 96
      %v1542 = vpop.permute.xlu0 %1541
      %1543 = vrot.lane.b32.xlu0 %v897, 96
      %v1544 = vpop.permute.xlu0 %1543
      %1545 = vrot.lane.b32.xlu0 %v899, 96
      %v1546 = vpop.permute.xlu0 %1545
      %1547 = vrot.lane.b32.xlu0 %v901, 96
      %v1548 = vpop.permute.xlu0 %1547
      %1549 = vrot.lane.b32.xlu0 %v903, 96
      %v1550 = vpop.permute.xlu0 %1549
      %1551 = vrot.lane.b32.xlu0 %v905, 96
      %v1552 = vpop.permute.xlu0 %1551
      %1553 = vrot.lane.b32.xlu0 %v907, 96
      %v1554 = vpop.permute.xlu0 %1553
      %1555 = vrot.lane.b32.xlu0 %v910, 96
      %v1556 = vpop.permute.xlu0 %1555
      %vm1621 = vcmask 261120
      %v1622 = vsel %vm1621, %v390, %v1044
      %v1623 = vsel %vm1621, %v391, %v1046
      %v1624 = vsel %vm1621, %v392, %v1048
      %v1625 = vsel %vm1621, %v393, %v1050
      %v1626 = vsel %vm1621, %v394, %v1052
      %v1627 = vsel %vm1621, %v395, %v1054
      %v1628 = vsel %vm1621, %v396, %v1056
      %v1629 = vsel %vm1621, %v397, %v1058
      %v1630 = vsel %vm1621, %v398, %v1060
      %v1631 = vsel %vm1621, %v399, %v1062
      %v1632 = vsel %vm1621, %v400, %v1064
      %v1633 = vsel %vm1621, %v401, %v1066
      %v1634 = vsel %vm1621, %v402, %v1068
      %v1635 = vsel %vm1621, %v403, %v1070
      %v1636 = vsel %vm1621, %v404, %v1072
      %v1637 = vsel %vm1621, %v405, %v1074
      %v1638 = vsel %vm1621, %v406, %v1076
      %v1639 = vsel %vm1621, %v407, %v1078
      %v1640 = vsel %vm1621, %v408, %v1080
      %v1641 = vsel %vm1621, %v409, %v1082
      %v1642 = vsel %vm1621, %v410, %v1084
      %v1643 = vsel %vm1621, %v411, %v1086
      %v1644 = vsel %vm1621, %v412, %v1088
      %v1645 = vsel %vm1621, %v413, %v1090
      %v1646 = vsel %vm1621, %v414, %v1092
      %v1647 = vsel %vm1621, %v415, %v1094
      %v1648 = vsel %vm1621, %v416, %v1096
      %v1649 = vsel %vm1621, %v417, %v1098
      %v1650 = vsel %vm1621, %v418, %v1100
      %v1651 = vsel %vm1621, %v419, %v1102
      %v1652 = vsel %vm1621, %v420, %v1104
      %v1653 = vsel %vm1621, %v421, %v1106
      %v1654 = vsel %vm1621, %v422, %v1108
      %v1655 = vsel %vm1621, %v423, %v1110
      %v1656 = vsel %vm1621, %v424, %v1112
      %v1657 = vsel %vm1621, %v425, %v1114
      %v1658 = vsel %vm1621, %v426, %v1116
      %v1659 = vsel %vm1621, %v427, %v1118
      %v1660 = vsel %vm1621, %v428, %v1120
      %v1661 = vsel %vm1621, %v429, %v1122
      %v1662 = vsel %vm1621, %v430, %v1124
      %v1663 = vsel %vm1621, %v431, %v1126
      %v1664 = vsel %vm1621, %v432, %v1128
      %v1665 = vsel %vm1621, %v433, %v1130
      %v1666 = vsel %vm1621, %v434, %v1132
      %v1667 = vsel %vm1621, %v435, %v1134
      %v1668 = vsel %vm1621, %v436, %v1136
      %v1669 = vsel %vm1621, %v437, %v1138
      %v1670 = vsel %vm1621, %v438, %v1140
      %v1671 = vsel %vm1621, %v439, %v1142
      %v1672 = vsel %vm1621, %v440, %v1144
      %v1673 = vsel %vm1621, %v441, %v1146
      %v1674 = vsel %vm1621, %v442, %v1148
      %v1675 = vsel %vm1621, %v443, %v1150
      %v1676 = vsel %vm1621, %v444, %v1152
      %v1677 = vsel %vm1621, %v445, %v1154
      %v1678 = vsel %vm1621, %v446, %v1156
      %v1679 = vsel %vm1621, %v447, %v1158
      %v1680 = vsel %vm1621, %v448, %v1160
      %v1681 = vsel %vm1621, %v449, %v1162
      %v1682 = vsel %vm1621, %v450, %v1164
      %v1683 = vsel %vm1621, %v451, %v1166
      %v1684 = vsel %vm1621, %v452, %v1168
      %v1685 = vsel %vm1621, %v453, %v1170
      %vm1686 = vcmask 523264
      %v1687 = vsel %vm1686, %v1622, %v1237
      %v1688 = vsel %vm1686, %v1623, %v1239
      %v1689 = vsel %vm1686, %v1624, %v1241
      %v1690 = vsel %vm1686, %v1625, %v1243
      %v1691 = vsel %vm1686, %v1626, %v1245
      %v1692 = vsel %vm1686, %v1627, %v1247
      %v1693 = vsel %vm1686, %v1628, %v1249
      %v1694 = vsel %vm1686, %v1629, %v1251
      %v1695 = vsel %vm1686, %v1630, %v1253
      %v1696 = vsel %vm1686, %v1631, %v1255
      %v1697 = vsel %vm1686, %v1632, %v1257
      %v1698 = vsel %vm1686, %v1633, %v1259
      %v1699 = vsel %vm1686, %v1634, %v1261
      %v1700 = vsel %vm1686, %v1635, %v1263
      %v1701 = vsel %vm1686, %v1636, %v1265
      %v1702 = vsel %vm1686, %v1637, %v1267
      %v1703 = vsel %vm1686, %v1638, %v1269
      %v1704 = vsel %vm1686, %v1639, %v1271
      %v1705 = vsel %vm1686, %v1640, %v1273
      %v1706 = vsel %vm1686, %v1641, %v1275
      %v1707 = vsel %vm1686, %v1642, %v1277
      %v1708 = vsel %vm1686, %v1643, %v1279
      %v1709 = vsel %vm1686, %v1644, %v1281
      %v1710 = vsel %vm1686, %v1645, %v1283
      %v1711 = vsel %vm1686, %v1646, %v1285
      %v1712 = vsel %vm1686, %v1647, %v1287
      %v1713 = vsel %vm1686, %v1648, %v1289
      %v1714 = vsel %vm1686, %v1649, %v1291
      %v1715 = vsel %vm1686, %v1650, %v1293
      %v1716 = vsel %vm1686, %v1651, %v1295
      %v1717 = vsel %vm1686, %v1652, %v1297
      %v1718 = vsel %vm1686, %v1653, %v1299
      %v1719 = vsel %vm1686, %v1654, %v1301
      %v1720 = vsel %vm1686, %v1655, %v1303
      %v1721 = vsel %vm1686, %v1656, %v1305
      %v1722 = vsel %vm1686, %v1657, %v1307
      %v1723 = vsel %vm1686, %v1658, %v1309
      %v1724 = vsel %vm1686, %v1659, %v1311
      %v1725 = vsel %vm1686, %v1660, %v1313
      %v1726 = vsel %vm1686, %v1661, %v1315
      %v1727 = vsel %vm1686, %v1662, %v1317
      %v1728 = vsel %vm1686, %v1663, %v1319
      %v1729 = vsel %vm1686, %v1664, %v1321
      %v1730 = vsel %vm1686, %v1665, %v1323
      %v1731 = vsel %vm1686, %v1666, %v1325
      %v1732 = vsel %vm1686, %v1667, %v1327
      %v1733 = vsel %vm1686, %v1668, %v1329
      %v1734 = vsel %vm1686, %v1669, %v1331
      %v1735 = vsel %vm1686, %v1670, %v1333
      %v1736 = vsel %vm1686, %v1671, %v1335
      %v1737 = vsel %vm1686, %v1672, %v1337
      %v1738 = vsel %vm1686, %v1673, %v1339
      %v1739 = vsel %vm1686, %v1674, %v1341
      %v1740 = vsel %vm1686, %v1675, %v1343
      %v1741 = vsel %vm1686, %v1676, %v1345
      %v1742 = vsel %vm1686, %v1677, %v1347
      %v1743 = vsel %vm1686, %v1678, %v1349
      %v1744 = vsel %vm1686, %v1679, %v1351
      %v1745 = vsel %vm1686, %v1680, %v1353
      %v1746 = vsel %vm1686, %v1681, %v1355
      %v1747 = vsel %vm1686, %v1682, %v1357
      %v1748 = vsel %vm1686, %v1683, %v1359
      %v1749 = vsel %vm1686, %v1684, %v1361
      %v1750 = vsel %vm1686, %v1685, %v1363
      %vm1751 = vcmask 785408
      %v1752 = vsel %vm1751, %v1687, %v1430
      %v1753 = vsel %vm1751, %v1688, %v1432
      %v1754 = vsel %vm1751, %v1689, %v1434
      %v1755 = vsel %vm1751, %v1690, %v1436
      %v1756 = vsel %vm1751, %v1691, %v1438
      %v1757 = vsel %vm1751, %v1692, %v1440
      %v1758 = vsel %vm1751, %v1693, %v1442
      %v1759 = vsel %vm1751, %v1694, %v1444
      %v1760 = vsel %vm1751, %v1695, %v1446
      %v1761 = vsel %vm1751, %v1696, %v1448
      %v1762 = vsel %vm1751, %v1697, %v1450
      %v1763 = vsel %vm1751, %v1698, %v1452
      %v1764 = vsel %vm1751, %v1699, %v1454
      %v1765 = vsel %vm1751, %v1700, %v1456
      %v1766 = vsel %vm1751, %v1701, %v1458
      %v1767 = vsel %vm1751, %v1702, %v1460
      %v1768 = vsel %vm1751, %v1703, %v1462
      %v1769 = vsel %vm1751, %v1704, %v1464
      %v1770 = vsel %vm1751, %v1705, %v1466
      %v1771 = vsel %vm1751, %v1706, %v1468
      %v1772 = vsel %vm1751, %v1707, %v1470
      %v1773 = vsel %vm1751, %v1708, %v1472
      %v1774 = vsel %vm1751, %v1709, %v1474
      %v1775 = vsel %vm1751, %v1710, %v1476
      %v1776 = vsel %vm1751, %v1711, %v1478
      %v1777 = vsel %vm1751, %v1712, %v1480
      %v1778 = vsel %vm1751, %v1713, %v1482
      %v1779 = vsel %vm1751, %v1714, %v1484
      %v1780 = vsel %vm1751, %v1715, %v1486
      %v1781 = vsel %vm1751, %v1716, %v1488
      %v1782 = vsel %vm1751, %v1717, %v1490
      %v1783 = vsel %vm1751, %v1718, %v1492
      %v1784 = vsel %vm1751, %v1719, %v1494
      %v1785 = vsel %vm1751, %v1720, %v1496
      %v1786 = vsel %vm1751, %v1721, %v1498
      %v1787 = vsel %vm1751, %v1722, %v1500
      %v1788 = vsel %vm1751, %v1723, %v1502
      %v1789 = vsel %vm1751, %v1724, %v1504
      %v1790 = vsel %vm1751, %v1725, %v1506
      %v1791 = vsel %vm1751, %v1726, %v1508
      %v1792 = vsel %vm1751, %v1727, %v1510
      %v1793 = vsel %vm1751, %v1728, %v1512
      %v1794 = vsel %vm1751, %v1729, %v1514
      %v1795 = vsel %vm1751, %v1730, %v1516
      %v1796 = vsel %vm1751, %v1731, %v1518
      %v1797 = vsel %vm1751, %v1732, %v1520
      %v1798 = vsel %vm1751, %v1733, %v1522
      %v1799 = vsel %vm1751, %v1734, %v1524
      %v1800 = vsel %vm1751, %v1735, %v1526
      %v1801 = vsel %vm1751, %v1736, %v1528
      %v1802 = vsel %vm1751, %v1737, %v1530
      %v1803 = vsel %vm1751, %v1738, %v1532
      %v1804 = vsel %vm1751, %v1739, %v1534
      %v1805 = vsel %vm1751, %v1740, %v1536
      %v1806 = vsel %vm1751, %v1741, %v1538
      %v1807 = vsel %vm1751, %v1742, %v1540
      %v1808 = vsel %vm1751, %v1743, %v1542
      %v1809 = vsel %vm1751, %v1744, %v1544
      %v1810 = vsel %vm1751, %v1745, %v1546
      %v1811 = vsel %vm1751, %v1746, %v1548
      %v1812 = vsel %vm1751, %v1747, %v1550
      %v1813 = vsel %vm1751, %v1748, %v1552
      %v1814 = vsel %vm1751, %v1749, %v1554
      %v1815 = vsel %vm1751, %v1750, %v1556
      %v1816 = vld [vmem:[%s1] sm:$0xff]
      %v1817 = vld [vmem:[%s1 + $0x8] sm:$0xff]
      %v1818 = vld [vmem:[%s1 + $0x10] sm:$0xff]
      %v1819 = vld [vmem:[%s1 + $0x18] sm:$0xff]
      %v1820 = vld [vmem:[%s1 + $0x20] sm:$0xff]
      %v1821 = vld [vmem:[%s1 + $0x28] sm:$0xff]
      %v1822 = vld [vmem:[%s1 + $0x30] sm:$0xff]
      %v1823 = vld [vmem:[%s1 + $0x38] sm:$0xff]
      %v1824 = vld [vmem:[%s1 + $0x40] sm:$0xff]
      %v1825 = vld [vmem:[%s1 + $0x48] sm:$0xff]
      %v1826 = vld [vmem:[%s1 + $0x50] sm:$0xff]
      %v1827 = vld [vmem:[%s1 + $0x58] sm:$0xff]
      %v1828 = vld [vmem:[%s1 + $0x60] sm:$0xff]
      %v1829 = vld [vmem:[%s1 + $0x68] sm:$0xff]
      %v1830 = vld [vmem:[%s1 + $0x70] sm:$0xff]
      %v1831 = vld [vmem:[%s1 + $0x78] sm:$0xff]
      %v1832 = vld [vmem:[%s1 + $0x80] sm:$0xff]
      %v1833 = vld [vmem:[%s1 + $0x88] sm:$0xff]
      %v1834 = vld [vmem:[%s1 + $0x90] sm:$0xff]
      %v1835 = vld [vmem:[%s1 + $0x98] sm:$0xff]
      %v1836 = vld [vmem:[%s1 + $0xa0] sm:$0xff]
      %v1837 = vld [vmem:[%s1 + $0xa8] sm:$0xff]
      %v1838 = vld [vmem:[%s1 + $0xb0] sm:$0xff]
      %v1839 = vld [vmem:[%s1 + $0xb8] sm:$0xff]
      %v1840 = vld [vmem:[%s1 + $0xc0] sm:$0xff]
      %v1841 = vld [vmem:[%s1 + $0xc8] sm:$0xff]
      %v1842 = vld [vmem:[%s1 + $0xd0] sm:$0xff]
      %v1843 = vld [vmem:[%s1 + $0xd8] sm:$0xff]
      %v1844 = vld [vmem:[%s1 + $0xe0] sm:$0xff]
      %v1845 = vld [vmem:[%s1 + $0xe8] sm:$0xff]
      %v1846 = vld [vmem:[%s1 + $0xf0] sm:$0xff]
      %v1847 = vld [vmem:[%s1 + $0xf8] sm:$0xff]
      %v1848 = vld [vmem:[%s1 + $0x100] sm:$0xff]
      %v1849 = vld [vmem:[%s1 + $0x108] sm:$0xff]
      %v1850 = vld [vmem:[%s1 + $0x110] sm:$0xff]
      %v1851 = vld [vmem:[%s1 + $0x118] sm:$0xff]
      %v1852 = vld [vmem:[%s1 + $0x120] sm:$0xff]
      %v1853 = vld [vmem:[%s1 + $0x128] sm:$0xff]
      %v1854 = vld [vmem:[%s1 + $0x130] sm:$0xff]
      %v1855 = vld [vmem:[%s1 + $0x138] sm:$0xff]
      %v1856 = vld [vmem:[%s2] sm:$0x3]
      %v1858 = vlaneseq
      %v1859 = vshrl.u32 %v1858, 7
      %v1860 = vsub.s32 0, %v1859
      %v1861 = vrot.slane %v1856, %v1860
      %v1862 = vlaneseq
      %v1863 = vshrl.u32 %v1862, 7
      %v1864 = vsub.s32 1, %v1863
      %v1865 = vrot.slane %v1856, %v1864
      %v1868 = vsel %vm1621, %v914, 0
      %v1870 = vsel %vm1621, %v916, 0
      %v1872 = vsel %vm1621, %v918, 0
      %v1874 = vsel %vm1621, %v920, 0
      %v1876 = vsel %vm1621, %v922, 0
      %v1878 = vsel %vm1621, %v924, 0
      %v1880 = vsel %vm1621, %v926, 0
      %v1882 = vsel %vm1621, %v928, 0
      %v1884 = vsel %vm1621, %v930, 0
      %v1886 = vsel %vm1621, %v932, 0
      %v1888 = vsel %vm1621, %v934, 0
      %v1890 = vsel %vm1621, %v936, 0
      %v1892 = vsel %vm1621, %v938, 0
      %v1894 = vsel %vm1621, %v940, 0
      %v1896 = vsel %vm1621, %v942, 0
      %v1898 = vsel %vm1621, %v944, 0
      %v1900 = vsel %vm1621, %v946, 0
      %v1902 = vsel %vm1621, %v948, 0
      %v1904 = vsel %vm1621, %v950, 0
      %v1906 = vsel %vm1621, %v952, 0
      %v1908 = vsel %vm1621, %v954, 0
      %v1910 = vsel %vm1621, %v956, 0
      %v1912 = vsel %vm1621, %v958, 0
      %v1914 = vsel %vm1621, %v960, 0
      %v1916 = vsel %vm1621, %v962, 0
      %v1918 = vsel %vm1621, %v964, 0
      %v1920 = vsel %vm1621, %v966, 0
      %v1922 = vsel %vm1621, %v968, 0
      %v1924 = vsel %vm1621, %v970, 0
      %v1926 = vsel %vm1621, %v972, 0
      %v1928 = vsel %vm1621, %v974, 0
      %v1930 = vsel %vm1621, %v976, 0
      %v1932 = vsel %vm1621, %v978, 0
      %v1934 = vsel %vm1621, %v980, 0
      %v1936 = vsel %vm1621, %v982, 0
      %v1938 = vsel %vm1621, %v984, 0
      %v1940 = vsel %vm1621, %v986, 0
      %v1942 = vsel %vm1621, %v988, 0
      %v1944 = vsel %vm1621, %v990, 0
      %v1946 = vsel %vm1621, %v992, 0
      %v1948 = vsel %vm1621, %v994, 0
      %v1950 = vsel %vm1621, %v996, 0
      %v1952 = vsel %vm1621, %v998, 0
      %v1954 = vsel %vm1621, %v1000, 0
      %v1956 = vsel %vm1621, %v1002, 0
      %v1958 = vsel %vm1621, %v1004, 0
      %v1960 = vsel %vm1621, %v1006, 0
      %v1962 = vsel %vm1621, %v1008, 0
      %v1964 = vsel %vm1621, %v1010, 0
      %v1966 = vsel %vm1621, %v1012, 0
      %v1968 = vsel %vm1621, %v1014, 0
      %v1970 = vsel %vm1621, %v1016, 0
      %v1972 = vsel %vm1621, %v1018, 0
      %v1974 = vsel %vm1621, %v1020, 0
      %v1976 = vsel %vm1621, %v1022, 0
      %v1978 = vsel %vm1621, %v1024, 0
      %v1980 = vsel %vm1621, %v1026, 0
      %v1982 = vsel %vm1621, %v1028, 0
      %v1984 = vsel %vm1621, %v1030, 0
      %v1986 = vsel %vm1621, %v1032, 0
      %v1988 = vsel %vm1621, %v1034, 0
      %v1990 = vsel %vm1621, %v1036, 0
      %v1992 = vsel %vm1621, %v1038, 0
      %v1995 = vsel %vm1621, %v1041, 0
      %1997 = vmatprep.subr.mxu0 %v1817
      %1998 = vmatpush1.msra.mxu0 %v1816
      %1999 = vmatprep.subr.mxu0 %v1819
      %2000 = vmatpush1.msra.mxu0 %v1818
      %2001 = vmatprep.subr.mxu0 %v1821
      %2002 = vmatpush1.msra.mxu0 %v1820
      %2003 = vmatprep.subr.mxu0 %v1823
      %2004 = vmatpush1.msra.mxu0 %v1822
      %2005 = vmatprep.subr.mxu0 %v1825
      %2006 = vmatpush1.msra.mxu0 %v1824
      %2007 = vmatprep.subr.mxu0 %v1827
      %2008 = vmatpush1.msra.mxu0 %v1826
      %2009 = vmatprep.subr.mxu0 %v1829
      %2010 = vmatpush1.msra.mxu0 %v1828
      %2011 = vmatprep.subr.mxu0 %v1831
      %2012 = vmatpush1.msra.mxu0 %v1830
      %2013 = vmatprep.subr.mxu0 %v1833
      %2014 = vmatpush1.msra.mxu0 %v1832
      %2015 = vmatprep.subr.mxu0 %v1835
      %2016 = vmatpush1.msra.mxu0 %v1834
      %2017 = vmatprep.subr.mxu0 %v1837
      %2018 = vmatpush1.msra.mxu0 %v1836
      %2019 = vmatprep.subr.mxu0 %v1839
      %2020 = vmatpush1.msra.mxu0 %v1838
      %2021 = vmatprep.subr.mxu0 %v1841
      %2022 = vmatpush1.msra.mxu0 %v1840
      %2023 = vmatprep.subr.mxu0 %v1843
      %2024 = vmatpush1.msra.mxu0 %v1842
      %2025 = vmatprep.subr.mxu0 %v1845
      %2026 = vmatpush1.msra.mxu0 %v1844
      %2027 = vmatprep.subr.mxu0 %v1847
      %2028 = vmatpush1.msra.mxu0 %v1846
      %2029 = vmatprep.subr.mxu0 %v1849
      %2030 = vmatpush1.msra.mxu0 %v1848
      %2031 = vmatprep.subr.mxu0 %v1851
      %2032 = vmatpush1.msra.mxu0 %v1850
      %2033 = vmatprep.subr.mxu0 %v1853
      %2034 = vmatpush1.msra.mxu0 %v1852
      %2035 = vmatprep.subr.mxu0 %v1855
      %2036 = vmatpush1.msra.mxu0 %v1854
      %2037 = vmatprep.subr.mxu0 0.0
      %2038 = vmatpush1.msra.mxu0 0.0
      %2039 = vmatprep.subr.mxu0 0.0
      %2040 = vmatpush1.msra.mxu0 0.0
      %2041 = vmatprep.subr.mxu0 0.0
      %2042 = vmatpush1.msra.mxu0 0.0
      %2043 = vmatprep.subr.mxu0 0.0
      %2044 = vmatpush1.msra.mxu0 0.0
      %2045 = vmatprep.subr.mxu0 0.0
      %2046 = vmatpush1.msra.mxu0 0.0
      %2047 = vmatprep.subr.mxu0 0.0
      %2048 = vmatpush1.msra.mxu0 0.0
      %2049 = vmatprep.subr.mxu0 0.0
      %2050 = vmatpush1.msra.mxu0 0.0
      %2051 = vmatprep.subr.mxu0 0.0
      %2052 = vmatpush1.msra.mxu0 0.0
      %2053 = vmatprep.subr.mxu0 0.0
      %2054 = vmatpush1.msra.mxu0 0.0
      %2055 = vmatprep.subr.mxu0 0.0
      %2056 = vmatpush1.msra.mxu0 0.0
      %2057 = vmatprep.subr.mxu0 0.0
      %2058 = vmatpush1.msra.mxu0 0.0
      %2059 = vmatprep.subr.mxu0 0.0
      %2060 = vmatpush1.msra.mxu0 0.0
      %2061 = vmatprep.mubr.f32.mxu0 %v1868
      %2062 = vmatmul.mubr.f32.gmra.mrb[0].mxu0 %v1752
      %v2063 = vpop.f32.mrb[0].mxu0
      %v2064 = vadd.f32 %v1861, %v2063
      %v2065 = vpop.f32.mrb[0].mxu0
      %v2066 = vadd.f32 %v1865, %v2065
      %2067 = vmatprep.mubr.f32.mxu0 %v1870
      %2068 = vmatmul.mubr.f32.gmra.mrb[0].mxu0 %v1753
      %v2069 = vpop.f32.mrb[0].mxu0
      %v2070 = vadd.f32 %v1861, %v2069
      %v2071 = vpop.f32.mrb[0].mxu0
      %v2072 = vadd.f32 %v1865, %v2071
      %2073 = vmatprep.mubr.f32.mxu0 %v1872
      %2074 = vmatmul.mubr.f32.gmra.mrb[0].mxu0 %v1754
      %v2075 = vpop.f32.mrb[0].mxu0
      %v2076 = vadd.f32 %v1861, %v2075
      %v2077 = vpop.f32.mrb[0].mxu0
      %v2078 = vadd.f32 %v1865, %v2077
      %2079 = vmatprep.mubr.f32.mxu0 %v1874
      %2080 = vmatmul.mubr.f32.gmra.mrb[0].mxu0 %v1755
      %v2081 = vpop.f32.mrb[0].mxu0
      %v2082 = vadd.f32 %v1861, %v2081
      %v2083 = vpop.f32.mrb[0].mxu0
      %v2084 = vadd.f32 %v1865, %v2083
      %2085 = vmatprep.mubr.f32.mxu0 %v1876
      %2086 = vmatmul.mubr.f32.gmra.mrb[0].mxu0 %v1756
      %v2087 = vpop.f32.mrb[0].mxu0
      %v2088 = vadd.f32 %v1861, %v2087
      %v2089 = vpop.f32.mrb[0].mxu0
      %v2090 = vadd.f32 %v1865, %v2089
      %2091 = vmatprep.mubr.f32.mxu0 %v1878
      %2092 = vmatmul.mubr.f32.gmra.mrb[0].mxu0 %v1757
      %v2093 = vpop.f32.mrb[0].mxu0
      %v2094 = vadd.f32 %v1861, %v2093
      %v2095 = vpop.f32.mrb[0].mxu0
      %v2096 = vadd.f32 %v1865, %v2095
      %2097 = vmatprep.mubr.f32.mxu0 %v1880
      %2098 = vmatmul.mubr.f32.gmra.mrb[0].mxu0 %v1758
      %v2099 = vpop.f32.mrb[0].mxu0
      %v2100 = vadd.f32 %v1861, %v2099
      %v2101 = vpop.f32.mrb[0].mxu0
      %v2102 = vadd.f32 %v1865, %v2101
      %2103 = vmatprep.mubr.f32.mxu0 %v1882
      %2104 = vmatmul.mubr.f32.gmra.mrb[0].mxu0 %v1759
      %v2105 = vpop.f32.mrb[0].mxu0
      %v2106 = vadd.f32 %v1861, %v2105
      %v2107 = vpop.f32.mrb[0].mxu0
      %v2108 = vadd.f32 %v1865, %v2107
      %2109 = vmatprep.mubr.f32.mxu0 %v1884
      %2110 = vmatmul.mubr.f32.gmra.mrb[0].mxu0 %v1760
      %v2111 = vpop.f32.mrb[0].mxu0
      %v2112 = vadd.f32 %v1861, %v2111
      %v2113 = vpop.f32.mrb[0].mxu0
      %v2114 = vadd.f32 %v1865, %v2113
      %2115 = vmatprep.mubr.f32.mxu0 %v1886
      %2116 = vmatmul.mubr.f32.gmra.mrb[0].mxu0 %v1761
      %v2117 = vpop.f32.mrb[0].mxu0
      %v2118 = vadd.f32 %v1861, %v2117
      %v2119 = vpop.f32.mrb[0].mxu0
      %v2120 = vadd.f32 %v1865, %v2119
      %2121 = vmatprep.mubr.f32.mxu0 %v1888
      %2122 = vmatmul.mubr.f32.gmra.mrb[0].mxu0 %v1762
      %v2123 = vpop.f32.mrb[0].mxu0
      %v2124 = vadd.f32 %v1861, %v2123
      %v2125 = vpop.f32.mrb[0].mxu0
      %v2126 = vadd.f32 %v1865, %v2125
      %2127 = vmatprep.mubr.f32.mxu0 %v1890
      %2128 = vmatmul.mubr.f32.gmra.mrb[0].mxu0 %v1763
      %v2129 = vpop.f32.mrb[0].mxu0
      %v2130 = vadd.f32 %v1861, %v2129
      %v2131 = vpop.f32.mrb[0].mxu0
      %v2132 = vadd.f32 %v1865, %v2131
      %2133 = vmatprep.mubr.f32.mxu0 %v1892
      %2134 = vmatmul.mubr.f32.gmra.mrb[0].mxu0 %v1764
      %v2135 = vpop.f32.mrb[0].mxu0
      %v2136 = vadd.f32 %v1861, %v2135
      %v2137 = vpop.f32.mrb[0].mxu0
      %v2138 = vadd.f32 %v1865, %v2137
      %2139 = vmatprep.mubr.f32.mxu0 %v1894
      %2140 = vmatmul.mubr.f32.gmra.mrb[0].mxu0 %v1765
      %v2141 = vpop.f32.mrb[0].mxu0
      %v2142 = vadd.f32 %v1861, %v2141
      %v2143 = vpop.f32.mrb[0].mxu0
      %v2144 = vadd.f32 %v1865, %v2143
      %2145 = vmatprep.mubr.f32.mxu0 %v1896
      %2146 = vmatmul.mubr.f32.gmra.mrb[0].mxu0 %v1766
      %v2147 = vpop.f32.mrb[0].mxu0
      %v2148 = vadd.f32 %v1861, %v2147
      %v2149 = vpop.f32.mrb[0].mxu0
      %v2150 = vadd.f32 %v1865, %v2149
      %2151 = vmatprep.mubr.f32.mxu0 %v1898
      %2152 = vmatmul.mubr.f32.gmra.mrb[0].mxu0 %v1767
      %v2153 = vpop.f32.mrb[0].mxu0
      %v2154 = vadd.f32 %v1861, %v2153
      %v2155 = vpop.f32.mrb[0].mxu0
      %v2156 = vadd.f32 %v1865, %v2155
      %2157 = vmatprep.mubr.f32.mxu0 %v1900
      %2158 = vmatmul.mubr.f32.gmra.mrb[0].mxu0 %v1768
      %v2159 = vpop.f32.mrb[0].mxu0
      %v2160 = vadd.f32 %v1861, %v2159
      %v2161 = vpop.f32.mrb[0].mxu0
      %v2162 = vadd.f32 %v1865, %v2161
      %2163 = vmatprep.mubr.f32.mxu0 %v1902
      %2164 = vmatmul.mubr.f32.gmra.mrb[0].mxu0 %v1769
      %v2165 = vpop.f32.mrb[0].mxu0
      %v2166 = vadd.f32 %v1861, %v2165
      %v2167 = vpop.f32.mrb[0].mxu0
      %v2168 = vadd.f32 %v1865, %v2167
      %2169 = vmatprep.mubr.f32.mxu0 %v1904
      %2170 = vmatmul.mubr.f32.gmra.mrb[0].mxu0 %v1770
      %v2171 = vpop.f32.mrb[0].mxu0
      %v2172 = vadd.f32 %v1861, %v2171
      %v2173 = vpop.f32.mrb[0].mxu0
      %v2174 = vadd.f32 %v1865, %v2173
      %2175 = vmatprep.mubr.f32.mxu0 %v1906
      %2176 = vmatmul.mubr.f32.gmra.mrb[0].mxu0 %v1771
      %v2177 = vpop.f32.mrb[0].mxu0
      %v2178 = vadd.f32 %v1861, %v2177
      %v2179 = vpop.f32.mrb[0].mxu0
      %v2180 = vadd.f32 %v1865, %v2179
      %2181 = vmatprep.mubr.f32.mxu0 %v1908
      %2182 = vmatmul.mubr.f32.gmra.mrb[0].mxu0 %v1772
      %v2183 = vpop.f32.mrb[0].mxu0
      %v2184 = vadd.f32 %v1861, %v2183
      %v2185 = vpop.f32.mrb[0].mxu0
      %v2186 = vadd.f32 %v1865, %v2185
      %2187 = vmatprep.mubr.f32.mxu0 %v1910
      %2188 = vmatmul.mubr.f32.gmra.mrb[0].mxu0 %v1773
      %v2189 = vpop.f32.mrb[0].mxu0
      %v2190 = vadd.f32 %v1861, %v2189
      %v2191 = vpop.f32.mrb[0].mxu0
      %v2192 = vadd.f32 %v1865, %v2191
      %2193 = vmatprep.mubr.f32.mxu0 %v1912
      %2194 = vmatmul.mubr.f32.gmra.mrb[0].mxu0 %v1774
      %v2195 = vpop.f32.mrb[0].mxu0
      %v2196 = vadd.f32 %v1861, %v2195
      %v2197 = vpop.f32.mrb[0].mxu0
      %v2198 = vadd.f32 %v1865, %v2197
      %2199 = vmatprep.mubr.f32.mxu0 %v1914
      %2200 = vmatmul.mubr.f32.gmra.mrb[0].mxu0 %v1775
      %v2201 = vpop.f32.mrb[0].mxu0
      %v2202 = vadd.f32 %v1861, %v2201
      %v2203 = vpop.f32.mrb[0].mxu0
      %v2204 = vadd.f32 %v1865, %v2203
      %2205 = vmatprep.mubr.f32.mxu0 %v1916
      %2206 = vmatmul.mubr.f32.gmra.mrb[0].mxu0 %v1776
      %v2207 = vpop.f32.mrb[0].mxu0
      %v2208 = vadd.f32 %v1861, %v2207
      %v2209 = vpop.f32.mrb[0].mxu0
      %v2210 = vadd.f32 %v1865, %v2209
      %2211 = vmatprep.mubr.f32.mxu0 %v1918
      %2212 = vmatmul.mubr.f32.gmra.mrb[0].mxu0 %v1777
      %v2213 = vpop.f32.mrb[0].mxu0
      %v2214 = vadd.f32 %v1861, %v2213
      %v2215 = vpop.f32.mrb[0].mxu0
      %v2216 = vadd.f32 %v1865, %v2215
      %2217 = vmatprep.mubr.f32.mxu0 %v1920
      %2218 = vmatmul.mubr.f32.gmra.mrb[0].mxu0 %v1778
      %v2219 = vpop.f32.mrb[0].mxu0
      %v2220 = vadd.f32 %v1861, %v2219
      %v2221 = vpop.f32.mrb[0].mxu0
      %v2222 = vadd.f32 %v1865, %v2221
      %2223 = vmatprep.mubr.f32.mxu0 %v1922
      %2224 = vmatmul.mubr.f32.gmra.mrb[0].mxu0 %v1779
      %v2225 = vpop.f32.mrb[0].mxu0
      %v2226 = vadd.f32 %v1861, %v2225
      %v2227 = vpop.f32.mrb[0].mxu0
      %v2228 = vadd.f32 %v1865, %v2227
      %2229 = vmatprep.mubr.f32.mxu0 %v1924
      %2230 = vmatmul.mubr.f32.gmra.mrb[0].mxu0 %v1780
      %v2231 = vpop.f32.mrb[0].mxu0
      %v2232 = vadd.f32 %v1861, %v2231
      %v2233 = vpop.f32.mrb[0].mxu0
      %v2234 = vadd.f32 %v1865, %v2233
      %2235 = vmatprep.mubr.f32.mxu0 %v1926
      %2236 = vmatmul.mubr.f32.gmra.mrb[0].mxu0 %v1781
      %v2237 = vpop.f32.mrb[0].mxu0
      %v2238 = vadd.f32 %v1861, %v2237
      %v2239 = vpop.f32.mrb[0].mxu0
      %v2240 = vadd.f32 %v1865, %v2239
      %2241 = vmatprep.mubr.f32.mxu0 %v1928
      %2242 = vmatmul.mubr.f32.gmra.mrb[0].mxu0 %v1782
      %v2243 = vpop.f32.mrb[0].mxu0
      %v2244 = vadd.f32 %v1861, %v2243
      %v2245 = vpop.f32.mrb[0].mxu0
      %v2246 = vadd.f32 %v1865, %v2245
      %2247 = vmatprep.mubr.f32.mxu0 %v1930
      %2248 = vmatmul.mubr.f32.gmra.mrb[0].mxu0 %v1783
      %v2249 = vpop.f32.mrb[0].mxu0
      %v2250 = vadd.f32 %v1861, %v2249
      %v2251 = vpop.f32.mrb[0].mxu0
      %v2252 = vadd.f32 %v1865, %v2251
      %2253 = vmatprep.mubr.f32.mxu0 %v1932
      %2254 = vmatmul.mubr.f32.gmra.mrb[0].mxu0 %v1784
      %v2255 = vpop.f32.mrb[0].mxu0
      %v2256 = vadd.f32 %v1861, %v2255
      %v2257 = vpop.f32.mrb[0].mxu0
      %v2258 = vadd.f32 %v1865, %v2257
      %2259 = vmatprep.mubr.f32.mxu0 %v1934
      %2260 = vmatmul.mubr.f32.gmra.mrb[0].mxu0 %v1785
      %v2261 = vpop.f32.mrb[0].mxu0
      %v2262 = vadd.f32 %v1861, %v2261
      %v2263 = vpop.f32.mrb[0].mxu0
      %v2264 = vadd.f32 %v1865, %v2263
      %2265 = vmatprep.mubr.f32.mxu0 %v1936
      %2266 = vmatmul.mubr.f32.gmra.mrb[0].mxu0 %v1786
      %v2267 = vpop.f32.mrb[0].mxu0
      %v2268 = vadd.f32 %v1861, %v2267
      %v2269 = vpop.f32.mrb[0].mxu0
      %v2270 = vadd.f32 %v1865, %v2269
      %2271 = vmatprep.mubr.f32.mxu0 %v1938
      %2272 = vmatmul.mubr.f32.gmra.mrb[0].mxu0 %v1787
      %v2273 = vpop.f32.mrb[0].mxu0
      %v2274 = vadd.f32 %v1861, %v2273
      %v2275 = vpop.f32.mrb[0].mxu0
      %v2276 = vadd.f32 %v1865, %v2275
      %2277 = vmatprep.mubr.f32.mxu0 %v1940
      %2278 = vmatmul.mubr.f32.gmra.mrb[0].mxu0 %v1788
      %v2279 = vpop.f32.mrb[0].mxu0
      %v2280 = vadd.f32 %v1861, %v2279
      %v2281 = vpop.f32.mrb[0].mxu0
      %v2282 = vadd.f32 %v1865, %v2281
      %2283 = vmatprep.mubr.f32.mxu0 %v1942
      %2284 = vmatmul.mubr.f32.gmra.mrb[0].mxu0 %v1789
      %v2285 = vpop.f32.mrb[0].mxu0
      %v2286 = vadd.f32 %v1861, %v2285
      %v2287 = vpop.f32.mrb[0].mxu0
      %v2288 = vadd.f32 %v1865, %v2287
      %2289 = vmatprep.mubr.f32.mxu0 %v1944
      %2290 = vmatmul.mubr.f32.gmra.mrb[0].mxu0 %v1790
      %v2291 = vpop.f32.mrb[0].mxu0
      %v2292 = vadd.f32 %v1861, %v2291
      %v2293 = vpop.f32.mrb[0].mxu0
      %v2294 = vadd.f32 %v1865, %v2293
      %2295 = vmatprep.mubr.f32.mxu0 %v1946
      %2296 = vmatmul.mubr.f32.gmra.mrb[0].mxu0 %v1791
      %v2297 = vpop.f32.mrb[0].mxu0
      %v2298 = vadd.f32 %v1861, %v2297
      %v2299 = vpop.f32.mrb[0].mxu0
      %v2300 = vadd.f32 %v1865, %v2299
      %2301 = vmatprep.mubr.f32.mxu0 %v1948
      %2302 = vmatmul.mubr.f32.gmra.mrb[0].mxu0 %v1792
      %v2303 = vpop.f32.mrb[0].mxu0
      %v2304 = vadd.f32 %v1861, %v2303
      %v2305 = vpop.f32.mrb[0].mxu0
      %v2306 = vadd.f32 %v1865, %v2305
      %2307 = vmatprep.mubr.f32.mxu0 %v1950
      %2308 = vmatmul.mubr.f32.gmra.mrb[0].mxu0 %v1793
      %v2309 = vpop.f32.mrb[0].mxu0
      %v2310 = vadd.f32 %v1861, %v2309
      %v2311 = vpop.f32.mrb[0].mxu0
      %v2312 = vadd.f32 %v1865, %v2311
      %2313 = vmatprep.mubr.f32.mxu0 %v1952
      %2314 = vmatmul.mubr.f32.gmra.mrb[0].mxu0 %v1794
      %v2315 = vpop.f32.mrb[0].mxu0
      %v2316 = vadd.f32 %v1861, %v2315
      %v2317 = vpop.f32.mrb[0].mxu0
      %v2318 = vadd.f32 %v1865, %v2317
      %2319 = vmatprep.mubr.f32.mxu0 %v1954
      %2320 = vmatmul.mubr.f32.gmra.mrb[0].mxu0 %v1795
      %v2321 = vpop.f32.mrb[0].mxu0
      %v2322 = vadd.f32 %v1861, %v2321
      %v2323 = vpop.f32.mrb[0].mxu0
      %v2324 = vadd.f32 %v1865, %v2323
      %2325 = vmatprep.mubr.f32.mxu0 %v1956
      %2326 = vmatmul.mubr.f32.gmra.mrb[0].mxu0 %v1796
      %v2327 = vpop.f32.mrb[0].mxu0
      %v2328 = vadd.f32 %v1861, %v2327
      %v2329 = vpop.f32.mrb[0].mxu0
      %v2330 = vadd.f32 %v1865, %v2329
      %2331 = vmatprep.mubr.f32.mxu0 %v1958
      %2332 = vmatmul.mubr.f32.gmra.mrb[0].mxu0 %v1797
      %v2333 = vpop.f32.mrb[0].mxu0
      %v2334 = vadd.f32 %v1861, %v2333
      %v2335 = vpop.f32.mrb[0].mxu0
      %v2336 = vadd.f32 %v1865, %v2335
      %2337 = vmatprep.mubr.f32.mxu0 %v1960
      %2338 = vmatmul.mubr.f32.gmra.mrb[0].mxu0 %v1798
      %v2339 = vpop.f32.mrb[0].mxu0
      %v2340 = vadd.f32 %v1861, %v2339
      %v2341 = vpop.f32.mrb[0].mxu0
      %v2342 = vadd.f32 %v1865, %v2341
      %2343 = vmatprep.mubr.f32.mxu0 %v1962
      %2344 = vmatmul.mubr.f32.gmra.mrb[0].mxu0 %v1799
      %v2345 = vpop.f32.mrb[0].mxu0
      %v2346 = vadd.f32 %v1861, %v2345
      %v2347 = vpop.f32.mrb[0].mxu0
      %v2348 = vadd.f32 %v1865, %v2347
      %2349 = vmatprep.mubr.f32.mxu0 %v1964
      %2350 = vmatmul.mubr.f32.gmra.mrb[0].mxu0 %v1800
      %v2351 = vpop.f32.mrb[0].mxu0
      %v2352 = vadd.f32 %v1861, %v2351
      %v2353 = vpop.f32.mrb[0].mxu0
      %v2354 = vadd.f32 %v1865, %v2353
      %2355 = vmatprep.mubr.f32.mxu0 %v1966
      %2356 = vmatmul.mubr.f32.gmra.mrb[0].mxu0 %v1801
      %v2357 = vpop.f32.mrb[0].mxu0
      %v2358 = vadd.f32 %v1861, %v2357
      %v2359 = vpop.f32.mrb[0].mxu0
      %v2360 = vadd.f32 %v1865, %v2359
      %2361 = vmatprep.mubr.f32.mxu0 %v1968
      %2362 = vmatmul.mubr.f32.gmra.mrb[0].mxu0 %v1802
      %v2363 = vpop.f32.mrb[0].mxu0
      %v2364 = vadd.f32 %v1861, %v2363
      %v2365 = vpop.f32.mrb[0].mxu0
      %v2366 = vadd.f32 %v1865, %v2365
      %2367 = vmatprep.mubr.f32.mxu0 %v1970
      %2368 = vmatmul.mubr.f32.gmra.mrb[0].mxu0 %v1803
      %v2369 = vpop.f32.mrb[0].mxu0
      %v2370 = vadd.f32 %v1861, %v2369
      %v2371 = vpop.f32.mrb[0].mxu0
      %v2372 = vadd.f32 %v1865, %v2371
      %2373 = vmatprep.mubr.f32.mxu0 %v1972
      %2374 = vmatmul.mubr.f32.gmra.mrb[0].mxu0 %v1804
      %v2375 = vpop.f32.mrb[0].mxu0
      %v2376 = vadd.f32 %v1861, %v2375
      %v2377 = vpop.f32.mrb[0].mxu0
      %v2378 = vadd.f32 %v1865, %v2377
      %2379 = vmatprep.mubr.f32.mxu0 %v1974
      %2380 = vmatmul.mubr.f32.gmra.mrb[0].mxu0 %v1805
      %v2381 = vpop.f32.mrb[0].mxu0
      %v2382 = vadd.f32 %v1861, %v2381
      %v2383 = vpop.f32.mrb[0].mxu0
      %v2384 = vadd.f32 %v1865, %v2383
      %2385 = vmatprep.mubr.f32.mxu0 %v1976
      %2386 = vmatmul.mubr.f32.gmra.mrb[0].mxu0 %v1806
      %v2387 = vpop.f32.mrb[0].mxu0
      %v2388 = vadd.f32 %v1861, %v2387
      %v2389 = vpop.f32.mrb[0].mxu0
      %v2390 = vadd.f32 %v1865, %v2389
      %2391 = vmatprep.mubr.f32.mxu0 %v1978
      %2392 = vmatmul.mubr.f32.gmra.mrb[0].mxu0 %v1807
      %v2393 = vpop.f32.mrb[0].mxu0
      %v2394 = vadd.f32 %v1861, %v2393
      %v2395 = vpop.f32.mrb[0].mxu0
      %v2396 = vadd.f32 %v1865, %v2395
      %2397 = vmatprep.mubr.f32.mxu0 %v1980
      %2398 = vmatmul.mubr.f32.gmra.mrb[0].mxu0 %v1808
      %v2399 = vpop.f32.mrb[0].mxu0
      %v2400 = vadd.f32 %v1861, %v2399
      %v2401 = vpop.f32.mrb[0].mxu0
      %v2402 = vadd.f32 %v1865, %v2401
      %2403 = vmatprep.mubr.f32.mxu0 %v1982
      %2404 = vmatmul.mubr.f32.gmra.mrb[0].mxu0 %v1809
      %v2405 = vpop.f32.mrb[0].mxu0
      %v2406 = vadd.f32 %v1861, %v2405
      %v2407 = vpop.f32.mrb[0].mxu0
      %v2408 = vadd.f32 %v1865, %v2407
      %2409 = vmatprep.mubr.f32.mxu0 %v1984
      %2410 = vmatmul.mubr.f32.gmra.mrb[0].mxu0 %v1810
      %v2411 = vpop.f32.mrb[0].mxu0
      %v2412 = vadd.f32 %v1861, %v2411
      %v2413 = vpop.f32.mrb[0].mxu0
      %v2414 = vadd.f32 %v1865, %v2413
      %2415 = vmatprep.mubr.f32.mxu0 %v1986
      %2416 = vmatmul.mubr.f32.gmra.mrb[0].mxu0 %v1811
      %v2417 = vpop.f32.mrb[0].mxu0
      %v2418 = vadd.f32 %v1861, %v2417
      %v2419 = vpop.f32.mrb[0].mxu0
      %v2420 = vadd.f32 %v1865, %v2419
      %2421 = vmatprep.mubr.f32.mxu0 %v1988
      %2422 = vmatmul.mubr.f32.gmra.mrb[0].mxu0 %v1812
      %v2423 = vpop.f32.mrb[0].mxu0
      %v2424 = vadd.f32 %v1861, %v2423
      %v2425 = vpop.f32.mrb[0].mxu0
      %v2426 = vadd.f32 %v1865, %v2425
      %2427 = vmatprep.mubr.f32.mxu0 %v1990
      %2428 = vmatmul.mubr.f32.gmra.mrb[0].mxu0 %v1813
      %v2429 = vpop.f32.mrb[0].mxu0
      %v2430 = vadd.f32 %v1861, %v2429
      %v2431 = vpop.f32.mrb[0].mxu0
      %v2432 = vadd.f32 %v1865, %v2431
      %2433 = vmatprep.mubr.f32.mxu0 %v1992
      %2434 = vmatmul.mubr.f32.gmra.mrb[0].mxu0 %v1814
      %v2435 = vpop.f32.mrb[0].mxu0
      %v2436 = vadd.f32 %v1861, %v2435
      %v2437 = vpop.f32.mrb[0].mxu0
      %v2438 = vadd.f32 %v1865, %v2437
      %2439 = vmatprep.mubr.f32.mxu0 %v1995
      %2440 = vmatmul.mubr.f32.gmra.mrb[0].mxu0 %v1815
      %v2441 = vpop.f32.mrb[0].mxu0
      %v2442 = vadd.f32 %v1861, %v2441
      %v2443 = vpop.f32.mrb[0].mxu0
      %v2444 = vadd.f32 %v1865, %v2443
      %2445 = vdwg.mxu0
      %v2446 = vmax.f32 %v2064, 0.0
      %v2447 = vmax.f32 %v2066, 0.0
      %v2448 = vmax.f32 %v2070, 0.0
      %v2449 = vmax.f32 %v2072, 0.0
      %v2450 = vmax.f32 %v2076, 0.0
      %v2451 = vmax.f32 %v2078, 0.0
      %v2452 = vmax.f32 %v2082, 0.0
      %v2453 = vmax.f32 %v2084, 0.0
      %v2454 = vmax.f32 %v2088, 0.0
      %v2455 = vmax.f32 %v2090, 0.0
      %v2456 = vmax.f32 %v2094, 0.0
      %v2457 = vmax.f32 %v2096, 0.0
      %v2458 = vmax.f32 %v2100, 0.0
      %v2459 = vmax.f32 %v2102, 0.0
      %v2460 = vmax.f32 %v2106, 0.0
      %v2461 = vmax.f32 %v2108, 0.0
      %v2462 = vmax.f32 %v2112, 0.0
      %v2463 = vmax.f32 %v2114, 0.0
      %v2464 = vmax.f32 %v2118, 0.0
      %v2465 = vmax.f32 %v2120, 0.0
      %v2466 = vmax.f32 %v2124, 0.0
      %v2467 = vmax.f32 %v2126, 0.0
      %v2468 = vmax.f32 %v2130, 0.0
      %v2469 = vmax.f32 %v2132, 0.0
      %v2470 = vmax.f32 %v2136, 0.0
      %v2471 = vmax.f32 %v2138, 0.0
      %v2472 = vmax.f32 %v2142, 0.0
      %v2473 = vmax.f32 %v2144, 0.0
      %v2474 = vmax.f32 %v2148, 0.0
      %v2475 = vmax.f32 %v2150, 0.0
      %v2476 = vmax.f32 %v2154, 0.0
      %v2477 = vmax.f32 %v2156, 0.0
      %v2478 = vmax.f32 %v2160, 0.0
      %v2479 = vmax.f32 %v2162, 0.0
      %v2480 = vmax.f32 %v2166, 0.0
      %v2481 = vmax.f32 %v2168, 0.0
      %v2482 = vmax.f32 %v2172, 0.0
      %v2483 = vmax.f32 %v2174, 0.0
      %v2484 = vmax.f32 %v2178, 0.0
      %v2485 = vmax.f32 %v2180, 0.0
      %v2486 = vmax.f32 %v2184, 0.0
      %v2487 = vmax.f32 %v2186, 0.0
      %v2488 = vmax.f32 %v2190, 0.0
      %v2489 = vmax.f32 %v2192, 0.0
      %v2490 = vmax.f32 %v2196, 0.0
      %v2491 = vmax.f32 %v2198, 0.0
      %v2492 = vmax.f32 %v2202, 0.0
      %v2493 = vmax.f32 %v2204, 0.0
      %v2494 = vmax.f32 %v2208, 0.0
      %v2495 = vmax.f32 %v2210, 0.0
      %v2496 = vmax.f32 %v2214, 0.0
      %v2497 = vmax.f32 %v2216, 0.0
      %v2498 = vmax.f32 %v2220, 0.0
      %v2499 = vmax.f32 %v2222, 0.0
      %v2500 = vmax.f32 %v2226, 0.0
      %v2501 = vmax.f32 %v2228, 0.0
      %v2502 = vmax.f32 %v2232, 0.0
      %v2503 = vmax.f32 %v2234, 0.0
      %v2504 = vmax.f32 %v2238, 0.0
      %v2505 = vmax.f32 %v2240, 0.0
      %v2506 = vmax.f32 %v2244, 0.0
      %v2507 = vmax.f32 %v2246, 0.0
      %v2508 = vmax.f32 %v2250, 0.0
      %v2509 = vmax.f32 %v2252, 0.0
      %v2510 = vmax.f32 %v2256, 0.0
      %v2511 = vmax.f32 %v2258, 0.0
      %v2512 = vmax.f32 %v2262, 0.0
      %v2513 = vmax.f32 %v2264, 0.0
      %v2514 = vmax.f32 %v2268, 0.0
      %v2515 = vmax.f32 %v2270, 0.0
      %v2516 = vmax.f32 %v2274, 0.0
      %v2517 = vmax.f32 %v2276, 0.0
      %v2518 = vmax.f32 %v2280, 0.0
      %v2519 = vmax.f32 %v2282, 0.0
      %v2520 = vmax.f32 %v2286, 0.0
      %v2521 = vmax.f32 %v2288, 0.0
      %v2522 = vmax.f32 %v2292, 0.0
      %v2523 = vmax.f32 %v2294, 0.0
      %v2524 = vmax.f32 %v2298, 0.0
      %v2525 = vmax.f32 %v2300, 0.0
      %v2526 = vmax.f32 %v2304, 0.0
      %v2527 = vmax.f32 %v2306, 0.0
      %v2528 = vmax.f32 %v2310, 0.0
      %v2529 = vmax.f32 %v2312, 0.0
      %v2530 = vmax.f32 %v2316, 0.0
      %v2531 = vmax.f32 %v2318, 0.0
      %v2532 = vmax.f32 %v2322, 0.0
      %v2533 = vmax.f32 %v2324, 0.0
      %v2534 = vmax.f32 %v2328, 0.0
      %v2535 = vmax.f32 %v2330, 0.0
      %v2536 = vmax.f32 %v2334, 0.0
      %v2537 = vmax.f32 %v2336, 0.0
      %v2538 = vmax.f32 %v2340, 0.0
      %v2539 = vmax.f32 %v2342, 0.0
      %v2540 = vmax.f32 %v2346, 0.0
      %v2541 = vmax.f32 %v2348, 0.0
      %v2542 = vmax.f32 %v2352, 0.0
      %v2543 = vmax.f32 %v2354, 0.0
      %v2544 = vmax.f32 %v2358, 0.0
      %v2545 = vmax.f32 %v2360, 0.0
      %v2546 = vmax.f32 %v2364, 0.0
      %v2547 = vmax.f32 %v2366, 0.0
      %v2548 = vmax.f32 %v2370, 0.0
      %v2549 = vmax.f32 %v2372, 0.0
      %v2550 = vmax.f32 %v2376, 0.0
      %v2551 = vmax.f32 %v2378, 0.0
      %v2552 = vmax.f32 %v2382, 0.0
      %v2553 = vmax.f32 %v2384, 0.0
      %v2554 = vmax.f32 %v2388, 0.0
      %v2555 = vmax.f32 %v2390, 0.0
      %v2556 = vmax.f32 %v2394, 0.0
      %v2557 = vmax.f32 %v2396, 0.0
      %v2558 = vmax.f32 %v2400, 0.0
      %v2559 = vmax.f32 %v2402, 0.0
      %v2560 = vmax.f32 %v2406, 0.0
      %v2561 = vmax.f32 %v2408, 0.0
      %v2562 = vmax.f32 %v2412, 0.0
      %v2563 = vmax.f32 %v2414, 0.0
      %v2564 = vmax.f32 %v2418, 0.0
      %v2565 = vmax.f32 %v2420, 0.0
      %v2566 = vmax.f32 %v2424, 0.0
      %v2567 = vmax.f32 %v2426, 0.0
      %v2568 = vmax.f32 %v2430, 0.0
      %v2569 = vmax.f32 %v2432, 0.0
      %v2570 = vmax.f32 %v2436, 0.0
      %v2571 = vmax.f32 %v2438, 0.0
      %v2572 = vmax.f32 %v2442, 0.0
      %v2573 = vmax.f32 %v2444, 0.0
      %2702 = vrot.lane.b32.xlu0 %v2446, 127
      %v2703 = vpop.permute.xlu0 %2702
      %2704 = vrot.lane.b32.xlu0 %v2447, 127
      %v2705 = vpop.permute.xlu0 %2704
      %2706 = vrot.lane.b32.xlu0 %v2448, 127
      %v2707 = vpop.permute.xlu0 %2706
      %2708 = vrot.lane.b32.xlu0 %v2449, 127
      %v2709 = vpop.permute.xlu0 %2708
      %2710 = vrot.lane.b32.xlu0 %v2450, 127
      %v2711 = vpop.permute.xlu0 %2710
      %2712 = vrot.lane.b32.xlu0 %v2451, 127
      %v2713 = vpop.permute.xlu0 %2712
      %2714 = vrot.lane.b32.xlu0 %v2452, 127
      %v2715 = vpop.permute.xlu0 %2714
      %2716 = vrot.lane.b32.xlu0 %v2453, 127
      %v2717 = vpop.permute.xlu0 %2716
      %2718 = vrot.lane.b32.xlu0 %v2454, 127
      %v2719 = vpop.permute.xlu0 %2718
      %2720 = vrot.lane.b32.xlu0 %v2455, 127
      %v2721 = vpop.permute.xlu0 %2720
      %2722 = vrot.lane.b32.xlu0 %v2456, 127
      %v2723 = vpop.permute.xlu0 %2722
      %2724 = vrot.lane.b32.xlu0 %v2457, 127
      %v2725 = vpop.permute.xlu0 %2724
      %2726 = vrot.lane.b32.xlu0 %v2458, 127
      %v2727 = vpop.permute.xlu0 %2726
      %2728 = vrot.lane.b32.xlu0 %v2459, 127
      %v2729 = vpop.permute.xlu0 %2728
      %2730 = vrot.lane.b32.xlu0 %v2460, 127
      %v2731 = vpop.permute.xlu0 %2730
      %2732 = vrot.lane.b32.xlu0 %v2461, 127
      %v2733 = vpop.permute.xlu0 %2732
      %2734 = vrot.lane.b32.xlu0 %v2462, 127
      %v2735 = vpop.permute.xlu0 %2734
      %2736 = vrot.lane.b32.xlu0 %v2463, 127
      %v2737 = vpop.permute.xlu0 %2736
      %2738 = vrot.lane.b32.xlu0 %v2464, 127
      %v2739 = vpop.permute.xlu0 %2738
      %2740 = vrot.lane.b32.xlu0 %v2465, 127
      %v2741 = vpop.permute.xlu0 %2740
      %2742 = vrot.lane.b32.xlu0 %v2466, 127
      %v2743 = vpop.permute.xlu0 %2742
      %2744 = vrot.lane.b32.xlu0 %v2467, 127
      %v2745 = vpop.permute.xlu0 %2744
      %2746 = vrot.lane.b32.xlu0 %v2468, 127
      %v2747 = vpop.permute.xlu0 %2746
      %2748 = vrot.lane.b32.xlu0 %v2469, 127
      %v2749 = vpop.permute.xlu0 %2748
      %2750 = vrot.lane.b32.xlu0 %v2470, 127
      %v2751 = vpop.permute.xlu0 %2750
      %2752 = vrot.lane.b32.xlu0 %v2471, 127
      %v2753 = vpop.permute.xlu0 %2752
      %2754 = vrot.lane.b32.xlu0 %v2472, 127
      %v2755 = vpop.permute.xlu0 %2754
      %2756 = vrot.lane.b32.xlu0 %v2473, 127
      %v2757 = vpop.permute.xlu0 %2756
      %2758 = vrot.lane.b32.xlu0 %v2474, 127
      %v2759 = vpop.permute.xlu0 %2758
      %2760 = vrot.lane.b32.xlu0 %v2475, 127
      %v2761 = vpop.permute.xlu0 %2760
      %2762 = vrot.lane.b32.xlu0 %v2476, 127
      %v2763 = vpop.permute.xlu0 %2762
      %2764 = vrot.lane.b32.xlu0 %v2477, 127
      %v2765 = vpop.permute.xlu0 %2764
      %2766 = vrot.lane.b32.xlu0 %v2478, 127
      %v2767 = vpop.permute.xlu0 %2766
      %2768 = vrot.lane.b32.xlu0 %v2479, 127
      %v2769 = vpop.permute.xlu0 %2768
      %2770 = vrot.lane.b32.xlu0 %v2480, 127
      %v2771 = vpop.permute.xlu0 %2770
      %2772 = vrot.lane.b32.xlu0 %v2481, 127
      %v2773 = vpop.permute.xlu0 %2772
      %2774 = vrot.lane.b32.xlu0 %v2482, 127
      %v2775 = vpop.permute.xlu0 %2774
      %2776 = vrot.lane.b32.xlu0 %v2483, 127
      %v2777 = vpop.permute.xlu0 %2776
      %2778 = vrot.lane.b32.xlu0 %v2484, 127
      %v2779 = vpop.permute.xlu0 %2778
      %2780 = vrot.lane.b32.xlu0 %v2485, 127
      %v2781 = vpop.permute.xlu0 %2780
      %2782 = vrot.lane.b32.xlu0 %v2486, 127
      %v2783 = vpop.permute.xlu0 %2782
      %2784 = vrot.lane.b32.xlu0 %v2487, 127
      %v2785 = vpop.permute.xlu0 %2784
      %2786 = vrot.lane.b32.xlu0 %v2488, 127
      %v2787 = vpop.permute.xlu0 %2786
      %2788 = vrot.lane.b32.xlu0 %v2489, 127
      %v2789 = vpop.permute.xlu0 %2788
      %2790 = vrot.lane.b32.xlu0 %v2490, 127
      %v2791 = vpop.permute.xlu0 %2790
      %2792 = vrot.lane.b32.xlu0 %v2491, 127
      %v2793 = vpop.permute.xlu0 %2792
      %2794 = vrot.lane.b32.xlu0 %v2492, 127
      %v2795 = vpop.permute.xlu0 %2794
      %2796 = vrot.lane.b32.xlu0 %v2493, 127
      %v2797 = vpop.permute.xlu0 %2796
      %2798 = vrot.lane.b32.xlu0 %v2494, 127
      %v2799 = vpop.permute.xlu0 %2798
      %2800 = vrot.lane.b32.xlu0 %v2495, 127
      %v2801 = vpop.permute.xlu0 %2800
      %2802 = vrot.lane.b32.xlu0 %v2496, 127
      %v2803 = vpop.permute.xlu0 %2802
      %2804 = vrot.lane.b32.xlu0 %v2497, 127
      %v2805 = vpop.permute.xlu0 %2804
      %2806 = vrot.lane.b32.xlu0 %v2498, 127
      %v2807 = vpop.permute.xlu0 %2806
      %2808 = vrot.lane.b32.xlu0 %v2499, 127
      %v2809 = vpop.permute.xlu0 %2808
      %2810 = vrot.lane.b32.xlu0 %v2500, 127
      %v2811 = vpop.permute.xlu0 %2810
      %2812 = vrot.lane.b32.xlu0 %v2501, 127
      %v2813 = vpop.permute.xlu0 %2812
      %2814 = vrot.lane.b32.xlu0 %v2502, 127
      %v2815 = vpop.permute.xlu0 %2814
      %2816 = vrot.lane.b32.xlu0 %v2503, 127
      %v2817 = vpop.permute.xlu0 %2816
      %2818 = vrot.lane.b32.xlu0 %v2504, 127
      %v2819 = vpop.permute.xlu0 %2818
      %2820 = vrot.lane.b32.xlu0 %v2505, 127
      %v2821 = vpop.permute.xlu0 %2820
      %2822 = vrot.lane.b32.xlu0 %v2506, 127
      %v2823 = vpop.permute.xlu0 %2822
      %2824 = vrot.lane.b32.xlu0 %v2507, 127
      %v2825 = vpop.permute.xlu0 %2824
      %2826 = vrot.lane.b32.xlu0 %v2508, 127
      %v2827 = vpop.permute.xlu0 %2826
      %2828 = vrot.lane.b32.xlu0 %v2509, 127
      %v2829 = vpop.permute.xlu0 %2828
      %2830 = vrot.lane.b32.xlu0 %v2510, 127
      %v2831 = vpop.permute.xlu0 %2830
      %2832 = vrot.lane.b32.xlu0 %v2511, 127
      %v2833 = vpop.permute.xlu0 %2832
      %2834 = vrot.lane.b32.xlu0 %v2512, 127
      %v2835 = vpop.permute.xlu0 %2834
      %2836 = vrot.lane.b32.xlu0 %v2513, 127
      %v2837 = vpop.permute.xlu0 %2836
      %2838 = vrot.lane.b32.xlu0 %v2514, 127
      %v2839 = vpop.permute.xlu0 %2838
      %2840 = vrot.lane.b32.xlu0 %v2515, 127
      %v2841 = vpop.permute.xlu0 %2840
      %2842 = vrot.lane.b32.xlu0 %v2516, 127
      %v2843 = vpop.permute.xlu0 %2842
      %2844 = vrot.lane.b32.xlu0 %v2517, 127
      %v2845 = vpop.permute.xlu0 %2844
      %2846 = vrot.lane.b32.xlu0 %v2518, 127
      %v2847 = vpop.permute.xlu0 %2846
      %2848 = vrot.lane.b32.xlu0 %v2519, 127
      %v2849 = vpop.permute.xlu0 %2848
      %2850 = vrot.lane.b32.xlu0 %v2520, 127
      %v2851 = vpop.permute.xlu0 %2850
      %2852 = vrot.lane.b32.xlu0 %v2521, 127
      %v2853 = vpop.permute.xlu0 %2852
      %2854 = vrot.lane.b32.xlu0 %v2522, 127
      %v2855 = vpop.permute.xlu0 %2854
      %2856 = vrot.lane.b32.xlu0 %v2523, 127
      %v2857 = vpop.permute.xlu0 %2856
      %2858 = vrot.lane.b32.xlu0 %v2524, 127
      %v2859 = vpop.permute.xlu0 %2858
      %2860 = vrot.lane.b32.xlu0 %v2525, 127
      %v2861 = vpop.permute.xlu0 %2860
      %2862 = vrot.lane.b32.xlu0 %v2526, 127
      %v2863 = vpop.permute.xlu0 %2862
      %2864 = vrot.lane.b32.xlu0 %v2527, 127
      %v2865 = vpop.permute.xlu0 %2864
      %2866 = vrot.lane.b32.xlu0 %v2528, 127
      %v2867 = vpop.permute.xlu0 %2866
      %2868 = vrot.lane.b32.xlu0 %v2529, 127
      %v2869 = vpop.permute.xlu0 %2868
      %2870 = vrot.lane.b32.xlu0 %v2530, 127
      %v2871 = vpop.permute.xlu0 %2870
      %2872 = vrot.lane.b32.xlu0 %v2531, 127
      %v2873 = vpop.permute.xlu0 %2872
      %2874 = vrot.lane.b32.xlu0 %v2532, 127
      %v2875 = vpop.permute.xlu0 %2874
      %2876 = vrot.lane.b32.xlu0 %v2533, 127
      %v2877 = vpop.permute.xlu0 %2876
      %2878 = vrot.lane.b32.xlu0 %v2534, 127
      %v2879 = vpop.permute.xlu0 %2878
      %2880 = vrot.lane.b32.xlu0 %v2535, 127
      %v2881 = vpop.permute.xlu0 %2880
      %2882 = vrot.lane.b32.xlu0 %v2536, 127
      %v2883 = vpop.permute.xlu0 %2882
      %2884 = vrot.lane.b32.xlu0 %v2537, 127
      %v2885 = vpop.permute.xlu0 %2884
      %2886 = vrot.lane.b32.xlu0 %v2538, 127
      %v2887 = vpop.permute.xlu0 %2886
      %2888 = vrot.lane.b32.xlu0 %v2539, 127
      %v2889 = vpop.permute.xlu0 %2888
      %2890 = vrot.lane.b32.xlu0 %v2540, 127
      %v2891 = vpop.permute.xlu0 %2890
      %2892 = vrot.lane.b32.xlu0 %v2541, 127
      %v2893 = vpop.permute.xlu0 %2892
      %2894 = vrot.lane.b32.xlu0 %v2542, 127
      %v2895 = vpop.permute.xlu0 %2894
      %2896 = vrot.lane.b32.xlu0 %v2543, 127
      %v2897 = vpop.permute.xlu0 %2896
      %2898 = vrot.lane.b32.xlu0 %v2544, 127
      %v2899 = vpop.permute.xlu0 %2898
      %2900 = vrot.lane.b32.xlu0 %v2545, 127
      %v2901 = vpop.permute.xlu0 %2900
      %2902 = vrot.lane.b32.xlu0 %v2546, 127
      %v2903 = vpop.permute.xlu0 %2902
      %2904 = vrot.lane.b32.xlu0 %v2547, 127
      %v2905 = vpop.permute.xlu0 %2904
      %2906 = vrot.lane.b32.xlu0 %v2548, 127
      %v2907 = vpop.permute.xlu0 %2906
      %2908 = vrot.lane.b32.xlu0 %v2549, 127
      %v2909 = vpop.permute.xlu0 %2908
      %2910 = vrot.lane.b32.xlu0 %v2550, 127
      %v2911 = vpop.permute.xlu0 %2910
      %2912 = vrot.lane.b32.xlu0 %v2551, 127
      %v2913 = vpop.permute.xlu0 %2912
      %2914 = vrot.lane.b32.xlu0 %v2552, 127
      %v2915 = vpop.permute.xlu0 %2914
      %2916 = vrot.lane.b32.xlu0 %v2553, 127
      %v2917 = vpop.permute.xlu0 %2916
      %2918 = vrot.lane.b32.xlu0 %v2554, 127
      %v2919 = vpop.permute.xlu0 %2918
      %2920 = vrot.lane.b32.xlu0 %v2555, 127
      %v2921 = vpop.permute.xlu0 %2920
      %2922 = vrot.lane.b32.xlu0 %v2556, 127
      %v2923 = vpop.permute.xlu0 %2922
      %2924 = vrot.lane.b32.xlu0 %v2557, 127
      %v2925 = vpop.permute.xlu0 %2924
      %2926 = vrot.lane.b32.xlu0 %v2558, 127
      %v2927 = vpop.permute.xlu0 %2926
      %2928 = vrot.lane.b32.xlu0 %v2559, 127
      %v2929 = vpop.permute.xlu0 %2928
      %2930 = vrot.lane.b32.xlu0 %v2560, 127
      %v2931 = vpop.permute.xlu0 %2930
      %2932 = vrot.lane.b32.xlu0 %v2561, 127
      %v2933 = vpop.permute.xlu0 %2932
      %2934 = vrot.lane.b32.xlu0 %v2562, 127
      %v2935 = vpop.permute.xlu0 %2934
      %2936 = vrot.lane.b32.xlu0 %v2563, 127
      %v2937 = vpop.permute.xlu0 %2936
      %2938 = vrot.lane.b32.xlu0 %v2564, 127
      %v2939 = vpop.permute.xlu0 %2938
      %2940 = vrot.lane.b32.xlu0 %v2565, 127
      %v2941 = vpop.permute.xlu0 %2940
      %2942 = vrot.lane.b32.xlu0 %v2566, 127
      %v2943 = vpop.permute.xlu0 %2942
      %2944 = vrot.lane.b32.xlu0 %v2567, 127
      %v2945 = vpop.permute.xlu0 %2944
      %2946 = vrot.lane.b32.xlu0 %v2568, 127
      %v2947 = vpop.permute.xlu0 %2946
      %2948 = vrot.lane.b32.xlu0 %v2569, 127
      %v2949 = vpop.permute.xlu0 %2948
      %2950 = vrot.lane.b32.xlu0 %v2570, 127
      %v2951 = vpop.permute.xlu0 %2950
      %2952 = vrot.lane.b32.xlu0 %v2571, 127
      %v2953 = vpop.permute.xlu0 %2952
      %2954 = vrot.lane.b32.xlu0 %v2572, 127
      %v2955 = vpop.permute.xlu0 %2954
      %2956 = vrot.lane.b32.xlu0 %v2573, 127
      %v2957 = vpop.permute.xlu0 %2956
      %vm2958 = vcmask 1039360
      %v2959 = vsel %vm2958, %v2703, %v2705
      %v2960 = vsel %vm2958, %v2707, %v2709
      %v2961 = vsel %vm2958, %v2711, %v2713
      %v2962 = vsel %vm2958, %v2715, %v2717
      %v2963 = vsel %vm2958, %v2719, %v2721
      %v2964 = vsel %vm2958, %v2723, %v2725
      %v2965 = vsel %vm2958, %v2727, %v2729
      %v2966 = vsel %vm2958, %v2731, %v2733
      %v2967 = vsel %vm2958, %v2735, %v2737
      %v2968 = vsel %vm2958, %v2739, %v2741
      %v2969 = vsel %vm2958, %v2743, %v2745
      %v2970 = vsel %vm2958, %v2747, %v2749
      %v2971 = vsel %vm2958, %v2751, %v2753
      %v2972 = vsel %vm2958, %v2755, %v2757
      %v2973 = vsel %vm2958, %v2759, %v2761
      %v2974 = vsel %vm2958, %v2763, %v2765
      %v2975 = vsel %vm2958, %v2767, %v2769
      %v2976 = vsel %vm2958, %v2771, %v2773
      %v2977 = vsel %vm2958, %v2775, %v2777
      %v2978 = vsel %vm2958, %v2779, %v2781
      %v2979 = vsel %vm2958, %v2783, %v2785
      %v2980 = vsel %vm2958, %v2787, %v2789
      %v2981 = vsel %vm2958, %v2791, %v2793
      %v2982 = vsel %vm2958, %v2795, %v2797
      %v2983 = vsel %vm2958, %v2799, %v2801
      %v2984 = vsel %vm2958, %v2803, %v2805
      %v2985 = vsel %vm2958, %v2807, %v2809
      %v2986 = vsel %vm2958, %v2811, %v2813
      %v2987 = vsel %vm2958, %v2815, %v2817
      %v2988 = vsel %vm2958, %v2819, %v2821
      %v2989 = vsel %vm2958, %v2823, %v2825
      %v2990 = vsel %vm2958, %v2827, %v2829
      %v2991 = vsel %vm2958, %v2831, %v2833
      %v2992 = vsel %vm2958, %v2835, %v2837
      %v2993 = vsel %vm2958, %v2839, %v2841
      %v2994 = vsel %vm2958, %v2843, %v2845
      %v2995 = vsel %vm2958, %v2847, %v2849
      %v2996 = vsel %vm2958, %v2851, %v2853
      %v2997 = vsel %vm2958, %v2855, %v2857
      %v2998 = vsel %vm2958, %v2859, %v2861
      %v2999 = vsel %vm2958, %v2863, %v2865
      %v3000 = vsel %vm2958, %v2867, %v2869
      %v3001 = vsel %vm2958, %v2871, %v2873
      %v3002 = vsel %vm2958, %v2875, %v2877
      %v3003 = vsel %vm2958, %v2879, %v2881
      %v3004 = vsel %vm2958, %v2883, %v2885
      %v3005 = vsel %vm2958, %v2887, %v2889
      %v3006 = vsel %vm2958, %v2891, %v2893
      %v3007 = vsel %vm2958, %v2895, %v2897
      %v3008 = vsel %vm2958, %v2899, %v2901
      %v3009 = vsel %vm2958, %v2903, %v2905
      %v3010 = vsel %vm2958, %v2907, %v2909
      %v3011 = vsel %vm2958, %v2911, %v2913
      %v3012 = vsel %vm2958, %v2915, %v2917
      %v3013 = vsel %vm2958, %v2919, %v2921
      %v3014 = vsel %vm2958, %v2923, %v2925
      %v3015 = vsel %vm2958, %v2927, %v2929
      %v3016 = vsel %vm2958, %v2931, %v2933
      %v3017 = vsel %vm2958, %v2935, %v2937
      %v3018 = vsel %vm2958, %v2939, %v2941
      %v3019 = vsel %vm2958, %v2943, %v2945
      %v3020 = vsel %vm2958, %v2947, %v2949
      %v3021 = vsel %vm2958, %v2951, %v2953
      %v3022 = vsel %vm2958, %v2955, %v2957
      %3151 = vrot.lane.b32.xlu0 %v2446, 39
      %v3152 = vpop.permute.xlu0 %3151
      %3153 = vrot.lane.b32.xlu0 %v2448, 39
      %v3154 = vpop.permute.xlu0 %3153
      %3155 = vrot.lane.b32.xlu0 %v2450, 39
      %v3156 = vpop.permute.xlu0 %3155
      %3157 = vrot.lane.b32.xlu0 %v2452, 39
      %v3158 = vpop.permute.xlu0 %3157
      %3159 = vrot.lane.b32.xlu0 %v2454, 39
      %v3160 = vpop.permute.xlu0 %3159
      %3161 = vrot.lane.b32.xlu0 %v2456, 39
      %v3162 = vpop.permute.xlu0 %3161
      %3163 = vrot.lane.b32.xlu0 %v2458, 39
      %v3164 = vpop.permute.xlu0 %3163
      %3165 = vrot.lane.b32.xlu0 %v2460, 39
      %v3166 = vpop.permute.xlu0 %3165
      %3167 = vrot.lane.b32.xlu0 %v2462, 39
      %v3168 = vpop.permute.xlu0 %3167
      %3169 = vrot.lane.b32.xlu0 %v2464, 39
      %v3170 = vpop.permute.xlu0 %3169
      %3171 = vrot.lane.b32.xlu0 %v2466, 39
      %v3172 = vpop.permute.xlu0 %3171
      %3173 = vrot.lane.b32.xlu0 %v2468, 39
      %v3174 = vpop.permute.xlu0 %3173
      %3175 = vrot.lane.b32.xlu0 %v2470, 39
      %v3176 = vpop.permute.xlu0 %3175
      %3177 = vrot.lane.b32.xlu0 %v2472, 39
      %v3178 = vpop.permute.xlu0 %3177
      %3179 = vrot.lane.b32.xlu0 %v2474, 39
      %v3180 = vpop.permute.xlu0 %3179
      %3181 = vrot.lane.b32.xlu0 %v2476, 39
      %v3182 = vpop.permute.xlu0 %3181
      %3183 = vrot.lane.b32.xlu0 %v2478, 39
      %v3184 = vpop.permute.xlu0 %3183
      %3185 = vrot.lane.b32.xlu0 %v2480, 39
      %v3186 = vpop.permute.xlu0 %3185
      %3187 = vrot.lane.b32.xlu0 %v2482, 39
      %v3188 = vpop.permute.xlu0 %3187
      %3189 = vrot.lane.b32.xlu0 %v2484, 39
      %v3190 = vpop.permute.xlu0 %3189
      %3191 = vrot.lane.b32.xlu0 %v2486, 39
      %v3192 = vpop.permute.xlu0 %3191
      %3193 = vrot.lane.b32.xlu0 %v2488, 39
      %v3194 = vpop.permute.xlu0 %3193
      %3195 = vrot.lane.b32.xlu0 %v2490, 39
      %v3196 = vpop.permute.xlu0 %3195
      %3197 = vrot.lane.b32.xlu0 %v2492, 39
      %v3198 = vpop.permute.xlu0 %3197
      %3199 = vrot.lane.b32.xlu0 %v2494, 39
      %v3200 = vpop.permute.xlu0 %3199
      %3201 = vrot.lane.b32.xlu0 %v2496, 39
      %v3202 = vpop.permute.xlu0 %3201
      %3203 = vrot.lane.b32.xlu0 %v2498, 39
      %v3204 = vpop.permute.xlu0 %3203
      %3205 = vrot.lane.b32.xlu0 %v2500, 39
      %v3206 = vpop.permute.xlu0 %3205
      %3207 = vrot.lane.b32.xlu0 %v2502, 39
      %v3208 = vpop.permute.xlu0 %3207
      %3209 = vrot.lane.b32.xlu0 %v2504, 39
      %v3210 = vpop.permute.xlu0 %3209
      %3211 = vrot.lane.b32.xlu0 %v2506, 39
      %v3212 = vpop.permute.xlu0 %3211
      %3213 = vrot.lane.b32.xlu0 %v2508, 39
      %v3214 = vpop.permute.xlu0 %3213
      %3215 = vrot.lane.b32.xlu0 %v2510, 39
      %v3216 = vpop.permute.xlu0 %3215
      %3217 = vrot.lane.b32.xlu0 %v2512, 39
      %v3218 = vpop.permute.xlu0 %3217
      %3219 = vrot.lane.b32.xlu0 %v2514, 39
      %v3220 = vpop.permute.xlu0 %3219
      %3221 = vrot.lane.b32.xlu0 %v2516, 39
      %v3222 = vpop.permute.xlu0 %3221
      %3223 = vrot.lane.b32.xlu0 %v2518, 39
      %v3224 = vpop.permute.xlu0 %3223
      %3225 = vrot.lane.b32.xlu0 %v2520, 39
      %v3226 = vpop.permute.xlu0 %3225
      %3227 = vrot.lane.b32.xlu0 %v2522, 39
      %v3228 = vpop.permute.xlu0 %3227
      %3229 = vrot.lane.b32.xlu0 %v2524, 39
      %v3230 = vpop.permute.xlu0 %3229
      %3231 = vrot.lane.b32.xlu0 %v2526, 39
      %v3232 = vpop.permute.xlu0 %3231
      %3233 = vrot.lane.b32.xlu0 %v2528, 39
      %v3234 = vpop.permute.xlu0 %3233
      %3235 = vrot.lane.b32.xlu0 %v2530, 39
      %v3236 = vpop.permute.xlu0 %3235
      %3237 = vrot.lane.b32.xlu0 %v2532, 39
      %v3238 = vpop.permute.xlu0 %3237
      %3239 = vrot.lane.b32.xlu0 %v2534, 39
      %v3240 = vpop.permute.xlu0 %3239
      %3241 = vrot.lane.b32.xlu0 %v2536, 39
      %v3242 = vpop.permute.xlu0 %3241
      %3243 = vrot.lane.b32.xlu0 %v2538, 39
      %v3244 = vpop.permute.xlu0 %3243
      %3245 = vrot.lane.b32.xlu0 %v2540, 39
      %v3246 = vpop.permute.xlu0 %3245
      %3247 = vrot.lane.b32.xlu0 %v2542, 39
      %v3248 = vpop.permute.xlu0 %3247
      %3249 = vrot.lane.b32.xlu0 %v2544, 39
      %v3250 = vpop.permute.xlu0 %3249
      %3251 = vrot.lane.b32.xlu0 %v2546, 39
      %v3252 = vpop.permute.xlu0 %3251
      %3253 = vrot.lane.b32.xlu0 %v2548, 39
      %v3254 = vpop.permute.xlu0 %3253
      %3255 = vrot.lane.b32.xlu0 %v2550, 39
      %v3256 = vpop.permute.xlu0 %3255
      %3257 = vrot.lane.b32.xlu0 %v2552, 39
      %v3258 = vpop.permute.xlu0 %3257
      %3259 = vrot.lane.b32.xlu0 %v2554, 39
      %v3260 = vpop.permute.xlu0 %3259
      %3261 = vrot.lane.b32.xlu0 %v2556, 39
      %v3262 = vpop.permute.xlu0 %3261
      %3263 = vrot.lane.b32.xlu0 %v2558, 39
      %v3264 = vpop.permute.xlu0 %3263
      %3265 = vrot.lane.b32.xlu0 %v2560, 39
      %v3266 = vpop.permute.xlu0 %3265
      %3267 = vrot.lane.b32.xlu0 %v2562, 39
      %v3268 = vpop.permute.xlu0 %3267
      %3269 = vrot.lane.b32.xlu0 %v2564, 39
      %v3270 = vpop.permute.xlu0 %3269
      %3271 = vrot.lane.b32.xlu0 %v2566, 39
      %v3272 = vpop.permute.xlu0 %3271
      %3273 = vrot.lane.b32.xlu0 %v2568, 39
      %v3274 = vpop.permute.xlu0 %3273
      %3275 = vrot.lane.b32.xlu0 %v2570, 39
      %v3276 = vpop.permute.xlu0 %3275
      %3277 = vrot.lane.b32.xlu0 %v2572, 39
      %v3278 = vpop.permute.xlu0 %3277
      %vm3343 = vcmask 318464
      %v3344 = vsel %vm3343, %v2705, %v3152
      %v3345 = vsel %vm3343, %v2709, %v3154
      %v3346 = vsel %vm3343, %v2713, %v3156
      %v3347 = vsel %vm3343, %v2717, %v3158
      %v3348 = vsel %vm3343, %v2721, %v3160
      %v3349 = vsel %vm3343, %v2725, %v3162
      %v3350 = vsel %vm3343, %v2729, %v3164
      %v3351 = vsel %vm3343, %v2733, %v3166
      %v3352 = vsel %vm3343, %v2737, %v3168
      %v3353 = vsel %vm3343, %v2741, %v3170
      %v3354 = vsel %vm3343, %v2745, %v3172
      %v3355 = vsel %vm3343, %v2749, %v3174
      %v3356 = vsel %vm3343, %v2753, %v3176
      %v3357 = vsel %vm3343, %v2757, %v3178
      %v3358 = vsel %vm3343, %v2761, %v3180
      %v3359 = vsel %vm3343, %v2765, %v3182
      %v3360 = vsel %vm3343, %v2769, %v3184
      %v3361 = vsel %vm3343, %v2773, %v3186
      %v3362 = vsel %vm3343, %v2777, %v3188
      %v3363 = vsel %vm3343, %v2781, %v3190
      %v3364 = vsel %vm3343, %v2785, %v3192
      %v3365 = vsel %vm3343, %v2789, %v3194
      %v3366 = vsel %vm3343, %v2793, %v3196
      %v3367 = vsel %vm3343, %v2797, %v3198
      %v3368 = vsel %vm3343, %v2801, %v3200
      %v3369 = vsel %vm3343, %v2805, %v3202
      %v3370 = vsel %vm3343, %v2809, %v3204
      %v3371 = vsel %vm3343, %v2813, %v3206
      %v3372 = vsel %vm3343, %v2817, %v3208
      %v3373 = vsel %vm3343, %v2821, %v3210
      %v3374 = vsel %vm3343, %v2825, %v3212
      %v3375 = vsel %vm3343, %v2829, %v3214
      %v3376 = vsel %vm3343, %v2833, %v3216
      %v3377 = vsel %vm3343, %v2837, %v3218
      %v3378 = vsel %vm3343, %v2841, %v3220
      %v3379 = vsel %vm3343, %v2845, %v3222
      %v3380 = vsel %vm3343, %v2849, %v3224
      %v3381 = vsel %vm3343, %v2853, %v3226
      %v3382 = vsel %vm3343, %v2857, %v3228
      %v3383 = vsel %vm3343, %v2861, %v3230
      %v3384 = vsel %vm3343, %v2865, %v3232
      %v3385 = vsel %vm3343, %v2869, %v3234
      %v3386 = vsel %vm3343, %v2873, %v3236
      %v3387 = vsel %vm3343, %v2877, %v3238
      %v3388 = vsel %vm3343, %v2881, %v3240
      %v3389 = vsel %vm3343, %v2885, %v3242
      %v3390 = vsel %vm3343, %v2889, %v3244
      %v3391 = vsel %vm3343, %v2893, %v3246
      %v3392 = vsel %vm3343, %v2897, %v3248
      %v3393 = vsel %vm3343, %v2901, %v3250
      %v3394 = vsel %vm3343, %v2905, %v3252
      %v3395 = vsel %vm3343, %v2909, %v3254
      %v3396 = vsel %vm3343, %v2913, %v3256
      %v3397 = vsel %vm3343, %v2917, %v3258
      %v3398 = vsel %vm3343, %v2921, %v3260
      %v3399 = vsel %vm3343, %v2925, %v3262
      %v3400 = vsel %vm3343, %v2929, %v3264
      %v3401 = vsel %vm3343, %v2933, %v3266
      %v3402 = vsel %vm3343, %v2937, %v3268
      %v3403 = vsel %vm3343, %v2941, %v3270
      %v3404 = vsel %vm3343, %v2945, %v3272
      %v3405 = vsel %vm3343, %v2949, %v3274
      %v3406 = vsel %vm3343, %v2953, %v3276
      %v3407 = vsel %vm3343, %v2957, %v3278
      %v3408 = vmax.f32 %v2446, %v2959
      %v3409 = vmax.f32 %v2447, %v3344
      %v3410 = vmax.f32 %v2448, %v2960
      %v3411 = vmax.f32 %v2449, %v3345
      %v3412 = vmax.f32 %v2450, %v2961
      %v3413 = vmax.f32 %v2451, %v3346
      %v3414 = vmax.f32 %v2452, %v2962
      %v3415 = vmax.f32 %v2453, %v3347
      %v3416 = vmax.f32 %v2454, %v2963
      %v3417 = vmax.f32 %v2455, %v3348
      %v3418 = vmax.f32 %v2456, %v2964
      %v3419 = vmax.f32 %v2457, %v3349
      %v3420 = vmax.f32 %v2458, %v2965
      %v3421 = vmax.f32 %v2459, %v3350
      %v3422 = vmax.f32 %v2460, %v2966
      %v3423 = vmax.f32 %v2461, %v3351
      %v3424 = vmax.f32 %v2462, %v2967
      %v3425 = vmax.f32 %v2463, %v3352
      %v3426 = vmax.f32 %v2464, %v2968
      %v3427 = vmax.f32 %v2465, %v3353
      %v3428 = vmax.f32 %v2466, %v2969
      %v3429 = vmax.f32 %v2467, %v3354
      %v3430 = vmax.f32 %v2468, %v2970
      %v3431 = vmax.f32 %v2469, %v3355
      %v3432 = vmax.f32 %v2470, %v2971
      %v3433 = vmax.f32 %v2471, %v3356
      %v3434 = vmax.f32 %v2472, %v2972
      %v3435 = vmax.f32 %v2473, %v3357
      %v3436 = vmax.f32 %v2474, %v2973
      %v3437 = vmax.f32 %v2475, %v3358
      %v3438 = vmax.f32 %v2476, %v2974
      %v3439 = vmax.f32 %v2477, %v3359
      %v3440 = vmax.f32 %v2478, %v2975
      %v3441 = vmax.f32 %v2479, %v3360
      %v3442 = vmax.f32 %v2480, %v2976
      %v3443 = vmax.f32 %v2481, %v3361
      %v3444 = vmax.f32 %v2482, %v2977
      %v3445 = vmax.f32 %v2483, %v3362
      %v3446 = vmax.f32 %v2484, %v2978
      %v3447 = vmax.f32 %v2485, %v3363
      %v3448 = vmax.f32 %v2486, %v2979
      %v3449 = vmax.f32 %v2487, %v3364
      %v3450 = vmax.f32 %v2488, %v2980
      %v3451 = vmax.f32 %v2489, %v3365
      %v3452 = vmax.f32 %v2490, %v2981
      %v3453 = vmax.f32 %v2491, %v3366
      %v3454 = vmax.f32 %v2492, %v2982
      %v3455 = vmax.f32 %v2493, %v3367
      %v3456 = vmax.f32 %v2494, %v2983
      %v3457 = vmax.f32 %v2495, %v3368
      %v3458 = vmax.f32 %v2496, %v2984
      %v3459 = vmax.f32 %v2497, %v3369
      %v3460 = vmax.f32 %v2498, %v2985
      %v3461 = vmax.f32 %v2499, %v3370
      %v3462 = vmax.f32 %v2500, %v2986
      %v3463 = vmax.f32 %v2501, %v3371
      %v3464 = vmax.f32 %v2502, %v2987
      %v3465 = vmax.f32 %v2503, %v3372
      %v3466 = vmax.f32 %v2504, %v2988
      %v3467 = vmax.f32 %v2505, %v3373
      %v3468 = vmax.f32 %v2506, %v2989
      %v3469 = vmax.f32 %v2507, %v3374
      %v3470 = vmax.f32 %v2508, %v2990
      %v3471 = vmax.f32 %v2509, %v3375
      %v3472 = vmax.f32 %v2510, %v2991
      %v3473 = vmax.f32 %v2511, %v3376
      %v3474 = vmax.f32 %v2512, %v2992
      %v3475 = vmax.f32 %v2513, %v3377
      %v3476 = vmax.f32 %v2514, %v2993
      %v3477 = vmax.f32 %v2515, %v3378
      %v3478 = vmax.f32 %v2516, %v2994
      %v3479 = vmax.f32 %v2517, %v3379
      %v3480 = vmax.f32 %v2518, %v2995
      %v3481 = vmax.f32 %v2519, %v3380
      %v3482 = vmax.f32 %v2520, %v2996
      %v3483 = vmax.f32 %v2521, %v3381
      %v3484 = vmax.f32 %v2522, %v2997
      %v3485 = vmax.f32 %v2523, %v3382
      %v3486 = vmax.f32 %v2524, %v2998
      %v3487 = vmax.f32 %v2525, %v3383
      %v3488 = vmax.f32 %v2526, %v2999
      %v3489 = vmax.f32 %v2527, %v3384
      %v3490 = vmax.f32 %v2528, %v3000
      %v3491 = vmax.f32 %v2529, %v3385
      %v3492 = vmax.f32 %v2530, %v3001
      %v3493 = vmax.f32 %v2531, %v3386
      %v3494 = vmax.f32 %v2532, %v3002
      %v3495 = vmax.f32 %v2533, %v3387
      %v3496 = vmax.f32 %v2534, %v3003
      %v3497 = vmax.f32 %v2535, %v3388
      %v3498 = vmax.f32 %v2536, %v3004
      %v3499 = vmax.f32 %v2537, %v3389
      %v3500 = vmax.f32 %v2538, %v3005
      %v3501 = vmax.f32 %v2539, %v3390
      %v3502 = vmax.f32 %v2540, %v3006
      %v3503 = vmax.f32 %v2541, %v3391
      %v3504 = vmax.f32 %v2542, %v3007
      %v3505 = vmax.f32 %v2543, %v3392
      %v3506 = vmax.f32 %v2544, %v3008
      %v3507 = vmax.f32 %v2545, %v3393
      %v3508 = vmax.f32 %v2546, %v3009
      %v3509 = vmax.f32 %v2547, %v3394
      %v3510 = vmax.f32 %v2548, %v3010
      %v3511 = vmax.f32 %v2549, %v3395
      %v3512 = vmax.f32 %v2550, %v3011
      %v3513 = vmax.f32 %v2551, %v3396
      %v3514 = vmax.f32 %v2552, %v3012
      %v3515 = vmax.f32 %v2553, %v3397
      %v3516 = vmax.f32 %v2554, %v3013
      %v3517 = vmax.f32 %v2555, %v3398
      %v3518 = vmax.f32 %v2556, %v3014
      %v3519 = vmax.f32 %v2557, %v3399
      %v3520 = vmax.f32 %v2558, %v3015
      %v3521 = vmax.f32 %v2559, %v3400
      %v3522 = vmax.f32 %v2560, %v3016
      %v3523 = vmax.f32 %v2561, %v3401
      %v3524 = vmax.f32 %v2562, %v3017
      %v3525 = vmax.f32 %v2563, %v3402
      %v3526 = vmax.f32 %v2564, %v3018
      %v3527 = vmax.f32 %v2565, %v3403
      %v3528 = vmax.f32 %v2566, %v3019
      %v3529 = vmax.f32 %v2567, %v3404
      %v3530 = vmax.f32 %v2568, %v3020
      %v3531 = vmax.f32 %v2569, %v3405
      %v3532 = vmax.f32 %v2570, %v3021
      %v3533 = vmax.f32 %v2571, %v3406
      %v3534 = vmax.f32 %v2572, %v3022
      %v3535 = vmax.f32 %v2573, %v3407
      %v3664 = vrot.slane %v3408, 1
      %v3665 = vrot.slane %v3410, 1
      %v3666 = vsel %vm518, %v3664, %v3665
      %v3667 = vrot.slane %v3409, 1
      %v3668 = vrot.slane %v3411, 1
      %v3669 = vsel %vm518, %v3667, %v3668
      %v3670 = vrot.slane %v3412, 1
      %v3671 = vsel %vm518, %v3665, %v3670
      %v3672 = vrot.slane %v3413, 1
      %v3673 = vsel %vm518, %v3668, %v3672
      %v3674 = vrot.slane %v3414, 1
      %v3675 = vsel %vm518, %v3670, %v3674
      %v3676 = vrot.slane %v3415, 1
      %v3677 = vsel %vm518, %v3672, %v3676
      %v3678 = vrot.slane %v3416, 1
      %v3679 = vsel %vm518, %v3674, %v3678
      %v3680 = vrot.slane %v3417, 1
      %v3681 = vsel %vm518, %v3676, %v3680
      %v3682 = vrot.slane %v3418, 1
      %v3683 = vsel %vm518, %v3678, %v3682
      %v3684 = vrot.slane %v3419, 1
      %v3685 = vsel %vm518, %v3680, %v3684
      %v3686 = vrot.slane %v3420, 1
      %v3687 = vsel %vm518, %v3682, %v3686
      %v3688 = vrot.slane %v3421, 1
      %v3689 = vsel %vm518, %v3684, %v3688
      %v3690 = vrot.slane %v3422, 1
      %v3691 = vsel %vm518, %v3686, %v3690
      %v3692 = vrot.slane %v3423, 1
      %v3693 = vsel %vm518, %v3688, %v3692
      %v3694 = vrot.slane %v3424, 1
      %v3695 = vsel %vm518, %v3690, %v3694
      %v3696 = vrot.slane %v3425, 1
      %v3697 = vsel %vm518, %v3692, %v3696
      %v3698 = vrot.slane %v3426, 1
      %v3699 = vsel %vm518, %v3694, %v3698
      %v3700 = vrot.slane %v3427, 1
      %v3701 = vsel %vm518, %v3696, %v3700
      %v3702 = vrot.slane %v3428, 1
      %v3703 = vsel %vm518, %v3698, %v3702
      %v3704 = vrot.slane %v3429, 1
      %v3705 = vsel %vm518, %v3700, %v3704
      %v3706 = vrot.slane %v3430, 1
      %v3707 = vsel %vm518, %v3702, %v3706
      %v3708 = vrot.slane %v3431, 1
      %v3709 = vsel %vm518, %v3704, %v3708
      %v3710 = vrot.slane %v3432, 1
      %v3711 = vsel %vm518, %v3706, %v3710
      %v3712 = vrot.slane %v3433, 1
      %v3713 = vsel %vm518, %v3708, %v3712
      %v3714 = vrot.slane %v3434, 1
      %v3715 = vsel %vm518, %v3710, %v3714
      %v3716 = vrot.slane %v3435, 1
      %v3717 = vsel %vm518, %v3712, %v3716
      %v3718 = vrot.slane %v3436, 1
      %v3719 = vsel %vm518, %v3714, %v3718
      %v3720 = vrot.slane %v3437, 1
      %v3721 = vsel %vm518, %v3716, %v3720
      %v3722 = vrot.slane %v3438, 1
      %v3723 = vsel %vm518, %v3718, %v3722
      %v3724 = vrot.slane %v3439, 1
      %v3725 = vsel %vm518, %v3720, %v3724
      %v3726 = vrot.slane %v3440, 1
      %v3727 = vsel %vm518, %v3722, %v3726
      %v3728 = vrot.slane %v3441, 1
      %v3729 = vsel %vm518, %v3724, %v3728
      %v3730 = vrot.slane %v3442, 1
      %v3731 = vsel %vm518, %v3726, %v3730
      %v3732 = vrot.slane %v3443, 1
      %v3733 = vsel %vm518, %v3728, %v3732
      %v3734 = vrot.slane %v3444, 1
      %v3735 = vsel %vm518, %v3730, %v3734
      %v3736 = vrot.slane %v3445, 1
      %v3737 = vsel %vm518, %v3732, %v3736
      %v3738 = vrot.slane %v3446, 1
      %v3739 = vsel %vm518, %v3734, %v3738
      %v3740 = vrot.slane %v3447, 1
      %v3741 = vsel %vm518, %v3736, %v3740
      %v3742 = vrot.slane %v3448, 1
      %v3743 = vsel %vm518, %v3738, %v3742
      %v3744 = vrot.slane %v3449, 1
      %v3745 = vsel %vm518, %v3740, %v3744
      %v3746 = vrot.slane %v3450, 1
      %v3747 = vsel %vm518, %v3742, %v3746
      %v3748 = vrot.slane %v3451, 1
      %v3749 = vsel %vm518, %v3744, %v3748
      %v3750 = vrot.slane %v3452, 1
      %v3751 = vsel %vm518, %v3746, %v3750
      %v3752 = vrot.slane %v3453, 1
      %v3753 = vsel %vm518, %v3748, %v3752
      %v3754 = vrot.slane %v3454, 1
      %v3755 = vsel %vm518, %v3750, %v3754
      %v3756 = vrot.slane %v3455, 1
      %v3757 = vsel %vm518, %v3752, %v3756
      %v3758 = vrot.slane %v3456, 1
      %v3759 = vsel %vm518, %v3754, %v3758
      %v3760 = vrot.slane %v3457, 1
      %v3761 = vsel %vm518, %v3756, %v3760
      %v3762 = vrot.slane %v3458, 1
      %v3763 = vsel %vm518, %v3758, %v3762
      %v3764 = vrot.slane %v3459, 1
      %v3765 = vsel %vm518, %v3760, %v3764
      %v3766 = vrot.slane %v3460, 1
      %v3767 = vsel %vm518, %v3762, %v3766
      %v3768 = vrot.slane %v3461, 1
      %v3769 = vsel %vm518, %v3764, %v3768
      %v3770 = vrot.slane %v3462, 1
      %v3771 = vsel %vm518, %v3766, %v3770
      %v3772 = vrot.slane %v3463, 1
      %v3773 = vsel %vm518, %v3768, %v3772
      %v3774 = vrot.slane %v3464, 1
      %v3775 = vsel %vm518, %v3770, %v3774
      %v3776 = vrot.slane %v3465, 1
      %v3777 = vsel %vm518, %v3772, %v3776
      %v3778 = vrot.slane %v3466, 1
      %v3779 = vsel %vm518, %v3774, %v3778
      %v3780 = vrot.slane %v3467, 1
      %v3781 = vsel %vm518, %v3776, %v3780
      %v3782 = vrot.slane %v3468, 1
      %v3783 = vsel %vm518, %v3778, %v3782
      %v3784 = vrot.slane %v3469, 1
      %v3785 = vsel %vm518, %v3780, %v3784
      %v3786 = vrot.slane %v3470, 1
      %v3787 = vsel %vm518, %v3782, %v3786
      %v3788 = vrot.slane %v3471, 1
      %v3789 = vsel %vm518, %v3784, %v3788
      %v3790 = vrot.slane %v3472, 1
      %v3791 = vsel %vm518, %v3786, %v3790
      %v3792 = vrot.slane %v3473, 1
      %v3793 = vsel %vm518, %v3788, %v3792
      %v3794 = vrot.slane %v3474, 1
      %v3795 = vsel %vm518, %v3790, %v3794
      %v3796 = vrot.slane %v3475, 1
      %v3797 = vsel %vm518, %v3792, %v3796
      %v3798 = vrot.slane %v3476, 1
      %v3799 = vsel %vm518, %v3794, %v3798
      %v3800 = vrot.slane %v3477, 1
      %v3801 = vsel %vm518, %v3796, %v3800
      %v3802 = vrot.slane %v3478, 1
      %v3803 = vsel %vm518, %v3798, %v3802
      %v3804 = vrot.slane %v3479, 1
      %v3805 = vsel %vm518, %v3800, %v3804
      %v3806 = vrot.slane %v3480, 1
      %v3807 = vsel %vm518, %v3802, %v3806
      %v3808 = vrot.slane %v3481, 1
      %v3809 = vsel %vm518, %v3804, %v3808
      %v3810 = vrot.slane %v3482, 1
      %v3811 = vsel %vm518, %v3806, %v3810
      %v3812 = vrot.slane %v3483, 1
      %v3813 = vsel %vm518, %v3808, %v3812
      %v3814 = vrot.slane %v3484, 1
      %v3815 = vsel %vm518, %v3810, %v3814
      %v3816 = vrot.slane %v3485, 1
      %v3817 = vsel %vm518, %v3812, %v3816
      %v3818 = vrot.slane %v3486, 1
      %v3819 = vsel %vm518, %v3814, %v3818
      %v3820 = vrot.slane %v3487, 1
      %v3821 = vsel %vm518, %v3816, %v3820
      %v3822 = vrot.slane %v3488, 1
      %v3823 = vsel %vm518, %v3818, %v3822
      %v3824 = vrot.slane %v3489, 1
      %v3825 = vsel %vm518, %v3820, %v3824
      %v3826 = vrot.slane %v3490, 1
      %v3827 = vsel %vm518, %v3822, %v3826
      %v3828 = vrot.slane %v3491, 1
      %v3829 = vsel %vm518, %v3824, %v3828
      %v3830 = vrot.slane %v3492, 1
      %v3831 = vsel %vm518, %v3826, %v3830
      %v3832 = vrot.slane %v3493, 1
      %v3833 = vsel %vm518, %v3828, %v3832
      %v3834 = vrot.slane %v3494, 1
      %v3835 = vsel %vm518, %v3830, %v3834
      %v3836 = vrot.slane %v3495, 1
      %v3837 = vsel %vm518, %v3832, %v3836
      %v3838 = vrot.slane %v3496, 1
      %v3839 = vsel %vm518, %v3834, %v3838
      %v3840 = vrot.slane %v3497, 1
      %v3841 = vsel %vm518, %v3836, %v3840
      %v3842 = vrot.slane %v3498, 1
      %v3843 = vsel %vm518, %v3838, %v3842
      %v3844 = vrot.slane %v3499, 1
      %v3845 = vsel %vm518, %v3840, %v3844
      %v3846 = vrot.slane %v3500, 1
      %v3847 = vsel %vm518, %v3842, %v3846
      %v3848 = vrot.slane %v3501, 1
      %v3849 = vsel %vm518, %v3844, %v3848
      %v3850 = vrot.slane %v3502, 1
      %v3851 = vsel %vm518, %v3846, %v3850
      %v3852 = vrot.slane %v3503, 1
      %v3853 = vsel %vm518, %v3848, %v3852
      %v3854 = vrot.slane %v3504, 1
      %v3855 = vsel %vm518, %v3850, %v3854
      %v3856 = vrot.slane %v3505, 1
      %v3857 = vsel %vm518, %v3852, %v3856
      %v3858 = vrot.slane %v3506, 1
      %v3859 = vsel %vm518, %v3854, %v3858
      %v3860 = vrot.slane %v3507, 1
      %v3861 = vsel %vm518, %v3856, %v3860
      %v3862 = vrot.slane %v3508, 1
      %v3863 = vsel %vm518, %v3858, %v3862
      %v3864 = vrot.slane %v3509, 1
      %v3865 = vsel %vm518, %v3860, %v3864
      %v3866 = vrot.slane %v3510, 1
      %v3867 = vsel %vm518, %v3862, %v3866
      %v3868 = vrot.slane %v3511, 1
      %v3869 = vsel %vm518, %v3864, %v3868
      %v3870 = vrot.slane %v3512, 1
      %v3871 = vsel %vm518, %v3866, %v3870
      %v3872 = vrot.slane %v3513, 1
      %v3873 = vsel %vm518, %v3868, %v3872
      %v3874 = vrot.slane %v3514, 1
      %v3875 = vsel %vm518, %v3870, %v3874
      %v3876 = vrot.slane %v3515, 1
      %v3877 = vsel %vm518, %v3872, %v3876
      %v3878 = vrot.slane %v3516, 1
      %v3879 = vsel %vm518, %v3874, %v3878
      %v3880 = vrot.slane %v3517, 1
      %v3881 = vsel %vm518, %v3876, %v3880
      %v3882 = vrot.slane %v3518, 1
      %v3883 = vsel %vm518, %v3878, %v3882
      %v3884 = vrot.slane %v3519, 1
      %v3885 = vsel %vm518, %v3880, %v3884
      %v3886 = vrot.slane %v3520, 1
      %v3887 = vsel %vm518, %v3882, %v3886
      %v3888 = vrot.slane %v3521, 1
      %v3889 = vsel %vm518, %v3884, %v3888
      %v3890 = vrot.slane %v3522, 1
      %v3891 = vsel %vm518, %v3886, %v3890
      %v3892 = vrot.slane %v3523, 1
      %v3893 = vsel %vm518, %v3888, %v3892
      %v3894 = vrot.slane %v3524, 1
      %v3895 = vsel %vm518, %v3890, %v3894
      %v3896 = vrot.slane %v3525, 1
      %v3897 = vsel %vm518, %v3892, %v3896
      %v3898 = vrot.slane %v3526, 1
      %v3899 = vsel %vm518, %v3894, %v3898
      %v3900 = vrot.slane %v3527, 1
      %v3901 = vsel %vm518, %v3896, %v3900
      %v3902 = vrot.slane %v3528, 1
      %v3903 = vsel %vm518, %v3898, %v3902
      %v3904 = vrot.slane %v3529, 1
      %v3905 = vsel %vm518, %v3900, %v3904
      %v3906 = vrot.slane %v3530, 1
      %v3907 = vsel %vm518, %v3902, %v3906
      %v3908 = vrot.slane %v3531, 1
      %v3909 = vsel %vm518, %v3904, %v3908
      %v3910 = vrot.slane %v3532, 1
      %v3911 = vsel %vm518, %v3906, %v3910
      %v3912 = vrot.slane %v3533, 1
      %v3913 = vsel %vm518, %v3908, %v3912
      %v3914 = vrot.slane %v3534, 1
      %v3915 = vsel %vm518, %v3910, %v3914
      %v3916 = vrot.slane %v3535, 1
      %v3917 = vsel %vm518, %v3912, %v3916
      %v4048 = vsel %vm518, %v3914, %v3664
      %v4049 = vsel %vm518, %v3916, %v3667
      %v4050 = vmax.f32 %v3408, %v3666
      %v4051 = vmax.f32 %v3409, %v3669
      %v4052 = vmax.f32 %v3410, %v3671
      %v4053 = vmax.f32 %v3411, %v3673
      %v4054 = vmax.f32 %v3412, %v3675
      %v4055 = vmax.f32 %v3413, %v3677
      %v4056 = vmax.f32 %v3414, %v3679
      %v4057 = vmax.f32 %v3415, %v3681
      %v4058 = vmax.f32 %v3416, %v3683
      %v4059 = vmax.f32 %v3417, %v3685
      %v4060 = vmax.f32 %v3418, %v3687
      %v4061 = vmax.f32 %v3419, %v3689
      %v4062 = vmax.f32 %v3420, %v3691
      %v4063 = vmax.f32 %v3421, %v3693
      %v4064 = vmax.f32 %v3422, %v3695
      %v4065 = vmax.f32 %v3423, %v3697
      %v4066 = vmax.f32 %v3424, %v3699
      %v4067 = vmax.f32 %v3425, %v3701
      %v4068 = vmax.f32 %v3426, %v3703
      %v4069 = vmax.f32 %v3427, %v3705
      %v4070 = vmax.f32 %v3428, %v3707
      %v4071 = vmax.f32 %v3429, %v3709
      %v4072 = vmax.f32 %v3430, %v3711
      %v4073 = vmax.f32 %v3431, %v3713
      %v4074 = vmax.f32 %v3432, %v3715
      %v4075 = vmax.f32 %v3433, %v3717
      %v4076 = vmax.f32 %v3434, %v3719
      %v4077 = vmax.f32 %v3435, %v3721
      %v4078 = vmax.f32 %v3436, %v3723
      %v4079 = vmax.f32 %v3437, %v3725
      %v4080 = vmax.f32 %v3438, %v3727
      %v4081 = vmax.f32 %v3439, %v3729
      %v4082 = vmax.f32 %v3440, %v3731
      %v4083 = vmax.f32 %v3441, %v3733
      %v4084 = vmax.f32 %v3442, %v3735
      %v4085 = vmax.f32 %v3443, %v3737
      %v4086 = vmax.f32 %v3444, %v3739
      %v4087 = vmax.f32 %v3445, %v3741
      %v4088 = vmax.f32 %v3446, %v3743
      %v4089 = vmax.f32 %v3447, %v3745
      %v4090 = vmax.f32 %v3448, %v3747
      %v4091 = vmax.f32 %v3449, %v3749
      %v4092 = vmax.f32 %v3450, %v3751
      %v4093 = vmax.f32 %v3451, %v3753
      %v4094 = vmax.f32 %v3452, %v3755
      %v4095 = vmax.f32 %v3453, %v3757
      %v4096 = vmax.f32 %v3454, %v3759
      %v4097 = vmax.f32 %v3455, %v3761
      %v4098 = vmax.f32 %v3456, %v3763
      %v4099 = vmax.f32 %v3457, %v3765
      %v4100 = vmax.f32 %v3458, %v3767
      %v4101 = vmax.f32 %v3459, %v3769
      %v4102 = vmax.f32 %v3460, %v3771
      %v4103 = vmax.f32 %v3461, %v3773
      %v4104 = vmax.f32 %v3462, %v3775
      %v4105 = vmax.f32 %v3463, %v3777
      %v4106 = vmax.f32 %v3464, %v3779
      %v4107 = vmax.f32 %v3465, %v3781
      %v4108 = vmax.f32 %v3466, %v3783
      %v4109 = vmax.f32 %v3467, %v3785
      %v4110 = vmax.f32 %v3468, %v3787
      %v4111 = vmax.f32 %v3469, %v3789
      %v4112 = vmax.f32 %v3470, %v3791
      %v4113 = vmax.f32 %v3471, %v3793
      %v4114 = vmax.f32 %v3472, %v3795
      %v4115 = vmax.f32 %v3473, %v3797
      %v4116 = vmax.f32 %v3474, %v3799
      %v4117 = vmax.f32 %v3475, %v3801
      %v4118 = vmax.f32 %v3476, %v3803
      %v4119 = vmax.f32 %v3477, %v3805
      %v4120 = vmax.f32 %v3478, %v3807
      %v4121 = vmax.f32 %v3479, %v3809
      %v4122 = vmax.f32 %v3480, %v3811
      %v4123 = vmax.f32 %v3481, %v3813
      %v4124 = vmax.f32 %v3482, %v3815
      %v4125 = vmax.f32 %v3483, %v3817
      %v4126 = vmax.f32 %v3484, %v3819
      %v4127 = vmax.f32 %v3485, %v3821
      %v4128 = vmax.f32 %v3486, %v3823
      %v4129 = vmax.f32 %v3487, %v3825
      %v4130 = vmax.f32 %v3488, %v3827
      %v4131 = vmax.f32 %v3489, %v3829
      %v4132 = vmax.f32 %v3490, %v3831
      %v4133 = vmax.f32 %v3491, %v3833
      %v4134 = vmax.f32 %v3492, %v3835
      %v4135 = vmax.f32 %v3493, %v3837
      %v4136 = vmax.f32 %v3494, %v3839
      %v4137 = vmax.f32 %v3495, %v3841
      %v4138 = vmax.f32 %v3496, %v3843
      %v4139 = vmax.f32 %v3497, %v3845
      %v4140 = vmax.f32 %v3498, %v3847
      %v4141 = vmax.f32 %v3499, %v3849
      %v4142 = vmax.f32 %v3500, %v3851
      %v4143 = vmax.f32 %v3501, %v3853
      %v4144 = vmax.f32 %v3502, %v3855
      %v4145 = vmax.f32 %v3503, %v3857
      %v4146 = vmax.f32 %v3504, %v3859
      %v4147 = vmax.f32 %v3505, %v3861
      %v4148 = vmax.f32 %v3506, %v3863
      %v4149 = vmax.f32 %v3507, %v3865
      %v4150 = vmax.f32 %v3508, %v3867
      %v4151 = vmax.f32 %v3509, %v3869
      %v4152 = vmax.f32 %v3510, %v3871
      %v4153 = vmax.f32 %v3511, %v3873
      %v4154 = vmax.f32 %v3512, %v3875
      %v4155 = vmax.f32 %v3513, %v3877
      %v4156 = vmax.f32 %v3514, %v3879
      %v4157 = vmax.f32 %v3515, %v3881
      %v4158 = vmax.f32 %v3516, %v3883
      %v4159 = vmax.f32 %v3517, %v3885
      %v4160 = vmax.f32 %v3518, %v3887
      %v4161 = vmax.f32 %v3519, %v3889
      %v4162 = vmax.f32 %v3520, %v3891
      %v4163 = vmax.f32 %v3521, %v3893
      %v4164 = vmax.f32 %v3522, %v3895
      %v4165 = vmax.f32 %v3523, %v3897
      %v4166 = vmax.f32 %v3524, %v3899
      %v4167 = vmax.f32 %v3525, %v3901
      %v4168 = vmax.f32 %v3526, %v3903
      %v4169 = vmax.f32 %v3527, %v3905
      %v4170 = vmax.f32 %v3528, %v3907
      %v4171 = vmax.f32 %v3529, %v3909
      %v4172 = vmax.f32 %v3530, %v3911
      %v4173 = vmax.f32 %v3531, %v3913
      %v4174 = vmax.f32 %v3532, %v3915
      %v4175 = vmax.f32 %v3533, %v3917
      %v4176 = vmax.f32 %v3534, %v4048
      %v4177 = vmax.f32 %v3535, %v4049
      %v4306 = vrot.slane %v4050, 2
      %v4307 = vrot.slane %v4052, 2
      %v4308 = vsel %vm649, %v4306, %v4307
      %v4309 = vrot.slane %v4051, 2
      %v4310 = vrot.slane %v4053, 2
      %v4311 = vsel %vm649, %v4309, %v4310
      %v4312 = vrot.slane %v4054, 2
      %v4313 = vsel %vm649, %v4307, %v4312
      %v4314 = vrot.slane %v4055, 2
      %v4315 = vsel %vm649, %v4310, %v4314
      %v4316 = vrot.slane %v4056, 2
      %v4317 = vsel %vm649, %v4312, %v4316
      %v4318 = vrot.slane %v4057, 2
      %v4319 = vsel %vm649, %v4314, %v4318
      %v4320 = vrot.slane %v4058, 2
      %v4321 = vsel %vm649, %v4316, %v4320
      %v4322 = vrot.slane %v4059, 2
      %v4323 = vsel %vm649, %v4318, %v4322
      %v4324 = vrot.slane %v4060, 2
      %v4325 = vsel %vm649, %v4320, %v4324
      %v4326 = vrot.slane %v4061, 2
      %v4327 = vsel %vm649, %v4322, %v4326
      %v4328 = vrot.slane %v4062, 2
      %v4329 = vsel %vm649, %v4324, %v4328
      %v4330 = vrot.slane %v4063, 2
      %v4331 = vsel %vm649, %v4326, %v4330
      %v4332 = vrot.slane %v4064, 2
      %v4333 = vsel %vm649, %v4328, %v4332
      %v4334 = vrot.slane %v4065, 2
      %v4335 = vsel %vm649, %v4330, %v4334
      %v4336 = vrot.slane %v4066, 2
      %v4337 = vsel %vm649, %v4332, %v4336
      %v4338 = vrot.slane %v4067, 2
      %v4339 = vsel %vm649, %v4334, %v4338
      %v4340 = vrot.slane %v4068, 2
      %v4341 = vsel %vm649, %v4336, %v4340
      %v4342 = vrot.slane %v4069, 2
      %v4343 = vsel %vm649, %v4338, %v4342
      %v4344 = vrot.slane %v4070, 2
      %v4345 = vsel %vm649, %v4340, %v4344
      %v4346 = vrot.slane %v4071, 2
      %v4347 = vsel %vm649, %v4342, %v4346
      %v4348 = vrot.slane %v4072, 2
      %v4349 = vsel %vm649, %v4344, %v4348
      %v4350 = vrot.slane %v4073, 2
      %v4351 = vsel %vm649, %v4346, %v4350
      %v4352 = vrot.slane %v4074, 2
      %v4353 = vsel %vm649, %v4348, %v4352
      %v4354 = vrot.slane %v4075, 2
      %v4355 = vsel %vm649, %v4350, %v4354
      %v4356 = vrot.slane %v4076, 2
      %v4357 = vsel %vm649, %v4352, %v4356
      %v4358 = vrot.slane %v4077, 2
      %v4359 = vsel %vm649, %v4354, %v4358
      %v4360 = vrot.slane %v4078, 2
      %v4361 = vsel %vm649, %v4356, %v4360
      %v4362 = vrot.slane %v4079, 2
      %v4363 = vsel %vm649, %v4358, %v4362
      %v4364 = vrot.slane %v4080, 2
      %v4365 = vsel %vm649, %v4360, %v4364
      %v4366 = vrot.slane %v4081, 2
      %v4367 = vsel %vm649, %v4362, %v4366
      %v4368 = vrot.slane %v4082, 2
      %v4369 = vsel %vm649, %v4364, %v4368
      %v4370 = vrot.slane %v4083, 2
      %v4371 = vsel %vm649, %v4366, %v4370
      %v4372 = vrot.slane %v4084, 2
      %v4373 = vsel %vm649, %v4368, %v4372
      %v4374 = vrot.slane %v4085, 2
      %v4375 = vsel %vm649, %v4370, %v4374
      %v4376 = vrot.slane %v4086, 2
      %v4377 = vsel %vm649, %v4372, %v4376
      %v4378 = vrot.slane %v4087, 2
      %v4379 = vsel %vm649, %v4374, %v4378
      %v4380 = vrot.slane %v4088, 2
      %v4381 = vsel %vm649, %v4376, %v4380
      %v4382 = vrot.slane %v4089, 2
      %v4383 = vsel %vm649, %v4378, %v4382
      %v4384 = vrot.slane %v4090, 2
      %v4385 = vsel %vm649, %v4380, %v4384
      %v4386 = vrot.slane %v4091, 2
      %v4387 = vsel %vm649, %v4382, %v4386
      %v4388 = vrot.slane %v4092, 2
      %v4389 = vsel %vm649, %v4384, %v4388
      %v4390 = vrot.slane %v4093, 2
      %v4391 = vsel %vm649, %v4386, %v4390
      %v4392 = vrot.slane %v4094, 2
      %v4393 = vsel %vm649, %v4388, %v4392
      %v4394 = vrot.slane %v4095, 2
      %v4395 = vsel %vm649, %v4390, %v4394
      %v4396 = vrot.slane %v4096, 2
      %v4397 = vsel %vm649, %v4392, %v4396
      %v4398 = vrot.slane %v4097, 2
      %v4399 = vsel %vm649, %v4394, %v4398
      %v4400 = vrot.slane %v4098, 2
      %v4401 = vsel %vm649, %v4396, %v4400
      %v4402 = vrot.slane %v4099, 2
      %v4403 = vsel %vm649, %v4398, %v4402
      %v4404 = vrot.slane %v4100, 2
      %v4405 = vsel %vm649, %v4400, %v4404
      %v4406 = vrot.slane %v4101, 2
      %v4407 = vsel %vm649, %v4402, %v4406
      %v4408 = vrot.slane %v4102, 2
      %v4409 = vsel %vm649, %v4404, %v4408
      %v4410 = vrot.slane %v4103, 2
      %v4411 = vsel %vm649, %v4406, %v4410
      %v4412 = vrot.slane %v4104, 2
      %v4413 = vsel %vm649, %v4408, %v4412
      %v4414 = vrot.slane %v4105, 2
      %v4415 = vsel %vm649, %v4410, %v4414
      %v4416 = vrot.slane %v4106, 2
      %v4417 = vsel %vm649, %v4412, %v4416
      %v4418 = vrot.slane %v4107, 2
      %v4419 = vsel %vm649, %v4414, %v4418
      %v4420 = vrot.slane %v4108, 2
      %v4421 = vsel %vm649, %v4416, %v4420
      %v4422 = vrot.slane %v4109, 2
      %v4423 = vsel %vm649, %v4418, %v4422
      %v4424 = vrot.slane %v4110, 2
      %v4425 = vsel %vm649, %v4420, %v4424
      %v4426 = vrot.slane %v4111, 2
      %v4427 = vsel %vm649, %v4422, %v4426
      %v4428 = vrot.slane %v4112, 2
      %v4429 = vsel %vm649, %v4424, %v4428
      %v4430 = vrot.slane %v4113, 2
      %v4431 = vsel %vm649, %v4426, %v4430
      %v4432 = vrot.slane %v4114, 2
      %v4433 = vsel %vm649, %v4428, %v4432
      %v4434 = vrot.slane %v4115, 2
      %v4435 = vsel %vm649, %v4430, %v4434
      %v4436 = vrot.slane %v4116, 2
      %v4437 = vsel %vm649, %v4432, %v4436
      %v4438 = vrot.slane %v4117, 2
      %v4439 = vsel %vm649, %v4434, %v4438
      %v4440 = vrot.slane %v4118, 2
      %v4441 = vsel %vm649, %v4436, %v4440
      %v4442 = vrot.slane %v4119, 2
      %v4443 = vsel %vm649, %v4438, %v4442
      %v4444 = vrot.slane %v4120, 2
      %v4445 = vsel %vm649, %v4440, %v4444
      %v4446 = vrot.slane %v4121, 2
      %v4447 = vsel %vm649, %v4442, %v4446
      %v4448 = vrot.slane %v4122, 2
      %v4449 = vsel %vm649, %v4444, %v4448
      %v4450 = vrot.slane %v4123, 2
      %v4451 = vsel %vm649, %v4446, %v4450
      %v4452 = vrot.slane %v4124, 2
      %v4453 = vsel %vm649, %v4448, %v4452
      %v4454 = vrot.slane %v4125, 2
      %v4455 = vsel %vm649, %v4450, %v4454
      %v4456 = vrot.slane %v4126, 2
      %v4457 = vsel %vm649, %v4452, %v4456
      %v4458 = vrot.slane %v4127, 2
      %v4459 = vsel %vm649, %v4454, %v4458
      %v4460 = vrot.slane %v4128, 2
      %v4461 = vsel %vm649, %v4456, %v4460
      %v4462 = vrot.slane %v4129, 2
      %v4463 = vsel %vm649, %v4458, %v4462
      %v4464 = vrot.slane %v4130, 2
      %v4465 = vsel %vm649, %v4460, %v4464
      %v4466 = vrot.slane %v4131, 2
      %v4467 = vsel %vm649, %v4462, %v4466
      %v4468 = vrot.slane %v4132, 2
      %v4469 = vsel %vm649, %v4464, %v4468
      %v4470 = vrot.slane %v4133, 2
      %v4471 = vsel %vm649, %v4466, %v4470
      %v4472 = vrot.slane %v4134, 2
      %v4473 = vsel %vm649, %v4468, %v4472
      %v4474 = vrot.slane %v4135, 2
      %v4475 = vsel %vm649, %v4470, %v4474
      %v4476 = vrot.slane %v4136, 2
      %v4477 = vsel %vm649, %v4472, %v4476
      %v4478 = vrot.slane %v4137, 2
      %v4479 = vsel %vm649, %v4474, %v4478
      %v4480 = vrot.slane %v4138, 2
      %v4481 = vsel %vm649, %v4476, %v4480
      %v4482 = vrot.slane %v4139, 2
      %v4483 = vsel %vm649, %v4478, %v4482
      %v4484 = vrot.slane %v4140, 2
      %v4485 = vsel %vm649, %v4480, %v4484
      %v4486 = vrot.slane %v4141, 2
      %v4487 = vsel %vm649, %v4482, %v4486
      %v4488 = vrot.slane %v4142, 2
      %v4489 = vsel %vm649, %v4484, %v4488
      %v4490 = vrot.slane %v4143, 2
      %v4491 = vsel %vm649, %v4486, %v4490
      %v4492 = vrot.slane %v4144, 2
      %v4493 = vsel %vm649, %v4488, %v4492
      %v4494 = vrot.slane %v4145, 2
      %v4495 = vsel %vm649, %v4490, %v4494
      %v4496 = vrot.slane %v4146, 2
      %v4497 = vsel %vm649, %v4492, %v4496
      %v4498 = vrot.slane %v4147, 2
      %v4499 = vsel %vm649, %v4494, %v4498
      %v4500 = vrot.slane %v4148, 2
      %v4501 = vsel %vm649, %v4496, %v4500
      %v4502 = vrot.slane %v4149, 2
      %v4503 = vsel %vm649, %v4498, %v4502
      %v4504 = vrot.slane %v4150, 2
      %v4505 = vsel %vm649, %v4500, %v4504
      %v4506 = vrot.slane %v4151, 2
      %v4507 = vsel %vm649, %v4502, %v4506
      %v4508 = vrot.slane %v4152, 2
      %v4509 = vsel %vm649, %v4504, %v4508
      %v4510 = vrot.slane %v4153, 2
      %v4511 = vsel %vm649, %v4506, %v4510
      %v4512 = vrot.slane %v4154, 2
      %v4513 = vsel %vm649, %v4508, %v4512
      %v4514 = vrot.slane %v4155, 2
      %v4515 = vsel %vm649, %v4510, %v4514
      %v4516 = vrot.slane %v4156, 2
      %v4517 = vsel %vm649, %v4512, %v4516
      %v4518 = vrot.slane %v4157, 2
      %v4519 = vsel %vm649, %v4514, %v4518
      %v4520 = vrot.slane %v4158, 2
      %v4521 = vsel %vm649, %v4516, %v4520
      %v4522 = vrot.slane %v4159, 2
      %v4523 = vsel %vm649, %v4518, %v4522
      %v4524 = vrot.slane %v4160, 2
      %v4525 = vsel %vm649, %v4520, %v4524
      %v4526 = vrot.slane %v4161, 2
      %v4527 = vsel %vm649, %v4522, %v4526
      %v4528 = vrot.slane %v4162, 2
      %v4529 = vsel %vm649, %v4524, %v4528
      %v4530 = vrot.slane %v4163, 2
      %v4531 = vsel %vm649, %v4526, %v4530
      %v4532 = vrot.slane %v4164, 2
      %v4533 = vsel %vm649, %v4528, %v4532
      %v4534 = vrot.slane %v4165, 2
      %v4535 = vsel %vm649, %v4530, %v4534
      %v4536 = vrot.slane %v4166, 2
      %v4537 = vsel %vm649, %v4532, %v4536
      %v4538 = vrot.slane %v4167, 2
      %v4539 = vsel %vm649, %v4534, %v4538
      %v4540 = vrot.slane %v4168, 2
      %v4541 = vsel %vm649, %v4536, %v4540
      %v4542 = vrot.slane %v4169, 2
      %v4543 = vsel %vm649, %v4538, %v4542
      %v4544 = vrot.slane %v4170, 2
      %v4545 = vsel %vm649, %v4540, %v4544
      %v4546 = vrot.slane %v4171, 2
      %v4547 = vsel %vm649, %v4542, %v4546
      %v4548 = vrot.slane %v4172, 2
      %v4549 = vsel %vm649, %v4544, %v4548
      %v4550 = vrot.slane %v4173, 2
      %v4551 = vsel %vm649, %v4546, %v4550
      %v4552 = vrot.slane %v4174, 2
      %v4553 = vsel %vm649, %v4548, %v4552
      %v4554 = vrot.slane %v4175, 2
      %v4555 = vsel %vm649, %v4550, %v4554
      %v4556 = vrot.slane %v4176, 2
      %v4557 = vsel %vm649, %v4552, %v4556
      %v4558 = vrot.slane %v4177, 2
      %v4559 = vsel %vm649, %v4554, %v4558
      %v4564 = vsel %vm649, %v4556, %v4306
      %v4565 = vsel %vm649, %v4558, %v4309
      %v4566 = vrot.slane %v4050, 4
      %v4567 = vrot.slane %v4052, 4
      %v4568 = vsel %vm911, %v4566, %v4567
      %v4569 = vrot.slane %v4051, 4
      %v4570 = vrot.slane %v4053, 4
      %v4571 = vsel %vm911, %v4569, %v4570
      %v4572 = vrot.slane %v4054, 4
      %v4573 = vsel %vm911, %v4567, %v4572
      %v4574 = vrot.slane %v4055, 4
      %v4575 = vsel %vm911, %v4570, %v4574
      %v4576 = vrot.slane %v4056, 4
      %v4577 = vsel %vm911, %v4572, %v4576
      %v4578 = vrot.slane %v4057, 4
      %v4579 = vsel %vm911, %v4574, %v4578
      %v4580 = vrot.slane %v4058, 4
      %v4581 = vsel %vm911, %v4576, %v4580
      %v4582 = vrot.slane %v4059, 4
      %v4583 = vsel %vm911, %v4578, %v4582
      %v4584 = vrot.slane %v4060, 4
      %v4585 = vsel %vm911, %v4580, %v4584
      %v4586 = vrot.slane %v4061, 4
      %v4587 = vsel %vm911, %v4582, %v4586
      %v4588 = vrot.slane %v4062, 4
      %v4589 = vsel %vm911, %v4584, %v4588
      %v4590 = vrot.slane %v4063, 4
      %v4591 = vsel %vm911, %v4586, %v4590
      %v4592 = vrot.slane %v4064, 4
      %v4593 = vsel %vm911, %v4588, %v4592
      %v4594 = vrot.slane %v4065, 4
      %v4595 = vsel %vm911, %v4590, %v4594
      %v4596 = vrot.slane %v4066, 4
      %v4597 = vsel %vm911, %v4592, %v4596
      %v4598 = vrot.slane %v4067, 4
      %v4599 = vsel %vm911, %v4594, %v4598
      %v4600 = vrot.slane %v4068, 4
      %v4601 = vsel %vm911, %v4596, %v4600
      %v4602 = vrot.slane %v4069, 4
      %v4603 = vsel %vm911, %v4598, %v4602
      %v4604 = vrot.slane %v4070, 4
      %v4605 = vsel %vm911, %v4600, %v4604
      %v4606 = vrot.slane %v4071, 4
      %v4607 = vsel %vm911, %v4602, %v4606
      %v4608 = vrot.slane %v4072, 4
      %v4609 = vsel %vm911, %v4604, %v4608
      %v4610 = vrot.slane %v4073, 4
      %v4611 = vsel %vm911, %v4606, %v4610
      %v4612 = vrot.slane %v4074, 4
      %v4613 = vsel %vm911, %v4608, %v4612
      %v4614 = vrot.slane %v4075, 4
      %v4615 = vsel %vm911, %v4610, %v4614
      %v4616 = vrot.slane %v4076, 4
      %v4617 = vsel %vm911, %v4612, %v4616
      %v4618 = vrot.slane %v4077, 4
      %v4619 = vsel %vm911, %v4614, %v4618
      %v4620 = vrot.slane %v4078, 4
      %v4621 = vsel %vm911, %v4616, %v4620
      %v4622 = vrot.slane %v4079, 4
      %v4623 = vsel %vm911, %v4618, %v4622
      %v4624 = vrot.slane %v4080, 4
      %v4625 = vsel %vm911, %v4620, %v4624
      %v4626 = vrot.slane %v4081, 4
      %v4627 = vsel %vm911, %v4622, %v4626
      %v4628 = vrot.slane %v4082, 4
      %v4629 = vsel %vm911, %v4624, %v4628
      %v4630 = vrot.slane %v4083, 4
      %v4631 = vsel %vm911, %v4626, %v4630
      %v4632 = vrot.slane %v4084, 4
      %v4633 = vsel %vm911, %v4628, %v4632
      %v4634 = vrot.slane %v4085, 4
      %v4635 = vsel %vm911, %v4630, %v4634
      %v4636 = vrot.slane %v4086, 4
      %v4637 = vsel %vm911, %v4632, %v4636
      %v4638 = vrot.slane %v4087, 4
      %v4639 = vsel %vm911, %v4634, %v4638
      %v4640 = vrot.slane %v4088, 4
      %v4641 = vsel %vm911, %v4636, %v4640
      %v4642 = vrot.slane %v4089, 4
      %v4643 = vsel %vm911, %v4638, %v4642
      %v4644 = vrot.slane %v4090, 4
      %v4645 = vsel %vm911, %v4640, %v4644
      %v4646 = vrot.slane %v4091, 4
      %v4647 = vsel %vm911, %v4642, %v4646
      %v4648 = vrot.slane %v4092, 4
      %v4649 = vsel %vm911, %v4644, %v4648
      %v4650 = vrot.slane %v4093, 4
      %v4651 = vsel %vm911, %v4646, %v4650
      %v4652 = vrot.slane %v4094, 4
      %v4653 = vsel %vm911, %v4648, %v4652
      %v4654 = vrot.slane %v4095, 4
      %v4655 = vsel %vm911, %v4650, %v4654
      %v4656 = vrot.slane %v4096, 4
      %v4657 = vsel %vm911, %v4652, %v4656
      %v4658 = vrot.slane %v4097, 4
      %v4659 = vsel %vm911, %v4654, %v4658
      %v4660 = vrot.slane %v4098, 4
      %v4661 = vsel %vm911, %v4656, %v4660
      %v4662 = vrot.slane %v4099, 4
      %v4663 = vsel %vm911, %v4658, %v4662
      %v4664 = vrot.slane %v4100, 4
      %v4665 = vsel %vm911, %v4660, %v4664
      %v4666 = vrot.slane %v4101, 4
      %v4667 = vsel %vm911, %v4662, %v4666
      %v4668 = vrot.slane %v4102, 4
      %v4669 = vsel %vm911, %v4664, %v4668
      %v4670 = vrot.slane %v4103, 4
      %v4671 = vsel %vm911, %v4666, %v4670
      %v4672 = vrot.slane %v4104, 4
      %v4673 = vsel %vm911, %v4668, %v4672
      %v4674 = vrot.slane %v4105, 4
      %v4675 = vsel %vm911, %v4670, %v4674
      %v4676 = vrot.slane %v4106, 4
      %v4677 = vsel %vm911, %v4672, %v4676
      %v4678 = vrot.slane %v4107, 4
      %v4679 = vsel %vm911, %v4674, %v4678
      %v4680 = vrot.slane %v4108, 4
      %v4681 = vsel %vm911, %v4676, %v4680
      %v4682 = vrot.slane %v4109, 4
      %v4683 = vsel %vm911, %v4678, %v4682
      %v4684 = vrot.slane %v4110, 4
      %v4685 = vsel %vm911, %v4680, %v4684
      %v4686 = vrot.slane %v4111, 4
      %v4687 = vsel %vm911, %v4682, %v4686
      %v4688 = vrot.slane %v4112, 4
      %v4689 = vsel %vm911, %v4684, %v4688
      %v4690 = vrot.slane %v4113, 4
      %v4691 = vsel %vm911, %v4686, %v4690
      %v4692 = vrot.slane %v4114, 4
      %v4693 = vsel %vm911, %v4688, %v4692
      %v4694 = vrot.slane %v4115, 4
      %v4695 = vsel %vm911, %v4690, %v4694
      %v4696 = vrot.slane %v4116, 4
      %v4697 = vsel %vm911, %v4692, %v4696
      %v4698 = vrot.slane %v4117, 4
      %v4699 = vsel %vm911, %v4694, %v4698
      %v4700 = vrot.slane %v4118, 4
      %v4701 = vsel %vm911, %v4696, %v4700
      %v4702 = vrot.slane %v4119, 4
      %v4703 = vsel %vm911, %v4698, %v4702
      %v4704 = vrot.slane %v4120, 4
      %v4705 = vsel %vm911, %v4700, %v4704
      %v4706 = vrot.slane %v4121, 4
      %v4707 = vsel %vm911, %v4702, %v4706
      %v4708 = vrot.slane %v4122, 4
      %v4709 = vsel %vm911, %v4704, %v4708
      %v4710 = vrot.slane %v4123, 4
      %v4711 = vsel %vm911, %v4706, %v4710
      %v4712 = vrot.slane %v4124, 4
      %v4713 = vsel %vm911, %v4708, %v4712
      %v4714 = vrot.slane %v4125, 4
      %v4715 = vsel %vm911, %v4710, %v4714
      %v4716 = vrot.slane %v4126, 4
      %v4717 = vsel %vm911, %v4712, %v4716
      %v4718 = vrot.slane %v4127, 4
      %v4719 = vsel %vm911, %v4714, %v4718
      %v4720 = vrot.slane %v4128, 4
      %v4721 = vsel %vm911, %v4716, %v4720
      %v4722 = vrot.slane %v4129, 4
      %v4723 = vsel %vm911, %v4718, %v4722
      %v4724 = vrot.slane %v4130, 4
      %v4725 = vsel %vm911, %v4720, %v4724
      %v4726 = vrot.slane %v4131, 4
      %v4727 = vsel %vm911, %v4722, %v4726
      %v4728 = vrot.slane %v4132, 4
      %v4729 = vsel %vm911, %v4724, %v4728
      %v4730 = vrot.slane %v4133, 4
      %v4731 = vsel %vm911, %v4726, %v4730
      %v4732 = vrot.slane %v4134, 4
      %v4733 = vsel %vm911, %v4728, %v4732
      %v4734 = vrot.slane %v4135, 4
      %v4735 = vsel %vm911, %v4730, %v4734
      %v4736 = vrot.slane %v4136, 4
      %v4737 = vsel %vm911, %v4732, %v4736
      %v4738 = vrot.slane %v4137, 4
      %v4739 = vsel %vm911, %v4734, %v4738
      %v4740 = vrot.slane %v4138, 4
      %v4741 = vsel %vm911, %v4736, %v4740
      %v4742 = vrot.slane %v4139, 4
      %v4743 = vsel %vm911, %v4738, %v4742
      %v4744 = vrot.slane %v4140, 4
      %v4745 = vsel %vm911, %v4740, %v4744
      %v4746 = vrot.slane %v4141, 4
      %v4747 = vsel %vm911, %v4742, %v4746
      %v4748 = vrot.slane %v4142, 4
      %v4749 = vsel %vm911, %v4744, %v4748
      %v4750 = vrot.slane %v4143, 4
      %v4751 = vsel %vm911, %v4746, %v4750
      %v4752 = vrot.slane %v4144, 4
      %v4753 = vsel %vm911, %v4748, %v4752
      %v4754 = vrot.slane %v4145, 4
      %v4755 = vsel %vm911, %v4750, %v4754
      %v4756 = vrot.slane %v4146, 4
      %v4757 = vsel %vm911, %v4752, %v4756
      %v4758 = vrot.slane %v4147, 4
      %v4759 = vsel %vm911, %v4754, %v4758
      %v4760 = vrot.slane %v4148, 4
      %v4761 = vsel %vm911, %v4756, %v4760
      %v4762 = vrot.slane %v4149, 4
      %v4763 = vsel %vm911, %v4758, %v4762
      %v4764 = vrot.slane %v4150, 4
      %v4765 = vsel %vm911, %v4760, %v4764
      %v4766 = vrot.slane %v4151, 4
      %v4767 = vsel %vm911, %v4762, %v4766
      %v4768 = vrot.slane %v4152, 4
      %v4769 = vsel %vm911, %v4764, %v4768
      %v4770 = vrot.slane %v4153, 4
      %v4771 = vsel %vm911, %v4766, %v4770
      %v4772 = vrot.slane %v4154, 4
      %v4773 = vsel %vm911, %v4768, %v4772
      %v4774 = vrot.slane %v4155, 4
      %v4775 = vsel %vm911, %v4770, %v4774
      %v4776 = vrot.slane %v4156, 4
      %v4777 = vsel %vm911, %v4772, %v4776
      %v4778 = vrot.slane %v4157, 4
      %v4779 = vsel %vm911, %v4774, %v4778
      %v4780 = vrot.slane %v4158, 4
      %v4781 = vsel %vm911, %v4776, %v4780
      %v4782 = vrot.slane %v4159, 4
      %v4783 = vsel %vm911, %v4778, %v4782
      %v4784 = vrot.slane %v4160, 4
      %v4785 = vsel %vm911, %v4780, %v4784
      %v4786 = vrot.slane %v4161, 4
      %v4787 = vsel %vm911, %v4782, %v4786
      %v4788 = vrot.slane %v4162, 4
      %v4789 = vsel %vm911, %v4784, %v4788
      %v4790 = vrot.slane %v4163, 4
      %v4791 = vsel %vm911, %v4786, %v4790
      %v4792 = vrot.slane %v4164, 4
      %v4793 = vsel %vm911, %v4788, %v4792
      %v4794 = vrot.slane %v4165, 4
      %v4795 = vsel %vm911, %v4790, %v4794
      %v4796 = vrot.slane %v4166, 4
      %v4797 = vsel %vm911, %v4792, %v4796
      %v4798 = vrot.slane %v4167, 4
      %v4799 = vsel %vm911, %v4794, %v4798
      %v4800 = vrot.slane %v4168, 4
      %v4801 = vsel %vm911, %v4796, %v4800
      %v4802 = vrot.slane %v4169, 4
      %v4803 = vsel %vm911, %v4798, %v4802
      %v4804 = vrot.slane %v4170, 4
      %v4805 = vsel %vm911, %v4800, %v4804
      %v4806 = vrot.slane %v4171, 4
      %v4807 = vsel %vm911, %v4802, %v4806
      %v4808 = vrot.slane %v4172, 4
      %v4809 = vsel %vm911, %v4804, %v4808
      %v4810 = vrot.slane %v4173, 4
      %v4811 = vsel %vm911, %v4806, %v4810
      %v4812 = vrot.slane %v4174, 4
      %v4813 = vsel %vm911, %v4808, %v4812
      %v4814 = vrot.slane %v4175, 4
      %v4815 = vsel %vm911, %v4810, %v4814
      %v4816 = vrot.slane %v4176, 4
      %v4817 = vsel %vm911, %v4812, %v4816
      %v4818 = vrot.slane %v4177, 4
      %v4819 = vsel %vm911, %v4814, %v4818
      %v4824 = vsel %vm911, %v4816, %v4566
      %v4825 = vsel %vm911, %v4818, %v4569
      %vm4826 = vcmask 1041408
      %v4827 = vrot.slane %v4050, 6
      %v4828 = vrot.slane %v4052, 6
      %v4829 = vsel %vm4826, %v4827, %v4828
      %v4830 = vrot.slane %v4051, 6
      %v4831 = vrot.slane %v4053, 6
      %v4832 = vsel %vm4826, %v4830, %v4831
      %v4833 = vrot.slane %v4054, 6
      %v4834 = vsel %vm4826, %v4828, %v4833
      %v4835 = vrot.slane %v4055, 6
      %v4836 = vsel %vm4826, %v4831, %v4835
      %v4837 = vrot.slane %v4056, 6
      %v4838 = vsel %vm4826, %v4833, %v4837
      %v4839 = vrot.slane %v4057, 6
      %v4840 = vsel %vm4826, %v4835, %v4839
      %v4841 = vrot.slane %v4058, 6
      %v4842 = vsel %vm4826, %v4837, %v4841
      %v4843 = vrot.slane %v4059, 6
      %v4844 = vsel %vm4826, %v4839, %v4843
      %v4845 = vrot.slane %v4060, 6
      %v4846 = vsel %vm4826, %v4841, %v4845
      %v4847 = vrot.slane %v4061, 6
      %v4848 = vsel %vm4826, %v4843, %v4847
      %v4849 = vrot.slane %v4062, 6
      %v4850 = vsel %vm4826, %v4845, %v4849
      %v4851 = vrot.slane %v4063, 6
      %v4852 = vsel %vm4826, %v4847, %v4851
      %v4853 = vrot.slane %v4064, 6
      %v4854 = vsel %vm4826, %v4849, %v4853
      %v4855 = vrot.slane %v4065, 6
      %v4856 = vsel %vm4826, %v4851, %v4855
      %v4857 = vrot.slane %v4066, 6
      %v4858 = vsel %vm4826, %v4853, %v4857
      %v4859 = vrot.slane %v4067, 6
      %v4860 = vsel %vm4826, %v4855, %v4859
      %v4861 = vrot.slane %v4068, 6
      %v4862 = vsel %vm4826, %v4857, %v4861
      %v4863 = vrot.slane %v4069, 6
      %v4864 = vsel %vm4826, %v4859, %v4863
      %v4865 = vrot.slane %v4070, 6
      %v4866 = vsel %vm4826, %v4861, %v4865
      %v4867 = vrot.slane %v4071, 6
      %v4868 = vsel %vm4826, %v4863, %v4867
      %v4869 = vrot.slane %v4072, 6
      %v4870 = vsel %vm4826, %v4865, %v4869
      %v4871 = vrot.slane %v4073, 6
      %v4872 = vsel %vm4826, %v4867, %v4871
      %v4873 = vrot.slane %v4074, 6
      %v4874 = vsel %vm4826, %v4869, %v4873
      %v4875 = vrot.slane %v4075, 6
      %v4876 = vsel %vm4826, %v4871, %v4875
      %v4877 = vrot.slane %v4076, 6
      %v4878 = vsel %vm4826, %v4873, %v4877
      %v4879 = vrot.slane %v4077, 6
      %v4880 = vsel %vm4826, %v4875, %v4879
      %v4881 = vrot.slane %v4078, 6
      %v4882 = vsel %vm4826, %v4877, %v4881
      %v4883 = vrot.slane %v4079, 6
      %v4884 = vsel %vm4826, %v4879, %v4883
      %v4885 = vrot.slane %v4080, 6
      %v4886 = vsel %vm4826, %v4881, %v4885
      %v4887 = vrot.slane %v4081, 6
      %v4888 = vsel %vm4826, %v4883, %v4887
      %v4889 = vrot.slane %v4082, 6
      %v4890 = vsel %vm4826, %v4885, %v4889
      %v4891 = vrot.slane %v4083, 6
      %v4892 = vsel %vm4826, %v4887, %v4891
      %v4893 = vrot.slane %v4084, 6
      %v4894 = vsel %vm4826, %v4889, %v4893
      %v4895 = vrot.slane %v4085, 6
      %v4896 = vsel %vm4826, %v4891, %v4895
      %v4897 = vrot.slane %v4086, 6
      %v4898 = vsel %vm4826, %v4893, %v4897
      %v4899 = vrot.slane %v4087, 6
      %v4900 = vsel %vm4826, %v4895, %v4899
      %v4901 = vrot.slane %v4088, 6
      %v4902 = vsel %vm4826, %v4897, %v4901
      %v4903 = vrot.slane %v4089, 6
      %v4904 = vsel %vm4826, %v4899, %v4903
      %v4905 = vrot.slane %v4090, 6
      %v4906 = vsel %vm4826, %v4901, %v4905
      %v4907 = vrot.slane %v4091, 6
      %v4908 = vsel %vm4826, %v4903, %v4907
      %v4909 = vrot.slane %v4092, 6
      %v4910 = vsel %vm4826, %v4905, %v4909
      %v4911 = vrot.slane %v4093, 6
      %v4912 = vsel %vm4826, %v4907, %v4911
      %v4913 = vrot.slane %v4094, 6
      %v4914 = vsel %vm4826, %v4909, %v4913
      %v4915 = vrot.slane %v4095, 6
      %v4916 = vsel %vm4826, %v4911, %v4915
      %v4917 = vrot.slane %v4096, 6
      %v4918 = vsel %vm4826, %v4913, %v4917
      %v4919 = vrot.slane %v4097, 6
      %v4920 = vsel %vm4826, %v4915, %v4919
      %v4921 = vrot.slane %v4098, 6
      %v4922 = vsel %vm4826, %v4917, %v4921
      %v4923 = vrot.slane %v4099, 6
      %v4924 = vsel %vm4826, %v4919, %v4923
      %v4925 = vrot.slane %v4100, 6
      %v4926 = vsel %vm4826, %v4921, %v4925
      %v4927 = vrot.slane %v4101, 6
      %v4928 = vsel %vm4826, %v4923, %v4927
      %v4929 = vrot.slane %v4102, 6
      %v4930 = vsel %vm4826, %v4925, %v4929
      %v4931 = vrot.slane %v4103, 6
      %v4932 = vsel %vm4826, %v4927, %v4931
      %v4933 = vrot.slane %v4104, 6
      %v4934 = vsel %vm4826, %v4929, %v4933
      %v4935 = vrot.slane %v4105, 6
      %v4936 = vsel %vm4826, %v4931, %v4935
      %v4937 = vrot.slane %v4106, 6
      %v4938 = vsel %vm4826, %v4933, %v4937
      %v4939 = vrot.slane %v4107, 6
      %v4940 = vsel %vm4826, %v4935, %v4939
      %v4941 = vrot.slane %v4108, 6
      %v4942 = vsel %vm4826, %v4937, %v4941
      %v4943 = vrot.slane %v4109, 6
      %v4944 = vsel %vm4826, %v4939, %v4943
      %v4945 = vrot.slane %v4110, 6
      %v4946 = vsel %vm4826, %v4941, %v4945
      %v4947 = vrot.slane %v4111, 6
      %v4948 = vsel %vm4826, %v4943, %v4947
      %v4949 = vrot.slane %v4112, 6
      %v4950 = vsel %vm4826, %v4945, %v4949
      %v4951 = vrot.slane %v4113, 6
      %v4952 = vsel %vm4826, %v4947, %v4951
      %v4953 = vrot.slane %v4114, 6
      %v4954 = vsel %vm4826, %v4949, %v4953
      %v4955 = vrot.slane %v4115, 6
      %v4956 = vsel %vm4826, %v4951, %v4955
      %v4957 = vrot.slane %v4116, 6
      %v4958 = vsel %vm4826, %v4953, %v4957
      %v4959 = vrot.slane %v4117, 6
      %v4960 = vsel %vm4826, %v4955, %v4959
      %v4961 = vrot.slane %v4118, 6
      %v4962 = vsel %vm4826, %v4957, %v4961
      %v4963 = vrot.slane %v4119, 6
      %v4964 = vsel %vm4826, %v4959, %v4963
      %v4965 = vrot.slane %v4120, 6
      %v4966 = vsel %vm4826, %v4961, %v4965
      %v4967 = vrot.slane %v4121, 6
      %v4968 = vsel %vm4826, %v4963, %v4967
      %v4969 = vrot.slane %v4122, 6
      %v4970 = vsel %vm4826, %v4965, %v4969
      %v4971 = vrot.slane %v4123, 6
      %v4972 = vsel %vm4826, %v4967, %v4971
      %v4973 = vrot.slane %v4124, 6
      %v4974 = vsel %vm4826, %v4969, %v4973
      %v4975 = vrot.slane %v4125, 6
      %v4976 = vsel %vm4826, %v4971, %v4975
      %v4977 = vrot.slane %v4126, 6
      %v4978 = vsel %vm4826, %v4973, %v4977
      %v4979 = vrot.slane %v4127, 6
      %v4980 = vsel %vm4826, %v4975, %v4979
      %v4981 = vrot.slane %v4128, 6
      %v4982 = vsel %vm4826, %v4977, %v4981
      %v4983 = vrot.slane %v4129, 6
      %v4984 = vsel %vm4826, %v4979, %v4983
      %v4985 = vrot.slane %v4130, 6
      %v4986 = vsel %vm4826, %v4981, %v4985
      %v4987 = vrot.slane %v4131, 6
      %v4988 = vsel %vm4826, %v4983, %v4987
      %v4989 = vrot.slane %v4132, 6
      %v4990 = vsel %vm4826, %v4985, %v4989
      %v4991 = vrot.slane %v4133, 6
      %v4992 = vsel %vm4826, %v4987, %v4991
      %v4993 = vrot.slane %v4134, 6
      %v4994 = vsel %vm4826, %v4989, %v4993
      %v4995 = vrot.slane %v4135, 6
      %v4996 = vsel %vm4826, %v4991, %v4995
      %v4997 = vrot.slane %v4136, 6
      %v4998 = vsel %vm4826, %v4993, %v4997
      %v4999 = vrot.slane %v4137, 6
      %v5000 = vsel %vm4826, %v4995, %v4999
      %v5001 = vrot.slane %v4138, 6
      %v5002 = vsel %vm4826, %v4997, %v5001
      %v5003 = vrot.slane %v4139, 6
      %v5004 = vsel %vm4826, %v4999, %v5003
      %v5005 = vrot.slane %v4140, 6
      %v5006 = vsel %vm4826, %v5001, %v5005
      %v5007 = vrot.slane %v4141, 6
      %v5008 = vsel %vm4826, %v5003, %v5007
      %v5009 = vrot.slane %v4142, 6
      %v5010 = vsel %vm4826, %v5005, %v5009
      %v5011 = vrot.slane %v4143, 6
      %v5012 = vsel %vm4826, %v5007, %v5011
      %v5013 = vrot.slane %v4144, 6
      %v5014 = vsel %vm4826, %v5009, %v5013
      %v5015 = vrot.slane %v4145, 6
      %v5016 = vsel %vm4826, %v5011, %v5015
      %v5017 = vrot.slane %v4146, 6
      %v5018 = vsel %vm4826, %v5013, %v5017
      %v5019 = vrot.slane %v4147, 6
      %v5020 = vsel %vm4826, %v5015, %v5019
      %v5021 = vrot.slane %v4148, 6
      %v5022 = vsel %vm4826, %v5017, %v5021
      %v5023 = vrot.slane %v4149, 6
      %v5024 = vsel %vm4826, %v5019, %v5023
      %v5025 = vrot.slane %v4150, 6
      %v5026 = vsel %vm4826, %v5021, %v5025
      %v5027 = vrot.slane %v4151, 6
      %v5028 = vsel %vm4826, %v5023, %v5027
      %v5029 = vrot.slane %v4152, 6
      %v5030 = vsel %vm4826, %v5025, %v5029
      %v5031 = vrot.slane %v4153, 6
      %v5032 = vsel %vm4826, %v5027, %v5031
      %v5033 = vrot.slane %v4154, 6
      %v5034 = vsel %vm4826, %v5029, %v5033
      %v5035 = vrot.slane %v4155, 6
      %v5036 = vsel %vm4826, %v5031, %v5035
      %v5037 = vrot.slane %v4156, 6
      %v5038 = vsel %vm4826, %v5033, %v5037
      %v5039 = vrot.slane %v4157, 6
      %v5040 = vsel %vm4826, %v5035, %v5039
      %v5041 = vrot.slane %v4158, 6
      %v5042 = vsel %vm4826, %v5037, %v5041
      %v5043 = vrot.slane %v4159, 6
      %v5044 = vsel %vm4826, %v5039, %v5043
      %v5045 = vrot.slane %v4160, 6
      %v5046 = vsel %vm4826, %v5041, %v5045
      %v5047 = vrot.slane %v4161, 6
      %v5048 = vsel %vm4826, %v5043, %v5047
      %v5049 = vrot.slane %v4162, 6
      %v5050 = vsel %vm4826, %v5045, %v5049
      %v5051 = vrot.slane %v4163, 6
      %v5052 = vsel %vm4826, %v5047, %v5051
      %v5053 = vrot.slane %v4164, 6
      %v5054 = vsel %vm4826, %v5049, %v5053
      %v5055 = vrot.slane %v4165, 6
      %v5056 = vsel %vm4826, %v5051, %v5055
      %v5057 = vrot.slane %v4166, 6
      %v5058 = vsel %vm4826, %v5053, %v5057
      %v5059 = vrot.slane %v4167, 6
      %v5060 = vsel %vm4826, %v5055, %v5059
      %v5061 = vrot.slane %v4168, 6
      %v5062 = vsel %vm4826, %v5057, %v5061
      %v5063 = vrot.slane %v4169, 6
      %v5064 = vsel %vm4826, %v5059, %v5063
      %v5065 = vrot.slane %v4170, 6
      %v5066 = vsel %vm4826, %v5061, %v5065
      %v5067 = vrot.slane %v4171, 6
      %v5068 = vsel %vm4826, %v5063, %v5067
      %v5069 = vrot.slane %v4172, 6
      %v5070 = vsel %vm4826, %v5065, %v5069
      %v5071 = vrot.slane %v4173, 6
      %v5072 = vsel %vm4826, %v5067, %v5071
      %v5073 = vrot.slane %v4174, 6
      %v5074 = vsel %vm4826, %v5069, %v5073
      %v5075 = vrot.slane %v4175, 6
      %v5076 = vsel %vm4826, %v5071, %v5075
      %v5077 = vrot.slane %v4176, 6
      %v5078 = vsel %vm4826, %v5073, %v5077
      %v5079 = vrot.slane %v4177, 6
      %v5080 = vsel %vm4826, %v5075, %v5079
      %v5085 = vsel %vm4826, %v5077, %v4827
      %v5086 = vsel %vm4826, %v5079, %v4830
      %5089 = vrot.lane.b32.xlu0 %v4308, 40
      %v5090 = vpop.permute.xlu0 %5089
      %5091 = vrot.lane.b32.xlu0 %v4311, 40
      %v5092 = vpop.permute.xlu0 %5091
      %5093 = vrot.lane.b32.xlu0 %v4313, 40
      %v5094 = vpop.permute.xlu0 %5093
      %5095 = vrot.lane.b32.xlu0 %v4315, 40
      %v5096 = vpop.permute.xlu0 %5095
      %5097 = vrot.lane.b32.xlu0 %v4317, 40
      %v5098 = vpop.permute.xlu0 %5097
      %5099 = vrot.lane.b32.xlu0 %v4319, 40
      %v5100 = vpop.permute.xlu0 %5099
      %5101 = vrot.lane.b32.xlu0 %v4321, 40
      %v5102 = vpop.permute.xlu0 %5101
      %5103 = vrot.lane.b32.xlu0 %v4323, 40
      %v5104 = vpop.permute.xlu0 %5103
      %5105 = vrot.lane.b32.xlu0 %v4325, 40
      %v5106 = vpop.permute.xlu0 %5105
      %5107 = vrot.lane.b32.xlu0 %v4327, 40
      %v5108 = vpop.permute.xlu0 %5107
      %5109 = vrot.lane.b32.xlu0 %v4329, 40
      %v5110 = vpop.permute.xlu0 %5109
      %5111 = vrot.lane.b32.xlu0 %v4331, 40
      %v5112 = vpop.permute.xlu0 %5111
      %5113 = vrot.lane.b32.xlu0 %v4333, 40
      %v5114 = vpop.permute.xlu0 %5113
      %5115 = vrot.lane.b32.xlu0 %v4335, 40
      %v5116 = vpop.permute.xlu0 %5115
      %5117 = vrot.lane.b32.xlu0 %v4337, 40
      %v5118 = vpop.permute.xlu0 %5117
      %5119 = vrot.lane.b32.xlu0 %v4339, 40
      %v5120 = vpop.permute.xlu0 %5119
      %5121 = vrot.lane.b32.xlu0 %v4341, 40
      %v5122 = vpop.permute.xlu0 %5121
      %5123 = vrot.lane.b32.xlu0 %v4343, 40
      %v5124 = vpop.permute.xlu0 %5123
      %5125 = vrot.lane.b32.xlu0 %v4345, 40
      %v5126 = vpop.permute.xlu0 %5125
      %5127 = vrot.lane.b32.xlu0 %v4347, 40
      %v5128 = vpop.permute.xlu0 %5127
      %5129 = vrot.lane.b32.xlu0 %v4349, 40
      %v5130 = vpop.permute.xlu0 %5129
      %5131 = vrot.lane.b32.xlu0 %v4351, 40
      %v5132 = vpop.permute.xlu0 %5131
      %5133 = vrot.lane.b32.xlu0 %v4353, 40
      %v5134 = vpop.permute.xlu0 %5133
      %5135 = vrot.lane.b32.xlu0 %v4355, 40
      %v5136 = vpop.permute.xlu0 %5135
      %5137 = vrot.lane.b32.xlu0 %v4357, 40
      %v5138 = vpop.permute.xlu0 %5137
      %5139 = vrot.lane.b32.xlu0 %v4359, 40
      %v5140 = vpop.permute.xlu0 %5139
      %5141 = vrot.lane.b32.xlu0 %v4361, 40
      %v5142 = vpop.permute.xlu0 %5141
      %5143 = vrot.lane.b32.xlu0 %v4363, 40
      %v5144 = vpop.permute.xlu0 %5143
      %5145 = vrot.lane.b32.xlu0 %v4365, 40
      %v5146 = vpop.permute.xlu0 %5145
      %5147 = vrot.lane.b32.xlu0 %v4367, 40
      %v5148 = vpop.permute.xlu0 %5147
      %5149 = vrot.lane.b32.xlu0 %v4369, 40
      %v5150 = vpop.permute.xlu0 %5149
      %5151 = vrot.lane.b32.xlu0 %v4371, 40
      %v5152 = vpop.permute.xlu0 %5151
      %5153 = vrot.lane.b32.xlu0 %v4373, 40
      %v5154 = vpop.permute.xlu0 %5153
      %5155 = vrot.lane.b32.xlu0 %v4375, 40
      %v5156 = vpop.permute.xlu0 %5155
      %5157 = vrot.lane.b32.xlu0 %v4377, 40
      %v5158 = vpop.permute.xlu0 %5157
      %5159 = vrot.lane.b32.xlu0 %v4379, 40
      %v5160 = vpop.permute.xlu0 %5159
      %5161 = vrot.lane.b32.xlu0 %v4381, 40
      %v5162 = vpop.permute.xlu0 %5161
      %5163 = vrot.lane.b32.xlu0 %v4383, 40
      %v5164 = vpop.permute.xlu0 %5163
      %5165 = vrot.lane.b32.xlu0 %v4385, 40
      %v5166 = vpop.permute.xlu0 %5165
      %5167 = vrot.lane.b32.xlu0 %v4387, 40
      %v5168 = vpop.permute.xlu0 %5167
      %5169 = vrot.lane.b32.xlu0 %v4389, 40
      %v5170 = vpop.permute.xlu0 %5169
      %5171 = vrot.lane.b32.xlu0 %v4391, 40
      %v5172 = vpop.permute.xlu0 %5171
      %5173 = vrot.lane.b32.xlu0 %v4393, 40
      %v5174 = vpop.permute.xlu0 %5173
      %5175 = vrot.lane.b32.xlu0 %v4395, 40
      %v5176 = vpop.permute.xlu0 %5175
      %5177 = vrot.lane.b32.xlu0 %v4397, 40
      %v5178 = vpop.permute.xlu0 %5177
      %5179 = vrot.lane.b32.xlu0 %v4399, 40
      %v5180 = vpop.permute.xlu0 %5179
      %5181 = vrot.lane.b32.xlu0 %v4401, 40
      %v5182 = vpop.permute.xlu0 %5181
      %5183 = vrot.lane.b32.xlu0 %v4403, 40
      %v5184 = vpop.permute.xlu0 %5183
      %5185 = vrot.lane.b32.xlu0 %v4405, 40
      %v5186 = vpop.permute.xlu0 %5185
      %5187 = vrot.lane.b32.xlu0 %v4407, 40
      %v5188 = vpop.permute.xlu0 %5187
      %5189 = vrot.lane.b32.xlu0 %v4409, 40
      %v5190 = vpop.permute.xlu0 %5189
      %5191 = vrot.lane.b32.xlu0 %v4411, 40
      %v5192 = vpop.permute.xlu0 %5191
      %5193 = vrot.lane.b32.xlu0 %v4413, 40
      %v5194 = vpop.permute.xlu0 %5193
      %5195 = vrot.lane.b32.xlu0 %v4415, 40
      %v5196 = vpop.permute.xlu0 %5195
      %5197 = vrot.lane.b32.xlu0 %v4417, 40
      %v5198 = vpop.permute.xlu0 %5197
      %5199 = vrot.lane.b32.xlu0 %v4419, 40
      %v5200 = vpop.permute.xlu0 %5199
      %5201 = vrot.lane.b32.xlu0 %v4421, 40
      %v5202 = vpop.permute.xlu0 %5201
      %5203 = vrot.lane.b32.xlu0 %v4423, 40
      %v5204 = vpop.permute.xlu0 %5203
      %5205 = vrot.lane.b32.xlu0 %v4425, 40
      %v5206 = vpop.permute.xlu0 %5205
      %5207 = vrot.lane.b32.xlu0 %v4427, 40
      %v5208 = vpop.permute.xlu0 %5207
      %5209 = vrot.lane.b32.xlu0 %v4429, 40
      %v5210 = vpop.permute.xlu0 %5209
      %5211 = vrot.lane.b32.xlu0 %v4431, 40
      %v5212 = vpop.permute.xlu0 %5211
      %5213 = vrot.lane.b32.xlu0 %v4433, 40
      %v5214 = vpop.permute.xlu0 %5213
      %5215 = vrot.lane.b32.xlu0 %v4435, 40
      %v5216 = vpop.permute.xlu0 %5215
      %5217 = vrot.lane.b32.xlu0 %v4437, 40
      %v5218 = vpop.permute.xlu0 %5217
      %5219 = vrot.lane.b32.xlu0 %v4439, 40
      %v5220 = vpop.permute.xlu0 %5219
      %5221 = vrot.lane.b32.xlu0 %v4441, 40
      %v5222 = vpop.permute.xlu0 %5221
      %5223 = vrot.lane.b32.xlu0 %v4443, 40
      %v5224 = vpop.permute.xlu0 %5223
      %5225 = vrot.lane.b32.xlu0 %v4445, 40
      %v5226 = vpop.permute.xlu0 %5225
      %5227 = vrot.lane.b32.xlu0 %v4447, 40
      %v5228 = vpop.permute.xlu0 %5227
      %5229 = vrot.lane.b32.xlu0 %v4449, 40
      %v5230 = vpop.permute.xlu0 %5229
      %5231 = vrot.lane.b32.xlu0 %v4451, 40
      %v5232 = vpop.permute.xlu0 %5231
      %5233 = vrot.lane.b32.xlu0 %v4453, 40
      %v5234 = vpop.permute.xlu0 %5233
      %5235 = vrot.lane.b32.xlu0 %v4455, 40
      %v5236 = vpop.permute.xlu0 %5235
      %5237 = vrot.lane.b32.xlu0 %v4457, 40
      %v5238 = vpop.permute.xlu0 %5237
      %5239 = vrot.lane.b32.xlu0 %v4459, 40
      %v5240 = vpop.permute.xlu0 %5239
      %5241 = vrot.lane.b32.xlu0 %v4461, 40
      %v5242 = vpop.permute.xlu0 %5241
      %5243 = vrot.lane.b32.xlu0 %v4463, 40
      %v5244 = vpop.permute.xlu0 %5243
      %5245 = vrot.lane.b32.xlu0 %v4465, 40
      %v5246 = vpop.permute.xlu0 %5245
      %5247 = vrot.lane.b32.xlu0 %v4467, 40
      %v5248 = vpop.permute.xlu0 %5247
      %5249 = vrot.lane.b32.xlu0 %v4469, 40
      %v5250 = vpop.permute.xlu0 %5249
      %5251 = vrot.lane.b32.xlu0 %v4471, 40
      %v5252 = vpop.permute.xlu0 %5251
      %5253 = vrot.lane.b32.xlu0 %v4473, 40
      %v5254 = vpop.permute.xlu0 %5253
      %5255 = vrot.lane.b32.xlu0 %v4475, 40
      %v5256 = vpop.permute.xlu0 %5255
      %5257 = vrot.lane.b32.xlu0 %v4477, 40
      %v5258 = vpop.permute.xlu0 %5257
      %5259 = vrot.lane.b32.xlu0 %v4479, 40
      %v5260 = vpop.permute.xlu0 %5259
      %5261 = vrot.lane.b32.xlu0 %v4481, 40
      %v5262 = vpop.permute.xlu0 %5261
      %5263 = vrot.lane.b32.xlu0 %v4483, 40
      %v5264 = vpop.permute.xlu0 %5263
      %5265 = vrot.lane.b32.xlu0 %v4485, 40
      %v5266 = vpop.permute.xlu0 %5265
      %5267 = vrot.lane.b32.xlu0 %v4487, 40
      %v5268 = vpop.permute.xlu0 %5267
      %5269 = vrot.lane.b32.xlu0 %v4489, 40
      %v5270 = vpop.permute.xlu0 %5269
      %5271 = vrot.lane.b32.xlu0 %v4491, 40
      %v5272 = vpop.permute.xlu0 %5271
      %5273 = vrot.lane.b32.xlu0 %v4493, 40
      %v5274 = vpop.permute.xlu0 %5273
      %5275 = vrot.lane.b32.xlu0 %v4495, 40
      %v5276 = vpop.permute.xlu0 %5275
      %5277 = vrot.lane.b32.xlu0 %v4497, 40
      %v5278 = vpop.permute.xlu0 %5277
      %5279 = vrot.lane.b32.xlu0 %v4499, 40
      %v5280 = vpop.permute.xlu0 %5279
      %5281 = vrot.lane.b32.xlu0 %v4501, 40
      %v5282 = vpop.permute.xlu0 %5281
      %5283 = vrot.lane.b32.xlu0 %v4503, 40
      %v5284 = vpop.permute.xlu0 %5283
      %5285 = vrot.lane.b32.xlu0 %v4505, 40
      %v5286 = vpop.permute.xlu0 %5285
      %5287 = vrot.lane.b32.xlu0 %v4507, 40
      %v5288 = vpop.permute.xlu0 %5287
      %5289 = vrot.lane.b32.xlu0 %v4509, 40
      %v5290 = vpop.permute.xlu0 %5289
      %5291 = vrot.lane.b32.xlu0 %v4511, 40
      %v5292 = vpop.permute.xlu0 %5291
      %5293 = vrot.lane.b32.xlu0 %v4513, 40
      %v5294 = vpop.permute.xlu0 %5293
      %5295 = vrot.lane.b32.xlu0 %v4515, 40
      %v5296 = vpop.permute.xlu0 %5295
      %5297 = vrot.lane.b32.xlu0 %v4517, 40
      %v5298 = vpop.permute.xlu0 %5297
      %5299 = vrot.lane.b32.xlu0 %v4519, 40
      %v5300 = vpop.permute.xlu0 %5299
      %5301 = vrot.lane.b32.xlu0 %v4521, 40
      %v5302 = vpop.permute.xlu0 %5301
      %5303 = vrot.lane.b32.xlu0 %v4523, 40
      %v5304 = vpop.permute.xlu0 %5303
      %5305 = vrot.lane.b32.xlu0 %v4525, 40
      %v5306 = vpop.permute.xlu0 %5305
      %5307 = vrot.lane.b32.xlu0 %v4527, 40
      %v5308 = vpop.permute.xlu0 %5307
      %5309 = vrot.lane.b32.xlu0 %v4529, 40
      %v5310 = vpop.permute.xlu0 %5309
      %5311 = vrot.lane.b32.xlu0 %v4531, 40
      %v5312 = vpop.permute.xlu0 %5311
      %5313 = vrot.lane.b32.xlu0 %v4533, 40
      %v5314 = vpop.permute.xlu0 %5313
      %5315 = vrot.lane.b32.xlu0 %v4535, 40
      %v5316 = vpop.permute.xlu0 %5315
      %5317 = vrot.lane.b32.xlu0 %v4537, 40
      %v5318 = vpop.permute.xlu0 %5317
      %5319 = vrot.lane.b32.xlu0 %v4539, 40
      %v5320 = vpop.permute.xlu0 %5319
      %5321 = vrot.lane.b32.xlu0 %v4541, 40
      %v5322 = vpop.permute.xlu0 %5321
      %5323 = vrot.lane.b32.xlu0 %v4543, 40
      %v5324 = vpop.permute.xlu0 %5323
      %5325 = vrot.lane.b32.xlu0 %v4545, 40
      %v5326 = vpop.permute.xlu0 %5325
      %5327 = vrot.lane.b32.xlu0 %v4547, 40
      %v5328 = vpop.permute.xlu0 %5327
      %5329 = vrot.lane.b32.xlu0 %v4549, 40
      %v5330 = vpop.permute.xlu0 %5329
      %5331 = vrot.lane.b32.xlu0 %v4551, 40
      %v5332 = vpop.permute.xlu0 %5331
      %5333 = vrot.lane.b32.xlu0 %v4553, 40
      %v5334 = vpop.permute.xlu0 %5333
      %5335 = vrot.lane.b32.xlu0 %v4555, 40
      %v5336 = vpop.permute.xlu0 %5335
      %5337 = vrot.lane.b32.xlu0 %v4557, 40
      %v5338 = vpop.permute.xlu0 %5337
      %5339 = vrot.lane.b32.xlu0 %v4559, 40
      %v5340 = vpop.permute.xlu0 %5339
      %5341 = vrot.lane.b32.xlu0 %v4564, 40
      %v5342 = vpop.permute.xlu0 %5341
      %5343 = vrot.lane.b32.xlu0 %v4565, 40
      %v5344 = vpop.permute.xlu0 %5343
      %vm5345 = vcmask 326656
      %v5346 = vsel %vm5345, %v5090, %v5092
      %v5347 = vsel %vm5345, %v5094, %v5096
      %v5348 = vsel %vm5345, %v5098, %v5100
      %v5349 = vsel %vm5345, %v5102, %v5104
      %v5350 = vsel %vm5345, %v5106, %v5108
      %v5351 = vsel %vm5345, %v5110, %v5112
      %v5352 = vsel %vm5345, %v5114, %v5116
      %v5353 = vsel %vm5345, %v5118, %v5120
      %v5354 = vsel %vm5345, %v5122, %v5124
      %v5355 = vsel %vm5345, %v5126, %v5128
      %v5356 = vsel %vm5345, %v5130, %v5132
      %v5357 = vsel %vm5345, %v5134, %v5136
      %v5358 = vsel %vm5345, %v5138, %v5140
      %v5359 = vsel %vm5345, %v5142, %v5144
      %v5360 = vsel %vm5345, %v5146, %v5148
      %v5361 = vsel %vm5345, %v5150, %v5152
      %v5362 = vsel %vm5345, %v5154, %v5156
      %v5363 = vsel %vm5345, %v5158, %v5160
      %v5364 = vsel %vm5345, %v5162, %v5164
      %v5365 = vsel %vm5345, %v5166, %v5168
      %v5366 = vsel %vm5345, %v5170, %v5172
      %v5367 = vsel %vm5345, %v5174, %v5176
      %v5368 = vsel %vm5345, %v5178, %v5180
      %v5369 = vsel %vm5345, %v5182, %v5184
      %v5370 = vsel %vm5345, %v5186, %v5188
      %v5371 = vsel %vm5345, %v5190, %v5192
      %v5372 = vsel %vm5345, %v5194, %v5196
      %v5373 = vsel %vm5345, %v5198, %v5200
      %v5374 = vsel %vm5345, %v5202, %v5204
      %v5375 = vsel %vm5345, %v5206, %v5208
      %v5376 = vsel %vm5345, %v5210, %v5212
      %v5377 = vsel %vm5345, %v5214, %v5216
      %v5378 = vsel %vm5345, %v5218, %v5220
      %v5379 = vsel %vm5345, %v5222, %v5224
      %v5380 = vsel %vm5345, %v5226, %v5228
      %v5381 = vsel %vm5345, %v5230, %v5232
      %v5382 = vsel %vm5345, %v5234, %v5236
      %v5383 = vsel %vm5345, %v5238, %v5240
      %v5384 = vsel %vm5345, %v5242, %v5244
      %v5385 = vsel %vm5345, %v5246, %v5248
      %v5386 = vsel %vm5345, %v5250, %v5252
      %v5387 = vsel %vm5345, %v5254, %v5256
      %v5388 = vsel %vm5345, %v5258, %v5260
      %v5389 = vsel %vm5345, %v5262, %v5264
      %v5390 = vsel %vm5345, %v5266, %v5268
      %v5391 = vsel %vm5345, %v5270, %v5272
      %v5392 = vsel %vm5345, %v5274, %v5276
      %v5393 = vsel %vm5345, %v5278, %v5280
      %v5394 = vsel %vm5345, %v5282, %v5284
      %v5395 = vsel %vm5345, %v5286, %v5288
      %v5396 = vsel %vm5345, %v5290, %v5292
      %v5397 = vsel %vm5345, %v5294, %v5296
      %v5398 = vsel %vm5345, %v5298, %v5300
      %v5399 = vsel %vm5345, %v5302, %v5304
      %v5400 = vsel %vm5345, %v5306, %v5308
      %v5401 = vsel %vm5345, %v5310, %v5312
      %v5402 = vsel %vm5345, %v5314, %v5316
      %v5403 = vsel %vm5345, %v5318, %v5320
      %v5404 = vsel %vm5345, %v5322, %v5324
      %v5405 = vsel %vm5345, %v5326, %v5328
      %v5406 = vsel %vm5345, %v5330, %v5332
      %v5407 = vsel %vm5345, %v5334, %v5336
      %v5408 = vsel %vm5345, %v5338, %v5340
      %v5409 = vsel %vm5345, %v5342, %v5344
      %5540 = vrot.lane.b32.xlu0 %v4568, 80
      %v5541 = vpop.permute.xlu0 %5540
      %5542 = vrot.lane.b32.xlu0 %v4571, 80
      %v5543 = vpop.permute.xlu0 %5542
      %5544 = vrot.lane.b32.xlu0 %v4573, 80
      %v5545 = vpop.permute.xlu0 %5544
      %5546 = vrot.lane.b32.xlu0 %v4575, 80
      %v5547 = vpop.permute.xlu0 %5546
      %5548 = vrot.lane.b32.xlu0 %v4577, 80
      %v5549 = vpop.permute.xlu0 %5548
      %5550 = vrot.lane.b32.xlu0 %v4579, 80
      %v5551 = vpop.permute.xlu0 %5550
      %5552 = vrot.lane.b32.xlu0 %v4581, 80
      %v5553 = vpop.permute.xlu0 %5552
      %5554 = vrot.lane.b32.xlu0 %v4583, 80
      %v5555 = vpop.permute.xlu0 %5554
      %5556 = vrot.lane.b32.xlu0 %v4585, 80
      %v5557 = vpop.permute.xlu0 %5556
      %5558 = vrot.lane.b32.xlu0 %v4587, 80
      %v5559 = vpop.permute.xlu0 %5558
      %5560 = vrot.lane.b32.xlu0 %v4589, 80
      %v5561 = vpop.permute.xlu0 %5560
      %5562 = vrot.lane.b32.xlu0 %v4591, 80
      %v5563 = vpop.permute.xlu0 %5562
      %5564 = vrot.lane.b32.xlu0 %v4593, 80
      %v5565 = vpop.permute.xlu0 %5564
      %5566 = vrot.lane.b32.xlu0 %v4595, 80
      %v5567 = vpop.permute.xlu0 %5566
      %5568 = vrot.lane.b32.xlu0 %v4597, 80
      %v5569 = vpop.permute.xlu0 %5568
      %5570 = vrot.lane.b32.xlu0 %v4599, 80
      %v5571 = vpop.permute.xlu0 %5570
      %5572 = vrot.lane.b32.xlu0 %v4601, 80
      %v5573 = vpop.permute.xlu0 %5572
      %5574 = vrot.lane.b32.xlu0 %v4603, 80
      %v5575 = vpop.permute.xlu0 %5574
      %5576 = vrot.lane.b32.xlu0 %v4605, 80
      %v5577 = vpop.permute.xlu0 %5576
      %5578 = vrot.lane.b32.xlu0 %v4607, 80
      %v5579 = vpop.permute.xlu0 %5578
      %5580 = vrot.lane.b32.xlu0 %v4609, 80
      %v5581 = vpop.permute.xlu0 %5580
      %5582 = vrot.lane.b32.xlu0 %v4611, 80
      %v5583 = vpop.permute.xlu0 %5582
      %5584 = vrot.lane.b32.xlu0 %v4613, 80
      %v5585 = vpop.permute.xlu0 %5584
      %5586 = vrot.lane.b32.xlu0 %v4615, 80
      %v5587 = vpop.permute.xlu0 %5586
      %5588 = vrot.lane.b32.xlu0 %v4617, 80
      %v5589 = vpop.permute.xlu0 %5588
      %5590 = vrot.lane.b32.xlu0 %v4619, 80
      %v5591 = vpop.permute.xlu0 %5590
      %5592 = vrot.lane.b32.xlu0 %v4621, 80
      %v5593 = vpop.permute.xlu0 %5592
      %5594 = vrot.lane.b32.xlu0 %v4623, 80
      %v5595 = vpop.permute.xlu0 %5594
      %5596 = vrot.lane.b32.xlu0 %v4625, 80
      %v5597 = vpop.permute.xlu0 %5596
      %5598 = vrot.lane.b32.xlu0 %v4627, 80
      %v5599 = vpop.permute.xlu0 %5598
      %5600 = vrot.lane.b32.xlu0 %v4629, 80
      %v5601 = vpop.permute.xlu0 %5600
      %5602 = vrot.lane.b32.xlu0 %v4631, 80
      %v5603 = vpop.permute.xlu0 %5602
      %5604 = vrot.lane.b32.xlu0 %v4633, 80
      %v5605 = vpop.permute.xlu0 %5604
      %5606 = vrot.lane.b32.xlu0 %v4635, 80
      %v5607 = vpop.permute.xlu0 %5606
      %5608 = vrot.lane.b32.xlu0 %v4637, 80
      %v5609 = vpop.permute.xlu0 %5608
      %5610 = vrot.lane.b32.xlu0 %v4639, 80
      %v5611 = vpop.permute.xlu0 %5610
      %5612 = vrot.lane.b32.xlu0 %v4641, 80
      %v5613 = vpop.permute.xlu0 %5612
      %5614 = vrot.lane.b32.xlu0 %v4643, 80
      %v5615 = vpop.permute.xlu0 %5614
      %5616 = vrot.lane.b32.xlu0 %v4645, 80
      %v5617 = vpop.permute.xlu0 %5616
      %5618 = vrot.lane.b32.xlu0 %v4647, 80
      %v5619 = vpop.permute.xlu0 %5618
      %5620 = vrot.lane.b32.xlu0 %v4649, 80
      %v5621 = vpop.permute.xlu0 %5620
      %5622 = vrot.lane.b32.xlu0 %v4651, 80
      %v5623 = vpop.permute.xlu0 %5622
      %5624 = vrot.lane.b32.xlu0 %v4653, 80
      %v5625 = vpop.permute.xlu0 %5624
      %5626 = vrot.lane.b32.xlu0 %v4655, 80
      %v5627 = vpop.permute.xlu0 %5626
      %5628 = vrot.lane.b32.xlu0 %v4657, 80
      %v5629 = vpop.permute.xlu0 %5628
      %5630 = vrot.lane.b32.xlu0 %v4659, 80
      %v5631 = vpop.permute.xlu0 %5630
      %5632 = vrot.lane.b32.xlu0 %v4661, 80
      %v5633 = vpop.permute.xlu0 %5632
      %5634 = vrot.lane.b32.xlu0 %v4663, 80
      %v5635 = vpop.permute.xlu0 %5634
      %5636 = vrot.lane.b32.xlu0 %v4665, 80
      %v5637 = vpop.permute.xlu0 %5636
      %5638 = vrot.lane.b32.xlu0 %v4667, 80
      %v5639 = vpop.permute.xlu0 %5638
      %5640 = vrot.lane.b32.xlu0 %v4669, 80
      %v5641 = vpop.permute.xlu0 %5640
      %5642 = vrot.lane.b32.xlu0 %v4671, 80
      %v5643 = vpop.permute.xlu0 %5642
      %5644 = vrot.lane.b32.xlu0 %v4673, 80
      %v5645 = vpop.permute.xlu0 %5644
      %5646 = vrot.lane.b32.xlu0 %v4675, 80
      %v5647 = vpop.permute.xlu0 %5646
      %5648 = vrot.lane.b32.xlu0 %v4677, 80
      %v5649 = vpop.permute.xlu0 %5648
      %5650 = vrot.lane.b32.xlu0 %v4679, 80
      %v5651 = vpop.permute.xlu0 %5650
      %5652 = vrot.lane.b32.xlu0 %v4681, 80
      %v5653 = vpop.permute.xlu0 %5652
      %5654 = vrot.lane.b32.xlu0 %v4683, 80
      %v5655 = vpop.permute.xlu0 %5654
      %5656 = vrot.lane.b32.xlu0 %v4685, 80
      %v5657 = vpop.permute.xlu0 %5656
      %5658 = vrot.lane.b32.xlu0 %v4687, 80
      %v5659 = vpop.permute.xlu0 %5658
      %5660 = vrot.lane.b32.xlu0 %v4689, 80
      %v5661 = vpop.permute.xlu0 %5660
      %5662 = vrot.lane.b32.xlu0 %v4691, 80
      %v5663 = vpop.permute.xlu0 %5662
      %5664 = vrot.lane.b32.xlu0 %v4693, 80
      %v5665 = vpop.permute.xlu0 %5664
      %5666 = vrot.lane.b32.xlu0 %v4695, 80
      %v5667 = vpop.permute.xlu0 %5666
      %5668 = vrot.lane.b32.xlu0 %v4697, 80
      %v5669 = vpop.permute.xlu0 %5668
      %5670 = vrot.lane.b32.xlu0 %v4699, 80
      %v5671 = vpop.permute.xlu0 %5670
      %5672 = vrot.lane.b32.xlu0 %v4701, 80
      %v5673 = vpop.permute.xlu0 %5672
      %5674 = vrot.lane.b32.xlu0 %v4703, 80
      %v5675 = vpop.permute.xlu0 %5674
      %5676 = vrot.lane.b32.xlu0 %v4705, 80
      %v5677 = vpop.permute.xlu0 %5676
      %5678 = vrot.lane.b32.xlu0 %v4707, 80
      %v5679 = vpop.permute.xlu0 %5678
      %5680 = vrot.lane.b32.xlu0 %v4709, 80
      %v5681 = vpop.permute.xlu0 %5680
      %5682 = vrot.lane.b32.xlu0 %v4711, 80
      %v5683 = vpop.permute.xlu0 %5682
      %5684 = vrot.lane.b32.xlu0 %v4713, 80
      %v5685 = vpop.permute.xlu0 %5684
      %5686 = vrot.lane.b32.xlu0 %v4715, 80
      %v5687 = vpop.permute.xlu0 %5686
      %5688 = vrot.lane.b32.xlu0 %v4717, 80
      %v5689 = vpop.permute.xlu0 %5688
      %5690 = vrot.lane.b32.xlu0 %v4719, 80
      %v5691 = vpop.permute.xlu0 %5690
      %5692 = vrot.lane.b32.xlu0 %v4721, 80
      %v5693 = vpop.permute.xlu0 %5692
      %5694 = vrot.lane.b32.xlu0 %v4723, 80
      %v5695 = vpop.permute.xlu0 %5694
      %5696 = vrot.lane.b32.xlu0 %v4725, 80
      %v5697 = vpop.permute.xlu0 %5696
      %5698 = vrot.lane.b32.xlu0 %v4727, 80
      %v5699 = vpop.permute.xlu0 %5698
      %5700 = vrot.lane.b32.xlu0 %v4729, 80
      %v5701 = vpop.permute.xlu0 %5700
      %5702 = vrot.lane.b32.xlu0 %v4731, 80
      %v5703 = vpop.permute.xlu0 %5702
      %5704 = vrot.lane.b32.xlu0 %v4733, 80
      %v5705 = vpop.permute.xlu0 %5704
      %5706 = vrot.lane.b32.xlu0 %v4735, 80
      %v5707 = vpop.permute.xlu0 %5706
      %5708 = vrot.lane.b32.xlu0 %v4737, 80
      %v5709 = vpop.permute.xlu0 %5708
      %5710 = vrot.lane.b32.xlu0 %v4739, 80
      %v5711 = vpop.permute.xlu0 %5710
      %5712 = vrot.lane.b32.xlu0 %v4741, 80
      %v5713 = vpop.permute.xlu0 %5712
      %5714 = vrot.lane.b32.xlu0 %v4743, 80
      %v5715 = vpop.permute.xlu0 %5714
      %5716 = vrot.lane.b32.xlu0 %v4745, 80
      %v5717 = vpop.permute.xlu0 %5716
      %5718 = vrot.lane.b32.xlu0 %v4747, 80
      %v5719 = vpop.permute.xlu0 %5718
      %5720 = vrot.lane.b32.xlu0 %v4749, 80
      %v5721 = vpop.permute.xlu0 %5720
      %5722 = vrot.lane.b32.xlu0 %v4751, 80
      %v5723 = vpop.permute.xlu0 %5722
      %5724 = vrot.lane.b32.xlu0 %v4753, 80
      %v5725 = vpop.permute.xlu0 %5724
      %5726 = vrot.lane.b32.xlu0 %v4755, 80
      %v5727 = vpop.permute.xlu0 %5726
      %5728 = vrot.lane.b32.xlu0 %v4757, 80
      %v5729 = vpop.permute.xlu0 %5728
      %5730 = vrot.lane.b32.xlu0 %v4759, 80
      %v5731 = vpop.permute.xlu0 %5730
      %5732 = vrot.lane.b32.xlu0 %v4761, 80
      %v5733 = vpop.permute.xlu0 %5732
      %5734 = vrot.lane.b32.xlu0 %v4763, 80
      %v5735 = vpop.permute.xlu0 %5734
      %5736 = vrot.lane.b32.xlu0 %v4765, 80
      %v5737 = vpop.permute.xlu0 %5736
      %5738 = vrot.lane.b32.xlu0 %v4767, 80
      %v5739 = vpop.permute.xlu0 %5738
      %5740 = vrot.lane.b32.xlu0 %v4769, 80
      %v5741 = vpop.permute.xlu0 %5740
      %5742 = vrot.lane.b32.xlu0 %v4771, 80
      %v5743 = vpop.permute.xlu0 %5742
      %5744 = vrot.lane.b32.xlu0 %v4773, 80
      %v5745 = vpop.permute.xlu0 %5744
      %5746 = vrot.lane.b32.xlu0 %v4775, 80
      %v5747 = vpop.permute.xlu0 %5746
      %5748 = vrot.lane.b32.xlu0 %v4777, 80
      %v5749 = vpop.permute.xlu0 %5748
      %5750 = vrot.lane.b32.xlu0 %v4779, 80
      %v5751 = vpop.permute.xlu0 %5750
      %5752 = vrot.lane.b32.xlu0 %v4781, 80
      %v5753 = vpop.permute.xlu0 %5752
      %5754 = vrot.lane.b32.xlu0 %v4783, 80
      %v5755 = vpop.permute.xlu0 %5754
      %5756 = vrot.lane.b32.xlu0 %v4785, 80
      %v5757 = vpop.permute.xlu0 %5756
      %5758 = vrot.lane.b32.xlu0 %v4787, 80
      %v5759 = vpop.permute.xlu0 %5758
      %5760 = vrot.lane.b32.xlu0 %v4789, 80
      %v5761 = vpop.permute.xlu0 %5760
      %5762 = vrot.lane.b32.xlu0 %v4791, 80
      %v5763 = vpop.permute.xlu0 %5762
      %5764 = vrot.lane.b32.xlu0 %v4793, 80
      %v5765 = vpop.permute.xlu0 %5764
      %5766 = vrot.lane.b32.xlu0 %v4795, 80
      %v5767 = vpop.permute.xlu0 %5766
      %5768 = vrot.lane.b32.xlu0 %v4797, 80
      %v5769 = vpop.permute.xlu0 %5768
      %5770 = vrot.lane.b32.xlu0 %v4799, 80
      %v5771 = vpop.permute.xlu0 %5770
      %5772 = vrot.lane.b32.xlu0 %v4801, 80
      %v5773 = vpop.permute.xlu0 %5772
      %5774 = vrot.lane.b32.xlu0 %v4803, 80
      %v5775 = vpop.permute.xlu0 %5774
      %5776 = vrot.lane.b32.xlu0 %v4805, 80
      %v5777 = vpop.permute.xlu0 %5776
      %5778 = vrot.lane.b32.xlu0 %v4807, 80
      %v5779 = vpop.permute.xlu0 %5778
      %5780 = vrot.lane.b32.xlu0 %v4809, 80
      %v5781 = vpop.permute.xlu0 %5780
      %5782 = vrot.lane.b32.xlu0 %v4811, 80
      %v5783 = vpop.permute.xlu0 %5782
      %5784 = vrot.lane.b32.xlu0 %v4813, 80
      %v5785 = vpop.permute.xlu0 %5784
      %5786 = vrot.lane.b32.xlu0 %v4815, 80
      %v5787 = vpop.permute.xlu0 %5786
      %5788 = vrot.lane.b32.xlu0 %v4817, 80
      %v5789 = vpop.permute.xlu0 %5788
      %5790 = vrot.lane.b32.xlu0 %v4819, 80
      %v5791 = vpop.permute.xlu0 %5790
      %5792 = vrot.lane.b32.xlu0 %v4824, 80
      %v5793 = vpop.permute.xlu0 %5792
      %5794 = vrot.lane.b32.xlu0 %v4825, 80
      %v5795 = vpop.permute.xlu0 %5794
      %vm5796 = vcmask 654336
      %v5797 = vsel %vm5796, %v5541, %v5543
      %v5798 = vsel %vm5796, %v5545, %v5547
      %v5799 = vsel %vm5796, %v5549, %v5551
      %v5800 = vsel %vm5796, %v5553, %v5555
      %v5801 = vsel %vm5796, %v5557, %v5559
      %v5802 = vsel %vm5796, %v5561, %v5563
      %v5803 = vsel %vm5796, %v5565, %v5567
      %v5804 = vsel %vm5796, %v5569, %v5571
      %v5805 = vsel %vm5796, %v5573, %v5575
      %v5806 = vsel %vm5796, %v5577, %v5579
      %v5807 = vsel %vm5796, %v5581, %v5583
      %v5808 = vsel %vm5796, %v5585, %v5587
      %v5809 = vsel %vm5796, %v5589, %v5591
      %v5810 = vsel %vm5796, %v5593, %v5595
      %v5811 = vsel %vm5796, %v5597, %v5599
      %v5812 = vsel %vm5796, %v5601, %v5603
      %v5813 = vsel %vm5796, %v5605, %v5607
      %v5814 = vsel %vm5796, %v5609, %v5611
      %v5815 = vsel %vm5796, %v5613, %v5615
      %v5816 = vsel %vm5796, %v5617, %v5619
      %v5817 = vsel %vm5796, %v5621, %v5623
      %v5818 = vsel %vm5796, %v5625, %v5627
      %v5819 = vsel %vm5796, %v5629, %v5631
      %v5820 = vsel %vm5796, %v5633, %v5635
      %v5821 = vsel %vm5796, %v5637, %v5639
      %v5822 = vsel %vm5796, %v5641, %v5643
      %v5823 = vsel %vm5796, %v5645, %v5647
      %v5824 = vsel %vm5796, %v5649, %v5651
      %v5825 = vsel %vm5796, %v5653, %v5655
      %v5826 = vsel %vm5796, %v5657, %v5659
      %v5827 = vsel %vm5796, %v5661, %v5663
      %v5828 = vsel %vm5796, %v5665, %v5667
      %v5829 = vsel %vm5796, %v5669, %v5671
      %v5830 = vsel %vm5796, %v5673, %v5675
      %v5831 = vsel %vm5796, %v5677, %v5679
      %v5832 = vsel %vm5796, %v5681, %v5683
      %v5833 = vsel %vm5796, %v5685, %v5687
      %v5834 = vsel %vm5796, %v5689, %v5691
      %v5835 = vsel %vm5796, %v5693, %v5695
      %v5836 = vsel %vm5796, %v5697, %v5699
      %v5837 = vsel %vm5796, %v5701, %v5703
      %v5838 = vsel %vm5796, %v5705, %v5707
      %v5839 = vsel %vm5796, %v5709, %v5711
      %v5840 = vsel %vm5796, %v5713, %v5715
      %v5841 = vsel %vm5796, %v5717, %v5719
      %v5842 = vsel %vm5796, %v5721, %v5723
      %v5843 = vsel %vm5796, %v5725, %v5727
      %v5844 = vsel %vm5796, %v5729, %v5731
      %v5845 = vsel %vm5796, %v5733, %v5735
      %v5846 = vsel %vm5796, %v5737, %v5739
      %v5847 = vsel %vm5796, %v5741, %v5743
      %v5848 = vsel %vm5796, %v5745, %v5747
      %v5849 = vsel %vm5796, %v5749, %v5751
      %v5850 = vsel %vm5796, %v5753, %v5755
      %v5851 = vsel %vm5796, %v5757, %v5759
      %v5852 = vsel %vm5796, %v5761, %v5763
      %v5853 = vsel %vm5796, %v5765, %v5767
      %v5854 = vsel %vm5796, %v5769, %v5771
      %v5855 = vsel %vm5796, %v5773, %v5775
      %v5856 = vsel %vm5796, %v5777, %v5779
      %v5857 = vsel %vm5796, %v5781, %v5783
      %v5858 = vsel %vm5796, %v5785, %v5787
      %v5859 = vsel %vm5796, %v5789, %v5791
      %v5860 = vsel %vm5796, %v5793, %v5795
      %5991 = vrot.lane.b32.xlu0 %v4829, 120
      %v5992 = vpop.permute.xlu0 %5991
      %5993 = vrot.lane.b32.xlu0 %v4832, 120
      %v5994 = vpop.permute.xlu0 %5993
      %5995 = vrot.lane.b32.xlu0 %v4834, 120
      %v5996 = vpop.permute.xlu0 %5995
      %5997 = vrot.lane.b32.xlu0 %v4836, 120
      %v5998 = vpop.permute.xlu0 %5997
      %5999 = vrot.lane.b32.xlu0 %v4838, 120
      %v6000 = vpop.permute.xlu0 %5999
      %6001 = vrot.lane.b32.xlu0 %v4840, 120
      %v6002 = vpop.permute.xlu0 %6001
      %6003 = vrot.lane.b32.xlu0 %v4842, 120
      %v6004 = vpop.permute.xlu0 %6003
      %6005 = vrot.lane.b32.xlu0 %v4844, 120
      %v6006 = vpop.permute.xlu0 %6005
      %6007 = vrot.lane.b32.xlu0 %v4846, 120
      %v6008 = vpop.permute.xlu0 %6007
      %6009 = vrot.lane.b32.xlu0 %v4848, 120
      %v6010 = vpop.permute.xlu0 %6009
      %6011 = vrot.lane.b32.xlu0 %v4850, 120
      %v6012 = vpop.permute.xlu0 %6011
      %6013 = vrot.lane.b32.xlu0 %v4852, 120
      %v6014 = vpop.permute.xlu0 %6013
      %6015 = vrot.lane.b32.xlu0 %v4854, 120
      %v6016 = vpop.permute.xlu0 %6015
      %6017 = vrot.lane.b32.xlu0 %v4856, 120
      %v6018 = vpop.permute.xlu0 %6017
      %6019 = vrot.lane.b32.xlu0 %v4858, 120
      %v6020 = vpop.permute.xlu0 %6019
      %6021 = vrot.lane.b32.xlu0 %v4860, 120
      %v6022 = vpop.permute.xlu0 %6021
      %6023 = vrot.lane.b32.xlu0 %v4862, 120
      %v6024 = vpop.permute.xlu0 %6023
      %6025 = vrot.lane.b32.xlu0 %v4864, 120
      %v6026 = vpop.permute.xlu0 %6025
      %6027 = vrot.lane.b32.xlu0 %v4866, 120
      %v6028 = vpop.permute.xlu0 %6027
      %6029 = vrot.lane.b32.xlu0 %v4868, 120
      %v6030 = vpop.permute.xlu0 %6029
      %6031 = vrot.lane.b32.xlu0 %v4870, 120
      %v6032 = vpop.permute.xlu0 %6031
      %6033 = vrot.lane.b32.xlu0 %v4872, 120
      %v6034 = vpop.permute.xlu0 %6033
      %6035 = vrot.lane.b32.xlu0 %v4874, 120
      %v6036 = vpop.permute.xlu0 %6035
      %6037 = vrot.lane.b32.xlu0 %v4876, 120
      %v6038 = vpop.permute.xlu0 %6037
      %6039 = vrot.lane.b32.xlu0 %v4878, 120
      %v6040 = vpop.permute.xlu0 %6039
      %6041 = vrot.lane.b32.xlu0 %v4880, 120
      %v6042 = vpop.permute.xlu0 %6041
      %6043 = vrot.lane.b32.xlu0 %v4882, 120
      %v6044 = vpop.permute.xlu0 %6043
      %6045 = vrot.lane.b32.xlu0 %v4884, 120
      %v6046 = vpop.permute.xlu0 %6045
      %6047 = vrot.lane.b32.xlu0 %v4886, 120
      %v6048 = vpop.permute.xlu0 %6047
      %6049 = vrot.lane.b32.xlu0 %v4888, 120
      %v6050 = vpop.permute.xlu0 %6049
      %6051 = vrot.lane.b32.xlu0 %v4890, 120
      %v6052 = vpop.permute.xlu0 %6051
      %6053 = vrot.lane.b32.xlu0 %v4892, 120
      %v6054 = vpop.permute.xlu0 %6053
      %6055 = vrot.lane.b32.xlu0 %v4894, 120
      %v6056 = vpop.permute.xlu0 %6055
      %6057 = vrot.lane.b32.xlu0 %v4896, 120
      %v6058 = vpop.permute.xlu0 %6057
      %6059 = vrot.lane.b32.xlu0 %v4898, 120
      %v6060 = vpop.permute.xlu0 %6059
      %6061 = vrot.lane.b32.xlu0 %v4900, 120
      %v6062 = vpop.permute.xlu0 %6061
      %6063 = vrot.lane.b32.xlu0 %v4902, 120
      %v6064 = vpop.permute.xlu0 %6063
      %6065 = vrot.lane.b32.xlu0 %v4904, 120
      %v6066 = vpop.permute.xlu0 %6065
      %6067 = vrot.lane.b32.xlu0 %v4906, 120
      %v6068 = vpop.permute.xlu0 %6067
      %6069 = vrot.lane.b32.xlu0 %v4908, 120
      %v6070 = vpop.permute.xlu0 %6069
      %6071 = vrot.lane.b32.xlu0 %v4910, 120
      %v6072 = vpop.permute.xlu0 %6071
      %6073 = vrot.lane.b32.xlu0 %v4912, 120
      %v6074 = vpop.permute.xlu0 %6073
      %6075 = vrot.lane.b32.xlu0 %v4914, 120
      %v6076 = vpop.permute.xlu0 %6075
      %6077 = vrot.lane.b32.xlu0 %v4916, 120
      %v6078 = vpop.permute.xlu0 %6077
      %6079 = vrot.lane.b32.xlu0 %v4918, 120
      %v6080 = vpop.permute.xlu0 %6079
      %6081 = vrot.lane.b32.xlu0 %v4920, 120
      %v6082 = vpop.permute.xlu0 %6081
      %6083 = vrot.lane.b32.xlu0 %v4922, 120
      %v6084 = vpop.permute.xlu0 %6083
      %6085 = vrot.lane.b32.xlu0 %v4924, 120
      %v6086 = vpop.permute.xlu0 %6085
      %6087 = vrot.lane.b32.xlu0 %v4926, 120
      %v6088 = vpop.permute.xlu0 %6087
      %6089 = vrot.lane.b32.xlu0 %v4928, 120
      %v6090 = vpop.permute.xlu0 %6089
      %6091 = vrot.lane.b32.xlu0 %v4930, 120
      %v6092 = vpop.permute.xlu0 %6091
      %6093 = vrot.lane.b32.xlu0 %v4932, 120
      %v6094 = vpop.permute.xlu0 %6093
      %6095 = vrot.lane.b32.xlu0 %v4934, 120
      %v6096 = vpop.permute.xlu0 %6095
      %6097 = vrot.lane.b32.xlu0 %v4936, 120
      %v6098 = vpop.permute.xlu0 %6097
      %6099 = vrot.lane.b32.xlu0 %v4938, 120
      %v6100 = vpop.permute.xlu0 %6099
      %6101 = vrot.lane.b32.xlu0 %v4940, 120
      %v6102 = vpop.permute.xlu0 %6101
      %6103 = vrot.lane.b32.xlu0 %v4942, 120
      %v6104 = vpop.permute.xlu0 %6103
      %6105 = vrot.lane.b32.xlu0 %v4944, 120
      %v6106 = vpop.permute.xlu0 %6105
      %6107 = vrot.lane.b32.xlu0 %v4946, 120
      %v6108 = vpop.permute.xlu0 %6107
      %6109 = vrot.lane.b32.xlu0 %v4948, 120
      %v6110 = vpop.permute.xlu0 %6109
      %6111 = vrot.lane.b32.xlu0 %v4950, 120
      %v6112 = vpop.permute.xlu0 %6111
      %6113 = vrot.lane.b32.xlu0 %v4952, 120
      %v6114 = vpop.permute.xlu0 %6113
      %6115 = vrot.lane.b32.xlu0 %v4954, 120
      %v6116 = vpop.permute.xlu0 %6115
      %6117 = vrot.lane.b32.xlu0 %v4956, 120
      %v6118 = vpop.permute.xlu0 %6117
      %6119 = vrot.lane.b32.xlu0 %v4958, 120
      %v6120 = vpop.permute.xlu0 %6119
      %6121 = vrot.lane.b32.xlu0 %v4960, 120
      %v6122 = vpop.permute.xlu0 %6121
      %6123 = vrot.lane.b32.xlu0 %v4962, 120
      %v6124 = vpop.permute.xlu0 %6123
      %6125 = vrot.lane.b32.xlu0 %v4964, 120
      %v6126 = vpop.permute.xlu0 %6125
      %6127 = vrot.lane.b32.xlu0 %v4966, 120
      %v6128 = vpop.permute.xlu0 %6127
      %6129 = vrot.lane.b32.xlu0 %v4968, 120
      %v6130 = vpop.permute.xlu0 %6129
      %6131 = vrot.lane.b32.xlu0 %v4970, 120
      %v6132 = vpop.permute.xlu0 %6131
      %6133 = vrot.lane.b32.xlu0 %v4972, 120
      %v6134 = vpop.permute.xlu0 %6133
      %6135 = vrot.lane.b32.xlu0 %v4974, 120
      %v6136 = vpop.permute.xlu0 %6135
      %6137 = vrot.lane.b32.xlu0 %v4976, 120
      %v6138 = vpop.permute.xlu0 %6137
      %6139 = vrot.lane.b32.xlu0 %v4978, 120
      %v6140 = vpop.permute.xlu0 %6139
      %6141 = vrot.lane.b32.xlu0 %v4980, 120
      %v6142 = vpop.permute.xlu0 %6141
      %6143 = vrot.lane.b32.xlu0 %v4982, 120
      %v6144 = vpop.permute.xlu0 %6143
      %6145 = vrot.lane.b32.xlu0 %v4984, 120
      %v6146 = vpop.permute.xlu0 %6145
      %6147 = vrot.lane.b32.xlu0 %v4986, 120
      %v6148 = vpop.permute.xlu0 %6147
      %6149 = vrot.lane.b32.xlu0 %v4988, 120
      %v6150 = vpop.permute.xlu0 %6149
      %6151 = vrot.lane.b32.xlu0 %v4990, 120
      %v6152 = vpop.permute.xlu0 %6151
      %6153 = vrot.lane.b32.xlu0 %v4992, 120
      %v6154 = vpop.permute.xlu0 %6153
      %6155 = vrot.lane.b32.xlu0 %v4994, 120
      %v6156 = vpop.permute.xlu0 %6155
      %6157 = vrot.lane.b32.xlu0 %v4996, 120
      %v6158 = vpop.permute.xlu0 %6157
      %6159 = vrot.lane.b32.xlu0 %v4998, 120
      %v6160 = vpop.permute.xlu0 %6159
      %6161 = vrot.lane.b32.xlu0 %v5000, 120
      %v6162 = vpop.permute.xlu0 %6161
      %6163 = vrot.lane.b32.xlu0 %v5002, 120
      %v6164 = vpop.permute.xlu0 %6163
      %6165 = vrot.lane.b32.xlu0 %v5004, 120
      %v6166 = vpop.permute.xlu0 %6165
      %6167 = vrot.lane.b32.xlu0 %v5006, 120
      %v6168 = vpop.permute.xlu0 %6167
      %6169 = vrot.lane.b32.xlu0 %v5008, 120
      %v6170 = vpop.permute.xlu0 %6169
      %6171 = vrot.lane.b32.xlu0 %v5010, 120
      %v6172 = vpop.permute.xlu0 %6171
      %6173 = vrot.lane.b32.xlu0 %v5012, 120
      %v6174 = vpop.permute.xlu0 %6173
      %6175 = vrot.lane.b32.xlu0 %v5014, 120
      %v6176 = vpop.permute.xlu0 %6175
      %6177 = vrot.lane.b32.xlu0 %v5016, 120
      %v6178 = vpop.permute.xlu0 %6177
      %6179 = vrot.lane.b32.xlu0 %v5018, 120
      %v6180 = vpop.permute.xlu0 %6179
      %6181 = vrot.lane.b32.xlu0 %v5020, 120
      %v6182 = vpop.permute.xlu0 %6181
      %6183 = vrot.lane.b32.xlu0 %v5022, 120
      %v6184 = vpop.permute.xlu0 %6183
      %6185 = vrot.lane.b32.xlu0 %v5024, 120
      %v6186 = vpop.permute.xlu0 %6185
      %6187 = vrot.lane.b32.xlu0 %v5026, 120
      %v6188 = vpop.permute.xlu0 %6187
      %6189 = vrot.lane.b32.xlu0 %v5028, 120
      %v6190 = vpop.permute.xlu0 %6189
      %6191 = vrot.lane.b32.xlu0 %v5030, 120
      %v6192 = vpop.permute.xlu0 %6191
      %6193 = vrot.lane.b32.xlu0 %v5032, 120
      %v6194 = vpop.permute.xlu0 %6193
      %6195 = vrot.lane.b32.xlu0 %v5034, 120
      %v6196 = vpop.permute.xlu0 %6195
      %6197 = vrot.lane.b32.xlu0 %v5036, 120
      %v6198 = vpop.permute.xlu0 %6197
      %6199 = vrot.lane.b32.xlu0 %v5038, 120
      %v6200 = vpop.permute.xlu0 %6199
      %6201 = vrot.lane.b32.xlu0 %v5040, 120
      %v6202 = vpop.permute.xlu0 %6201
      %6203 = vrot.lane.b32.xlu0 %v5042, 120
      %v6204 = vpop.permute.xlu0 %6203
      %6205 = vrot.lane.b32.xlu0 %v5044, 120
      %v6206 = vpop.permute.xlu0 %6205
      %6207 = vrot.lane.b32.xlu0 %v5046, 120
      %v6208 = vpop.permute.xlu0 %6207
      %6209 = vrot.lane.b32.xlu0 %v5048, 120
      %v6210 = vpop.permute.xlu0 %6209
      %6211 = vrot.lane.b32.xlu0 %v5050, 120
      %v6212 = vpop.permute.xlu0 %6211
      %6213 = vrot.lane.b32.xlu0 %v5052, 120
      %v6214 = vpop.permute.xlu0 %6213
      %6215 = vrot.lane.b32.xlu0 %v5054, 120
      %v6216 = vpop.permute.xlu0 %6215
      %6217 = vrot.lane.b32.xlu0 %v5056, 120
      %v6218 = vpop.permute.xlu0 %6217
      %6219 = vrot.lane.b32.xlu0 %v5058, 120
      %v6220 = vpop.permute.xlu0 %6219
      %6221 = vrot.lane.b32.xlu0 %v5060, 120
      %v6222 = vpop.permute.xlu0 %6221
      %6223 = vrot.lane.b32.xlu0 %v5062, 120
      %v6224 = vpop.permute.xlu0 %6223
      %6225 = vrot.lane.b32.xlu0 %v5064, 120
      %v6226 = vpop.permute.xlu0 %6225
      %6227 = vrot.lane.b32.xlu0 %v5066, 120
      %v6228 = vpop.permute.xlu0 %6227
      %6229 = vrot.lane.b32.xlu0 %v5068, 120
      %v6230 = vpop.permute.xlu0 %6229
      %6231 = vrot.lane.b32.xlu0 %v5070, 120
      %v6232 = vpop.permute.xlu0 %6231
      %6233 = vrot.lane.b32.xlu0 %v5072, 120
      %v6234 = vpop.permute.xlu0 %6233
      %6235 = vrot.lane.b32.xlu0 %v5074, 120
      %v6236 = vpop.permute.xlu0 %6235
      %6237 = vrot.lane.b32.xlu0 %v5076, 120
      %v6238 = vpop.permute.xlu0 %6237
      %6239 = vrot.lane.b32.xlu0 %v5078, 120
      %v6240 = vpop.permute.xlu0 %6239
      %6241 = vrot.lane.b32.xlu0 %v5080, 120
      %v6242 = vpop.permute.xlu0 %6241
      %6243 = vrot.lane.b32.xlu0 %v5085, 120
      %v6244 = vpop.permute.xlu0 %6243
      %6245 = vrot.lane.b32.xlu0 %v5086, 120
      %v6246 = vpop.permute.xlu0 %6245
      %vm6247 = vcmask 982016
      %v6248 = vsel %vm6247, %v5992, %v5994
      %v6249 = vsel %vm6247, %v5996, %v5998
      %v6250 = vsel %vm6247, %v6000, %v6002
      %v6251 = vsel %vm6247, %v6004, %v6006
      %v6252 = vsel %vm6247, %v6008, %v6010
      %v6253 = vsel %vm6247, %v6012, %v6014
      %v6254 = vsel %vm6247, %v6016, %v6018
      %v6255 = vsel %vm6247, %v6020, %v6022
      %v6256 = vsel %vm6247, %v6024, %v6026
      %v6257 = vsel %vm6247, %v6028, %v6030
      %v6258 = vsel %vm6247, %v6032, %v6034
      %v6259 = vsel %vm6247, %v6036, %v6038
      %v6260 = vsel %vm6247, %v6040, %v6042
      %v6261 = vsel %vm6247, %v6044, %v6046
      %v6262 = vsel %vm6247, %v6048, %v6050
      %v6263 = vsel %vm6247, %v6052, %v6054
      %v6264 = vsel %vm6247, %v6056, %v6058
      %v6265 = vsel %vm6247, %v6060, %v6062
      %v6266 = vsel %vm6247, %v6064, %v6066
      %v6267 = vsel %vm6247, %v6068, %v6070
      %v6268 = vsel %vm6247, %v6072, %v6074
      %v6269 = vsel %vm6247, %v6076, %v6078
      %v6270 = vsel %vm6247, %v6080, %v6082
      %v6271 = vsel %vm6247, %v6084, %v6086
      %v6272 = vsel %vm6247, %v6088, %v6090
      %v6273 = vsel %vm6247, %v6092, %v6094
      %v6274 = vsel %vm6247, %v6096, %v6098
      %v6275 = vsel %vm6247, %v6100, %v6102
      %v6276 = vsel %vm6247, %v6104, %v6106
      %v6277 = vsel %vm6247, %v6108, %v6110
      %v6278 = vsel %vm6247, %v6112, %v6114
      %v6279 = vsel %vm6247, %v6116, %v6118
      %v6280 = vsel %vm6247, %v6120, %v6122
      %v6281 = vsel %vm6247, %v6124, %v6126
      %v6282 = vsel %vm6247, %v6128, %v6130
      %v6283 = vsel %vm6247, %v6132, %v6134
      %v6284 = vsel %vm6247, %v6136, %v6138
      %v6285 = vsel %vm6247, %v6140, %v6142
      %v6286 = vsel %vm6247, %v6144, %v6146
      %v6287 = vsel %vm6247, %v6148, %v6150
      %v6288 = vsel %vm6247, %v6152, %v6154
      %v6289 = vsel %vm6247, %v6156, %v6158
      %v6290 = vsel %vm6247, %v6160, %v6162
      %v6291 = vsel %vm6247, %v6164, %v6166
      %v6292 = vsel %vm6247, %v6168, %v6170
      %v6293 = vsel %vm6247, %v6172, %v6174
      %v6294 = vsel %vm6247, %v6176, %v6178
      %v6295 = vsel %vm6247, %v6180, %v6182
      %v6296 = vsel %vm6247, %v6184, %v6186
      %v6297 = vsel %vm6247, %v6188, %v6190
      %v6298 = vsel %vm6247, %v6192, %v6194
      %v6299 = vsel %vm6247, %v6196, %v6198
      %v6300 = vsel %vm6247, %v6200, %v6202
      %v6301 = vsel %vm6247, %v6204, %v6206
      %v6302 = vsel %vm6247, %v6208, %v6210
      %v6303 = vsel %vm6247, %v6212, %v6214
      %v6304 = vsel %vm6247, %v6216, %v6218
      %v6305 = vsel %vm6247, %v6220, %v6222
      %v6306 = vsel %vm6247, %v6224, %v6226
      %v6307 = vsel %vm6247, %v6228, %v6230
      %v6308 = vsel %vm6247, %v6232, %v6234
      %v6309 = vsel %vm6247, %v6236, %v6238
      %v6310 = vsel %vm6247, %v6240, %v6242
      %v6311 = vsel %vm6247, %v6244, %v6246
      %6504 = vrot.lane.b32.xlu0 %v4052, 32
      %v6505 = vpop.permute.xlu0 %6504
      %6506 = vrot.lane.b32.xlu0 %v4053, 32
      %v6507 = vpop.permute.xlu0 %6506
      %6508 = vrot.lane.b32.xlu0 %v4054, 32
      %v6509 = vpop.permute.xlu0 %6508
      %6510 = vrot.lane.b32.xlu0 %v4055, 32
      %v6511 = vpop.permute.xlu0 %6510
      %6512 = vrot.lane.b32.xlu0 %v4056, 32
      %v6513 = vpop.permute.xlu0 %6512
      %6514 = vrot.lane.b32.xlu0 %v4057, 32
      %v6515 = vpop.permute.xlu0 %6514
      %6516 = vrot.lane.b32.xlu0 %v4058, 32
      %v6517 = vpop.permute.xlu0 %6516
      %6518 = vrot.lane.b32.xlu0 %v4059, 32
      %v6519 = vpop.permute.xlu0 %6518
      %6520 = vrot.lane.b32.xlu0 %v4060, 32
      %v6521 = vpop.permute.xlu0 %6520
      %6522 = vrot.lane.b32.xlu0 %v4061, 32
      %v6523 = vpop.permute.xlu0 %6522
      %6524 = vrot.lane.b32.xlu0 %v4062, 32
      %v6525 = vpop.permute.xlu0 %6524
      %6526 = vrot.lane.b32.xlu0 %v4063, 32
      %v6527 = vpop.permute.xlu0 %6526
      %6528 = vrot.lane.b32.xlu0 %v4064, 32
      %v6529 = vpop.permute.xlu0 %6528
      %6530 = vrot.lane.b32.xlu0 %v4065, 32
      %v6531 = vpop.permute.xlu0 %6530
      %6532 = vrot.lane.b32.xlu0 %v4066, 32
      %v6533 = vpop.permute.xlu0 %6532
      %6534 = vrot.lane.b32.xlu0 %v4067, 32
      %v6535 = vpop.permute.xlu0 %6534
      %6536 = vrot.lane.b32.xlu0 %v4068, 32
      %v6537 = vpop.permute.xlu0 %6536
      %6538 = vrot.lane.b32.xlu0 %v4069, 32
      %v6539 = vpop.permute.xlu0 %6538
      %6540 = vrot.lane.b32.xlu0 %v4070, 32
      %v6541 = vpop.permute.xlu0 %6540
      %6542 = vrot.lane.b32.xlu0 %v4071, 32
      %v6543 = vpop.permute.xlu0 %6542
      %6544 = vrot.lane.b32.xlu0 %v4072, 32
      %v6545 = vpop.permute.xlu0 %6544
      %6546 = vrot.lane.b32.xlu0 %v4073, 32
      %v6547 = vpop.permute.xlu0 %6546
      %6548 = vrot.lane.b32.xlu0 %v4074, 32
      %v6549 = vpop.permute.xlu0 %6548
      %6550 = vrot.lane.b32.xlu0 %v4075, 32
      %v6551 = vpop.permute.xlu0 %6550
      %6552 = vrot.lane.b32.xlu0 %v4076, 32
      %v6553 = vpop.permute.xlu0 %6552
      %6554 = vrot.lane.b32.xlu0 %v4077, 32
      %v6555 = vpop.permute.xlu0 %6554
      %6556 = vrot.lane.b32.xlu0 %v4078, 32
      %v6557 = vpop.permute.xlu0 %6556
      %6558 = vrot.lane.b32.xlu0 %v4079, 32
      %v6559 = vpop.permute.xlu0 %6558
      %6560 = vrot.lane.b32.xlu0 %v4080, 32
      %v6561 = vpop.permute.xlu0 %6560
      %6562 = vrot.lane.b32.xlu0 %v4081, 32
      %v6563 = vpop.permute.xlu0 %6562
      %6564 = vrot.lane.b32.xlu0 %v4082, 32
      %v6565 = vpop.permute.xlu0 %6564
      %6566 = vrot.lane.b32.xlu0 %v4083, 32
      %v6567 = vpop.permute.xlu0 %6566
      %6568 = vrot.lane.b32.xlu0 %v4084, 32
      %v6569 = vpop.permute.xlu0 %6568
      %6570 = vrot.lane.b32.xlu0 %v4085, 32
      %v6571 = vpop.permute.xlu0 %6570
      %6572 = vrot.lane.b32.xlu0 %v4086, 32
      %v6573 = vpop.permute.xlu0 %6572
      %6574 = vrot.lane.b32.xlu0 %v4087, 32
      %v6575 = vpop.permute.xlu0 %6574
      %6576 = vrot.lane.b32.xlu0 %v4088, 32
      %v6577 = vpop.permute.xlu0 %6576
      %6578 = vrot.lane.b32.xlu0 %v4089, 32
      %v6579 = vpop.permute.xlu0 %6578
      %6580 = vrot.lane.b32.xlu0 %v4090, 32
      %v6581 = vpop.permute.xlu0 %6580
      %6582 = vrot.lane.b32.xlu0 %v4091, 32
      %v6583 = vpop.permute.xlu0 %6582
      %6584 = vrot.lane.b32.xlu0 %v4092, 32
      %v6585 = vpop.permute.xlu0 %6584
      %6586 = vrot.lane.b32.xlu0 %v4093, 32
      %v6587 = vpop.permute.xlu0 %6586
      %6588 = vrot.lane.b32.xlu0 %v4094, 32
      %v6589 = vpop.permute.xlu0 %6588
      %6590 = vrot.lane.b32.xlu0 %v4095, 32
      %v6591 = vpop.permute.xlu0 %6590
      %6592 = vrot.lane.b32.xlu0 %v4096, 32
      %v6593 = vpop.permute.xlu0 %6592
      %6594 = vrot.lane.b32.xlu0 %v4097, 32
      %v6595 = vpop.permute.xlu0 %6594
      %6596 = vrot.lane.b32.xlu0 %v4098, 32
      %v6597 = vpop.permute.xlu0 %6596
      %6598 = vrot.lane.b32.xlu0 %v4099, 32
      %v6599 = vpop.permute.xlu0 %6598
      %6600 = vrot.lane.b32.xlu0 %v4100, 32
      %v6601 = vpop.permute.xlu0 %6600
      %6602 = vrot.lane.b32.xlu0 %v4101, 32
      %v6603 = vpop.permute.xlu0 %6602
      %6604 = vrot.lane.b32.xlu0 %v4102, 32
      %v6605 = vpop.permute.xlu0 %6604
      %6606 = vrot.lane.b32.xlu0 %v4103, 32
      %v6607 = vpop.permute.xlu0 %6606
      %6608 = vrot.lane.b32.xlu0 %v4104, 32
      %v6609 = vpop.permute.xlu0 %6608
      %6610 = vrot.lane.b32.xlu0 %v4105, 32
      %v6611 = vpop.permute.xlu0 %6610
      %6612 = vrot.lane.b32.xlu0 %v4106, 32
      %v6613 = vpop.permute.xlu0 %6612
      %6614 = vrot.lane.b32.xlu0 %v4107, 32
      %v6615 = vpop.permute.xlu0 %6614
      %6616 = vrot.lane.b32.xlu0 %v4108, 32
      %v6617 = vpop.permute.xlu0 %6616
      %6618 = vrot.lane.b32.xlu0 %v4109, 32
      %v6619 = vpop.permute.xlu0 %6618
      %6620 = vrot.lane.b32.xlu0 %v4110, 32
      %v6621 = vpop.permute.xlu0 %6620
      %6622 = vrot.lane.b32.xlu0 %v4111, 32
      %v6623 = vpop.permute.xlu0 %6622
      %6624 = vrot.lane.b32.xlu0 %v4112, 32
      %v6625 = vpop.permute.xlu0 %6624
      %6626 = vrot.lane.b32.xlu0 %v4113, 32
      %v6627 = vpop.permute.xlu0 %6626
      %6628 = vrot.lane.b32.xlu0 %v4114, 32
      %v6629 = vpop.permute.xlu0 %6628
      %6630 = vrot.lane.b32.xlu0 %v4115, 32
      %v6631 = vpop.permute.xlu0 %6630
      %6632 = vrot.lane.b32.xlu0 %v4116, 32
      %v6633 = vpop.permute.xlu0 %6632
      %6634 = vrot.lane.b32.xlu0 %v4117, 32
      %v6635 = vpop.permute.xlu0 %6634
      %6636 = vrot.lane.b32.xlu0 %v4118, 32
      %v6637 = vpop.permute.xlu0 %6636
      %6638 = vrot.lane.b32.xlu0 %v4119, 32
      %v6639 = vpop.permute.xlu0 %6638
      %6640 = vrot.lane.b32.xlu0 %v4120, 32
      %v6641 = vpop.permute.xlu0 %6640
      %6642 = vrot.lane.b32.xlu0 %v4121, 32
      %v6643 = vpop.permute.xlu0 %6642
      %6644 = vrot.lane.b32.xlu0 %v4122, 32
      %v6645 = vpop.permute.xlu0 %6644
      %6646 = vrot.lane.b32.xlu0 %v4123, 32
      %v6647 = vpop.permute.xlu0 %6646
      %6648 = vrot.lane.b32.xlu0 %v4124, 32
      %v6649 = vpop.permute.xlu0 %6648
      %6650 = vrot.lane.b32.xlu0 %v4125, 32
      %v6651 = vpop.permute.xlu0 %6650
      %6652 = vrot.lane.b32.xlu0 %v4126, 32
      %v6653 = vpop.permute.xlu0 %6652
      %6654 = vrot.lane.b32.xlu0 %v4127, 32
      %v6655 = vpop.permute.xlu0 %6654
      %6656 = vrot.lane.b32.xlu0 %v4128, 32
      %v6657 = vpop.permute.xlu0 %6656
      %6658 = vrot.lane.b32.xlu0 %v4129, 32
      %v6659 = vpop.permute.xlu0 %6658
      %6660 = vrot.lane.b32.xlu0 %v4130, 32
      %v6661 = vpop.permute.xlu0 %6660
      %6662 = vrot.lane.b32.xlu0 %v4131, 32
      %v6663 = vpop.permute.xlu0 %6662
      %6664 = vrot.lane.b32.xlu0 %v4132, 32
      %v6665 = vpop.permute.xlu0 %6664
      %6666 = vrot.lane.b32.xlu0 %v4133, 32
      %v6667 = vpop.permute.xlu0 %6666
      %6668 = vrot.lane.b32.xlu0 %v4134, 32
      %v6669 = vpop.permute.xlu0 %6668
      %6670 = vrot.lane.b32.xlu0 %v4135, 32
      %v6671 = vpop.permute.xlu0 %6670
      %6672 = vrot.lane.b32.xlu0 %v4136, 32
      %v6673 = vpop.permute.xlu0 %6672
      %6674 = vrot.lane.b32.xlu0 %v4137, 32
      %v6675 = vpop.permute.xlu0 %6674
      %6676 = vrot.lane.b32.xlu0 %v4138, 32
      %v6677 = vpop.permute.xlu0 %6676
      %6678 = vrot.lane.b32.xlu0 %v4139, 32
      %v6679 = vpop.permute.xlu0 %6678
      %6680 = vrot.lane.b32.xlu0 %v4140, 32
      %v6681 = vpop.permute.xlu0 %6680
      %6682 = vrot.lane.b32.xlu0 %v4141, 32
      %v6683 = vpop.permute.xlu0 %6682
      %6684 = vrot.lane.b32.xlu0 %v4142, 32
      %v6685 = vpop.permute.xlu0 %6684
      %6686 = vrot.lane.b32.xlu0 %v4143, 32
      %v6687 = vpop.permute.xlu0 %6686
      %6688 = vrot.lane.b32.xlu0 %v4144, 32
      %v6689 = vpop.permute.xlu0 %6688
      %6690 = vrot.lane.b32.xlu0 %v4145, 32
      %v6691 = vpop.permute.xlu0 %6690
      %6692 = vrot.lane.b32.xlu0 %v4146, 32
      %v6693 = vpop.permute.xlu0 %6692
      %6694 = vrot.lane.b32.xlu0 %v4147, 32
      %v6695 = vpop.permute.xlu0 %6694
      %6696 = vrot.lane.b32.xlu0 %v4148, 32
      %v6697 = vpop.permute.xlu0 %6696
      %6698 = vrot.lane.b32.xlu0 %v4149, 32
      %v6699 = vpop.permute.xlu0 %6698
      %6700 = vrot.lane.b32.xlu0 %v4150, 32
      %v6701 = vpop.permute.xlu0 %6700
      %6702 = vrot.lane.b32.xlu0 %v4151, 32
      %v6703 = vpop.permute.xlu0 %6702
      %6704 = vrot.lane.b32.xlu0 %v4152, 32
      %v6705 = vpop.permute.xlu0 %6704
      %6706 = vrot.lane.b32.xlu0 %v4153, 32
      %v6707 = vpop.permute.xlu0 %6706
      %6708 = vrot.lane.b32.xlu0 %v4154, 32
      %v6709 = vpop.permute.xlu0 %6708
      %6710 = vrot.lane.b32.xlu0 %v4155, 32
      %v6711 = vpop.permute.xlu0 %6710
      %6712 = vrot.lane.b32.xlu0 %v4156, 32
      %v6713 = vpop.permute.xlu0 %6712
      %6714 = vrot.lane.b32.xlu0 %v4157, 32
      %v6715 = vpop.permute.xlu0 %6714
      %6716 = vrot.lane.b32.xlu0 %v4158, 32
      %v6717 = vpop.permute.xlu0 %6716
      %6718 = vrot.lane.b32.xlu0 %v4159, 32
      %v6719 = vpop.permute.xlu0 %6718
      %6720 = vrot.lane.b32.xlu0 %v4160, 32
      %v6721 = vpop.permute.xlu0 %6720
      %6722 = vrot.lane.b32.xlu0 %v4161, 32
      %v6723 = vpop.permute.xlu0 %6722
      %6724 = vrot.lane.b32.xlu0 %v4162, 32
      %v6725 = vpop.permute.xlu0 %6724
      %6726 = vrot.lane.b32.xlu0 %v4163, 32
      %v6727 = vpop.permute.xlu0 %6726
      %6728 = vrot.lane.b32.xlu0 %v4164, 32
      %v6729 = vpop.permute.xlu0 %6728
      %6730 = vrot.lane.b32.xlu0 %v4165, 32
      %v6731 = vpop.permute.xlu0 %6730
      %6732 = vrot.lane.b32.xlu0 %v4166, 32
      %v6733 = vpop.permute.xlu0 %6732
      %6734 = vrot.lane.b32.xlu0 %v4167, 32
      %v6735 = vpop.permute.xlu0 %6734
      %6736 = vrot.lane.b32.xlu0 %v4168, 32
      %v6737 = vpop.permute.xlu0 %6736
      %6738 = vrot.lane.b32.xlu0 %v4169, 32
      %v6739 = vpop.permute.xlu0 %6738
      %6740 = vrot.lane.b32.xlu0 %v4170, 32
      %v6741 = vpop.permute.xlu0 %6740
      %6742 = vrot.lane.b32.xlu0 %v4171, 32
      %v6743 = vpop.permute.xlu0 %6742
      %6744 = vrot.lane.b32.xlu0 %v4172, 32
      %v6745 = vpop.permute.xlu0 %6744
      %6746 = vrot.lane.b32.xlu0 %v4173, 32
      %v6747 = vpop.permute.xlu0 %6746
      %6748 = vrot.lane.b32.xlu0 %v4174, 32
      %v6749 = vpop.permute.xlu0 %6748
      %6750 = vrot.lane.b32.xlu0 %v4175, 32
      %v6751 = vpop.permute.xlu0 %6750
      %6752 = vrot.lane.b32.xlu0 %v4176, 32
      %v6753 = vpop.permute.xlu0 %6752
      %6754 = vrot.lane.b32.xlu0 %v4177, 32
      %v6755 = vpop.permute.xlu0 %6754
      %6756 = vrot.lane.b32.xlu0 %v4050, 32
      %v6757 = vpop.permute.xlu0 %6756
      %6758 = vrot.lane.b32.xlu0 %v4051, 32
      %v6759 = vpop.permute.xlu0 %6758
      %v6760 = vsel %vm1621, %v6505, %v6507
      %v6761 = vsel %vm1621, %v6509, %v6511
      %v6762 = vsel %vm1621, %v6513, %v6515
      %v6763 = vsel %vm1621, %v6517, %v6519
      %v6764 = vsel %vm1621, %v6521, %v6523
      %v6765 = vsel %vm1621, %v6525, %v6527
      %v6766 = vsel %vm1621, %v6529, %v6531
      %v6767 = vsel %vm1621, %v6533, %v6535
      %v6768 = vsel %vm1621, %v6537, %v6539
      %v6769 = vsel %vm1621, %v6541, %v6543
      %v6770 = vsel %vm1621, %v6545, %v6547
      %v6771 = vsel %vm1621, %v6549, %v6551
      %v6772 = vsel %vm1621, %v6553, %v6555
      %v6773 = vsel %vm1621, %v6557, %v6559
      %v6774 = vsel %vm1621, %v6561, %v6563
      %v6775 = vsel %vm1621, %v6565, %v6567
      %v6776 = vsel %vm1621, %v6569, %v6571
      %v6777 = vsel %vm1621, %v6573, %v6575
      %v6778 = vsel %vm1621, %v6577, %v6579
      %v6779 = vsel %vm1621, %v6581, %v6583
      %v6780 = vsel %vm1621, %v6585, %v6587
      %v6781 = vsel %vm1621, %v6589, %v6591
      %v6782 = vsel %vm1621, %v6593, %v6595
      %v6783 = vsel %vm1621, %v6597, %v6599
      %v6784 = vsel %vm1621, %v6601, %v6603
      %v6785 = vsel %vm1621, %v6605, %v6607
      %v6786 = vsel %vm1621, %v6609, %v6611
      %v6787 = vsel %vm1621, %v6613, %v6615
      %v6788 = vsel %vm1621, %v6617, %v6619
      %v6789 = vsel %vm1621, %v6621, %v6623
      %v6790 = vsel %vm1621, %v6625, %v6627
      %v6791 = vsel %vm1621, %v6629, %v6631
      %v6792 = vsel %vm1621, %v6633, %v6635
      %v6793 = vsel %vm1621, %v6637, %v6639
      %v6794 = vsel %vm1621, %v6641, %v6643
      %v6795 = vsel %vm1621, %v6645, %v6647
      %v6796 = vsel %vm1621, %v6649, %v6651
      %v6797 = vsel %vm1621, %v6653, %v6655
      %v6798 = vsel %vm1621, %v6657, %v6659
      %v6799 = vsel %vm1621, %v6661, %v6663
      %v6800 = vsel %vm1621, %v6665, %v6667
      %v6801 = vsel %vm1621, %v6669, %v6671
      %v6802 = vsel %vm1621, %v6673, %v6675
      %v6803 = vsel %vm1621, %v6677, %v6679
      %v6804 = vsel %vm1621, %v6681, %v6683
      %v6805 = vsel %vm1621, %v6685, %v6687
      %v6806 = vsel %vm1621, %v6689, %v6691
      %v6807 = vsel %vm1621, %v6693, %v6695
      %v6808 = vsel %vm1621, %v6697, %v6699
      %v6809 = vsel %vm1621, %v6701, %v6703
      %v6810 = vsel %vm1621, %v6705, %v6707
      %v6811 = vsel %vm1621, %v6709, %v6711
      %v6812 = vsel %vm1621, %v6713, %v6715
      %v6813 = vsel %vm1621, %v6717, %v6719
      %v6814 = vsel %vm1621, %v6721, %v6723
      %v6815 = vsel %vm1621, %v6725, %v6727
      %v6816 = vsel %vm1621, %v6729, %v6731
      %v6817 = vsel %vm1621, %v6733, %v6735
      %v6818 = vsel %vm1621, %v6737, %v6739
      %v6819 = vsel %vm1621, %v6741, %v6743
      %v6820 = vsel %vm1621, %v6745, %v6747
      %v6821 = vsel %vm1621, %v6749, %v6751
      %v6822 = vsel %vm1621, %v6753, %v6755
      %v6823 = vsel %vm1621, %v6757, %v6759
      %v6888 = vsel %vm5345, %v4051, %v5090
      %v6889 = vsel %vm5345, %v4053, %v5094
      %v6890 = vsel %vm5345, %v4055, %v5098
      %v6891 = vsel %vm5345, %v4057, %v5102
      %v6892 = vsel %vm5345, %v4059, %v5106
      %v6893 = vsel %vm5345, %v4061, %v5110
      %v6894 = vsel %vm5345, %v4063, %v5114
      %v6895 = vsel %vm5345, %v4065, %v5118
      %v6896 = vsel %vm5345, %v4067, %v5122
      %v6897 = vsel %vm5345, %v4069, %v5126
      %v6898 = vsel %vm5345, %v4071, %v5130
      %v6899 = vsel %vm5345, %v4073, %v5134
      %v6900 = vsel %vm5345, %v4075, %v5138
      %v6901 = vsel %vm5345, %v4077, %v5142
      %v6902 = vsel %vm5345, %v4079, %v5146
      %v6903 = vsel %vm5345, %v4081, %v5150
      %v6904 = vsel %vm5345, %v4083, %v5154
      %v6905 = vsel %vm5345, %v4085, %v5158
      %v6906 = vsel %vm5345, %v4087, %v5162
      %v6907 = vsel %vm5345, %v4089, %v5166
      %v6908 = vsel %vm5345, %v4091, %v5170
      %v6909 = vsel %vm5345, %v4093, %v5174
      %v6910 = vsel %vm5345, %v4095, %v5178
      %v6911 = vsel %vm5345, %v4097, %v5182
      %v6912 = vsel %vm5345, %v4099, %v5186
      %v6913 = vsel %vm5345, %v4101, %v5190
      %v6914 = vsel %vm5345, %v4103, %v5194
      %v6915 = vsel %vm5345, %v4105, %v5198
      %v6916 = vsel %vm5345, %v4107, %v5202
      %v6917 = vsel %vm5345, %v4109, %v5206
      %v6918 = vsel %vm5345, %v4111, %v5210
      %v6919 = vsel %vm5345, %v4113, %v5214
      %v6920 = vsel %vm5345, %v4115, %v5218
      %v6921 = vsel %vm5345, %v4117, %v5222
      %v6922 = vsel %vm5345, %v4119, %v5226
      %v6923 = vsel %vm5345, %v4121, %v5230
      %v6924 = vsel %vm5345, %v4123, %v5234
      %v6925 = vsel %vm5345, %v4125, %v5238
      %v6926 = vsel %vm5345, %v4127, %v5242
      %v6927 = vsel %vm5345, %v4129, %v5246
      %v6928 = vsel %vm5345, %v4131, %v5250
      %v6929 = vsel %vm5345, %v4133, %v5254
      %v6930 = vsel %vm5345, %v4135, %v5258
      %v6931 = vsel %vm5345, %v4137, %v5262
      %v6932 = vsel %vm5345, %v4139, %v5266
      %v6933 = vsel %vm5345, %v4141, %v5270
      %v6934 = vsel %vm5345, %v4143, %v5274
      %v6935 = vsel %vm5345, %v4145, %v5278
      %v6936 = vsel %vm5345, %v4147, %v5282
      %v6937 = vsel %vm5345, %v4149, %v5286
      %v6938 = vsel %vm5345, %v4151, %v5290
      %v6939 = vsel %vm5345, %v4153, %v5294
      %v6940 = vsel %vm5345, %v4155, %v5298
      %v6941 = vsel %vm5345, %v4157, %v5302
      %v6942 = vsel %vm5345, %v4159, %v5306
      %v6943 = vsel %vm5345, %v4161, %v5310
      %v6944 = vsel %vm5345, %v4163, %v5314
      %v6945 = vsel %vm5345, %v4165, %v5318
      %v6946 = vsel %vm5345, %v4167, %v5322
      %v6947 = vsel %vm5345, %v4169, %v5326
      %v6948 = vsel %vm5345, %v4171, %v5330
      %v6949 = vsel %vm5345, %v4173, %v5334
      %v6950 = vsel %vm5345, %v4175, %v5338
      %v6951 = vsel %vm5345, %v4177, %v5342
      %v6952 = vsel %vm5796, %v5346, %v5541
      %v6953 = vsel %vm5796, %v5347, %v5545
      %v6954 = vsel %vm5796, %v5348, %v5549
      %v6955 = vsel %vm5796, %v5349, %v5553
      %v6956 = vsel %vm5796, %v5350, %v5557
      %v6957 = vsel %vm5796, %v5351, %v5561
      %v6958 = vsel %vm5796, %v5352, %v5565
      %v6959 = vsel %vm5796, %v5353, %v5569
      %v6960 = vsel %vm5796, %v5354, %v5573
      %v6961 = vsel %vm5796, %v5355, %v5577
      %v6962 = vsel %vm5796, %v5356, %v5581
      %v6963 = vsel %vm5796, %v5357, %v5585
      %v6964 = vsel %vm5796, %v5358, %v5589
      %v6965 = vsel %vm5796, %v5359, %v5593
      %v6966 = vsel %vm5796, %v5360, %v5597
      %v6967 = vsel %vm5796, %v5361, %v5601
      %v6968 = vsel %vm5796, %v5362, %v5605
      %v6969 = vsel %vm5796, %v5363, %v5609
      %v6970 = vsel %vm5796, %v5364, %v5613
      %v6971 = vsel %vm5796, %v5365, %v5617
      %v6972 = vsel %vm5796, %v5366, %v5621
      %v6973 = vsel %vm5796, %v5367, %v5625
      %v6974 = vsel %vm5796, %v5368, %v5629
      %v6975 = vsel %vm5796, %v5369, %v5633
      %v6976 = vsel %vm5796, %v5370, %v5637
      %v6977 = vsel %vm5796, %v5371, %v5641
      %v6978 = vsel %vm5796, %v5372, %v5645
      %v6979 = vsel %vm5796, %v5373, %v5649
      %v6980 = vsel %vm5796, %v5374, %v5653
      %v6981 = vsel %vm5796, %v5375, %v5657
      %v6982 = vsel %vm5796, %v5376, %v5661
      %v6983 = vsel %vm5796, %v5377, %v5665
      %v6984 = vsel %vm5796, %v5378, %v5669
      %v6985 = vsel %vm5796, %v5379, %v5673
      %v6986 = vsel %vm5796, %v5380, %v5677
      %v6987 = vsel %vm5796, %v5381, %v5681
      %v6988 = vsel %vm5796, %v5382, %v5685
      %v6989 = vsel %vm5796, %v5383, %v5689
      %v6990 = vsel %vm5796, %v5384, %v5693
      %v6991 = vsel %vm5796, %v5385, %v5697
      %v6992 = vsel %vm5796, %v5386, %v5701
      %v6993 = vsel %vm5796, %v5387, %v5705
      %v6994 = vsel %vm5796, %v5388, %v5709
      %v6995 = vsel %vm5796, %v5389, %v5713
      %v6996 = vsel %vm5796, %v5390, %v5717
      %v6997 = vsel %vm5796, %v5391, %v5721
      %v6998 = vsel %vm5796, %v5392, %v5725
      %v6999 = vsel %vm5796, %v5393, %v5729
      %v7000 = vsel %vm5796, %v5394, %v5733
      %v7001 = vsel %vm5796, %v5395, %v5737
      %v7002 = vsel %vm5796, %v5396, %v5741
      %v7003 = vsel %vm5796, %v5397, %v5745
      %v7004 = vsel %vm5796, %v5398, %v5749
      %v7005 = vsel %vm5796, %v5399, %v5753
      %v7006 = vsel %vm5796, %v5400, %v5757
      %v7007 = vsel %vm5796, %v5401, %v5761
      %v7008 = vsel %vm5796, %v5402, %v5765
      %v7009 = vsel %vm5796, %v5403, %v5769
      %v7010 = vsel %vm5796, %v5404, %v5773
      %v7011 = vsel %vm5796, %v5405, %v5777
      %v7012 = vsel %vm5796, %v5406, %v5781
      %v7013 = vsel %vm5796, %v5407, %v5785
      %v7014 = vsel %vm5796, %v5408, %v5789
      %v7015 = vsel %vm5796, %v5409, %v5793
      %v7016 = vsel %vm6247, %v5797, %v5992
      %v7017 = vsel %vm6247, %v5798, %v5996
      %v7018 = vsel %vm6247, %v5799, %v6000
      %v7019 = vsel %vm6247, %v5800, %v6004
      %v7020 = vsel %vm6247, %v5801, %v6008
      %v7021 = vsel %vm6247, %v5802, %v6012
      %v7022 = vsel %vm6247, %v5803, %v6016
      %v7023 = vsel %vm6247, %v5804, %v6020
      %v7024 = vsel %vm6247, %v5805, %v6024
      %v7025 = vsel %vm6247, %v5806, %v6028
      %v7026 = vsel %vm6247, %v5807, %v6032
      %v7027 = vsel %vm6247, %v5808, %v6036
      %v7028 = vsel %vm6247, %v5809, %v6040
      %v7029 = vsel %vm6247, %v5810, %v6044
      %v7030 = vsel %vm6247, %v5811, %v6048
      %v7031 = vsel %vm6247, %v5812, %v6052
      %v7032 = vsel %vm6247, %v5813, %v6056
      %v7033 = vsel %vm6247, %v5814, %v6060
      %v7034 = vsel %vm6247, %v5815, %v6064
      %v7035 = vsel %vm6247, %v5816, %v6068
      %v7036 = vsel %vm6247, %v5817, %v6072
      %v7037 = vsel %vm6247, %v5818, %v6076
      %v7038 = vsel %vm6247, %v5819, %v6080
      %v7039 = vsel %vm6247, %v5820, %v6084
      %v7040 = vsel %vm6247, %v5821, %v6088
      %v7041 = vsel %vm6247, %v5822, %v6092
      %v7042 = vsel %vm6247, %v5823, %v6096
      %v7043 = vsel %vm6247, %v5824, %v6100
      %v7044 = vsel %vm6247, %v5825, %v6104
      %v7045 = vsel %vm6247, %v5826, %v6108
      %v7046 = vsel %vm6247, %v5827, %v6112
      %v7047 = vsel %vm6247, %v5828, %v6116
      %v7048 = vsel %vm6247, %v5829, %v6120
      %v7049 = vsel %vm6247, %v5830, %v6124
      %v7050 = vsel %vm6247, %v5831, %v6128
      %v7051 = vsel %vm6247, %v5832, %v6132
      %v7052 = vsel %vm6247, %v5833, %v6136
      %v7053 = vsel %vm6247, %v5834, %v6140
      %v7054 = vsel %vm6247, %v5835, %v6144
      %v7055 = vsel %vm6247, %v5836, %v6148
      %v7056 = vsel %vm6247, %v5837, %v6152
      %v7057 = vsel %vm6247, %v5838, %v6156
      %v7058 = vsel %vm6247, %v5839, %v6160
      %v7059 = vsel %vm6247, %v5840, %v6164
      %v7060 = vsel %vm6247, %v5841, %v6168
      %v7061 = vsel %vm6247, %v5842, %v6172
      %v7062 = vsel %vm6247, %v5843, %v6176
      %v7063 = vsel %vm6247, %v5844, %v6180
      %v7064 = vsel %vm6247, %v5845, %v6184
      %v7065 = vsel %vm6247, %v5846, %v6188
      %v7066 = vsel %vm6247, %v5847, %v6192
      %v7067 = vsel %vm6247, %v5848, %v6196
      %v7068 = vsel %vm6247, %v5849, %v6200
      %v7069 = vsel %vm6247, %v5850, %v6204
      %v7070 = vsel %vm6247, %v5851, %v6208
      %v7071 = vsel %vm6247, %v5852, %v6212
      %v7072 = vsel %vm6247, %v5853, %v6216
      %v7073 = vsel %vm6247, %v5854, %v6220
      %v7074 = vsel %vm6247, %v5855, %v6224
      %v7075 = vsel %vm6247, %v5856, %v6228
      %v7076 = vsel %vm6247, %v5857, %v6232
      %v7077 = vsel %vm6247, %v5858, %v6236
      %v7078 = vsel %vm6247, %v5859, %v6240
      %v7079 = vsel %vm6247, %v5860, %v6244
      %v7080 = vsel %vm1621, %v5994, %v6505
      %v7081 = vsel %vm1621, %v5998, %v6509
      %v7082 = vsel %vm1621, %v6002, %v6513
      %v7083 = vsel %vm1621, %v6006, %v6517
      %v7084 = vsel %vm1621, %v6010, %v6521
      %v7085 = vsel %vm1621, %v6014, %v6525
      %v7086 = vsel %vm1621, %v6018, %v6529
      %v7087 = vsel %vm1621, %v6022, %v6533
      %v7088 = vsel %vm1621, %v6026, %v6537
      %v7089 = vsel %vm1621, %v6030, %v6541
      %v7090 = vsel %vm1621, %v6034, %v6545
      %v7091 = vsel %vm1621, %v6038, %v6549
      %v7092 = vsel %vm1621, %v6042, %v6553
      %v7093 = vsel %vm1621, %v6046, %v6557
      %v7094 = vsel %vm1621, %v6050, %v6561
      %v7095 = vsel %vm1621, %v6054, %v6565
      %v7096 = vsel %vm1621, %v6058, %v6569
      %v7097 = vsel %vm1621, %v6062, %v6573
      %v7098 = vsel %vm1621, %v6066, %v6577
      %v7099 = vsel %vm1621, %v6070, %v6581
      %v7100 = vsel %vm1621, %v6074, %v6585
      %v7101 = vsel %vm1621, %v6078, %v6589
      %v7102 = vsel %vm1621, %v6082, %v6593
      %v7103 = vsel %vm1621, %v6086, %v6597
      %v7104 = vsel %vm1621, %v6090, %v6601
      %v7105 = vsel %vm1621, %v6094, %v6605
      %v7106 = vsel %vm1621, %v6098, %v6609
      %v7107 = vsel %vm1621, %v6102, %v6613
      %v7108 = vsel %vm1621, %v6106, %v6617
      %v7109 = vsel %vm1621, %v6110, %v6621
      %v7110 = vsel %vm1621, %v6114, %v6625
      %v7111 = vsel %vm1621, %v6118, %v6629
      %v7112 = vsel %vm1621, %v6122, %v6633
      %v7113 = vsel %vm1621, %v6126, %v6637
      %v7114 = vsel %vm1621, %v6130, %v6641
      %v7115 = vsel %vm1621, %v6134, %v6645
      %v7116 = vsel %vm1621, %v6138, %v6649
      %v7117 = vsel %vm1621, %v6142, %v6653
      %v7118 = vsel %vm1621, %v6146, %v6657
      %v7119 = vsel %vm1621, %v6150, %v6661
      %v7120 = vsel %vm1621, %v6154, %v6665
      %v7121 = vsel %vm1621, %v6158, %v6669
      %v7122 = vsel %vm1621, %v6162, %v6673
      %v7123 = vsel %vm1621, %v6166, %v6677
      %v7124 = vsel %vm1621, %v6170, %v6681
      %v7125 = vsel %vm1621, %v6174, %v6685
      %v7126 = vsel %vm1621, %v6178, %v6689
      %v7127 = vsel %vm1621, %v6182, %v6693
      %v7128 = vsel %vm1621, %v6186, %v6697
      %v7129 = vsel %vm1621, %v6190, %v6701
      %v7130 = vsel %vm1621, %v6194, %v6705
      %v7131 = vsel %vm1621, %v6198, %v6709
      %v7132 = vsel %vm1621, %v6202, %v6713
      %v7133 = vsel %vm1621, %v6206, %v6717
      %v7134 = vsel %vm1621, %v6210, %v6721
      %v7135 = vsel %vm1621, %v6214, %v6725
      %v7136 = vsel %vm1621, %v6218, %v6729
      %v7137 = vsel %vm1621, %v6222, %v6733
      %v7138 = vsel %vm1621, %v6226, %v6737
      %v7139 = vsel %vm1621, %v6230, %v6741
      %v7140 = vsel %vm1621, %v6234, %v6745
      %v7141 = vsel %vm1621, %v6238, %v6749
      %v7142 = vsel %vm1621, %v6242, %v6753
      %v7143 = vsel %vm1621, %v6246, %v6757
      %v7144 = vld [vmem:[%s3] sm:$0xff]
      %v7145 = vld [vmem:[%s3 + $0x8] sm:$0xff]
      %v7146 = vld [vmem:[%s3 + $0x10] sm:$0xff]
      %v7147 = vld [vmem:[%s3 + $0x18] sm:$0xff]
      %v7148 = vld [vmem:[%s3 + $0x20] sm:$0xff]
      %v7149 = vld [vmem:[%s3 + $0x28] sm:$0xff]
      %v7150 = vld [vmem:[%s3 + $0x30] sm:$0xff]
      %v7151 = vld [vmem:[%s3 + $0x38] sm:$0xff]
      %v7152 = vld [vmem:[%s3 + $0x40] sm:$0xff]
      %v7153 = vld [vmem:[%s3 + $0x48] sm:$0xff]
      %v7154 = vld [vmem:[%s3 + $0x50] sm:$0xff]
      %v7155 = vld [vmem:[%s3 + $0x58] sm:$0xff]
      %v7156 = vld [vmem:[%s3 + $0x60] sm:$0xff]
      %v7157 = vld [vmem:[%s3 + $0x68] sm:$0xff]
      %v7158 = vld [vmem:[%s3 + $0x70] sm:$0xff]
      %v7159 = vld [vmem:[%s3 + $0x78] sm:$0xff]
      %v7160 = vld [vmem:[%s3 + $0x80] sm:$0xff]
      %v7161 = vld [vmem:[%s3 + $0x88] sm:$0xff]
      %v7162 = vld [vmem:[%s3 + $0x90] sm:$0xff]
      %v7163 = vld [vmem:[%s3 + $0x98] sm:$0xff]
      %v7164 = vld [vmem:[%s3 + $0xa0] sm:$0xff]
      %v7165 = vld [vmem:[%s3 + $0xa8] sm:$0xff]
      %v7166 = vld [vmem:[%s3 + $0xb0] sm:$0xff]
      %v7167 = vld [vmem:[%s3 + $0xb8] sm:$0xff]
      %v7168 = vld [vmem:[%s3 + $0xc0] sm:$0xff]
      %v7169 = vld [vmem:[%s3 + $0xc8] sm:$0xff]
      %v7170 = vld [vmem:[%s3 + $0xd0] sm:$0xff]
      %v7171 = vld [vmem:[%s3 + $0xd8] sm:$0xff]
      %v7172 = vld [vmem:[%s3 + $0xe0] sm:$0xff]
      %v7173 = vld [vmem:[%s3 + $0xe8] sm:$0xff]
      %v7174 = vld [vmem:[%s3 + $0xf0] sm:$0xff]
      %v7175 = vld [vmem:[%s3 + $0xf8] sm:$0xff]
      %v7176 = vld [vmem:[%s3 + $0x100] sm:$0xff]
      %v7177 = vld [vmem:[%s3 + $0x108] sm:$0xff]
      %v7178 = vld [vmem:[%s3 + $0x110] sm:$0xff]
      %v7179 = vld [vmem:[%s3 + $0x118] sm:$0xff]
      %v7180 = vld [vmem:[%s3 + $0x120] sm:$0xff]
      %v7181 = vld [vmem:[%s3 + $0x128] sm:$0xff]
      %v7182 = vld [vmem:[%s3 + $0x130] sm:$0xff]
      %v7183 = vld [vmem:[%s3 + $0x138] sm:$0xff]
      %v7184 = vld [vmem:[%s3 + $0x140] sm:$0xff]
      %v7185 = vld [vmem:[%s3 + $0x148] sm:$0xff]
      %v7186 = vld [vmem:[%s3 + $0x150] sm:$0xff]
      %v7187 = vld [vmem:[%s3 + $0x158] sm:$0xff]
      %v7188 = vld [vmem:[%s3 + $0x160] sm:$0xff]
      %v7189 = vld [vmem:[%s3 + $0x168] sm:$0xff]
      %v7190 = vld [vmem:[%s3 + $0x170] sm:$0xff]
      %v7191 = vld [vmem:[%s3 + $0x178] sm:$0xff]
      %v7192 = vld [vmem:[%s3 + $0x180] sm:$0xff]
      %v7193 = vld [vmem:[%s3 + $0x188] sm:$0xff]
      %v7194 = vld [vmem:[%s3 + $0x190] sm:$0xff]
      %v7195 = vld [vmem:[%s3 + $0x198] sm:$0xff]
      %v7196 = vld [vmem:[%s3 + $0x1a0] sm:$0xff]
      %v7197 = vld [vmem:[%s3 + $0x1a8] sm:$0xff]
      %v7198 = vld [vmem:[%s3 + $0x1b0] sm:$0xff]
      %v7199 = vld [vmem:[%s3 + $0x1b8] sm:$0xff]
      %v7200 = vld [vmem:[%s3 + $0x1c0] sm:$0xff]
      %v7201 = vld [vmem:[%s3 + $0x1c8] sm:$0xff]
      %v7202 = vld [vmem:[%s3 + $0x1d0] sm:$0xff]
      %v7203 = vld [vmem:[%s3 + $0x1d8] sm:$0xff]
      %v7204 = vld [vmem:[%s3 + $0x1e0] sm:$0xff]
      %v7205 = vld [vmem:[%s3 + $0x1e8] sm:$0xff]
      %v7206 = vld [vmem:[%s3 + $0x1f0] sm:$0xff]
      %v7207 = vld [vmem:[%s3 + $0x1f8] sm:$0xff]
      %v7208 = vld [vmem:[%s3 + $0x200] sm:$0xff]
      %v7209 = vld [vmem:[%s3 + $0x208] sm:$0xff]
      %v7210 = vld [vmem:[%s3 + $0x210] sm:$0xff]
      %v7211 = vld [vmem:[%s3 + $0x218] sm:$0xff]
      %v7212 = vld [vmem:[%s3 + $0x220] sm:$0xff]
      %v7213 = vld [vmem:[%s3 + $0x228] sm:$0xff]
      %v7214 = vld [vmem:[%s3 + $0x230] sm:$0xff]
      %v7215 = vld [vmem:[%s3 + $0x238] sm:$0xff]
      %v7216 = vld [vmem:[%s3 + $0x240] sm:$0xff]
      %v7217 = vld [vmem:[%s3 + $0x248] sm:$0xff]
      %v7218 = vld [vmem:[%s3 + $0x250] sm:$0xff]
      %v7219 = vld [vmem:[%s3 + $0x258] sm:$0xff]
      %v7220 = vld [vmem:[%s3 + $0x260] sm:$0xff]
      %v7221 = vld [vmem:[%s3 + $0x268] sm:$0xff]
      %v7222 = vld [vmem:[%s3 + $0x270] sm:$0xff]
      %v7223 = vld [vmem:[%s3 + $0x278] sm:$0xff]
      %v7224 = vld [vmem:[%s3 + $0x280] sm:$0xff]
      %v7225 = vld [vmem:[%s3 + $0x288] sm:$0xff]
      %v7226 = vld [vmem:[%s3 + $0x290] sm:$0xff]
      %v7227 = vld [vmem:[%s3 + $0x298] sm:$0xff]
      %v7228 = vld [vmem:[%s3 + $0x2a0] sm:$0xff]
      %v7229 = vld [vmem:[%s3 + $0x2a8] sm:$0xff]
      %v7230 = vld [vmem:[%s3 + $0x2b0] sm:$0xff]
      %v7231 = vld [vmem:[%s3 + $0x2b8] sm:$0xff]
      %v7232 = vld [vmem:[%s3 + $0x2c0] sm:$0xff]
      %v7233 = vld [vmem:[%s3 + $0x2c8] sm:$0xff]
      %v7234 = vld [vmem:[%s3 + $0x2d0] sm:$0xff]
      %v7235 = vld [vmem:[%s3 + $0x2d8] sm:$0xff]
      %v7236 = vld [vmem:[%s3 + $0x2e0] sm:$0xff]
      %v7237 = vld [vmem:[%s3 + $0x2e8] sm:$0xff]
      %v7238 = vld [vmem:[%s3 + $0x2f0] sm:$0xff]
      %v7239 = vld [vmem:[%s3 + $0x2f8] sm:$0xff]
      %v7240 = vld [vmem:[%s3 + $0x300] sm:$0xff]
      %v7241 = vld [vmem:[%s3 + $0x308] sm:$0xff]
      %v7242 = vld [vmem:[%s3 + $0x310] sm:$0xff]
      %v7243 = vld [vmem:[%s3 + $0x318] sm:$0xff]
      %v7244 = vld [vmem:[%s3 + $0x320] sm:$0xff]
      %v7245 = vld [vmem:[%s3 + $0x328] sm:$0xff]
      %v7246 = vld [vmem:[%s3 + $0x330] sm:$0xff]
      %v7247 = vld [vmem:[%s3 + $0x338] sm:$0xff]
      %v7248 = vld [vmem:[%s3 + $0x340] sm:$0xff]
      %v7249 = vld [vmem:[%s3 + $0x348] sm:$0xff]
      %v7250 = vld [vmem:[%s3 + $0x350] sm:$0xff]
      %v7251 = vld [vmem:[%s3 + $0x358] sm:$0xff]
      %v7252 = vld [vmem:[%s3 + $0x360] sm:$0xff]
      %v7253 = vld [vmem:[%s3 + $0x368] sm:$0xff]
      %v7254 = vld [vmem:[%s3 + $0x370] sm:$0xff]
      %v7255 = vld [vmem:[%s3 + $0x378] sm:$0xff]
      %v7256 = vld [vmem:[%s3 + $0x380] sm:$0xff]
      %v7257 = vld [vmem:[%s3 + $0x388] sm:$0xff]
      %v7258 = vld [vmem:[%s3 + $0x390] sm:$0xff]
      %v7259 = vld [vmem:[%s3 + $0x398] sm:$0xff]
      %v7260 = vld [vmem:[%s3 + $0x3a0] sm:$0xff]
      %v7261 = vld [vmem:[%s3 + $0x3a8] sm:$0xff]
      %v7262 = vld [vmem:[%s3 + $0x3b0] sm:$0xff]
      %v7263 = vld [vmem:[%s3 + $0x3b8] sm:$0xff]
      %v7264 = vld [vmem:[%s3 + $0x3c0] sm:$0xff]
      %v7265 = vld [vmem:[%s3 + $0x3c8] sm:$0xff]
      %v7266 = vld [vmem:[%s3 + $0x3d0] sm:$0xff]
      %v7267 = vld [vmem:[%s3 + $0x3d8] sm:$0xff]
      %v7268 = vld [vmem:[%s3 + $0x3e0] sm:$0xff]
      %v7269 = vld [vmem:[%s3 + $0x3e8] sm:$0xff]
      %v7270 = vld [vmem:[%s3 + $0x3f0] sm:$0xff]
      %v7271 = vld [vmem:[%s3 + $0x3f8] sm:$0xff]
      %v7272 = vld [vmem:[%s3 + $0x400] sm:$0xff]
      %v7273 = vld [vmem:[%s3 + $0x408] sm:$0xff]
      %v7274 = vld [vmem:[%s3 + $0x410] sm:$0xff]
      %v7275 = vld [vmem:[%s3 + $0x418] sm:$0xff]
      %v7276 = vld [vmem:[%s3 + $0x420] sm:$0xff]
      %v7277 = vld [vmem:[%s3 + $0x428] sm:$0xff]
      %v7278 = vld [vmem:[%s3 + $0x430] sm:$0xff]
      %v7279 = vld [vmem:[%s3 + $0x438] sm:$0xff]
      %v7280 = vld [vmem:[%s3 + $0x440] sm:$0xff]
      %v7281 = vld [vmem:[%s3 + $0x448] sm:$0xff]
      %v7282 = vld [vmem:[%s3 + $0x450] sm:$0xff]
      %v7283 = vld [vmem:[%s3 + $0x458] sm:$0xff]
      %v7284 = vld [vmem:[%s3 + $0x460] sm:$0xff]
      %v7285 = vld [vmem:[%s3 + $0x468] sm:$0xff]
      %v7286 = vld [vmem:[%s3 + $0x470] sm:$0xff]
      %v7287 = vld [vmem:[%s3 + $0x478] sm:$0xff]
      %v7288 = vld [vmem:[%s3 + $0x480] sm:$0xff]
      %v7289 = vld [vmem:[%s3 + $0x488] sm:$0xff]
      %v7290 = vld [vmem:[%s3 + $0x490] sm:$0xff]
      %v7291 = vld [vmem:[%s3 + $0x498] sm:$0xff]
      %v7292 = vld [vmem:[%s3 + $0x4a0] sm:$0xff]
      %v7293 = vld [vmem:[%s3 + $0x4a8] sm:$0xff]
      %v7294 = vld [vmem:[%s3 + $0x4b0] sm:$0xff]
      %v7295 = vld [vmem:[%s3 + $0x4b8] sm:$0xff]
      %v7296 = vld [vmem:[%s3 + $0x4c0] sm:$0xff]
      %v7297 = vld [vmem:[%s3 + $0x4c8] sm:$0xff]
      %v7298 = vld [vmem:[%s3 + $0x4d0] sm:$0xff]
      %v7299 = vld [vmem:[%s3 + $0x4d8] sm:$0xff]
      %v7300 = vld [vmem:[%s3 + $0x4e0] sm:$0xff]
      %v7301 = vld [vmem:[%s3 + $0x4e8] sm:$0xff]
      %v7302 = vld [vmem:[%s3 + $0x4f0] sm:$0xff]
      %v7303 = vld [vmem:[%s3 + $0x4f8] sm:$0xff]
      %v7304 = vld [vmem:[%s3 + $0x500] sm:$0xff]
      %v7305 = vld [vmem:[%s3 + $0x508] sm:$0xff]
      %v7306 = vld [vmem:[%s3 + $0x510] sm:$0xff]
      %v7307 = vld [vmem:[%s3 + $0x518] sm:$0xff]
      %v7308 = vld [vmem:[%s3 + $0x520] sm:$0xff]
      %v7309 = vld [vmem:[%s3 + $0x528] sm:$0xff]
      %v7310 = vld [vmem:[%s3 + $0x530] sm:$0xff]
      %v7311 = vld [vmem:[%s3 + $0x538] sm:$0xff]
      %v7312 = vld [vmem:[%s3 + $0x540] sm:$0xff]
      %v7313 = vld [vmem:[%s3 + $0x548] sm:$0xff]
      %v7314 = vld [vmem:[%s3 + $0x550] sm:$0xff]
      %v7315 = vld [vmem:[%s3 + $0x558] sm:$0xff]
      %v7316 = vld [vmem:[%s3 + $0x560] sm:$0xff]
      %v7317 = vld [vmem:[%s3 + $0x568] sm:$0xff]
      %v7318 = vld [vmem:[%s3 + $0x570] sm:$0xff]
      %v7319 = vld [vmem:[%s3 + $0x578] sm:$0xff]
      %v7320 = vld [vmem:[%s3 + $0x580] sm:$0xff]
      %v7321 = vld [vmem:[%s3 + $0x588] sm:$0xff]
      %v7322 = vld [vmem:[%s3 + $0x590] sm:$0xff]
      %v7323 = vld [vmem:[%s3 + $0x598] sm:$0xff]
      %v7324 = vld [vmem:[%s3 + $0x5a0] sm:$0xff]
      %v7325 = vld [vmem:[%s3 + $0x5a8] sm:$0xff]
      %v7326 = vld [vmem:[%s3 + $0x5b0] sm:$0xff]
      %v7327 = vld [vmem:[%s3 + $0x5b8] sm:$0xff]
      %v7328 = vld [vmem:[%s3 + $0x5c0] sm:$0xff]
      %v7329 = vld [vmem:[%s3 + $0x5c8] sm:$0xff]
      %v7330 = vld [vmem:[%s3 + $0x5d0] sm:$0xff]
      %v7331 = vld [vmem:[%s3 + $0x5d8] sm:$0xff]
      %v7332 = vld [vmem:[%s3 + $0x5e0] sm:$0xff]
      %v7333 = vld [vmem:[%s3 + $0x5e8] sm:$0xff]
      %v7334 = vld [vmem:[%s3 + $0x5f0] sm:$0xff]
      %v7335 = vld [vmem:[%s3 + $0x5f8] sm:$0xff]
      %v7336 = vld [vmem:[%s3 + $0x600] sm:$0xff]
      %v7337 = vld [vmem:[%s3 + $0x608] sm:$0xff]
      %v7338 = vld [vmem:[%s3 + $0x610] sm:$0xff]
      %v7339 = vld [vmem:[%s3 + $0x618] sm:$0xff]
      %v7340 = vld [vmem:[%s3 + $0x620] sm:$0xff]
      %v7341 = vld [vmem:[%s3 + $0x628] sm:$0xff]
      %v7342 = vld [vmem:[%s3 + $0x630] sm:$0xff]
      %v7343 = vld [vmem:[%s3 + $0x638] sm:$0xff]
      %v7344 = vld [vmem:[%s3 + $0x640] sm:$0xff]
      %v7345 = vld [vmem:[%s3 + $0x648] sm:$0xff]
      %v7346 = vld [vmem:[%s3 + $0x650] sm:$0xff]
      %v7347 = vld [vmem:[%s3 + $0x658] sm:$0xff]
      %v7348 = vld [vmem:[%s3 + $0x660] sm:$0xff]
      %v7349 = vld [vmem:[%s3 + $0x668] sm:$0xff]
      %v7350 = vld [vmem:[%s3 + $0x670] sm:$0xff]
      %v7351 = vld [vmem:[%s3 + $0x678] sm:$0xff]
      %v7352 = vld [vmem:[%s3 + $0x680] sm:$0xff]
      %v7353 = vld [vmem:[%s3 + $0x688] sm:$0xff]
      %v7354 = vld [vmem:[%s4] sm:$0x3]
      %v7356 = vlaneseq
      %v7357 = vshrl.u32 %v7356, 7
      %v7358 = vsub.s32 0, %v7357
      %v7359 = vrot.slane %v7354, %v7358
      %v7360 = vlaneseq
      %v7361 = vshrl.u32 %v7360, 7
      %v7362 = vsub.s32 1, %v7361
      %v7363 = vrot.slane %v7354, %v7362
      %vm7366 = vcmask 588800
      %v7367 = vsel %vm7366, %v6760, 0
      %v7369 = vsel %vm7366, %v6761, 0
      %v7371 = vsel %vm7366, %v6762, 0
      %v7373 = vsel %vm7366, %v6763, 0
      %v7375 = vsel %vm7366, %v6764, 0
      %v7377 = vsel %vm7366, %v6765, 0
      %v7379 = vsel %vm7366, %v6766, 0
      %v7381 = vsel %vm7366, %v6767, 0
      %v7383 = vsel %vm7366, %v6768, 0
      %v7385 = vsel %vm7366, %v6769, 0
      %v7387 = vsel %vm7366, %v6770, 0
      %v7389 = vsel %vm7366, %v6771, 0
      %v7391 = vsel %vm7366, %v6772, 0
      %v7393 = vsel %vm7366, %v6773, 0
      %v7395 = vsel %vm7366, %v6774, 0
      %v7397 = vsel %vm7366, %v6775, 0
      %v7399 = vsel %vm7366, %v6776, 0
      %v7401 = vsel %vm7366, %v6777, 0
      %v7403 = vsel %vm7366, %v6778, 0
      %v7405 = vsel %vm7366, %v6779, 0
      %v7407 = vsel %vm7366, %v6780, 0
      %v7409 = vsel %vm7366, %v6781, 0
      %v7411 = vsel %vm7366, %v6782, 0
      %v7413 = vsel %vm7366, %v6783, 0
      %v7415 = vsel %vm7366, %v6784, 0
      %v7417 = vsel %vm7366, %v6785, 0
      %v7419 = vsel %vm7366, %v6786, 0
      %v7421 = vsel %vm7366, %v6787, 0
      %v7423 = vsel %vm7366, %v6788, 0
      %v7425 = vsel %vm7366, %v6789, 0
      %v7427 = vsel %vm7366, %v6790, 0
      %v7429 = vsel %vm7366, %v6791, 0
      %v7431 = vsel %vm7366, %v6792, 0
      %v7433 = vsel %vm7366, %v6793, 0
      %v7435 = vsel %vm7366, %v6794, 0
      %v7437 = vsel %vm7366, %v6795, 0
      %v7439 = vsel %vm7366, %v6796, 0
      %v7441 = vsel %vm7366, %v6797, 0
      %v7443 = vsel %vm7366, %v6798, 0
      %v7445 = vsel %vm7366, %v6799, 0
      %v7447 = vsel %vm7366, %v6800, 0
      %v7449 = vsel %vm7366, %v6801, 0
      %v7451 = vsel %vm7366, %v6802, 0
      %v7453 = vsel %vm7366, %v6803, 0
      %v7455 = vsel %vm7366, %v6804, 0
      %v7457 = vsel %vm7366, %v6805, 0
      %v7459 = vsel %vm7366, %v6806, 0
      %v7461 = vsel %vm7366, %v6807, 0
      %v7463 = vsel %vm7366, %v6808, 0
      %v7465 = vsel %vm7366, %v6809, 0
      %v7467 = vsel %vm7366, %v6810, 0
      %v7469 = vsel %vm7366, %v6811, 0
      %v7471 = vsel %vm7366, %v6812, 0
      %v7473 = vsel %vm7366, %v6813, 0
      %v7475 = vsel %vm7366, %v6814, 0
      %v7477 = vsel %vm7366, %v6815, 0
      %v7479 = vsel %vm7366, %v6816, 0
      %v7481 = vsel %vm7366, %v6817, 0
      %v7483 = vsel %vm7366, %v6818, 0
      %v7485 = vsel %vm7366, %v6819, 0
      %v7487 = vsel %vm7366, %v6820, 0
      %v7489 = vsel %vm7366, %v6821, 0
      %v7491 = vsel %vm7366, %v6822, 0
      %v7493 = vsel %vm7366, %v6823, 0
      %7495 = vmatprep.subr.mxu0 %v7145
      %7496 = vmatpush1.msra.mxu0 %v7144
      %7497 = vmatprep.subr.mxu0 %v7147
      %7498 = vmatpush1.msra.mxu0 %v7146
      %7499 = vmatprep.subr.mxu0 %v7149
      %7500 = vmatpush1.msra.mxu0 %v7148
      %7501 = vmatprep.subr.mxu0 %v7151
      %7502 = vmatpush1.msra.mxu0 %v7150
      %7503 = vmatprep.subr.mxu0 %v7153
      %7504 = vmatpush1.msra.mxu0 %v7152
      %7505 = vmatprep.subr.mxu0 %v7155
      %7506 = vmatpush1.msra.mxu0 %v7154
      %7507 = vmatprep.subr.mxu0 %v7157
      %7508 = vmatpush1.msra.mxu0 %v7156
      %7509 = vmatprep.subr.mxu0 %v7159
      %7510 = vmatpush1.msra.mxu0 %v7158
      %7511 = vmatprep.subr.mxu0 %v7161
      %7512 = vmatpush1.msra.mxu0 %v7160
      %7513 = vmatprep.subr.mxu0 %v7163
      %7514 = vmatpush1.msra.mxu0 %v7162
      %7515 = vmatprep.subr.mxu0 %v7165
      %7516 = vmatpush1.msra.mxu0 %v7164
      %7517 = vmatprep.subr.mxu0 %v7167
      %7518 = vmatpush1.msra.mxu0 %v7166
      %7519 = vmatprep.subr.mxu0 %v7169
      %7520 = vmatpush1.msra.mxu0 %v7168
      %7521 = vmatprep.subr.mxu0 %v7171
      %7522 = vmatpush1.msra.mxu0 %v7170
      %7523 = vmatprep.subr.mxu0 %v7173
      %7524 = vmatpush1.msra.mxu0 %v7172
      %7525 = vmatprep.subr.mxu0 %v7175
      %7526 = vmatpush1.msra.mxu0 %v7174
      %7527 = vmatprep.subr.mxu0 %v7177
      %7528 = vmatpush1.msra.mxu0 %v7176
      %7529 = vmatprep.subr.mxu0 %v7179
      %7530 = vmatpush1.msra.mxu0 %v7178
      %7531 = vmatprep.subr.mxu0 %v7181
      %7532 = vmatpush1.msra.mxu0 %v7180
      %7533 = vmatprep.subr.mxu0 %v7183
      %7534 = vmatpush1.msra.mxu0 %v7182
      %7535 = vmatprep.subr.mxu0 %v7185
      %7536 = vmatpush1.msra.mxu0 %v7184
      %7537 = vmatprep.subr.mxu0 %v7187
      %7538 = vmatpush1.msra.mxu0 %v7186
      %7539 = vmatprep.subr.mxu0 %v7189
      %7540 = vmatpush1.msra.mxu0 %v7188
      %7541 = vmatprep.subr.mxu0 %v7191
      %7542 = vmatpush1.msra.mxu0 %v7190
      %7543 = vmatprep.subr.mxu0 %v7193
      %7544 = vmatpush1.msra.mxu0 %v7192
      %7545 = vmatprep.subr.mxu0 %v7195
      %7546 = vmatpush1.msra.mxu0 %v7194
      %7547 = vmatprep.subr.mxu0 %v7197
      %7548 = vmatpush1.msra.mxu0 %v7196
      %7549 = vmatprep.subr.mxu0 %v7199
      %7550 = vmatpush1.msra.mxu0 %v7198
      %7551 = vmatprep.subr.mxu0 %v7201
      %7552 = vmatpush1.msra.mxu0 %v7200
      %7553 = vmatprep.subr.mxu0 %v7203
      %7554 = vmatpush1.msra.mxu0 %v7202
      %7555 = vmatprep.subr.mxu0 %v7205
      %7556 = vmatpush1.msra.mxu0 %v7204
      %7557 = vmatprep.subr.mxu0 %v7207
      %7558 = vmatpush1.msra.mxu0 %v7206
      %7559 = vmatprep.mubr.f32.mxu0 %v6888
      %7560 = vmatmul.mubr.f32.gmra.mrb[0].mxu0 %v4050
      %v7561 = vpop.f32.mrb[0].mxu0
      %v7562 = vadd.f32 %v7359, %v7561
      %v7563 = vpop.f32.mrb[0].mxu0
      %v7564 = vadd.f32 %v7363, %v7563
      %7565 = vmatprep.mubr.f32.mxu0 %v6889
      %7566 = vmatmul.mubr.f32.gmra.mrb[0].mxu0 %v4052
      %v7567 = vpop.f32.mrb[0].mxu0
      %v7568 = vadd.f32 %v7359, %v7567
      %v7569 = vpop.f32.mrb[0].mxu0
      %v7570 = vadd.f32 %v7363, %v7569
      %7571 = vmatprep.mubr.f32.mxu0 %v6890
      %7572 = vmatmul.mubr.f32.gmra.mrb[0].mxu0 %v4054
      %v7573 = vpop.f32.mrb[0].mxu0
      %v7574 = vadd.f32 %v7359, %v7573
      %v7575 = vpop.f32.mrb[0].mxu0
      %v7576 = vadd.f32 %v7363, %v7575
      %7577 = vmatprep.mubr.f32.mxu0 %v6891
      %7578 = vmatmul.mubr.f32.gmra.mrb[0].mxu0 %v4056
      %v7579 = vpop.f32.mrb[0].mxu0
      %v7580 = vadd.f32 %v7359, %v7579
      %v7581 = vpop.f32.mrb[0].mxu0
      %v7582 = vadd.f32 %v7363, %v7581
      %7583 = vmatprep.mubr.f32.mxu0 %v6892
      %7584 = vmatmul.mubr.f32.gmra.mrb[0].mxu0 %v4058
      %v7585 = vpop.f32.mrb[0].mxu0
      %v7586 = vadd.f32 %v7359, %v7585
      %v7587 = vpop.f32.mrb[0].mxu0
      %v7588 = vadd.f32 %v7363, %v7587
      %7589 = vmatprep.mubr.f32.mxu0 %v6893
      %7590 = vmatmul.mubr.f32.gmra.mrb[0].mxu0 %v4060
      %v7591 = vpop.f32.mrb[0].mxu0
      %v7592 = vadd.f32 %v7359, %v7591
      %v7593 = vpop.f32.mrb[0].mxu0
      %v7594 = vadd.f32 %v7363, %v7593
      %7595 = vmatprep.mubr.f32.mxu0 %v6894
      %7596 = vmatmul.mubr.f32.gmra.mrb[0].mxu0 %v4062
      %v7597 = vpop.f32.mrb[0].mxu0
      %v7598 = vadd.f32 %v7359, %v7597
      %v7599 = vpop.f32.mrb[0].mxu0
      %v7600 = vadd.f32 %v7363, %v7599
      %7601 = vmatprep.mubr.f32.mxu0 %v6895
      %7602 = vmatmul.mubr.f32.gmra.mrb[0].mxu0 %v4064
      %v7603 = vpop.f32.mrb[0].mxu0
      %v7604 = vadd.f32 %v7359, %v7603
      %v7605 = vpop.f32.mrb[0].mxu0
      %v7606 = vadd.f32 %v7363, %v7605
      %7607 = vmatprep.mubr.f32.mxu0 %v6896
      %7608 = vmatmul.mubr.f32.gmra.mrb[0].mxu0 %v4066
      %v7609 = vpop.f32.mrb[0].mxu0
      %v7610 = vadd.f32 %v7359, %v7609
      %v7611 = vpop.f32.mrb[0].mxu0
      %v7612 = vadd.f32 %v7363, %v7611
      %7613 = vmatprep.mubr.f32.mxu0 %v6897
      %7614 = vmatmul.mubr.f32.gmra.mrb[0].mxu0 %v4068
      %v7615 = vpop.f32.mrb[0].mxu0
      %v7616 = vadd.f32 %v7359, %v7615
      %v7617 = vpop.f32.mrb[0].mxu0
      %v7618 = vadd.f32 %v7363, %v7617
      %7619 = vmatprep.mubr.f32.mxu0 %v6898
      %7620 = vmatmul.mubr.f32.gmra.mrb[0].mxu0 %v4070
      %v7621 = vpop.f32.mrb[0].mxu0
      %v7622 = vadd.f32 %v7359, %v7621
      %v7623 = vpop.f32.mrb[0].mxu0
      %v7624 = vadd.f32 %v7363, %v7623
      %7625 = vmatprep.mubr.f32.mxu0 %v6899
      %7626 = vmatmul.mubr.f32.gmra.mrb[0].mxu0 %v4072
      %v7627 = vpop.f32.mrb[0].mxu0
      %v7628 = vadd.f32 %v7359, %v7627
      %v7629 = vpop.f32.mrb[0].mxu0
      %v7630 = vadd.f32 %v7363, %v7629
      %7631 = vmatprep.mubr.f32.mxu0 %v6900
      %7632 = vmatmul.mubr.f32.gmra.mrb[0].mxu0 %v4074
      %v7633 = vpop.f32.mrb[0].mxu0
      %v7634 = vadd.f32 %v7359, %v7633
      %v7635 = vpop.f32.mrb[0].mxu0
      %v7636 = vadd.f32 %v7363, %v7635
      %7637 = vmatprep.mubr.f32.mxu0 %v6901
      %7638 = vmatmul.mubr.f32.gmra.mrb[0].mxu0 %v4076
      %v7639 = vpop.f32.mrb[0].mxu0
      %v7640 = vadd.f32 %v7359, %v7639
      %v7641 = vpop.f32.mrb[0].mxu0
      %v7642 = vadd.f32 %v7363, %v7641
      %7643 = vmatprep.mubr.f32.mxu0 %v6902
      %7644 = vmatmul.mubr.f32.gmra.mrb[0].mxu0 %v4078
      %v7645 = vpop.f32.mrb[0].mxu0
      %v7646 = vadd.f32 %v7359, %v7645
      %v7647 = vpop.f32.mrb[0].mxu0
      %v7648 = vadd.f32 %v7363, %v7647
      %7649 = vmatprep.mubr.f32.mxu0 %v6903
      %7650 = vmatmul.mubr.f32.gmra.mrb[0].mxu0 %v4080
      %v7651 = vpop.f32.mrb[0].mxu0
      %v7652 = vadd.f32 %v7359, %v7651
      %v7653 = vpop.f32.mrb[0].mxu0
      %v7654 = vadd.f32 %v7363, %v7653
      %7655 = vmatprep.mubr.f32.mxu0 %v6904
      %7656 = vmatmul.mubr.f32.gmra.mrb[0].mxu0 %v4082
      %v7657 = vpop.f32.mrb[0].mxu0
      %v7658 = vadd.f32 %v7359, %v7657
      %v7659 = vpop.f32.mrb[0].mxu0
      %v7660 = vadd.f32 %v7363, %v7659
      %7661 = vmatprep.mubr.f32.mxu0 %v6905
      %7662 = vmatmul.mubr.f32.gmra.mrb[0].mxu0 %v4084
      %v7663 = vpop.f32.mrb[0].mxu0
      %v7664 = vadd.f32 %v7359, %v7663
      %v7665 = vpop.f32.mrb[0].mxu0
      %v7666 = vadd.f32 %v7363, %v7665
      %7667 = vmatprep.mubr.f32.mxu0 %v6906
      %7668 = vmatmul.mubr.f32.gmra.mrb[0].mxu0 %v4086
      %v7669 = vpop.f32.mrb[0].mxu0
      %v7670 = vadd.f32 %v7359, %v7669
      %v7671 = vpop.f32.mrb[0].mxu0
      %v7672 = vadd.f32 %v7363, %v7671
      %7673 = vmatprep.mubr.f32.mxu0 %v6907
      %7674 = vmatmul.mubr.f32.gmra.mrb[0].mxu0 %v4088
      %v7675 = vpop.f32.mrb[0].mxu0
      %v7676 = vadd.f32 %v7359, %v7675
      %v7677 = vpop.f32.mrb[0].mxu0
      %v7678 = vadd.f32 %v7363, %v7677
      %7679 = vmatprep.mubr.f32.mxu0 %v6908
      %7680 = vmatmul.mubr.f32.gmra.mrb[0].mxu0 %v4090
      %v7681 = vpop.f32.mrb[0].mxu0
      %v7682 = vadd.f32 %v7359, %v7681
      %v7683 = vpop.f32.mrb[0].mxu0
      %v7684 = vadd.f32 %v7363, %v7683
      %7685 = vmatprep.mubr.f32.mxu0 %v6909
      %7686 = vmatmul.mubr.f32.gmra.mrb[0].mxu0 %v4092
      %v7687 = vpop.f32.mrb[0].mxu0
      %v7688 = vadd.f32 %v7359, %v7687
      %v7689 = vpop.f32.mrb[0].mxu0
      %v7690 = vadd.f32 %v7363, %v7689
      %7691 = vmatprep.mubr.f32.mxu0 %v6910
      %7692 = vmatmul.mubr.f32.gmra.mrb[0].mxu0 %v4094
      %v7693 = vpop.f32.mrb[0].mxu0
      %v7694 = vadd.f32 %v7359, %v7693
      %v7695 = vpop.f32.mrb[0].mxu0
      %v7696 = vadd.f32 %v7363, %v7695
      %7697 = vmatprep.mubr.f32.mxu0 %v6911
      %7698 = vmatmul.mubr.f32.gmra.mrb[0].mxu0 %v4096
      %v7699 = vpop.f32.mrb[0].mxu0
      %v7700 = vadd.f32 %v7359, %v7699
      %v7701 = vpop.f32.mrb[0].mxu0
      %v7702 = vadd.f32 %v7363, %v7701
      %7703 = vmatprep.mubr.f32.mxu0 %v6912
      %7704 = vmatmul.mubr.f32.gmra.mrb[0].mxu0 %v4098
      %v7705 = vpop.f32.mrb[0].mxu0
      %v7706 = vadd.f32 %v7359, %v7705
      %v7707 = vpop.f32.mrb[0].mxu0
      %v7708 = vadd.f32 %v7363, %v7707
      %7709 = vmatprep.mubr.f32.mxu0 %v6913
      %7710 = vmatmul.mubr.f32.gmra.mrb[0].mxu0 %v4100
      %v7711 = vpop.f32.mrb[0].mxu0
      %v7712 = vadd.f32 %v7359, %v7711
      %v7713 = vpop.f32.mrb[0].mxu0
      %v7714 = vadd.f32 %v7363, %v7713
      %7715 = vmatprep.mubr.f32.mxu0 %v6914
      %7716 = vmatmul.mubr.f32.gmra.mrb[0].mxu0 %v4102
      %v7717 = vpop.f32.mrb[0].mxu0
      %v7718 = vadd.f32 %v7359, %v7717
      %v7719 = vpop.f32.mrb[0].mxu0
      %v7720 = vadd.f32 %v7363, %v7719
      %7721 = vmatprep.mubr.f32.mxu0 %v6915
      %7722 = vmatmul.mubr.f32.gmra.mrb[0].mxu0 %v4104
      %v7723 = vpop.f32.mrb[0].mxu0
      %v7724 = vadd.f32 %v7359, %v7723
      %v7725 = vpop.f32.mrb[0].mxu0
      %v7726 = vadd.f32 %v7363, %v7725
      %7727 = vmatprep.mubr.f32.mxu0 %v6916
      %7728 = vmatmul.mubr.f32.gmra.mrb[0].mxu0 %v4106
      %v7729 = vpop.f32.mrb[0].mxu0
      %v7730 = vadd.f32 %v7359, %v7729
      %v7731 = vpop.f32.mrb[0].mxu0
      %v7732 = vadd.f32 %v7363, %v7731
      %7733 = vmatprep.mubr.f32.mxu0 %v6917
      %7734 = vmatmul.mubr.f32.gmra.mrb[0].mxu0 %v4108
      %v7735 = vpop.f32.mrb[0].mxu0
      %v7736 = vadd.f32 %v7359, %v7735
      %v7737 = vpop.f32.mrb[0].mxu0
      %v7738 = vadd.f32 %v7363, %v7737
      %7739 = vmatprep.mubr.f32.mxu0 %v6918
      %7740 = vmatmul.mubr.f32.gmra.mrb[0].mxu0 %v4110
      %v7741 = vpop.f32.mrb[0].mxu0
      %v7742 = vadd.f32 %v7359, %v7741
      %v7743 = vpop.f32.mrb[0].mxu0
      %v7744 = vadd.f32 %v7363, %v7743
      %7745 = vmatprep.mubr.f32.mxu0 %v6919
      %7746 = vmatmul.mubr.f32.gmra.mrb[0].mxu0 %v4112
      %v7747 = vpop.f32.mrb[0].mxu0
      %v7748 = vadd.f32 %v7359, %v7747
      %v7749 = vpop.f32.mrb[0].mxu0
      %v7750 = vadd.f32 %v7363, %v7749
      %7751 = vmatprep.mubr.f32.mxu0 %v6920
      %7752 = vmatmul.mubr.f32.gmra.mrb[0].mxu0 %v4114
      %v7753 = vpop.f32.mrb[0].mxu0
      %v7754 = vadd.f32 %v7359, %v7753
      %v7755 = vpop.f32.mrb[0].mxu0
      %v7756 = vadd.f32 %v7363, %v7755
      %7757 = vmatprep.mubr.f32.mxu0 %v6921
      %7758 = vmatmul.mubr.f32.gmra.mrb[0].mxu0 %v4116
      %v7759 = vpop.f32.mrb[0].mxu0
      %v7760 = vadd.f32 %v7359, %v7759
      %v7761 = vpop.f32.mrb[0].mxu0
      %v7762 = vadd.f32 %v7363, %v7761
      %7763 = vmatprep.mubr.f32.mxu0 %v6922
      %7764 = vmatmul.mubr.f32.gmra.mrb[0].mxu0 %v4118
      %v7765 = vpop.f32.mrb[0].mxu0
      %v7766 = vadd.f32 %v7359, %v7765
      %v7767 = vpop.f32.mrb[0].mxu0
      %v7768 = vadd.f32 %v7363, %v7767
      %7769 = vmatprep.mubr.f32.mxu0 %v6923
      %7770 = vmatmul.mubr.f32.gmra.mrb[0].mxu0 %v4120
      %v7771 = vpop.f32.mrb[0].mxu0
      %v7772 = vadd.f32 %v7359, %v7771
      %v7773 = vpop.f32.mrb[0].mxu0
      %v7774 = vadd.f32 %v7363, %v7773
      %7775 = vmatprep.mubr.f32.mxu0 %v6924
      %7776 = vmatmul.mubr.f32.gmra.mrb[0].mxu0 %v4122
      %v7777 = vpop.f32.mrb[0].mxu0
      %v7778 = vadd.f32 %v7359, %v7777
      %v7779 = vpop.f32.mrb[0].mxu0
      %v7780 = vadd.f32 %v7363, %v7779
      %7781 = vmatprep.mubr.f32.mxu0 %v6925
      %7782 = vmatmul.mubr.f32.gmra.mrb[0].mxu0 %v4124
      %v7783 = vpop.f32.mrb[0].mxu0
      %v7784 = vadd.f32 %v7359, %v7783
      %v7785 = vpop.f32.mrb[0].mxu0
      %v7786 = vadd.f32 %v7363, %v7785
      %7787 = vmatprep.mubr.f32.mxu0 %v6926
      %7788 = vmatmul.mubr.f32.gmra.mrb[0].mxu0 %v4126
      %v7789 = vpop.f32.mrb[0].mxu0
      %v7790 = vadd.f32 %v7359, %v7789
      %v7791 = vpop.f32.mrb[0].mxu0
      %v7792 = vadd.f32 %v7363, %v7791
      %7793 = vmatprep.mubr.f32.mxu0 %v6927
      %7794 = vmatmul.mubr.f32.gmra.mrb[0].mxu0 %v4128
      %v7795 = vpop.f32.mrb[0].mxu0
      %v7796 = vadd.f32 %v7359, %v7795
      %v7797 = vpop.f32.mrb[0].mxu0
      %v7798 = vadd.f32 %v7363, %v7797
      %7799 = vmatprep.mubr.f32.mxu0 %v6928
      %7800 = vmatmul.mubr.f32.gmra.mrb[0].mxu0 %v4130
      %v7801 = vpop.f32.mrb[0].mxu0
      %v7802 = vadd.f32 %v7359, %v7801
      %v7803 = vpop.f32.mrb[0].mxu0
      %v7804 = vadd.f32 %v7363, %v7803
      %7805 = vmatprep.mubr.f32.mxu0 %v6929
      %7806 = vmatmul.mubr.f32.gmra.mrb[0].mxu0 %v4132
      %v7807 = vpop.f32.mrb[0].mxu0
      %v7808 = vadd.f32 %v7359, %v7807
      %v7809 = vpop.f32.mrb[0].mxu0
      %v7810 = vadd.f32 %v7363, %v7809
      %7811 = vmatprep.mubr.f32.mxu0 %v6930
      %7812 = vmatmul.mubr.f32.gmra.mrb[0].mxu0 %v4134
      %v7813 = vpop.f32.mrb[0].mxu0
      %v7814 = vadd.f32 %v7359, %v7813
      %v7815 = vpop.f32.mrb[0].mxu0
      %v7816 = vadd.f32 %v7363, %v7815
      %7817 = vmatprep.mubr.f32.mxu0 %v6931
      %7818 = vmatmul.mubr.f32.gmra.mrb[0].mxu0 %v4136
      %v7819 = vpop.f32.mrb[0].mxu0
      %v7820 = vadd.f32 %v7359, %v7819
      %v7821 = vpop.f32.mrb[0].mxu0
      %v7822 = vadd.f32 %v7363, %v7821
      %7823 = vmatprep.mubr.f32.mxu0 %v6932
      %7824 = vmatmul.mubr.f32.gmra.mrb[0].mxu0 %v4138
      %v7825 = vpop.f32.mrb[0].mxu0
      %v7826 = vadd.f32 %v7359, %v7825
      %v7827 = vpop.f32.mrb[0].mxu0
      %v7828 = vadd.f32 %v7363, %v7827
      %7829 = vmatprep.mubr.f32.mxu0 %v6933
      %7830 = vmatmul.mubr.f32.gmra.mrb[0].mxu0 %v4140
      %v7831 = vpop.f32.mrb[0].mxu0
      %v7832 = vadd.f32 %v7359, %v7831
      %v7833 = vpop.f32.mrb[0].mxu0
      %v7834 = vadd.f32 %v7363, %v7833
      %7835 = vmatprep.mubr.f32.mxu0 %v6934
      %7836 = vmatmul.mubr.f32.gmra.mrb[0].mxu0 %v4142
      %v7837 = vpop.f32.mrb[0].mxu0
      %v7838 = vadd.f32 %v7359, %v7837
      %v7839 = vpop.f32.mrb[0].mxu0
      %v7840 = vadd.f32 %v7363, %v7839
      %7841 = vmatprep.mubr.f32.mxu0 %v6935
      %7842 = vmatmul.mubr.f32.gmra.mrb[0].mxu0 %v4144
      %v7843 = vpop.f32.mrb[0].mxu0
      %v7844 = vadd.f32 %v7359, %v7843
      %v7845 = vpop.f32.mrb[0].mxu0
      %v7846 = vadd.f32 %v7363, %v7845
      %7847 = vmatprep.mubr.f32.mxu0 %v6936
      %7848 = vmatmul.mubr.f32.gmra.mrb[0].mxu0 %v4146
      %v7849 = vpop.f32.mrb[0].mxu0
      %v7850 = vadd.f32 %v7359, %v7849
      %v7851 = vpop.f32.mrb[0].mxu0
      %v7852 = vadd.f32 %v7363, %v7851
      %7853 = vmatprep.mubr.f32.mxu0 %v6937
      %7854 = vmatmul.mubr.f32.gmra.mrb[0].mxu0 %v4148
      %v7855 = vpop.f32.mrb[0].mxu0
      %v7856 = vadd.f32 %v7359, %v7855
      %v7857 = vpop.f32.mrb[0].mxu0
      %v7858 = vadd.f32 %v7363, %v7857
      %7859 = vmatprep.mubr.f32.mxu0 %v6938
      %7860 = vmatmul.mubr.f32.gmra.mrb[0].mxu0 %v4150
      %v7861 = vpop.f32.mrb[0].mxu0
      %v7862 = vadd.f32 %v7359, %v7861
      %v7863 = vpop.f32.mrb[0].mxu0
      %v7864 = vadd.f32 %v7363, %v7863
      %7865 = vmatprep.mubr.f32.mxu0 %v6939
      %7866 = vmatmul.mubr.f32.gmra.mrb[0].mxu0 %v4152
      %v7867 = vpop.f32.mrb[0].mxu0
      %v7868 = vadd.f32 %v7359, %v7867
      %v7869 = vpop.f32.mrb[0].mxu0
      %v7870 = vadd.f32 %v7363, %v7869
      %7871 = vmatprep.mubr.f32.mxu0 %v6940
      %7872 = vmatmul.mubr.f32.gmra.mrb[0].mxu0 %v4154
      %v7873 = vpop.f32.mrb[0].mxu0
      %v7874 = vadd.f32 %v7359, %v7873
      %v7875 = vpop.f32.mrb[0].mxu0
      %v7876 = vadd.f32 %v7363, %v7875
      %7877 = vmatprep.mubr.f32.mxu0 %v6941
      %7878 = vmatmul.mubr.f32.gmra.mrb[0].mxu0 %v4156
      %v7879 = vpop.f32.mrb[0].mxu0
      %v7880 = vadd.f32 %v7359, %v7879
      %v7881 = vpop.f32.mrb[0].mxu0
      %v7882 = vadd.f32 %v7363, %v7881
      %7883 = vmatprep.mubr.f32.mxu0 %v6942
      %7884 = vmatmul.mubr.f32.gmra.mrb[0].mxu0 %v4158
      %v7885 = vpop.f32.mrb[0].mxu0
      %v7886 = vadd.f32 %v7359, %v7885
      %v7887 = vpop.f32.mrb[0].mxu0
      %v7888 = vadd.f32 %v7363, %v7887
      %7889 = vmatprep.mubr.f32.mxu0 %v6943
      %7890 = vmatmul.mubr.f32.gmra.mrb[0].mxu0 %v4160
      %v7891 = vpop.f32.mrb[0].mxu0
      %v7892 = vadd.f32 %v7359, %v7891
      %v7893 = vpop.f32.mrb[0].mxu0
      %v7894 = vadd.f32 %v7363, %v7893
      %7895 = vmatprep.mubr.f32.mxu0 %v6944
      %7896 = vmatmul.mubr.f32.gmra.mrb[0].mxu0 %v4162
      %v7897 = vpop.f32.mrb[0].mxu0
      %v7898 = vadd.f32 %v7359, %v7897
      %v7899 = vpop.f32.mrb[0].mxu0
      %v7900 = vadd.f32 %v7363, %v7899
      %7901 = vmatprep.mubr.f32.mxu0 %v6945
      %7902 = vmatmul.mubr.f32.gmra.mrb[0].mxu0 %v4164
      %v7903 = vpop.f32.mrb[0].mxu0
      %v7904 = vadd.f32 %v7359, %v7903
      %v7905 = vpop.f32.mrb[0].mxu0
      %v7906 = vadd.f32 %v7363, %v7905
      %7907 = vmatprep.mubr.f32.mxu0 %v6946
      %7908 = vmatmul.mubr.f32.gmra.mrb[0].mxu0 %v4166
      %v7909 = vpop.f32.mrb[0].mxu0
      %v7910 = vadd.f32 %v7359, %v7909
      %v7911 = vpop.f32.mrb[0].mxu0
      %v7912 = vadd.f32 %v7363, %v7911
      %7913 = vmatprep.mubr.f32.mxu0 %v6947
      %7914 = vmatmul.mubr.f32.gmra.mrb[0].mxu0 %v4168
      %v7915 = vpop.f32.mrb[0].mxu0
      %v7916 = vadd.f32 %v7359, %v7915
      %v7917 = vpop.f32.mrb[0].mxu0
      %v7918 = vadd.f32 %v7363, %v7917
      %7919 = vmatprep.mubr.f32.mxu0 %v6948
      %7920 = vmatmul.mubr.f32.gmra.mrb[0].mxu0 %v4170
      %v7921 = vpop.f32.mrb[0].mxu0
      %v7922 = vadd.f32 %v7359, %v7921
      %v7923 = vpop.f32.mrb[0].mxu0
      %v7924 = vadd.f32 %v7363, %v7923
      %7925 = vmatprep.mubr.f32.mxu0 %v6949
      %7926 = vmatmul.mubr.f32.gmra.mrb[0].mxu0 %v4172
      %v7927 = vpop.f32.mrb[0].mxu0
      %v7928 = vadd.f32 %v7359, %v7927
      %v7929 = vpop.f32.mrb[0].mxu0
      %v7930 = vadd.f32 %v7363, %v7929
      %7931 = vmatprep.mubr.f32.mxu0 %v6950
      %7932 = vmatmul.mubr.f32.gmra.mrb[0].mxu0 %v4174
      %v7933 = vpop.f32.mrb[0].mxu0
      %v7934 = vadd.f32 %v7359, %v7933
      %v7935 = vpop.f32.mrb[0].mxu0
      %v7936 = vadd.f32 %v7363, %v7935
      %7937 = vmatprep.mubr.f32.mxu0 %v6951
      %7938 = vmatmul.mubr.f32.gmra.mrb[0].mxu0 %v4176
      %v7939 = vpop.f32.mrb[0].mxu0
      %v7940 = vadd.f32 %v7359, %v7939
      %v7941 = vpop.f32.mrb[0].mxu0
      %v7942 = vadd.f32 %v7363, %v7941
      %7943 = vdwg.mxu0
      %7944 = vmatprep.subr.mxu0 %v7209
      %7945 = vmatpush1.msra.mxu0 %v7208
      %7946 = vmatprep.subr.mxu0 %v7211
      %7947 = vmatpush1.msra.mxu0 %v7210
      %7948 = vmatprep.subr.mxu0 %v7213
      %7949 = vmatpush1.msra.mxu0 %v7212
      %7950 = vmatprep.subr.mxu0 %v7215
      %7951 = vmatpush1.msra.mxu0 %v7214
      %7952 = vmatprep.subr.mxu0 %v7217
      %7953 = vmatpush1.msra.mxu0 %v7216
      %7954 = vmatprep.subr.mxu0 %v7219
      %7955 = vmatpush1.msra.mxu0 %v7218
      %7956 = vmatprep.subr.mxu0 %v7221
      %7957 = vmatpush1.msra.mxu0 %v7220
      %7958 = vmatprep.subr.mxu0 %v7223
      %7959 = vmatpush1.msra.mxu0 %v7222
      %7960 = vmatprep.subr.mxu0 %v7225
      %7961 = vmatpush1.msra.mxu0 %v7224
      %7962 = vmatprep.subr.mxu0 %v7227
      %7963 = vmatpush1.msra.mxu0 %v7226
      %7964 = vmatprep.subr.mxu0 %v7229
      %7965 = vmatpush1.msra.mxu0 %v7228
      %7966 = vmatprep.subr.mxu0 %v7231
      %7967 = vmatpush1.msra.mxu0 %v7230
      %7968 = vmatprep.subr.mxu0 %v7233
      %7969 = vmatpush1.msra.mxu0 %v7232
      %7970 = vmatprep.subr.mxu0 %v7235
      %7971 = vmatpush1.msra.mxu0 %v7234
      %7972 = vmatprep.subr.mxu0 %v7237
      %7973 = vmatpush1.msra.mxu0 %v7236
      %7974 = vmatprep.subr.mxu0 %v7239
      %7975 = vmatpush1.msra.mxu0 %v7238
      %7976 = vmatprep.subr.mxu0 %v7241
      %7977 = vmatpush1.msra.mxu0 %v7240
      %7978 = vmatprep.subr.mxu0 %v7243
      %7979 = vmatpush1.msra.mxu0 %v7242
      %7980 = vmatprep.subr.mxu0 %v7245
      %7981 = vmatpush1.msra.mxu0 %v7244
      %7982 = vmatprep.subr.mxu0 %v7247
      %7983 = vmatpush1.msra.mxu0 %v7246
      %7984 = vmatprep.subr.mxu0 %v7249
      %7985 = vmatpush1.msra.mxu0 %v7248
      %7986 = vmatprep.subr.mxu0 %v7251
      %7987 = vmatpush1.msra.mxu0 %v7250
      %7988 = vmatprep.subr.mxu0 %v7253
      %7989 = vmatpush1.msra.mxu0 %v7252
      %7990 = vmatprep.subr.mxu0 %v7255
      %7991 = vmatpush1.msra.mxu0 %v7254
      %7992 = vmatprep.subr.mxu0 %v7257
      %7993 = vmatpush1.msra.mxu0 %v7256
      %7994 = vmatprep.subr.mxu0 %v7259
      %7995 = vmatpush1.msra.mxu0 %v7258
      %7996 = vmatprep.subr.mxu0 %v7261
      %7997 = vmatpush1.msra.mxu0 %v7260
      %7998 = vmatprep.subr.mxu0 %v7263
      %7999 = vmatpush1.msra.mxu0 %v7262
      %8000 = vmatprep.subr.mxu0 %v7265
      %8001 = vmatpush1.msra.mxu0 %v7264
      %8002 = vmatprep.subr.mxu0 %v7267
      %8003 = vmatpush1.msra.mxu0 %v7266
      %8004 = vmatprep.subr.mxu0 %v7269
      %8005 = vmatpush1.msra.mxu0 %v7268
      %8006 = vmatprep.subr.mxu0 %v7271
      %8007 = vmatpush1.msra.mxu0 %v7270
      %8008 = vmatprep.mubr.f32.mxu0 %v7016
      %8009 = vmatmul.mubr.f32.gmra.mrb[0].mxu0 %v6952
      %v8010 = vpop.f32.mrb[0].mxu0
      %v8011 = vadd.f32 %v7562, %v8010
      %v8012 = vpop.f32.mrb[0].mxu0
      %v8013 = vadd.f32 %v7564, %v8012
      %8014 = vmatprep.mubr.f32.mxu0 %v7017
      %8015 = vmatmul.mubr.f32.gmra.mrb[0].mxu0 %v6953
      %v8016 = vpop.f32.mrb[0].mxu0
      %v8017 = vadd.f32 %v7568, %v8016
      %v8018 = vpop.f32.mrb[0].mxu0
      %v8019 = vadd.f32 %v7570, %v8018
      %8020 = vmatprep.mubr.f32.mxu0 %v7018
      %8021 = vmatmul.mubr.f32.gmra.mrb[0].mxu0 %v6954
      %v8022 = vpop.f32.mrb[0].mxu0
      %v8023 = vadd.f32 %v7574, %v8022
      %v8024 = vpop.f32.mrb[0].mxu0
      %v8025 = vadd.f32 %v7576, %v8024
      %8026 = vmatprep.mubr.f32.mxu0 %v7019
      %8027 = vmatmul.mubr.f32.gmra.mrb[0].mxu0 %v6955
      %v8028 = vpop.f32.mrb[0].mxu0
      %v8029 = vadd.f32 %v7580, %v8028
      %v8030 = vpop.f32.mrb[0].mxu0
      %v8031 = vadd.f32 %v7582, %v8030
      %8032 = vmatprep.mubr.f32.mxu0 %v7020
      %8033 = vmatmul.mubr.f32.gmra.mrb[0].mxu0 %v6956
      %v8034 = vpop.f32.mrb[0].mxu0
      %v8035 = vadd.f32 %v7586, %v8034
      %v8036 = vpop.f32.mrb[0].mxu0
      %v8037 = vadd.f32 %v7588, %v8036
      %8038 = vmatprep.mubr.f32.mxu0 %v7021
      %8039 = vmatmul.mubr.f32.gmra.mrb[0].mxu0 %v6957
      %v8040 = vpop.f32.mrb[0].mxu0
      %v8041 = vadd.f32 %v7592, %v8040
      %v8042 = vpop.f32.mrb[0].mxu0
      %v8043 = vadd.f32 %v7594, %v8042
      %8044 = vmatprep.mubr.f32.mxu0 %v7022
      %8045 = vmatmul.mubr.f32.gmra.mrb[0].mxu0 %v6958
      %v8046 = vpop.f32.mrb[0].mxu0
      %v8047 = vadd.f32 %v7598, %v8046
      %v8048 = vpop.f32.mrb[0].mxu0
      %v8049 = vadd.f32 %v7600, %v8048
      %8050 = vmatprep.mubr.f32.mxu0 %v7023
      %8051 = vmatmul.mubr.f32.gmra.mrb[0].mxu0 %v6959
      %v8052 = vpop.f32.mrb[0].mxu0
      %v8053 = vadd.f32 %v7604, %v8052
      %v8054 = vpop.f32.mrb[0].mxu0
      %v8055 = vadd.f32 %v7606, %v8054
      %8056 = vmatprep.mubr.f32.mxu0 %v7024
      %8057 = vmatmul.mubr.f32.gmra.mrb[0].mxu0 %v6960
      %v8058 = vpop.f32.mrb[0].mxu0
      %v8059 = vadd.f32 %v7610, %v8058
      %v8060 = vpop.f32.mrb[0].mxu0
      %v8061 = vadd.f32 %v7612, %v8060
      %8062 = vmatprep.mubr.f32.mxu0 %v7025
      %8063 = vmatmul.mubr.f32.gmra.mrb[0].mxu0 %v6961
      %v8064 = vpop.f32.mrb[0].mxu0
      %v8065 = vadd.f32 %v7616, %v8064
      %v8066 = vpop.f32.mrb[0].mxu0
      %v8067 = vadd.f32 %v7618, %v8066
      %8068 = vmatprep.mubr.f32.mxu0 %v7026
      %8069 = vmatmul.mubr.f32.gmra.mrb[0].mxu0 %v6962
      %v8070 = vpop.f32.mrb[0].mxu0
      %v8071 = vadd.f32 %v7622, %v8070
      %v8072 = vpop.f32.mrb[0].mxu0
      %v8073 = vadd.f32 %v7624, %v8072
      %8074 = vmatprep.mubr.f32.mxu0 %v7027
      %8075 = vmatmul.mubr.f32.gmra.mrb[0].mxu0 %v6963
      %v8076 = vpop.f32.mrb[0].mxu0
      %v8077 = vadd.f32 %v7628, %v8076
      %v8078 = vpop.f32.mrb[0].mxu0
      %v8079 = vadd.f32 %v7630, %v8078
      %8080 = vmatprep.mubr.f32.mxu0 %v7028
      %8081 = vmatmul.mubr.f32.gmra.mrb[0].mxu0 %v6964
      %v8082 = vpop.f32.mrb[0].mxu0
      %v8083 = vadd.f32 %v7634, %v8082
      %v8084 = vpop.f32.mrb[0].mxu0
      %v8085 = vadd.f32 %v7636, %v8084
      %8086 = vmatprep.mubr.f32.mxu0 %v7029
      %8087 = vmatmul.mubr.f32.gmra.mrb[0].mxu0 %v6965
      %v8088 = vpop.f32.mrb[0].mxu0
      %v8089 = vadd.f32 %v7640, %v8088
      %v8090 = vpop.f32.mrb[0].mxu0
      %v8091 = vadd.f32 %v7642, %v8090
      %8092 = vmatprep.mubr.f32.mxu0 %v7030
      %8093 = vmatmul.mubr.f32.gmra.mrb[0].mxu0 %v6966
      %v8094 = vpop.f32.mrb[0].mxu0
      %v8095 = vadd.f32 %v7646, %v8094
      %v8096 = vpop.f32.mrb[0].mxu0
      %v8097 = vadd.f32 %v7648, %v8096
      %8098 = vmatprep.mubr.f32.mxu0 %v7031
      %8099 = vmatmul.mubr.f32.gmra.mrb[0].mxu0 %v6967
      %v8100 = vpop.f32.mrb[0].mxu0
      %v8101 = vadd.f32 %v7652, %v8100
      %v8102 = vpop.f32.mrb[0].mxu0
      %v8103 = vadd.f32 %v7654, %v8102
      %8104 = vmatprep.mubr.f32.mxu0 %v7032
      %8105 = vmatmul.mubr.f32.gmra.mrb[0].mxu0 %v6968
      %v8106 = vpop.f32.mrb[0].mxu0
      %v8107 = vadd.f32 %v7658, %v8106
      %v8108 = vpop.f32.mrb[0].mxu0
      %v8109 = vadd.f32 %v7660, %v8108
      %8110 = vmatprep.mubr.f32.mxu0 %v7033
      %8111 = vmatmul.mubr.f32.gmra.mrb[0].mxu0 %v6969
      %v8112 = vpop.f32.mrb[0].mxu0
      %v8113 = vadd.f32 %v7664, %v8112
      %v8114 = vpop.f32.mrb[0].mxu0
      %v8115 = vadd.f32 %v7666, %v8114
      %8116 = vmatprep.mubr.f32.mxu0 %v7034
      %8117 = vmatmul.mubr.f32.gmra.mrb[0].mxu0 %v6970
      %v8118 = vpop.f32.mrb[0].mxu0
      %v8119 = vadd.f32 %v7670, %v8118
      %v8120 = vpop.f32.mrb[0].mxu0
      %v8121 = vadd.f32 %v7672, %v8120
      %8122 = vmatprep.mubr.f32.mxu0 %v7035
      %8123 = vmatmul.mubr.f32.gmra.mrb[0].mxu0 %v6971
      %v8124 = vpop.f32.mrb[0].mxu0
      %v8125 = vadd.f32 %v7676, %v8124
      %v8126 = vpop.f32.mrb[0].mxu0
      %v8127 = vadd.f32 %v7678, %v8126
      %8128 = vmatprep.mubr.f32.mxu0 %v7036
      %8129 = vmatmul.mubr.f32.gmra.mrb[0].mxu0 %v6972
      %v8130 = vpop.f32.mrb[0].mxu0
      %v8131 = vadd.f32 %v7682, %v8130
      %v8132 = vpop.f32.mrb[0].mxu0
      %v8133 = vadd.f32 %v7684, %v8132
      %8134 = vmatprep.mubr.f32.mxu0 %v7037
      %8135 = vmatmul.mubr.f32.gmra.mrb[0].mxu0 %v6973
      %v8136 = vpop.f32.mrb[0].mxu0
      %v8137 = vadd.f32 %v7688, %v8136
      %v8138 = vpop.f32.mrb[0].mxu0
      %v8139 = vadd.f32 %v7690, %v8138
      %8140 = vmatprep.mubr.f32.mxu0 %v7038
      %8141 = vmatmul.mubr.f32.gmra.mrb[0].mxu0 %v6974
      %v8142 = vpop.f32.mrb[0].mxu0
      %v8143 = vadd.f32 %v7694, %v8142
      %v8144 = vpop.f32.mrb[0].mxu0
      %v8145 = vadd.f32 %v7696, %v8144
      %8146 = vmatprep.mubr.f32.mxu0 %v7039
      %8147 = vmatmul.mubr.f32.gmra.mrb[0].mxu0 %v6975
      %v8148 = vpop.f32.mrb[0].mxu0
      %v8149 = vadd.f32 %v7700, %v8148
      %v8150 = vpop.f32.mrb[0].mxu0
      %v8151 = vadd.f32 %v7702, %v8150
      %8152 = vmatprep.mubr.f32.mxu0 %v7040
      %8153 = vmatmul.mubr.f32.gmra.mrb[0].mxu0 %v6976
      %v8154 = vpop.f32.mrb[0].mxu0
      %v8155 = vadd.f32 %v7706, %v8154
      %v8156 = vpop.f32.mrb[0].mxu0
      %v8157 = vadd.f32 %v7708, %v8156
      %8158 = vmatprep.mubr.f32.mxu0 %v7041
      %8159 = vmatmul.mubr.f32.gmra.mrb[0].mxu0 %v6977
      %v8160 = vpop.f32.mrb[0].mxu0
      %v8161 = vadd.f32 %v7712, %v8160
      %v8162 = vpop.f32.mrb[0].mxu0
      %v8163 = vadd.f32 %v7714, %v8162
      %8164 = vmatprep.mubr.f32.mxu0 %v7042
      %8165 = vmatmul.mubr.f32.gmra.mrb[0].mxu0 %v6978
      %v8166 = vpop.f32.mrb[0].mxu0
      %v8167 = vadd.f32 %v7718, %v8166
      %v8168 = vpop.f32.mrb[0].mxu0
      %v8169 = vadd.f32 %v7720, %v8168
      %8170 = vmatprep.mubr.f32.mxu0 %v7043
      %8171 = vmatmul.mubr.f32.gmra.mrb[0].mxu0 %v6979
      %v8172 = vpop.f32.mrb[0].mxu0
      %v8173 = vadd.f32 %v7724, %v8172
      %v8174 = vpop.f32.mrb[0].mxu0
      %v8175 = vadd.f32 %v7726, %v8174
      %8176 = vmatprep.mubr.f32.mxu0 %v7044
      %8177 = vmatmul.mubr.f32.gmra.mrb[0].mxu0 %v6980
      %v8178 = vpop.f32.mrb[0].mxu0
      %v8179 = vadd.f32 %v7730, %v8178
      %v8180 = vpop.f32.mrb[0].mxu0
      %v8181 = vadd.f32 %v7732, %v8180
      %8182 = vmatprep.mubr.f32.mxu0 %v7045
      %8183 = vmatmul.mubr.f32.gmra.mrb[0].mxu0 %v6981
      %v8184 = vpop.f32.mrb[0].mxu0
      %v8185 = vadd.f32 %v7736, %v8184
      %v8186 = vpop.f32.mrb[0].mxu0
      %v8187 = vadd.f32 %v7738, %v8186
      %8188 = vmatprep.mubr.f32.mxu0 %v7046
      %8189 = vmatmul.mubr.f32.gmra.mrb[0].mxu0 %v6982
      %v8190 = vpop.f32.mrb[0].mxu0
      %v8191 = vadd.f32 %v7742, %v8190
      %v8192 = vpop.f32.mrb[0].mxu0
      %v8193 = vadd.f32 %v7744, %v8192
      %8194 = vmatprep.mubr.f32.mxu0 %v7047
      %8195 = vmatmul.mubr.f32.gmra.mrb[0].mxu0 %v6983
      %v8196 = vpop.f32.mrb[0].mxu0
      %v8197 = vadd.f32 %v7748, %v8196
      %v8198 = vpop.f32.mrb[0].mxu0
      %v8199 = vadd.f32 %v7750, %v8198
      %8200 = vmatprep.mubr.f32.mxu0 %v7048
      %8201 = vmatmul.mubr.f32.gmra.mrb[0].mxu0 %v6984
      %v8202 = vpop.f32.mrb[0].mxu0
      %v8203 = vadd.f32 %v7754, %v8202
      %v8204 = vpop.f32.mrb[0].mxu0
      %v8205 = vadd.f32 %v7756, %v8204
      %8206 = vmatprep.mubr.f32.mxu0 %v7049
      %8207 = vmatmul.mubr.f32.gmra.mrb[0].mxu0 %v6985
      %v8208 = vpop.f32.mrb[0].mxu0
      %v8209 = vadd.f32 %v7760, %v8208
      %v8210 = vpop.f32.mrb[0].mxu0
      %v8211 = vadd.f32 %v7762, %v8210
      %8212 = vmatprep.mubr.f32.mxu0 %v7050
      %8213 = vmatmul.mubr.f32.gmra.mrb[0].mxu0 %v6986
      %v8214 = vpop.f32.mrb[0].mxu0
      %v8215 = vadd.f32 %v7766, %v8214
      %v8216 = vpop.f32.mrb[0].mxu0
      %v8217 = vadd.f32 %v7768, %v8216
      %8218 = vmatprep.mubr.f32.mxu0 %v7051
      %8219 = vmatmul.mubr.f32.gmra.mrb[0].mxu0 %v6987
      %v8220 = vpop.f32.mrb[0].mxu0
      %v8221 = vadd.f32 %v7772, %v8220
      %v8222 = vpop.f32.mrb[0].mxu0
      %v8223 = vadd.f32 %v7774, %v8222
      %8224 = vmatprep.mubr.f32.mxu0 %v7052
      %8225 = vmatmul.mubr.f32.gmra.mrb[0].mxu0 %v6988
      %v8226 = vpop.f32.mrb[0].mxu0
      %v8227 = vadd.f32 %v7778, %v8226
      %v8228 = vpop.f32.mrb[0].mxu0
      %v8229 = vadd.f32 %v7780, %v8228
      %8230 = vmatprep.mubr.f32.mxu0 %v7053
      %8231 = vmatmul.mubr.f32.gmra.mrb[0].mxu0 %v6989
      %v8232 = vpop.f32.mrb[0].mxu0
      %v8233 = vadd.f32 %v7784, %v8232
      %v8234 = vpop.f32.mrb[0].mxu0
      %v8235 = vadd.f32 %v7786, %v8234
      %8236 = vmatprep.mubr.f32.mxu0 %v7054
      %8237 = vmatmul.mubr.f32.gmra.mrb[0].mxu0 %v6990
      %v8238 = vpop.f32.mrb[0].mxu0
      %v8239 = vadd.f32 %v7790, %v8238
      %v8240 = vpop.f32.mrb[0].mxu0
      %v8241 = vadd.f32 %v7792, %v8240
      %8242 = vmatprep.mubr.f32.mxu0 %v7055
      %8243 = vmatmul.mubr.f32.gmra.mrb[0].mxu0 %v6991
      %v8244 = vpop.f32.mrb[0].mxu0
      %v8245 = vadd.f32 %v7796, %v8244
      %v8246 = vpop.f32.mrb[0].mxu0
      %v8247 = vadd.f32 %v7798, %v8246
      %8248 = vmatprep.mubr.f32.mxu0 %v7056
      %8249 = vmatmul.mubr.f32.gmra.mrb[0].mxu0 %v6992
      %v8250 = vpop.f32.mrb[0].mxu0
      %v8251 = vadd.f32 %v7802, %v8250
      %v8252 = vpop.f32.mrb[0].mxu0
      %v8253 = vadd.f32 %v7804, %v8252
      %8254 = vmatprep.mubr.f32.mxu0 %v7057
      %8255 = vmatmul.mubr.f32.gmra.mrb[0].mxu0 %v6993
      %v8256 = vpop.f32.mrb[0].mxu0
      %v8257 = vadd.f32 %v7808, %v8256
      %v8258 = vpop.f32.mrb[0].mxu0
      %v8259 = vadd.f32 %v7810, %v8258
      %8260 = vmatprep.mubr.f32.mxu0 %v7058
      %8261 = vmatmul.mubr.f32.gmra.mrb[0].mxu0 %v6994
      %v8262 = vpop.f32.mrb[0].mxu0
      %v8263 = vadd.f32 %v7814, %v8262
      %v8264 = vpop.f32.mrb[0].mxu0
      %v8265 = vadd.f32 %v7816, %v8264
      %8266 = vmatprep.mubr.f32.mxu0 %v7059
      %8267 = vmatmul.mubr.f32.gmra.mrb[0].mxu0 %v6995
      %v8268 = vpop.f32.mrb[0].mxu0
      %v8269 = vadd.f32 %v7820, %v8268
      %v8270 = vpop.f32.mrb[0].mxu0
      %v8271 = vadd.f32 %v7822, %v8270
      %8272 = vmatprep.mubr.f32.mxu0 %v7060
      %8273 = vmatmul.mubr.f32.gmra.mrb[0].mxu0 %v6996
      %v8274 = vpop.f32.mrb[0].mxu0
      %v8275 = vadd.f32 %v7826, %v8274
      %v8276 = vpop.f32.mrb[0].mxu0
      %v8277 = vadd.f32 %v7828, %v8276
      %8278 = vmatprep.mubr.f32.mxu0 %v7061
      %8279 = vmatmul.mubr.f32.gmra.mrb[0].mxu0 %v6997
      %v8280 = vpop.f32.mrb[0].mxu0
      %v8281 = vadd.f32 %v7832, %v8280
      %v8282 = vpop.f32.mrb[0].mxu0
      %v8283 = vadd.f32 %v7834, %v8282
      %8284 = vmatprep.mubr.f32.mxu0 %v7062
      %8285 = vmatmul.mubr.f32.gmra.mrb[0].mxu0 %v6998
      %v8286 = vpop.f32.mrb[0].mxu0
      %v8287 = vadd.f32 %v7838, %v8286
      %v8288 = vpop.f32.mrb[0].mxu0
      %v8289 = vadd.f32 %v7840, %v8288
      %8290 = vmatprep.mubr.f32.mxu0 %v7063
      %8291 = vmatmul.mubr.f32.gmra.mrb[0].mxu0 %v6999
      %v8292 = vpop.f32.mrb[0].mxu0
      %v8293 = vadd.f32 %v7844, %v8292
      %v8294 = vpop.f32.mrb[0].mxu0
      %v8295 = vadd.f32 %v7846, %v8294
      %8296 = vmatprep.mubr.f32.mxu0 %v7064
      %8297 = vmatmul.mubr.f32.gmra.mrb[0].mxu0 %v7000
      %v8298 = vpop.f32.mrb[0].mxu0
      %v8299 = vadd.f32 %v7850, %v8298
      %v8300 = vpop.f32.mrb[0].mxu0
      %v8301 = vadd.f32 %v7852, %v8300
      %8302 = vmatprep.mubr.f32.mxu0 %v7065
      %8303 = vmatmul.mubr.f32.gmra.mrb[0].mxu0 %v7001
      %v8304 = vpop.f32.mrb[0].mxu0
      %v8305 = vadd.f32 %v7856, %v8304
      %v8306 = vpop.f32.mrb[0].mxu0
      %v8307 = vadd.f32 %v7858, %v8306
      %8308 = vmatprep.mubr.f32.mxu0 %v7066
      %8309 = vmatmul.mubr.f32.gmra.mrb[0].mxu0 %v7002
      %v8310 = vpop.f32.mrb[0].mxu0
      %v8311 = vadd.f32 %v7862, %v8310
      %v8312 = vpop.f32.mrb[0].mxu0
      %v8313 = vadd.f32 %v7864, %v8312
      %8314 = vmatprep.mubr.f32.mxu0 %v7067
      %8315 = vmatmul.mubr.f32.gmra.mrb[0].mxu0 %v7003
      %v8316 = vpop.f32.mrb[0].mxu0
      %v8317 = vadd.f32 %v7868, %v8316
      %v8318 = vpop.f32.mrb[0].mxu0
      %v8319 = vadd.f32 %v7870, %v8318
      %8320 = vmatprep.mubr.f32.mxu0 %v7068
      %8321 = vmatmul.mubr.f32.gmra.mrb[0].mxu0 %v7004
      %v8322 = vpop.f32.mrb[0].mxu0
      %v8323 = vadd.f32 %v7874, %v8322
      %v8324 = vpop.f32.mrb[0].mxu0
      %v8325 = vadd.f32 %v7876, %v8324
      %8326 = vmatprep.mubr.f32.mxu0 %v7069
      %8327 = vmatmul.mubr.f32.gmra.mrb[0].mxu0 %v7005
      %v8328 = vpop.f32.mrb[0].mxu0
      %v8329 = vadd.f32 %v7880, %v8328
      %v8330 = vpop.f32.mrb[0].mxu0
      %v8331 = vadd.f32 %v7882, %v8330
      %8332 = vmatprep.mubr.f32.mxu0 %v7070
      %8333 = vmatmul.mubr.f32.gmra.mrb[0].mxu0 %v7006
      %v8334 = vpop.f32.mrb[0].mxu0
      %v8335 = vadd.f32 %v7886, %v8334
      %v8336 = vpop.f32.mrb[0].mxu0
      %v8337 = vadd.f32 %v7888, %v8336
      %8338 = vmatprep.mubr.f32.mxu0 %v7071
      %8339 = vmatmul.mubr.f32.gmra.mrb[0].mxu0 %v7007
      %v8340 = vpop.f32.mrb[0].mxu0
      %v8341 = vadd.f32 %v7892, %v8340
      %v8342 = vpop.f32.mrb[0].mxu0
      %v8343 = vadd.f32 %v7894, %v8342
      %8344 = vmatprep.mubr.f32.mxu0 %v7072
      %8345 = vmatmul.mubr.f32.gmra.mrb[0].mxu0 %v7008
      %v8346 = vpop.f32.mrb[0].mxu0
      %v8347 = vadd.f32 %v7898, %v8346
      %v8348 = vpop.f32.mrb[0].mxu0
      %v8349 = vadd.f32 %v7900, %v8348
      %8350 = vmatprep.mubr.f32.mxu0 %v7073
      %8351 = vmatmul.mubr.f32.gmra.mrb[0].mxu0 %v7009
      %v8352 = vpop.f32.mrb[0].mxu0
      %v8353 = vadd.f32 %v7904, %v8352
      %v8354 = vpop.f32.mrb[0].mxu0
      %v8355 = vadd.f32 %v7906, %v8354
      %8356 = vmatprep.mubr.f32.mxu0 %v7074
      %8357 = vmatmul.mubr.f32.gmra.mrb[0].mxu0 %v7010
      %v8358 = vpop.f32.mrb[0].mxu0
      %v8359 = vadd.f32 %v7910, %v8358
      %v8360 = vpop.f32.mrb[0].mxu0
      %v8361 = vadd.f32 %v7912, %v8360
      %8362 = vmatprep.mubr.f32.mxu0 %v7075
      %8363 = vmatmul.mubr.f32.gmra.mrb[0].mxu0 %v7011
      %v8364 = vpop.f32.mrb[0].mxu0
      %v8365 = vadd.f32 %v7916, %v8364
      %v8366 = vpop.f32.mrb[0].mxu0
      %v8367 = vadd.f32 %v7918, %v8366
      %8368 = vmatprep.mubr.f32.mxu0 %v7076
      %8369 = vmatmul.mubr.f32.gmra.mrb[0].mxu0 %v7012
      %v8370 = vpop.f32.mrb[0].mxu0
      %v8371 = vadd.f32 %v7922, %v8370
      %v8372 = vpop.f32.mrb[0].mxu0
      %v8373 = vadd.f32 %v7924, %v8372
      %8374 = vmatprep.mubr.f32.mxu0 %v7077
      %8375 = vmatmul.mubr.f32.gmra.mrb[0].mxu0 %v7013
      %v8376 = vpop.f32.mrb[0].mxu0
      %v8377 = vadd.f32 %v7928, %v8376
      %v8378 = vpop.f32.mrb[0].mxu0
      %v8379 = vadd.f32 %v7930, %v8378
      %8380 = vmatprep.mubr.f32.mxu0 %v7078
      %8381 = vmatmul.mubr.f32.gmra.mrb[0].mxu0 %v7014
      %v8382 = vpop.f32.mrb[0].mxu0
      %v8383 = vadd.f32 %v7934, %v8382
      %v8384 = vpop.f32.mrb[0].mxu0
      %v8385 = vadd.f32 %v7936, %v8384
      %8386 = vmatprep.mubr.f32.mxu0 %v7079
      %8387 = vmatmul.mubr.f32.gmra.mrb[0].mxu0 %v7015
      %v8388 = vpop.f32.mrb[0].mxu0
      %v8389 = vadd.f32 %v7940, %v8388
      %v8390 = vpop.f32.mrb[0].mxu0
      %v8391 = vadd.f32 %v7942, %v8390
      %8392 = vdwg.mxu0
      %8393 = vmatprep.subr.mxu0 %v7273
      %8394 = vmatpush1.msra.mxu0 %v7272
      %8395 = vmatprep.subr.mxu0 %v7275
      %8396 = vmatpush1.msra.mxu0 %v7274
      %8397 = vmatprep.subr.mxu0 %v7277
      %8398 = vmatpush1.msra.mxu0 %v7276
      %8399 = vmatprep.subr.mxu0 %v7279
      %8400 = vmatpush1.msra.mxu0 %v7278
      %8401 = vmatprep.subr.mxu0 %v7281
      %8402 = vmatpush1.msra.mxu0 %v7280
      %8403 = vmatprep.subr.mxu0 %v7283
      %8404 = vmatpush1.msra.mxu0 %v7282
      %8405 = vmatprep.subr.mxu0 %v7285
      %8406 = vmatpush1.msra.mxu0 %v7284
      %8407 = vmatprep.subr.mxu0 %v7287
      %8408 = vmatpush1.msra.mxu0 %v7286
      %8409 = vmatprep.subr.mxu0 %v7289
      %8410 = vmatpush1.msra.mxu0 %v7288
      %8411 = vmatprep.subr.mxu0 %v7291
      %8412 = vmatpush1.msra.mxu0 %v7290
      %8413 = vmatprep.subr.mxu0 %v7293
      %8414 = vmatpush1.msra.mxu0 %v7292
      %8415 = vmatprep.subr.mxu0 %v7295
      %8416 = vmatpush1.msra.mxu0 %v7294
      %8417 = vmatprep.subr.mxu0 %v7297
      %8418 = vmatpush1.msra.mxu0 %v7296
      %8419 = vmatprep.subr.mxu0 %v7299
      %8420 = vmatpush1.msra.mxu0 %v7298
      %8421 = vmatprep.subr.mxu0 %v7301
      %8422 = vmatpush1.msra.mxu0 %v7300
      %8423 = vmatprep.subr.mxu0 %v7303
      %8424 = vmatpush1.msra.mxu0 %v7302
      %8425 = vmatprep.subr.mxu0 %v7305
      %8426 = vmatpush1.msra.mxu0 %v7304
      %8427 = vmatprep.subr.mxu0 %v7307
      %8428 = vmatpush1.msra.mxu0 %v7306
      %8429 = vmatprep.subr.mxu0 %v7309
      %8430 = vmatpush1.msra.mxu0 %v7308
      %8431 = vmatprep.subr.mxu0 %v7311
      %8432 = vmatpush1.msra.mxu0 %v7310
      %8433 = vmatprep.subr.mxu0 %v7313
      %8434 = vmatpush1.msra.mxu0 %v7312
      %8435 = vmatprep.subr.mxu0 %v7315
      %8436 = vmatpush1.msra.mxu0 %v7314
      %8437 = vmatprep.subr.mxu0 %v7317
      %8438 = vmatpush1.msra.mxu0 %v7316
      %8439 = vmatprep.subr.mxu0 %v7319
      %8440 = vmatpush1.msra.mxu0 %v7318
      %8441 = vmatprep.subr.mxu0 %v7321
      %8442 = vmatpush1.msra.mxu0 %v7320
      %8443 = vmatprep.subr.mxu0 %v7323
      %8444 = vmatpush1.msra.mxu0 %v7322
      %8445 = vmatprep.subr.mxu0 %v7325
      %8446 = vmatpush1.msra.mxu0 %v7324
      %8447 = vmatprep.subr.mxu0 %v7327
      %8448 = vmatpush1.msra.mxu0 %v7326
      %8449 = vmatprep.subr.mxu0 %v7329
      %8450 = vmatpush1.msra.mxu0 %v7328
      %8451 = vmatprep.subr.mxu0 %v7331
      %8452 = vmatpush1.msra.mxu0 %v7330
      %8453 = vmatprep.subr.mxu0 %v7333
      %8454 = vmatpush1.msra.mxu0 %v7332
      %8455 = vmatprep.subr.mxu0 %v7335
      %8456 = vmatpush1.msra.mxu0 %v7334
      %8457 = vmatprep.mubr.f32.mxu0 %v7080
      %8458 = vmatmul.mubr.f32.gmra.mrb[0].mxu0 %v6248
      %v8459 = vpop.f32.mrb[0].mxu0
      %v8460 = vadd.f32 %v8011, %v8459
      %v8461 = vpop.f32.mrb[0].mxu0
      %v8462 = vadd.f32 %v8013, %v8461
      %8463 = vmatprep.mubr.f32.mxu0 %v7081
      %8464 = vmatmul.mubr.f32.gmra.mrb[0].mxu0 %v6249
      %v8465 = vpop.f32.mrb[0].mxu0
      %v8466 = vadd.f32 %v8017, %v8465
      %v8467 = vpop.f32.mrb[0].mxu0
      %v8468 = vadd.f32 %v8019, %v8467
      %8469 = vmatprep.mubr.f32.mxu0 %v7082
      %8470 = vmatmul.mubr.f32.gmra.mrb[0].mxu0 %v6250
      %v8471 = vpop.f32.mrb[0].mxu0
      %v8472 = vadd.f32 %v8023, %v8471
      %v8473 = vpop.f32.mrb[0].mxu0
      %v8474 = vadd.f32 %v8025, %v8473
      %8475 = vmatprep.mubr.f32.mxu0 %v7083
      %8476 = vmatmul.mubr.f32.gmra.mrb[0].mxu0 %v6251
      %v8477 = vpop.f32.mrb[0].mxu0
      %v8478 = vadd.f32 %v8029, %v8477
      %v8479 = vpop.f32.mrb[0].mxu0
      %v8480 = vadd.f32 %v8031, %v8479
      %8481 = vmatprep.mubr.f32.mxu0 %v7084
      %8482 = vmatmul.mubr.f32.gmra.mrb[0].mxu0 %v6252
      %v8483 = vpop.f32.mrb[0].mxu0
      %v8484 = vadd.f32 %v8035, %v8483
      %v8485 = vpop.f32.mrb[0].mxu0
      %v8486 = vadd.f32 %v8037, %v8485
      %8487 = vmatprep.mubr.f32.mxu0 %v7085
      %8488 = vmatmul.mubr.f32.gmra.mrb[0].mxu0 %v6253
      %v8489 = vpop.f32.mrb[0].mxu0
      %v8490 = vadd.f32 %v8041, %v8489
      %v8491 = vpop.f32.mrb[0].mxu0
      %v8492 = vadd.f32 %v8043, %v8491
      %8493 = vmatprep.mubr.f32.mxu0 %v7086
      %8494 = vmatmul.mubr.f32.gmra.mrb[0].mxu0 %v6254
      %v8495 = vpop.f32.mrb[0].mxu0
      %v8496 = vadd.f32 %v8047, %v8495
      %v8497 = vpop.f32.mrb[0].mxu0
      %v8498 = vadd.f32 %v8049, %v8497
      %8499 = vmatprep.mubr.f32.mxu0 %v7087
      %8500 = vmatmul.mubr.f32.gmra.mrb[0].mxu0 %v6255
      %v8501 = vpop.f32.mrb[0].mxu0
      %v8502 = vadd.f32 %v8053, %v8501
      %v8503 = vpop.f32.mrb[0].mxu0
      %v8504 = vadd.f32 %v8055, %v8503
      %8505 = vmatprep.mubr.f32.mxu0 %v7088
      %8506 = vmatmul.mubr.f32.gmra.mrb[0].mxu0 %v6256
      %v8507 = vpop.f32.mrb[0].mxu0
      %v8508 = vadd.f32 %v8059, %v8507
      %v8509 = vpop.f32.mrb[0].mxu0
      %v8510 = vadd.f32 %v8061, %v8509
      %8511 = vmatprep.mubr.f32.mxu0 %v7089
      %8512 = vmatmul.mubr.f32.gmra.mrb[0].mxu0 %v6257
      %v8513 = vpop.f32.mrb[0].mxu0
      %v8514 = vadd.f32 %v8065, %v8513
      %v8515 = vpop.f32.mrb[0].mxu0
      %v8516 = vadd.f32 %v8067, %v8515
      %8517 = vmatprep.mubr.f32.mxu0 %v7090
      %8518 = vmatmul.mubr.f32.gmra.mrb[0].mxu0 %v6258
      %v8519 = vpop.f32.mrb[0].mxu0
      %v8520 = vadd.f32 %v8071, %v8519
      %v8521 = vpop.f32.mrb[0].mxu0
      %v8522 = vadd.f32 %v8073, %v8521
      %8523 = vmatprep.mubr.f32.mxu0 %v7091
      %8524 = vmatmul.mubr.f32.gmra.mrb[0].mxu0 %v6259
      %v8525 = vpop.f32.mrb[0].mxu0
      %v8526 = vadd.f32 %v8077, %v8525
      %v8527 = vpop.f32.mrb[0].mxu0
      %v8528 = vadd.f32 %v8079, %v8527
      %8529 = vmatprep.mubr.f32.mxu0 %v7092
      %8530 = vmatmul.mubr.f32.gmra.mrb[0].mxu0 %v6260
      %v8531 = vpop.f32.mrb[0].mxu0
      %v8532 = vadd.f32 %v8083, %v8531
      %v8533 = vpop.f32.mrb[0].mxu0
      %v8534 = vadd.f32 %v8085, %v8533
      %8535 = vmatprep.mubr.f32.mxu0 %v7093
      %8536 = vmatmul.mubr.f32.gmra.mrb[0].mxu0 %v6261
      %v8537 = vpop.f32.mrb[0].mxu0
      %v8538 = vadd.f32 %v8089, %v8537
      %v8539 = vpop.f32.mrb[0].mxu0
      %v8540 = vadd.f32 %v8091, %v8539
      %8541 = vmatprep.mubr.f32.mxu0 %v7094
      %8542 = vmatmul.mubr.f32.gmra.mrb[0].mxu0 %v6262
      %v8543 = vpop.f32.mrb[0].mxu0
      %v8544 = vadd.f32 %v8095, %v8543
      %v8545 = vpop.f32.mrb[0].mxu0
      %v8546 = vadd.f32 %v8097, %v8545
      %8547 = vmatprep.mubr.f32.mxu0 %v7095
      %8548 = vmatmul.mubr.f32.gmra.mrb[0].mxu0 %v6263
      %v8549 = vpop.f32.mrb[0].mxu0
      %v8550 = vadd.f32 %v8101, %v8549
      %v8551 = vpop.f32.mrb[0].mxu0
      %v8552 = vadd.f32 %v8103, %v8551
      %8553 = vmatprep.mubr.f32.mxu0 %v7096
      %8554 = vmatmul.mubr.f32.gmra.mrb[0].mxu0 %v6264
      %v8555 = vpop.f32.mrb[0].mxu0
      %v8556 = vadd.f32 %v8107, %v8555
      %v8557 = vpop.f32.mrb[0].mxu0
      %v8558 = vadd.f32 %v8109, %v8557
      %8559 = vmatprep.mubr.f32.mxu0 %v7097
      %8560 = vmatmul.mubr.f32.gmra.mrb[0].mxu0 %v6265
      %v8561 = vpop.f32.mrb[0].mxu0
      %v8562 = vadd.f32 %v8113, %v8561
      %v8563 = vpop.f32.mrb[0].mxu0
      %v8564 = vadd.f32 %v8115, %v8563
      %8565 = vmatprep.mubr.f32.mxu0 %v7098
      %8566 = vmatmul.mubr.f32.gmra.mrb[0].mxu0 %v6266
      %v8567 = vpop.f32.mrb[0].mxu0
      %v8568 = vadd.f32 %v8119, %v8567
      %v8569 = vpop.f32.mrb[0].mxu0
      %v8570 = vadd.f32 %v8121, %v8569
      %8571 = vmatprep.mubr.f32.mxu0 %v7099
      %8572 = vmatmul.mubr.f32.gmra.mrb[0].mxu0 %v6267
      %v8573 = vpop.f32.mrb[0].mxu0
      %v8574 = vadd.f32 %v8125, %v8573
      %v8575 = vpop.f32.mrb[0].mxu0
      %v8576 = vadd.f32 %v8127, %v8575
      %8577 = vmatprep.mubr.f32.mxu0 %v7100
      %8578 = vmatmul.mubr.f32.gmra.mrb[0].mxu0 %v6268
      %v8579 = vpop.f32.mrb[0].mxu0
      %v8580 = vadd.f32 %v8131, %v8579
      %v8581 = vpop.f32.mrb[0].mxu0
      %v8582 = vadd.f32 %v8133, %v8581
      %8583 = vmatprep.mubr.f32.mxu0 %v7101
      %8584 = vmatmul.mubr.f32.gmra.mrb[0].mxu0 %v6269
      %v8585 = vpop.f32.mrb[0].mxu0
      %v8586 = vadd.f32 %v8137, %v8585
      %v8587 = vpop.f32.mrb[0].mxu0
      %v8588 = vadd.f32 %v8139, %v8587
      %8589 = vmatprep.mubr.f32.mxu0 %v7102
      %8590 = vmatmul.mubr.f32.gmra.mrb[0].mxu0 %v6270
      %v8591 = vpop.f32.mrb[0].mxu0
      %v8592 = vadd.f32 %v8143, %v8591
      %v8593 = vpop.f32.mrb[0].mxu0
      %v8594 = vadd.f32 %v8145, %v8593
      %8595 = vmatprep.mubr.f32.mxu0 %v7103
      %8596 = vmatmul.mubr.f32.gmra.mrb[0].mxu0 %v6271
      %v8597 = vpop.f32.mrb[0].mxu0
      %v8598 = vadd.f32 %v8149, %v8597
      %v8599 = vpop.f32.mrb[0].mxu0
      %v8600 = vadd.f32 %v8151, %v8599
      %8601 = vmatprep.mubr.f32.mxu0 %v7104
      %8602 = vmatmul.mubr.f32.gmra.mrb[0].mxu0 %v6272
      %v8603 = vpop.f32.mrb[0].mxu0
      %v8604 = vadd.f32 %v8155, %v8603
      %v8605 = vpop.f32.mrb[0].mxu0
      %v8606 = vadd.f32 %v8157, %v8605
      %8607 = vmatprep.mubr.f32.mxu0 %v7105
      %8608 = vmatmul.mubr.f32.gmra.mrb[0].mxu0 %v6273
      %v8609 = vpop.f32.mrb[0].mxu0
      %v8610 = vadd.f32 %v8161, %v8609
      %v8611 = vpop.f32.mrb[0].mxu0
      %v8612 = vadd.f32 %v8163, %v8611
      %8613 = vmatprep.mubr.f32.mxu0 %v7106
      %8614 = vmatmul.mubr.f32.gmra.mrb[0].mxu0 %v6274
      %v8615 = vpop.f32.mrb[0].mxu0
      %v8616 = vadd.f32 %v8167, %v8615
      %v8617 = vpop.f32.mrb[0].mxu0
      %v8618 = vadd.f32 %v8169, %v8617
      %8619 = vmatprep.mubr.f32.mxu0 %v7107
      %8620 = vmatmul.mubr.f32.gmra.mrb[0].mxu0 %v6275
      %v8621 = vpop.f32.mrb[0].mxu0
      %v8622 = vadd.f32 %v8173, %v8621
      %v8623 = vpop.f32.mrb[0].mxu0
      %v8624 = vadd.f32 %v8175, %v8623
      %8625 = vmatprep.mubr.f32.mxu0 %v7108
      %8626 = vmatmul.mubr.f32.gmra.mrb[0].mxu0 %v6276
      %v8627 = vpop.f32.mrb[0].mxu0
      %v8628 = vadd.f32 %v8179, %v8627
      %v8629 = vpop.f32.mrb[0].mxu0
      %v8630 = vadd.f32 %v8181, %v8629
      %8631 = vmatprep.mubr.f32.mxu0 %v7109
      %8632 = vmatmul.mubr.f32.gmra.mrb[0].mxu0 %v6277
      %v8633 = vpop.f32.mrb[0].mxu0
      %v8634 = vadd.f32 %v8185, %v8633
      %v8635 = vpop.f32.mrb[0].mxu0
      %v8636 = vadd.f32 %v8187, %v8635
      %8637 = vmatprep.mubr.f32.mxu0 %v7110
      %8638 = vmatmul.mubr.f32.gmra.mrb[0].mxu0 %v6278
      %v8639 = vpop.f32.mrb[0].mxu0
      %v8640 = vadd.f32 %v8191, %v8639
      %v8641 = vpop.f32.mrb[0].mxu0
      %v8642 = vadd.f32 %v8193, %v8641
      %8643 = vmatprep.mubr.f32.mxu0 %v7111
      %8644 = vmatmul.mubr.f32.gmra.mrb[0].mxu0 %v6279
      %v8645 = vpop.f32.mrb[0].mxu0
      %v8646 = vadd.f32 %v8197, %v8645
      %v8647 = vpop.f32.mrb[0].mxu0
      %v8648 = vadd.f32 %v8199, %v8647
      %8649 = vmatprep.mubr.f32.mxu0 %v7112
      %8650 = vmatmul.mubr.f32.gmra.mrb[0].mxu0 %v6280
      %v8651 = vpop.f32.mrb[0].mxu0
      %v8652 = vadd.f32 %v8203, %v8651
      %v8653 = vpop.f32.mrb[0].mxu0
      %v8654 = vadd.f32 %v8205, %v8653
      %8655 = vmatprep.mubr.f32.mxu0 %v7113
      %8656 = vmatmul.mubr.f32.gmra.mrb[0].mxu0 %v6281
      %v8657 = vpop.f32.mrb[0].mxu0
      %v8658 = vadd.f32 %v8209, %v8657
      %v8659 = vpop.f32.mrb[0].mxu0
      %v8660 = vadd.f32 %v8211, %v8659
      %8661 = vmatprep.mubr.f32.mxu0 %v7114
      %8662 = vmatmul.mubr.f32.gmra.mrb[0].mxu0 %v6282
      %v8663 = vpop.f32.mrb[0].mxu0
      %v8664 = vadd.f32 %v8215, %v8663
      %v8665 = vpop.f32.mrb[0].mxu0
      %v8666 = vadd.f32 %v8217, %v8665
      %8667 = vmatprep.mubr.f32.mxu0 %v7115
      %8668 = vmatmul.mubr.f32.gmra.mrb[0].mxu0 %v6283
      %v8669 = vpop.f32.mrb[0].mxu0
      %v8670 = vadd.f32 %v8221, %v8669
      %v8671 = vpop.f32.mrb[0].mxu0
      %v8672 = vadd.f32 %v8223, %v8671
      %8673 = vmatprep.mubr.f32.mxu0 %v7116
      %8674 = vmatmul.mubr.f32.gmra.mrb[0].mxu0 %v6284
      %v8675 = vpop.f32.mrb[0].mxu0
      %v8676 = vadd.f32 %v8227, %v8675
      %v8677 = vpop.f32.mrb[0].mxu0
      %v8678 = vadd.f32 %v8229, %v8677
      %8679 = vmatprep.mubr.f32.mxu0 %v7117
      %8680 = vmatmul.mubr.f32.gmra.mrb[0].mxu0 %v6285
      %v8681 = vpop.f32.mrb[0].mxu0
      %v8682 = vadd.f32 %v8233, %v8681
      %v8683 = vpop.f32.mrb[0].mxu0
      %v8684 = vadd.f32 %v8235, %v8683
      %8685 = vmatprep.mubr.f32.mxu0 %v7118
      %8686 = vmatmul.mubr.f32.gmra.mrb[0].mxu0 %v6286
      %v8687 = vpop.f32.mrb[0].mxu0
      %v8688 = vadd.f32 %v8239, %v8687
      %v8689 = vpop.f32.mrb[0].mxu0
      %v8690 = vadd.f32 %v8241, %v8689
      %8691 = vmatprep.mubr.f32.mxu0 %v7119
      %8692 = vmatmul.mubr.f32.gmra.mrb[0].mxu0 %v6287
      %v8693 = vpop.f32.mrb[0].mxu0
      %v8694 = vadd.f32 %v8245, %v8693
      %v8695 = vpop.f32.mrb[0].mxu0
      %v8696 = vadd.f32 %v8247, %v8695
      %8697 = vmatprep.mubr.f32.mxu0 %v7120
      %8698 = vmatmul.mubr.f32.gmra.mrb[0].mxu0 %v6288
      %v8699 = vpop.f32.mrb[0].mxu0
      %v8700 = vadd.f32 %v8251, %v8699
      %v8701 = vpop.f32.mrb[0].mxu0
      %v8702 = vadd.f32 %v8253, %v8701
      %8703 = vmatprep.mubr.f32.mxu0 %v7121
      %8704 = vmatmul.mubr.f32.gmra.mrb[0].mxu0 %v6289
      %v8705 = vpop.f32.mrb[0].mxu0
      %v8706 = vadd.f32 %v8257, %v8705
      %v8707 = vpop.f32.mrb[0].mxu0
      %v8708 = vadd.f32 %v8259, %v8707
      %8709 = vmatprep.mubr.f32.mxu0 %v7122
      %8710 = vmatmul.mubr.f32.gmra.mrb[0].mxu0 %v6290
      %v8711 = vpop.f32.mrb[0].mxu0
      %v8712 = vadd.f32 %v8263, %v8711
      %v8713 = vpop.f32.mrb[0].mxu0
      %v8714 = vadd.f32 %v8265, %v8713
      %8715 = vmatprep.mubr.f32.mxu0 %v7123
      %8716 = vmatmul.mubr.f32.gmra.mrb[0].mxu0 %v6291
      %v8717 = vpop.f32.mrb[0].mxu0
      %v8718 = vadd.f32 %v8269, %v8717
      %v8719 = vpop.f32.mrb[0].mxu0
      %v8720 = vadd.f32 %v8271, %v8719
      %8721 = vmatprep.mubr.f32.mxu0 %v7124
      %8722 = vmatmul.mubr.f32.gmra.mrb[0].mxu0 %v6292
      %v8723 = vpop.f32.mrb[0].mxu0
      %v8724 = vadd.f32 %v8275, %v8723
      %v8725 = vpop.f32.mrb[0].mxu0
      %v8726 = vadd.f32 %v8277, %v8725
      %8727 = vmatprep.mubr.f32.mxu0 %v7125
      %8728 = vmatmul.mubr.f32.gmra.mrb[0].mxu0 %v6293
      %v8729 = vpop.f32.mrb[0].mxu0
      %v8730 = vadd.f32 %v8281, %v8729
      %v8731 = vpop.f32.mrb[0].mxu0
      %v8732 = vadd.f32 %v8283, %v8731
      %8733 = vmatprep.mubr.f32.mxu0 %v7126
      %8734 = vmatmul.mubr.f32.gmra.mrb[0].mxu0 %v6294
      %v8735 = vpop.f32.mrb[0].mxu0
      %v8736 = vadd.f32 %v8287, %v8735
      %v8737 = vpop.f32.mrb[0].mxu0
      %v8738 = vadd.f32 %v8289, %v8737
      %8739 = vmatprep.mubr.f32.mxu0 %v7127
      %8740 = vmatmul.mubr.f32.gmra.mrb[0].mxu0 %v6295
      %v8741 = vpop.f32.mrb[0].mxu0
      %v8742 = vadd.f32 %v8293, %v8741
      %v8743 = vpop.f32.mrb[0].mxu0
      %v8744 = vadd.f32 %v8295, %v8743
      %8745 = vmatprep.mubr.f32.mxu0 %v7128
      %8746 = vmatmul.mubr.f32.gmra.mrb[0].mxu0 %v6296
      %v8747 = vpop.f32.mrb[0].mxu0
      %v8748 = vadd.f32 %v8299, %v8747
      %v8749 = vpop.f32.mrb[0].mxu0
      %v8750 = vadd.f32 %v8301, %v8749
      %8751 = vmatprep.mubr.f32.mxu0 %v7129
      %8752 = vmatmul.mubr.f32.gmra.mrb[0].mxu0 %v6297
      %v8753 = vpop.f32.mrb[0].mxu0
      %v8754 = vadd.f32 %v8305, %v8753
      %v8755 = vpop.f32.mrb[0].mxu0
      %v8756 = vadd.f32 %v8307, %v8755
      %8757 = vmatprep.mubr.f32.mxu0 %v7130
      %8758 = vmatmul.mubr.f32.gmra.mrb[0].mxu0 %v6298
      %v8759 = vpop.f32.mrb[0].mxu0
      %v8760 = vadd.f32 %v8311, %v8759
      %v8761 = vpop.f32.mrb[0].mxu0
      %v8762 = vadd.f32 %v8313, %v8761
      %8763 = vmatprep.mubr.f32.mxu0 %v7131
      %8764 = vmatmul.mubr.f32.gmra.mrb[0].mxu0 %v6299
      %v8765 = vpop.f32.mrb[0].mxu0
      %v8766 = vadd.f32 %v8317, %v8765
      %v8767 = vpop.f32.mrb[0].mxu0
      %v8768 = vadd.f32 %v8319, %v8767
      %8769 = vmatprep.mubr.f32.mxu0 %v7132
      %8770 = vmatmul.mubr.f32.gmra.mrb[0].mxu0 %v6300
      %v8771 = vpop.f32.mrb[0].mxu0
      %v8772 = vadd.f32 %v8323, %v8771
      %v8773 = vpop.f32.mrb[0].mxu0
      %v8774 = vadd.f32 %v8325, %v8773
      %8775 = vmatprep.mubr.f32.mxu0 %v7133
      %8776 = vmatmul.mubr.f32.gmra.mrb[0].mxu0 %v6301
      %v8777 = vpop.f32.mrb[0].mxu0
      %v8778 = vadd.f32 %v8329, %v8777
      %v8779 = vpop.f32.mrb[0].mxu0
      %v8780 = vadd.f32 %v8331, %v8779
      %8781 = vmatprep.mubr.f32.mxu0 %v7134
      %8782 = vmatmul.mubr.f32.gmra.mrb[0].mxu0 %v6302
      %v8783 = vpop.f32.mrb[0].mxu0
      %v8784 = vadd.f32 %v8335, %v8783
      %v8785 = vpop.f32.mrb[0].mxu0
      %v8786 = vadd.f32 %v8337, %v8785
      %8787 = vmatprep.mubr.f32.mxu0 %v7135
      %8788 = vmatmul.mubr.f32.gmra.mrb[0].mxu0 %v6303
      %v8789 = vpop.f32.mrb[0].mxu0
      %v8790 = vadd.f32 %v8341, %v8789
      %v8791 = vpop.f32.mrb[0].mxu0
      %v8792 = vadd.f32 %v8343, %v8791
      %8793 = vmatprep.mubr.f32.mxu0 %v7136
      %8794 = vmatmul.mubr.f32.gmra.mrb[0].mxu0 %v6304
      %v8795 = vpop.f32.mrb[0].mxu0
      %v8796 = vadd.f32 %v8347, %v8795
      %v8797 = vpop.f32.mrb[0].mxu0
      %v8798 = vadd.f32 %v8349, %v8797
      %8799 = vmatprep.mubr.f32.mxu0 %v7137
      %8800 = vmatmul.mubr.f32.gmra.mrb[0].mxu0 %v6305
      %v8801 = vpop.f32.mrb[0].mxu0
      %v8802 = vadd.f32 %v8353, %v8801
      %v8803 = vpop.f32.mrb[0].mxu0
      %v8804 = vadd.f32 %v8355, %v8803
      %8805 = vmatprep.mubr.f32.mxu0 %v7138
      %8806 = vmatmul.mubr.f32.gmra.mrb[0].mxu0 %v6306
      %v8807 = vpop.f32.mrb[0].mxu0
      %v8808 = vadd.f32 %v8359, %v8807
      %v8809 = vpop.f32.mrb[0].mxu0
      %v8810 = vadd.f32 %v8361, %v8809
      %8811 = vmatprep.mubr.f32.mxu0 %v7139
      %8812 = vmatmul.mubr.f32.gmra.mrb[0].mxu0 %v6307
      %v8813 = vpop.f32.mrb[0].mxu0
      %v8814 = vadd.f32 %v8365, %v8813
      %v8815 = vpop.f32.mrb[0].mxu0
      %v8816 = vadd.f32 %v8367, %v8815
      %8817 = vmatprep.mubr.f32.mxu0 %v7140
      %8818 = vmatmul.mubr.f32.gmra.mrb[0].mxu0 %v6308
      %v8819 = vpop.f32.mrb[0].mxu0
      %v8820 = vadd.f32 %v8371, %v8819
      %v8821 = vpop.f32.mrb[0].mxu0
      %v8822 = vadd.f32 %v8373, %v8821
      %8823 = vmatprep.mubr.f32.mxu0 %v7141
      %8824 = vmatmul.mubr.f32.gmra.mrb[0].mxu0 %v6309
      %v8825 = vpop.f32.mrb[0].mxu0
      %v8826 = vadd.f32 %v8377, %v8825
      %v8827 = vpop.f32.mrb[0].mxu0
      %v8828 = vadd.f32 %v8379, %v8827
      %8829 = vmatprep.mubr.f32.mxu0 %v7142
      %8830 = vmatmul.mubr.f32.gmra.mrb[0].mxu0 %v6310
      %v8831 = vpop.f32.mrb[0].mxu0
      %v8832 = vadd.f32 %v8383, %v8831
      %v8833 = vpop.f32.mrb[0].mxu0
      %v8834 = vadd.f32 %v8385, %v8833
      %8835 = vmatprep.mubr.f32.mxu0 %v7143
      %8836 = vmatmul.mubr.f32.gmra.mrb[0].mxu0 %v6311
      %v8837 = vpop.f32.mrb[0].mxu0
      %v8838 = vadd.f32 %v8389, %v8837
      %v8839 = vpop.f32.mrb[0].mxu0
      %v8840 = vadd.f32 %v8391, %v8839
      %8841 = vdwg.mxu0
      %8842 = vmatprep.subr.mxu0 %v7337
      %8843 = vmatpush1.msra.mxu0 %v7336
      %8844 = vmatprep.subr.mxu0 %v7339
      %8845 = vmatpush1.msra.mxu0 %v7338
      %8846 = vmatprep.subr.mxu0 %v7341
      %8847 = vmatpush1.msra.mxu0 %v7340
      %8848 = vmatprep.subr.mxu0 %v7343
      %8849 = vmatpush1.msra.mxu0 %v7342
      %8850 = vmatprep.subr.mxu0 %v7345
      %8851 = vmatpush1.msra.mxu0 %v7344
      %8852 = vmatprep.subr.mxu0 %v7347
      %8853 = vmatpush1.msra.mxu0 %v7346
      %8854 = vmatprep.subr.mxu0 %v7349
      %8855 = vmatpush1.msra.mxu0 %v7348
      %8856 = vmatprep.subr.mxu0 %v7351
      %8857 = vmatpush1.msra.mxu0 %v7350
      %8858 = vmatprep.subr.mxu0 %v7353
      %8859 = vmatpush1.msra.mxu0 %v7352
      %8860 = vmatprep.subr.mxu0 0.0
      %8861 = vmatpush1.msra.mxu0 0.0
      %8862 = vmatprep.subr.mxu0 0.0
      %8863 = vmatpush1.msra.mxu0 0.0
      %8864 = vmatprep.subr.mxu0 0.0
      %8865 = vmatpush1.msra.mxu0 0.0
      %8866 = vmatprep.subr.mxu0 0.0
      %8867 = vmatpush1.msra.mxu0 0.0
      %8868 = vmatprep.subr.mxu0 0.0
      %8869 = vmatpush1.msra.mxu0 0.0
      %8870 = vmatprep.subr.mxu0 0.0
      %8871 = vmatpush1.msra.mxu0 0.0
      %8872 = vmatprep.subr.mxu0 0.0
      %8873 = vmatpush1.msra.mxu0 0.0
      %8874 = vmatprep.subr.mxu0 0.0
      %8875 = vmatpush1.msra.mxu0 0.0
      %8876 = vmatprep.subr.mxu0 0.0
      %8877 = vmatpush1.msra.mxu0 0.0
      %8878 = vmatprep.subr.mxu0 0.0
      %8879 = vmatpush1.msra.mxu0 0.0
      %8880 = vmatprep.subr.mxu0 0.0
      %8881 = vmatpush1.msra.mxu0 0.0
      %8882 = vmatprep.subr.mxu0 0.0
      %8883 = vmatpush1.msra.mxu0 0.0
      %8884 = vmatprep.subr.mxu0 0.0
      %8885 = vmatpush1.msra.mxu0 0.0
      %8886 = vmatprep.subr.mxu0 0.0
      %8887 = vmatpush1.msra.mxu0 0.0
      %8888 = vmatprep.subr.mxu0 0.0
      %8889 = vmatpush1.msra.mxu0 0.0
      %8890 = vmatprep.subr.mxu0 0.0
      %8891 = vmatpush1.msra.mxu0 0.0
      %8892 = vmatprep.subr.mxu0 0.0
      %8893 = vmatpush1.msra.mxu0 0.0
      %8894 = vmatprep.subr.mxu0 0.0
      %8895 = vmatpush1.msra.mxu0 0.0
      %8896 = vmatprep.subr.mxu0 0.0
      %8897 = vmatpush1.msra.mxu0 0.0
      %8898 = vmatprep.subr.mxu0 0.0
      %8899 = vmatpush1.msra.mxu0 0.0
      %8900 = vmatprep.subr.mxu0 0.0
      %8901 = vmatpush1.msra.mxu0 0.0
      %8902 = vmatprep.subr.mxu0 0.0
      %8903 = vmatpush1.msra.mxu0 0.0
      %8904 = vmatprep.subr.mxu0 0.0
      %8905 = vmatpush1.msra.mxu0 0.0
      %8906 = vmatprep.mubr.f32.mxu0 0.0
      %8907 = vmatmul.mubr.f32.gmra.mrb[0].mxu0 %v7367
      %v8908 = vpop.f32.mrb[0].mxu0
      %v8909 = vadd.f32 %v8460, %v8908
      %v8910 = vpop.f32.mrb[0].mxu0
      %v8911 = vadd.f32 %v8462, %v8910
      %8912 = vmatprep.mubr.f32.mxu0 0.0
      %8913 = vmatmul.mubr.f32.gmra.mrb[0].mxu0 %v7369
      %v8914 = vpop.f32.mrb[0].mxu0
      %v8915 = vadd.f32 %v8466, %v8914
      %v8916 = vpop.f32.mrb[0].mxu0
      %v8917 = vadd.f32 %v8468, %v8916
      %8918 = vmatprep.mubr.f32.mxu0 0.0
      %8919 = vmatmul.mubr.f32.gmra.mrb[0].mxu0 %v7371
      %v8920 = vpop.f32.mrb[0].mxu0
      %v8921 = vadd.f32 %v8472, %v8920
      %v8922 = vpop.f32.mrb[0].mxu0
      %v8923 = vadd.f32 %v8474, %v8922
      %8924 = vmatprep.mubr.f32.mxu0 0.0
      %8925 = vmatmul.mubr.f32.gmra.mrb[0].mxu0 %v7373
      %v8926 = vpop.f32.mrb[0].mxu0
      %v8927 = vadd.f32 %v8478, %v8926
      %v8928 = vpop.f32.mrb[0].mxu0
      %v8929 = vadd.f32 %v8480, %v8928
      %8930 = vmatprep.mubr.f32.mxu0 0.0
      %8931 = vmatmul.mubr.f32.gmra.mrb[0].mxu0 %v7375
      %v8932 = vpop.f32.mrb[0].mxu0
      %v8933 = vadd.f32 %v8484, %v8932
      %v8934 = vpop.f32.mrb[0].mxu0
      %v8935 = vadd.f32 %v8486, %v8934
      %8936 = vmatprep.mubr.f32.mxu0 0.0
      %8937 = vmatmul.mubr.f32.gmra.mrb[0].mxu0 %v7377
      %v8938 = vpop.f32.mrb[0].mxu0
      %v8939 = vadd.f32 %v8490, %v8938
      %v8940 = vpop.f32.mrb[0].mxu0
      %v8941 = vadd.f32 %v8492, %v8940
      %8942 = vmatprep.mubr.f32.mxu0 0.0
      %8943 = vmatmul.mubr.f32.gmra.mrb[0].mxu0 %v7379
      %v8944 = vpop.f32.mrb[0].mxu0
      %v8945 = vadd.f32 %v8496, %v8944
      %v8946 = vpop.f32.mrb[0].mxu0
      %v8947 = vadd.f32 %v8498, %v8946
      %8948 = vmatprep.mubr.f32.mxu0 0.0
      %8949 = vmatmul.mubr.f32.gmra.mrb[0].mxu0 %v7381
      %v8950 = vpop.f32.mrb[0].mxu0
      %v8951 = vadd.f32 %v8502, %v8950
      %v8952 = vpop.f32.mrb[0].mxu0
      %v8953 = vadd.f32 %v8504, %v8952
      %8954 = vmatprep.mubr.f32.mxu0 0.0
      %8955 = vmatmul.mubr.f32.gmra.mrb[0].mxu0 %v7383
      %v8956 = vpop.f32.mrb[0].mxu0
      %v8957 = vadd.f32 %v8508, %v8956
      %v8958 = vpop.f32.mrb[0].mxu0
      %v8959 = vadd.f32 %v8510, %v8958
      %8960 = vmatprep.mubr.f32.mxu0 0.0
      %8961 = vmatmul.mubr.f32.gmra.mrb[0].mxu0 %v7385
      %v8962 = vpop.f32.mrb[0].mxu0
      %v8963 = vadd.f32 %v8514, %v8962
      %v8964 = vpop.f32.mrb[0].mxu0
      %v8965 = vadd.f32 %v8516, %v8964
      %8966 = vmatprep.mubr.f32.mxu0 0.0
      %8967 = vmatmul.mubr.f32.gmra.mrb[0].mxu0 %v7387
      %v8968 = vpop.f32.mrb[0].mxu0
      %v8969 = vadd.f32 %v8520, %v8968
      %v8970 = vpop.f32.mrb[0].mxu0
      %v8971 = vadd.f32 %v8522, %v8970
      %8972 = vmatprep.mubr.f32.mxu0 0.0
      %8973 = vmatmul.mubr.f32.gmra.mrb[0].mxu0 %v7389
      %v8974 = vpop.f32.mrb[0].mxu0
      %v8975 = vadd.f32 %v8526, %v8974
      %v8976 = vpop.f32.mrb[0].mxu0
      %v8977 = vadd.f32 %v8528, %v8976
      %8978 = vmatprep.mubr.f32.mxu0 0.0
      %8979 = vmatmul.mubr.f32.gmra.mrb[0].mxu0 %v7391
      %v8980 = vpop.f32.mrb[0].mxu0
      %v8981 = vadd.f32 %v8532, %v8980
      %v8982 = vpop.f32.mrb[0].mxu0
      %v8983 = vadd.f32 %v8534, %v8982
      %8984 = vmatprep.mubr.f32.mxu0 0.0
      %8985 = vmatmul.mubr.f32.gmra.mrb[0].mxu0 %v7393
      %v8986 = vpop.f32.mrb[0].mxu0
      %v8987 = vadd.f32 %v8538, %v8986
      %v8988 = vpop.f32.mrb[0].mxu0
      %v8989 = vadd.f32 %v8540, %v8988
      %8990 = vmatprep.mubr.f32.mxu0 0.0
      %8991 = vmatmul.mubr.f32.gmra.mrb[0].mxu0 %v7395
      %v8992 = vpop.f32.mrb[0].mxu0
      %v8993 = vadd.f32 %v8544, %v8992
      %v8994 = vpop.f32.mrb[0].mxu0
      %v8995 = vadd.f32 %v8546, %v8994
      %8996 = vmatprep.mubr.f32.mxu0 0.0
      %8997 = vmatmul.mubr.f32.gmra.mrb[0].mxu0 %v7397
      %v8998 = vpop.f32.mrb[0].mxu0
      %v8999 = vadd.f32 %v8550, %v8998
      %v9000 = vpop.f32.mrb[0].mxu0
      %v9001 = vadd.f32 %v8552, %v9000
      %9002 = vmatprep.mubr.f32.mxu0 0.0
      %9003 = vmatmul.mubr.f32.gmra.mrb[0].mxu0 %v7399
      %v9004 = vpop.f32.mrb[0].mxu0
      %v9005 = vadd.f32 %v8556, %v9004
      %v9006 = vpop.f32.mrb[0].mxu0
      %v9007 = vadd.f32 %v8558, %v9006
      %9008 = vmatprep.mubr.f32.mxu0 0.0
      %9009 = vmatmul.mubr.f32.gmra.mrb[0].mxu0 %v7401
      %v9010 = vpop.f32.mrb[0].mxu0
      %v9011 = vadd.f32 %v8562, %v9010
      %v9012 = vpop.f32.mrb[0].mxu0
      %v9013 = vadd.f32 %v8564, %v9012
      %9014 = vmatprep.mubr.f32.mxu0 0.0
      %9015 = vmatmul.mubr.f32.gmra.mrb[0].mxu0 %v7403
      %v9016 = vpop.f32.mrb[0].mxu0
      %v9017 = vadd.f32 %v8568, %v9016
      %v9018 = vpop.f32.mrb[0].mxu0
      %v9019 = vadd.f32 %v8570, %v9018
      %9020 = vmatprep.mubr.f32.mxu0 0.0
      %9021 = vmatmul.mubr.f32.gmra.mrb[0].mxu0 %v7405
      %v9022 = vpop.f32.mrb[0].mxu0
      %v9023 = vadd.f32 %v8574, %v9022
      %v9024 = vpop.f32.mrb[0].mxu0
      %v9025 = vadd.f32 %v8576, %v9024
      %9026 = vmatprep.mubr.f32.mxu0 0.0
      %9027 = vmatmul.mubr.f32.gmra.mrb[0].mxu0 %v7407
      %v9028 = vpop.f32.mrb[0].mxu0
      %v9029 = vadd.f32 %v8580, %v9028
      %v9030 = vpop.f32.mrb[0].mxu0
      %v9031 = vadd.f32 %v8582, %v9030
      %9032 = vmatprep.mubr.f32.mxu0 0.0
      %9033 = vmatmul.mubr.f32.gmra.mrb[0].mxu0 %v7409
      %v9034 = vpop.f32.mrb[0].mxu0
      %v9035 = vadd.f32 %v8586, %v9034
      %v9036 = vpop.f32.mrb[0].mxu0
      %v9037 = vadd.f32 %v8588, %v9036
      %9038 = vmatprep.mubr.f32.mxu0 0.0
      %9039 = vmatmul.mubr.f32.gmra.mrb[0].mxu0 %v7411
      %v9040 = vpop.f32.mrb[0].mxu0
      %v9041 = vadd.f32 %v8592, %v9040
      %v9042 = vpop.f32.mrb[0].mxu0
      %v9043 = vadd.f32 %v8594, %v9042
      %9044 = vmatprep.mubr.f32.mxu0 0.0
      %9045 = vmatmul.mubr.f32.gmra.mrb[0].mxu0 %v7413
      %v9046 = vpop.f32.mrb[0].mxu0
      %v9047 = vadd.f32 %v8598, %v9046
      %v9048 = vpop.f32.mrb[0].mxu0
      %v9049 = vadd.f32 %v8600, %v9048
      %9050 = vmatprep.mubr.f32.mxu0 0.0
      %9051 = vmatmul.mubr.f32.gmra.mrb[0].mxu0 %v7415
      %v9052 = vpop.f32.mrb[0].mxu0
      %v9053 = vadd.f32 %v8604, %v9052
      %v9054 = vpop.f32.mrb[0].mxu0
      %v9055 = vadd.f32 %v8606, %v9054
      %9056 = vmatprep.mubr.f32.mxu0 0.0
      %9057 = vmatmul.mubr.f32.gmra.mrb[0].mxu0 %v7417
      %v9058 = vpop.f32.mrb[0].mxu0
      %v9059 = vadd.f32 %v8610, %v9058
      %v9060 = vpop.f32.mrb[0].mxu0
      %v9061 = vadd.f32 %v8612, %v9060
      %9062 = vmatprep.mubr.f32.mxu0 0.0
      %9063 = vmatmul.mubr.f32.gmra.mrb[0].mxu0 %v7419
      %v9064 = vpop.f32.mrb[0].mxu0
      %v9065 = vadd.f32 %v8616, %v9064
      %v9066 = vpop.f32.mrb[0].mxu0
      %v9067 = vadd.f32 %v8618, %v9066
      %9068 = vmatprep.mubr.f32.mxu0 0.0
      %9069 = vmatmul.mubr.f32.gmra.mrb[0].mxu0 %v7421
      %v9070 = vpop.f32.mrb[0].mxu0
      %v9071 = vadd.f32 %v8622, %v9070
      %v9072 = vpop.f32.mrb[0].mxu0
      %v9073 = vadd.f32 %v8624, %v9072
      %9074 = vmatprep.mubr.f32.mxu0 0.0
      %9075 = vmatmul.mubr.f32.gmra.mrb[0].mxu0 %v7423
      %v9076 = vpop.f32.mrb[0].mxu0
      %v9077 = vadd.f32 %v8628, %v9076
      %v9078 = vpop.f32.mrb[0].mxu0
      %v9079 = vadd.f32 %v8630, %v9078
      %9080 = vmatprep.mubr.f32.mxu0 0.0
      %9081 = vmatmul.mubr.f32.gmra.mrb[0].mxu0 %v7425
      %v9082 = vpop.f32.mrb[0].mxu0
      %v9083 = vadd.f32 %v8634, %v9082
      %v9084 = vpop.f32.mrb[0].mxu0
      %v9085 = vadd.f32 %v8636, %v9084
      %9086 = vmatprep.mubr.f32.mxu0 0.0
      %9087 = vmatmul.mubr.f32.gmra.mrb[0].mxu0 %v7427
      %v9088 = vpop.f32.mrb[0].mxu0
      %v9089 = vadd.f32 %v8640, %v9088
      %v9090 = vpop.f32.mrb[0].mxu0
      %v9091 = vadd.f32 %v8642, %v9090
      %9092 = vmatprep.mubr.f32.mxu0 0.0
      %9093 = vmatmul.mubr.f32.gmra.mrb[0].mxu0 %v7429
      %v9094 = vpop.f32.mrb[0].mxu0
      %v9095 = vadd.f32 %v8646, %v9094
      %v9096 = vpop.f32.mrb[0].mxu0
      %v9097 = vadd.f32 %v8648, %v9096
      %9098 = vmatprep.mubr.f32.mxu0 0.0
      %9099 = vmatmul.mubr.f32.gmra.mrb[0].mxu0 %v7431
      %v9100 = vpop.f32.mrb[0].mxu0
      %v9101 = vadd.f32 %v8652, %v9100
      %v9102 = vpop.f32.mrb[0].mxu0
      %v9103 = vadd.f32 %v8654, %v9102
      %9104 = vmatprep.mubr.f32.mxu0 0.0
      %9105 = vmatmul.mubr.f32.gmra.mrb[0].mxu0 %v7433
      %v9106 = vpop.f32.mrb[0].mxu0
      %v9107 = vadd.f32 %v8658, %v9106
      %v9108 = vpop.f32.mrb[0].mxu0
      %v9109 = vadd.f32 %v8660, %v9108
      %9110 = vmatprep.mubr.f32.mxu0 0.0
      %9111 = vmatmul.mubr.f32.gmra.mrb[0].mxu0 %v7435
      %v9112 = vpop.f32.mrb[0].mxu0
      %v9113 = vadd.f32 %v8664, %v9112
      %v9114 = vpop.f32.mrb[0].mxu0
      %v9115 = vadd.f32 %v8666, %v9114
      %9116 = vmatprep.mubr.f32.mxu0 0.0
      %9117 = vmatmul.mubr.f32.gmra.mrb[0].mxu0 %v7437
      %v9118 = vpop.f32.mrb[0].mxu0
      %v9119 = vadd.f32 %v8670, %v9118
      %v9120 = vpop.f32.mrb[0].mxu0
      %v9121 = vadd.f32 %v8672, %v9120
      %9122 = vmatprep.mubr.f32.mxu0 0.0
      %9123 = vmatmul.mubr.f32.gmra.mrb[0].mxu0 %v7439
      %v9124 = vpop.f32.mrb[0].mxu0
      %v9125 = vadd.f32 %v8676, %v9124
      %v9126 = vpop.f32.mrb[0].mxu0
      %v9127 = vadd.f32 %v8678, %v9126
      %9128 = vmatprep.mubr.f32.mxu0 0.0
      %9129 = vmatmul.mubr.f32.gmra.mrb[0].mxu0 %v7441
      %v9130 = vpop.f32.mrb[0].mxu0
      %v9131 = vadd.f32 %v8682, %v9130
      %v9132 = vpop.f32.mrb[0].mxu0
      %v9133 = vadd.f32 %v8684, %v9132
      %9134 = vmatprep.mubr.f32.mxu0 0.0
      %9135 = vmatmul.mubr.f32.gmra.mrb[0].mxu0 %v7443
      %v9136 = vpop.f32.mrb[0].mxu0
      %v9137 = vadd.f32 %v8688, %v9136
      %v9138 = vpop.f32.mrb[0].mxu0
      %v9139 = vadd.f32 %v8690, %v9138
      %9140 = vmatprep.mubr.f32.mxu0 0.0
      %9141 = vmatmul.mubr.f32.gmra.mrb[0].mxu0 %v7445
      %v9142 = vpop.f32.mrb[0].mxu0
      %v9143 = vadd.f32 %v8694, %v9142
      %v9144 = vpop.f32.mrb[0].mxu0
      %v9145 = vadd.f32 %v8696, %v9144
      %9146 = vmatprep.mubr.f32.mxu0 0.0
      %9147 = vmatmul.mubr.f32.gmra.mrb[0].mxu0 %v7447
      %v9148 = vpop.f32.mrb[0].mxu0
      %v9149 = vadd.f32 %v8700, %v9148
      %v9150 = vpop.f32.mrb[0].mxu0
      %v9151 = vadd.f32 %v8702, %v9150
      %9152 = vmatprep.mubr.f32.mxu0 0.0
      %9153 = vmatmul.mubr.f32.gmra.mrb[0].mxu0 %v7449
      %v9154 = vpop.f32.mrb[0].mxu0
      %v9155 = vadd.f32 %v8706, %v9154
      %v9156 = vpop.f32.mrb[0].mxu0
      %v9157 = vadd.f32 %v8708, %v9156
      %9158 = vmatprep.mubr.f32.mxu0 0.0
      %9159 = vmatmul.mubr.f32.gmra.mrb[0].mxu0 %v7451
      %v9160 = vpop.f32.mrb[0].mxu0
      %v9161 = vadd.f32 %v8712, %v9160
      %v9162 = vpop.f32.mrb[0].mxu0
      %v9163 = vadd.f32 %v8714, %v9162
      %9164 = vmatprep.mubr.f32.mxu0 0.0
      %9165 = vmatmul.mubr.f32.gmra.mrb[0].mxu0 %v7453
      %v9166 = vpop.f32.mrb[0].mxu0
      %v9167 = vadd.f32 %v8718, %v9166
      %v9168 = vpop.f32.mrb[0].mxu0
      %v9169 = vadd.f32 %v8720, %v9168
      %9170 = vmatprep.mubr.f32.mxu0 0.0
      %9171 = vmatmul.mubr.f32.gmra.mrb[0].mxu0 %v7455
      %v9172 = vpop.f32.mrb[0].mxu0
      %v9173 = vadd.f32 %v8724, %v9172
      %v9174 = vpop.f32.mrb[0].mxu0
      %v9175 = vadd.f32 %v8726, %v9174
      %9176 = vmatprep.mubr.f32.mxu0 0.0
      %9177 = vmatmul.mubr.f32.gmra.mrb[0].mxu0 %v7457
      %v9178 = vpop.f32.mrb[0].mxu0
      %v9179 = vadd.f32 %v8730, %v9178
      %v9180 = vpop.f32.mrb[0].mxu0
      %v9181 = vadd.f32 %v8732, %v9180
      %9182 = vmatprep.mubr.f32.mxu0 0.0
      %9183 = vmatmul.mubr.f32.gmra.mrb[0].mxu0 %v7459
      %v9184 = vpop.f32.mrb[0].mxu0
      %v9185 = vadd.f32 %v8736, %v9184
      %v9186 = vpop.f32.mrb[0].mxu0
      %v9187 = vadd.f32 %v8738, %v9186
      %9188 = vmatprep.mubr.f32.mxu0 0.0
      %9189 = vmatmul.mubr.f32.gmra.mrb[0].mxu0 %v7461
      %v9190 = vpop.f32.mrb[0].mxu0
      %v9191 = vadd.f32 %v8742, %v9190
      %v9192 = vpop.f32.mrb[0].mxu0
      %v9193 = vadd.f32 %v8744, %v9192
      %9194 = vmatprep.mubr.f32.mxu0 0.0
      %9195 = vmatmul.mubr.f32.gmra.mrb[0].mxu0 %v7463
      %v9196 = vpop.f32.mrb[0].mxu0
      %v9197 = vadd.f32 %v8748, %v9196
      %v9198 = vpop.f32.mrb[0].mxu0
      %v9199 = vadd.f32 %v8750, %v9198
      %9200 = vmatprep.mubr.f32.mxu0 0.0
      %9201 = vmatmul.mubr.f32.gmra.mrb[0].mxu0 %v7465
      %v9202 = vpop.f32.mrb[0].mxu0
      %v9203 = vadd.f32 %v8754, %v9202
      %v9204 = vpop.f32.mrb[0].mxu0
      %v9205 = vadd.f32 %v8756, %v9204
      %9206 = vmatprep.mubr.f32.mxu0 0.0
      %9207 = vmatmul.mubr.f32.gmra.mrb[0].mxu0 %v7467
      %v9208 = vpop.f32.mrb[0].mxu0
      %v9209 = vadd.f32 %v8760, %v9208
      %v9210 = vpop.f32.mrb[0].mxu0
      %v9211 = vadd.f32 %v8762, %v9210
      %9212 = vmatprep.mubr.f32.mxu0 0.0
      %9213 = vmatmul.mubr.f32.gmra.mrb[0].mxu0 %v7469
      %v9214 = vpop.f32.mrb[0].mxu0
      %v9215 = vadd.f32 %v8766, %v9214
      %v9216 = vpop.f32.mrb[0].mxu0
      %v9217 = vadd.f32 %v8768, %v9216
      %9218 = vmatprep.mubr.f32.mxu0 0.0
      %9219 = vmatmul.mubr.f32.gmra.mrb[0].mxu0 %v7471
      %v9220 = vpop.f32.mrb[0].mxu0
      %v9221 = vadd.f32 %v8772, %v9220
      %v9222 = vpop.f32.mrb[0].mxu0
      %v9223 = vadd.f32 %v8774, %v9222
      %9224 = vmatprep.mubr.f32.mxu0 0.0
      %9225 = vmatmul.mubr.f32.gmra.mrb[0].mxu0 %v7473
      %v9226 = vpop.f32.mrb[0].mxu0
      %v9227 = vadd.f32 %v8778, %v9226
      %v9228 = vpop.f32.mrb[0].mxu0
      %v9229 = vadd.f32 %v8780, %v9228
      %9230 = vmatprep.mubr.f32.mxu0 0.0
      %9231 = vmatmul.mubr.f32.gmra.mrb[0].mxu0 %v7475
      %v9232 = vpop.f32.mrb[0].mxu0
      %v9233 = vadd.f32 %v8784, %v9232
      %v9234 = vpop.f32.mrb[0].mxu0
      %v9235 = vadd.f32 %v8786, %v9234
      %9236 = vmatprep.mubr.f32.mxu0 0.0
      %9237 = vmatmul.mubr.f32.gmra.mrb[0].mxu0 %v7477
      %v9238 = vpop.f32.mrb[0].mxu0
      %v9239 = vadd.f32 %v8790, %v9238
      %v9240 = vpop.f32.mrb[0].mxu0
      %v9241 = vadd.f32 %v8792, %v9240
      %9242 = vmatprep.mubr.f32.mxu0 0.0
      %9243 = vmatmul.mubr.f32.gmra.mrb[0].mxu0 %v7479
      %v9244 = vpop.f32.mrb[0].mxu0
      %v9245 = vadd.f32 %v8796, %v9244
      %v9246 = vpop.f32.mrb[0].mxu0
      %v9247 = vadd.f32 %v8798, %v9246
      %9248 = vmatprep.mubr.f32.mxu0 0.0
      %9249 = vmatmul.mubr.f32.gmra.mrb[0].mxu0 %v7481
      %v9250 = vpop.f32.mrb[0].mxu0
      %v9251 = vadd.f32 %v8802, %v9250
      %v9252 = vpop.f32.mrb[0].mxu0
      %v9253 = vadd.f32 %v8804, %v9252
      %9254 = vmatprep.mubr.f32.mxu0 0.0
      %9255 = vmatmul.mubr.f32.gmra.mrb[0].mxu0 %v7483
      %v9256 = vpop.f32.mrb[0].mxu0
      %v9257 = vadd.f32 %v8808, %v9256
      %v9258 = vpop.f32.mrb[0].mxu0
      %v9259 = vadd.f32 %v8810, %v9258
      %9260 = vmatprep.mubr.f32.mxu0 0.0
      %9261 = vmatmul.mubr.f32.gmra.mrb[0].mxu0 %v7485
      %v9262 = vpop.f32.mrb[0].mxu0
      %v9263 = vadd.f32 %v8814, %v9262
      %v9264 = vpop.f32.mrb[0].mxu0
      %v9265 = vadd.f32 %v8816, %v9264
      %9266 = vmatprep.mubr.f32.mxu0 0.0
      %9267 = vmatmul.mubr.f32.gmra.mrb[0].mxu0 %v7487
      %v9268 = vpop.f32.mrb[0].mxu0
      %v9269 = vadd.f32 %v8820, %v9268
      %v9270 = vpop.f32.mrb[0].mxu0
      %v9271 = vadd.f32 %v8822, %v9270
      %9272 = vmatprep.mubr.f32.mxu0 0.0
      %9273 = vmatmul.mubr.f32.gmra.mrb[0].mxu0 %v7489
      %v9274 = vpop.f32.mrb[0].mxu0
      %v9275 = vadd.f32 %v8826, %v9274
      %v9276 = vpop.f32.mrb[0].mxu0
      %v9277 = vadd.f32 %v8828, %v9276
      %9278 = vmatprep.mubr.f32.mxu0 0.0
      %9279 = vmatmul.mubr.f32.gmra.mrb[0].mxu0 %v7491
      %v9280 = vpop.f32.mrb[0].mxu0
      %v9281 = vadd.f32 %v8832, %v9280
      %v9282 = vpop.f32.mrb[0].mxu0
      %v9283 = vadd.f32 %v8834, %v9282
      %9284 = vmatprep.mubr.f32.mxu0 0.0
      %9285 = vmatmul.mubr.f32.gmra.mrb[0].mxu0 %v7493
      %v9286 = vpop.f32.mrb[0].mxu0
      %v9287 = vadd.f32 %v8838, %v9286
      %v9288 = vpop.f32.mrb[0].mxu0
      %v9289 = vadd.f32 %v8840, %v9288
      %9290 = vdwg.mxu0
      %v9291 = vmax.f32 %v8909, 0.0
      %v9292 = vmax.f32 %v8911, 0.0
      %v9293 = vmax.f32 %v8915, 0.0
      %v9294 = vmax.f32 %v8917, 0.0
      %v9295 = vmax.f32 %v8921, 0.0
      %v9296 = vmax.f32 %v8923, 0.0
      %v9297 = vmax.f32 %v8927, 0.0
      %v9298 = vmax.f32 %v8929, 0.0
      %v9299 = vmax.f32 %v8933, 0.0
      %v9300 = vmax.f32 %v8935, 0.0
      %v9301 = vmax.f32 %v8939, 0.0
      %v9302 = vmax.f32 %v8941, 0.0
      %v9303 = vmax.f32 %v8945, 0.0
      %v9304 = vmax.f32 %v8947, 0.0
      %v9305 = vmax.f32 %v8951, 0.0
      %v9306 = vmax.f32 %v8953, 0.0
      %v9307 = vmax.f32 %v8957, 0.0
      %v9308 = vmax.f32 %v8959, 0.0
      %v9309 = vmax.f32 %v8963, 0.0
      %v9310 = vmax.f32 %v8965, 0.0
      %v9311 = vmax.f32 %v8969, 0.0
      %v9312 = vmax.f32 %v8971, 0.0
      %v9313 = vmax.f32 %v8975, 0.0
      %v9314 = vmax.f32 %v8977, 0.0
      %v9315 = vmax.f32 %v8981, 0.0
      %v9316 = vmax.f32 %v8983, 0.0
      %v9317 = vmax.f32 %v8987, 0.0
      %v9318 = vmax.f32 %v8989, 0.0
      %v9319 = vmax.f32 %v8993, 0.0
      %v9320 = vmax.f32 %v8995, 0.0
      %v9321 = vmax.f32 %v8999, 0.0
      %v9322 = vmax.f32 %v9001, 0.0
      %v9323 = vmax.f32 %v9005, 0.0
      %v9324 = vmax.f32 %v9007, 0.0
      %v9325 = vmax.f32 %v9011, 0.0
      %v9326 = vmax.f32 %v9013, 0.0
      %v9327 = vmax.f32 %v9017, 0.0
      %v9328 = vmax.f32 %v9019, 0.0
      %v9329 = vmax.f32 %v9023, 0.0
      %v9330 = vmax.f32 %v9025, 0.0
      %v9331 = vmax.f32 %v9029, 0.0
      %v9332 = vmax.f32 %v9031, 0.0
      %v9333 = vmax.f32 %v9035, 0.0
      %v9334 = vmax.f32 %v9037, 0.0
      %v9335 = vmax.f32 %v9041, 0.0
      %v9336 = vmax.f32 %v9043, 0.0
      %v9337 = vmax.f32 %v9047, 0.0
      %v9338 = vmax.f32 %v9049, 0.0
      %v9339 = vmax.f32 %v9053, 0.0
      %v9340 = vmax.f32 %v9055, 0.0
      %v9341 = vmax.f32 %v9059, 0.0
      %v9342 = vmax.f32 %v9061, 0.0
      %v9343 = vmax.f32 %v9065, 0.0
      %v9344 = vmax.f32 %v9067, 0.0
      %v9345 = vmax.f32 %v9071, 0.0
      %v9346 = vmax.f32 %v9073, 0.0
      %v9347 = vmax.f32 %v9077, 0.0
      %v9348 = vmax.f32 %v9079, 0.0
      %v9349 = vmax.f32 %v9083, 0.0
      %v9350 = vmax.f32 %v9085, 0.0
      %v9351 = vmax.f32 %v9089, 0.0
      %v9352 = vmax.f32 %v9091, 0.0
      %v9353 = vmax.f32 %v9095, 0.0
      %v9354 = vmax.f32 %v9097, 0.0
      %v9355 = vmax.f32 %v9101, 0.0
      %v9356 = vmax.f32 %v9103, 0.0
      %v9357 = vmax.f32 %v9107, 0.0
      %v9358 = vmax.f32 %v9109, 0.0
      %v9359 = vmax.f32 %v9113, 0.0
      %v9360 = vmax.f32 %v9115, 0.0
      %v9361 = vmax.f32 %v9119, 0.0
      %v9362 = vmax.f32 %v9121, 0.0
      %v9363 = vmax.f32 %v9125, 0.0
      %v9364 = vmax.f32 %v9127, 0.0
      %v9365 = vmax.f32 %v9131, 0.0
      %v9366 = vmax.f32 %v9133, 0.0
      %v9367 = vmax.f32 %v9137, 0.0
      %v9368 = vmax.f32 %v9139, 0.0
      %v9369 = vmax.f32 %v9143, 0.0
      %v9370 = vmax.f32 %v9145, 0.0
      %v9371 = vmax.f32 %v9149, 0.0
      %v9372 = vmax.f32 %v9151, 0.0
      %v9373 = vmax.f32 %v9155, 0.0
      %v9374 = vmax.f32 %v9157, 0.0
      %v9375 = vmax.f32 %v9161, 0.0
      %v9376 = vmax.f32 %v9163, 0.0
      %v9377 = vmax.f32 %v9167, 0.0
      %v9378 = vmax.f32 %v9169, 0.0
      %v9379 = vmax.f32 %v9173, 0.0
      %v9380 = vmax.f32 %v9175, 0.0
      %v9381 = vmax.f32 %v9179, 0.0
      %v9382 = vmax.f32 %v9181, 0.0
      %v9383 = vmax.f32 %v9185, 0.0
      %v9384 = vmax.f32 %v9187, 0.0
      %v9385 = vmax.f32 %v9191, 0.0
      %v9386 = vmax.f32 %v9193, 0.0
      %v9387 = vmax.f32 %v9197, 0.0
      %v9388 = vmax.f32 %v9199, 0.0
      %v9389 = vmax.f32 %v9203, 0.0
      %v9390 = vmax.f32 %v9205, 0.0
      %v9391 = vmax.f32 %v9209, 0.0
      %v9392 = vmax.f32 %v9211, 0.0
      %v9393 = vmax.f32 %v9215, 0.0
      %v9394 = vmax.f32 %v9217, 0.0
      %v9395 = vmax.f32 %v9221, 0.0
      %v9396 = vmax.f32 %v9223, 0.0
      %v9397 = vmax.f32 %v9227, 0.0
      %v9398 = vmax.f32 %v9229, 0.0
      %v9399 = vmax.f32 %v9233, 0.0
      %v9400 = vmax.f32 %v9235, 0.0
      %v9401 = vmax.f32 %v9239, 0.0
      %v9402 = vmax.f32 %v9241, 0.0
      %v9403 = vmax.f32 %v9245, 0.0
      %v9404 = vmax.f32 %v9247, 0.0
      %v9405 = vmax.f32 %v9251, 0.0
      %v9406 = vmax.f32 %v9253, 0.0
      %v9407 = vmax.f32 %v9257, 0.0
      %v9408 = vmax.f32 %v9259, 0.0
      %v9409 = vmax.f32 %v9263, 0.0
      %v9410 = vmax.f32 %v9265, 0.0
      %v9411 = vmax.f32 %v9269, 0.0
      %v9412 = vmax.f32 %v9271, 0.0
      %v9413 = vmax.f32 %v9275, 0.0
      %v9414 = vmax.f32 %v9277, 0.0
      %v9415 = vmax.f32 %v9281, 0.0
      %v9416 = vmax.f32 %v9283, 0.0
      %v9417 = vmax.f32 %v9287, 0.0
      %v9418 = vmax.f32 %v9289, 0.0
      %9547 = vrot.lane.b32.xlu0 %v9291, 127
      %v9548 = vpop.permute.xlu0 %9547
      %9549 = vrot.lane.b32.xlu0 %v9292, 127
      %v9550 = vpop.permute.xlu0 %9549
      %9551 = vrot.lane.b32.xlu0 %v9293, 127
      %v9552 = vpop.permute.xlu0 %9551
      %9553 = vrot.lane.b32.xlu0 %v9294, 127
      %v9554 = vpop.permute.xlu0 %9553
      %9555 = vrot.lane.b32.xlu0 %v9295, 127
      %v9556 = vpop.permute.xlu0 %9555
      %9557 = vrot.lane.b32.xlu0 %v9296, 127
      %v9558 = vpop.permute.xlu0 %9557
      %9559 = vrot.lane.b32.xlu0 %v9297, 127
      %v9560 = vpop.permute.xlu0 %9559
      %9561 = vrot.lane.b32.xlu0 %v9298, 127
      %v9562 = vpop.permute.xlu0 %9561
      %9563 = vrot.lane.b32.xlu0 %v9299, 127
      %v9564 = vpop.permute.xlu0 %9563
      %9565 = vrot.lane.b32.xlu0 %v9300, 127
      %v9566 = vpop.permute.xlu0 %9565
      %9567 = vrot.lane.b32.xlu0 %v9301, 127
      %v9568 = vpop.permute.xlu0 %9567
      %9569 = vrot.lane.b32.xlu0 %v9302, 127
      %v9570 = vpop.permute.xlu0 %9569
      %9571 = vrot.lane.b32.xlu0 %v9303, 127
      %v9572 = vpop.permute.xlu0 %9571
      %9573 = vrot.lane.b32.xlu0 %v9304, 127
      %v9574 = vpop.permute.xlu0 %9573
      %9575 = vrot.lane.b32.xlu0 %v9305, 127
      %v9576 = vpop.permute.xlu0 %9575
      %9577 = vrot.lane.b32.xlu0 %v9306, 127
      %v9578 = vpop.permute.xlu0 %9577
      %9579 = vrot.lane.b32.xlu0 %v9307, 127
      %v9580 = vpop.permute.xlu0 %9579
      %9581 = vrot.lane.b32.xlu0 %v9308, 127
      %v9582 = vpop.permute.xlu0 %9581
      %9583 = vrot.lane.b32.xlu0 %v9309, 127
      %v9584 = vpop.permute.xlu0 %9583
      %9585 = vrot.lane.b32.xlu0 %v9310, 127
      %v9586 = vpop.permute.xlu0 %9585
      %9587 = vrot.lane.b32.xlu0 %v9311, 127
      %v9588 = vpop.permute.xlu0 %9587
      %9589 = vrot.lane.b32.xlu0 %v9312, 127
      %v9590 = vpop.permute.xlu0 %9589
      %9591 = vrot.lane.b32.xlu0 %v9313, 127
      %v9592 = vpop.permute.xlu0 %9591
      %9593 = vrot.lane.b32.xlu0 %v9314, 127
      %v9594 = vpop.permute.xlu0 %9593
      %9595 = vrot.lane.b32.xlu0 %v9315, 127
      %v9596 = vpop.permute.xlu0 %9595
      %9597 = vrot.lane.b32.xlu0 %v9316, 127
      %v9598 = vpop.permute.xlu0 %9597
      %9599 = vrot.lane.b32.xlu0 %v9317, 127
      %v9600 = vpop.permute.xlu0 %9599
      %9601 = vrot.lane.b32.xlu0 %v9318, 127
      %v9602 = vpop.permute.xlu0 %9601
      %9603 = vrot.lane.b32.xlu0 %v9319, 127
      %v9604 = vpop.permute.xlu0 %9603
      %9605 = vrot.lane.b32.xlu0 %v9320, 127
      %v9606 = vpop.permute.xlu0 %9605
      %9607 = vrot.lane.b32.xlu0 %v9321, 127
      %v9608 = vpop.permute.xlu0 %9607
      %9609 = vrot.lane.b32.xlu0 %v9322, 127
      %v9610 = vpop.permute.xlu0 %9609
      %9611 = vrot.lane.b32.xlu0 %v9323, 127
      %v9612 = vpop.permute.xlu0 %9611
      %9613 = vrot.lane.b32.xlu0 %v9324, 127
      %v9614 = vpop.permute.xlu0 %9613
      %9615 = vrot.lane.b32.xlu0 %v9325, 127
      %v9616 = vpop.permute.xlu0 %9615
      %9617 = vrot.lane.b32.xlu0 %v9326, 127
      %v9618 = vpop.permute.xlu0 %9617
      %9619 = vrot.lane.b32.xlu0 %v9327, 127
      %v9620 = vpop.permute.xlu0 %9619
      %9621 = vrot.lane.b32.xlu0 %v9328, 127
      %v9622 = vpop.permute.xlu0 %9621
      %9623 = vrot.lane.b32.xlu0 %v9329, 127
      %v9624 = vpop.permute.xlu0 %9623
      %9625 = vrot.lane.b32.xlu0 %v9330, 127
      %v9626 = vpop.permute.xlu0 %9625
      %9627 = vrot.lane.b32.xlu0 %v9331, 127
      %v9628 = vpop.permute.xlu0 %9627
      %9629 = vrot.lane.b32.xlu0 %v9332, 127
      %v9630 = vpop.permute.xlu0 %9629
      %9631 = vrot.lane.b32.xlu0 %v9333, 127
      %v9632 = vpop.permute.xlu0 %9631
      %9633 = vrot.lane.b32.xlu0 %v9334, 127
      %v9634 = vpop.permute.xlu0 %9633
      %9635 = vrot.lane.b32.xlu0 %v9335, 127
      %v9636 = vpop.permute.xlu0 %9635
      %9637 = vrot.lane.b32.xlu0 %v9336, 127
      %v9638 = vpop.permute.xlu0 %9637
      %9639 = vrot.lane.b32.xlu0 %v9337, 127
      %v9640 = vpop.permute.xlu0 %9639
      %9641 = vrot.lane.b32.xlu0 %v9338, 127
      %v9642 = vpop.permute.xlu0 %9641
      %9643 = vrot.lane.b32.xlu0 %v9339, 127
      %v9644 = vpop.permute.xlu0 %9643
      %9645 = vrot.lane.b32.xlu0 %v9340, 127
      %v9646 = vpop.permute.xlu0 %9645
      %9647 = vrot.lane.b32.xlu0 %v9341, 127
      %v9648 = vpop.permute.xlu0 %9647
      %9649 = vrot.lane.b32.xlu0 %v9342, 127
      %v9650 = vpop.permute.xlu0 %9649
      %9651 = vrot.lane.b32.xlu0 %v9343, 127
      %v9652 = vpop.permute.xlu0 %9651
      %9653 = vrot.lane.b32.xlu0 %v9344, 127
      %v9654 = vpop.permute.xlu0 %9653
      %9655 = vrot.lane.b32.xlu0 %v9345, 127
      %v9656 = vpop.permute.xlu0 %9655
      %9657 = vrot.lane.b32.xlu0 %v9346, 127
      %v9658 = vpop.permute.xlu0 %9657
      %9659 = vrot.lane.b32.xlu0 %v9347, 127
      %v9660 = vpop.permute.xlu0 %9659
      %9661 = vrot.lane.b32.xlu0 %v9348, 127
      %v9662 = vpop.permute.xlu0 %9661
      %9663 = vrot.lane.b32.xlu0 %v9349, 127
      %v9664 = vpop.permute.xlu0 %9663
      %9665 = vrot.lane.b32.xlu0 %v9350, 127
      %v9666 = vpop.permute.xlu0 %9665
      %9667 = vrot.lane.b32.xlu0 %v9351, 127
      %v9668 = vpop.permute.xlu0 %9667
      %9669 = vrot.lane.b32.xlu0 %v9352, 127
      %v9670 = vpop.permute.xlu0 %9669
      %9671 = vrot.lane.b32.xlu0 %v9353, 127
      %v9672 = vpop.permute.xlu0 %9671
      %9673 = vrot.lane.b32.xlu0 %v9354, 127
      %v9674 = vpop.permute.xlu0 %9673
      %9675 = vrot.lane.b32.xlu0 %v9355, 127
      %v9676 = vpop.permute.xlu0 %9675
      %9677 = vrot.lane.b32.xlu0 %v9356, 127
      %v9678 = vpop.permute.xlu0 %9677
      %9679 = vrot.lane.b32.xlu0 %v9357, 127
      %v9680 = vpop.permute.xlu0 %9679
      %9681 = vrot.lane.b32.xlu0 %v9358, 127
      %v9682 = vpop.permute.xlu0 %9681
      %9683 = vrot.lane.b32.xlu0 %v9359, 127
      %v9684 = vpop.permute.xlu0 %9683
      %9685 = vrot.lane.b32.xlu0 %v9360, 127
      %v9686 = vpop.permute.xlu0 %9685
      %9687 = vrot.lane.b32.xlu0 %v9361, 127
      %v9688 = vpop.permute.xlu0 %9687
      %9689 = vrot.lane.b32.xlu0 %v9362, 127
      %v9690 = vpop.permute.xlu0 %9689
      %9691 = vrot.lane.b32.xlu0 %v9363, 127
      %v9692 = vpop.permute.xlu0 %9691
      %9693 = vrot.lane.b32.xlu0 %v9364, 127
      %v9694 = vpop.permute.xlu0 %9693
      %9695 = vrot.lane.b32.xlu0 %v9365, 127
      %v9696 = vpop.permute.xlu0 %9695
      %9697 = vrot.lane.b32.xlu0 %v9366, 127
      %v9698 = vpop.permute.xlu0 %9697
      %9699 = vrot.lane.b32.xlu0 %v9367, 127
      %v9700 = vpop.permute.xlu0 %9699
      %9701 = vrot.lane.b32.xlu0 %v9368, 127
      %v9702 = vpop.permute.xlu0 %9701
      %9703 = vrot.lane.b32.xlu0 %v9369, 127
      %v9704 = vpop.permute.xlu0 %9703
      %9705 = vrot.lane.b32.xlu0 %v9370, 127
      %v9706 = vpop.permute.xlu0 %9705
      %9707 = vrot.lane.b32.xlu0 %v9371, 127
      %v9708 = vpop.permute.xlu0 %9707
      %9709 = vrot.lane.b32.xlu0 %v9372, 127
      %v9710 = vpop.permute.xlu0 %9709
      %9711 = vrot.lane.b32.xlu0 %v9373, 127
      %v9712 = vpop.permute.xlu0 %9711
      %9713 = vrot.lane.b32.xlu0 %v9374, 127
      %v9714 = vpop.permute.xlu0 %9713
      %9715 = vrot.lane.b32.xlu0 %v9375, 127
      %v9716 = vpop.permute.xlu0 %9715
      %9717 = vrot.lane.b32.xlu0 %v9376, 127
      %v9718 = vpop.permute.xlu0 %9717
      %9719 = vrot.lane.b32.xlu0 %v9377, 127
      %v9720 = vpop.permute.xlu0 %9719
      %9721 = vrot.lane.b32.xlu0 %v9378, 127
      %v9722 = vpop.permute.xlu0 %9721
      %9723 = vrot.lane.b32.xlu0 %v9379, 127
      %v9724 = vpop.permute.xlu0 %9723
      %9725 = vrot.lane.b32.xlu0 %v9380, 127
      %v9726 = vpop.permute.xlu0 %9725
      %9727 = vrot.lane.b32.xlu0 %v9381, 127
      %v9728 = vpop.permute.xlu0 %9727
      %9729 = vrot.lane.b32.xlu0 %v9382, 127
      %v9730 = vpop.permute.xlu0 %9729
      %9731 = vrot.lane.b32.xlu0 %v9383, 127
      %v9732 = vpop.permute.xlu0 %9731
      %9733 = vrot.lane.b32.xlu0 %v9384, 127
      %v9734 = vpop.permute.xlu0 %9733
      %9735 = vrot.lane.b32.xlu0 %v9385, 127
      %v9736 = vpop.permute.xlu0 %9735
      %9737 = vrot.lane.b32.xlu0 %v9386, 127
      %v9738 = vpop.permute.xlu0 %9737
      %9739 = vrot.lane.b32.xlu0 %v9387, 127
      %v9740 = vpop.permute.xlu0 %9739
      %9741 = vrot.lane.b32.xlu0 %v9388, 127
      %v9742 = vpop.permute.xlu0 %9741
      %9743 = vrot.lane.b32.xlu0 %v9389, 127
      %v9744 = vpop.permute.xlu0 %9743
      %9745 = vrot.lane.b32.xlu0 %v9390, 127
      %v9746 = vpop.permute.xlu0 %9745
      %9747 = vrot.lane.b32.xlu0 %v9391, 127
      %v9748 = vpop.permute.xlu0 %9747
      %9749 = vrot.lane.b32.xlu0 %v9392, 127
      %v9750 = vpop.permute.xlu0 %9749
      %9751 = vrot.lane.b32.xlu0 %v9393, 127
      %v9752 = vpop.permute.xlu0 %9751
      %9753 = vrot.lane.b32.xlu0 %v9394, 127
      %v9754 = vpop.permute.xlu0 %9753
      %9755 = vrot.lane.b32.xlu0 %v9395, 127
      %v9756 = vpop.permute.xlu0 %9755
      %9757 = vrot.lane.b32.xlu0 %v9396, 127
      %v9758 = vpop.permute.xlu0 %9757
      %9759 = vrot.lane.b32.xlu0 %v9397, 127
      %v9760 = vpop.permute.xlu0 %9759
      %9761 = vrot.lane.b32.xlu0 %v9398, 127
      %v9762 = vpop.permute.xlu0 %9761
      %9763 = vrot.lane.b32.xlu0 %v9399, 127
      %v9764 = vpop.permute.xlu0 %9763
      %9765 = vrot.lane.b32.xlu0 %v9400, 127
      %v9766 = vpop.permute.xlu0 %9765
      %9767 = vrot.lane.b32.xlu0 %v9401, 127
      %v9768 = vpop.permute.xlu0 %9767
      %9769 = vrot.lane.b32.xlu0 %v9402, 127
      %v9770 = vpop.permute.xlu0 %9769
      %9771 = vrot.lane.b32.xlu0 %v9403, 127
      %v9772 = vpop.permute.xlu0 %9771
      %9773 = vrot.lane.b32.xlu0 %v9404, 127
      %v9774 = vpop.permute.xlu0 %9773
      %9775 = vrot.lane.b32.xlu0 %v9405, 127
      %v9776 = vpop.permute.xlu0 %9775
      %9777 = vrot.lane.b32.xlu0 %v9406, 127
      %v9778 = vpop.permute.xlu0 %9777
      %9779 = vrot.lane.b32.xlu0 %v9407, 127
      %v9780 = vpop.permute.xlu0 %9779
      %9781 = vrot.lane.b32.xlu0 %v9408, 127
      %v9782 = vpop.permute.xlu0 %9781
      %9783 = vrot.lane.b32.xlu0 %v9409, 127
      %v9784 = vpop.permute.xlu0 %9783
      %9785 = vrot.lane.b32.xlu0 %v9410, 127
      %v9786 = vpop.permute.xlu0 %9785
      %9787 = vrot.lane.b32.xlu0 %v9411, 127
      %v9788 = vpop.permute.xlu0 %9787
      %9789 = vrot.lane.b32.xlu0 %v9412, 127
      %v9790 = vpop.permute.xlu0 %9789
      %9791 = vrot.lane.b32.xlu0 %v9413, 127
      %v9792 = vpop.permute.xlu0 %9791
      %9793 = vrot.lane.b32.xlu0 %v9414, 127
      %v9794 = vpop.permute.xlu0 %9793
      %9795 = vrot.lane.b32.xlu0 %v9415, 127
      %v9796 = vpop.permute.xlu0 %9795
      %9797 = vrot.lane.b32.xlu0 %v9416, 127
      %v9798 = vpop.permute.xlu0 %9797
      %9799 = vrot.lane.b32.xlu0 %v9417, 127
      %v9800 = vpop.permute.xlu0 %9799
      %9801 = vrot.lane.b32.xlu0 %v9418, 127
      %v9802 = vpop.permute.xlu0 %9801
      %v9803 = vsel %vm2958, %v9548, %v9550
      %v9804 = vsel %vm2958, %v9552, %v9554
      %v9805 = vsel %vm2958, %v9556, %v9558
      %v9806 = vsel %vm2958, %v9560, %v9562
      %v9807 = vsel %vm2958, %v9564, %v9566
      %v9808 = vsel %vm2958, %v9568, %v9570
      %v9809 = vsel %vm2958, %v9572, %v9574
      %v9810 = vsel %vm2958, %v9576, %v9578
      %v9811 = vsel %vm2958, %v9580, %v9582
      %v9812 = vsel %vm2958, %v9584, %v9586
      %v9813 = vsel %vm2958, %v9588, %v9590
      %v9814 = vsel %vm2958, %v9592, %v9594
      %v9815 = vsel %vm2958, %v9596, %v9598
      %v9816 = vsel %vm2958, %v9600, %v9602
      %v9817 = vsel %vm2958, %v9604, %v9606
      %v9818 = vsel %vm2958, %v9608, %v9610
      %v9819 = vsel %vm2958, %v9612, %v9614
      %v9820 = vsel %vm2958, %v9616, %v9618
      %v9821 = vsel %vm2958, %v9620, %v9622
      %v9822 = vsel %vm2958, %v9624, %v9626
      %v9823 = vsel %vm2958, %v9628, %v9630
      %v9824 = vsel %vm2958, %v9632, %v9634
      %v9825 = vsel %vm2958, %v9636, %v9638
      %v9826 = vsel %vm2958, %v9640, %v9642
      %v9827 = vsel %vm2958, %v9644, %v9646
      %v9828 = vsel %vm2958, %v9648, %v9650
      %v9829 = vsel %vm2958, %v9652, %v9654
      %v9830 = vsel %vm2958, %v9656, %v9658
      %v9831 = vsel %vm2958, %v9660, %v9662
      %v9832 = vsel %vm2958, %v9664, %v9666
      %v9833 = vsel %vm2958, %v9668, %v9670
      %v9834 = vsel %vm2958, %v9672, %v9674
      %v9835 = vsel %vm2958, %v9676, %v9678
      %v9836 = vsel %vm2958, %v9680, %v9682
      %v9837 = vsel %vm2958, %v9684, %v9686
      %v9838 = vsel %vm2958, %v9688, %v9690
      %v9839 = vsel %vm2958, %v9692, %v9694
      %v9840 = vsel %vm2958, %v9696, %v9698
      %v9841 = vsel %vm2958, %v9700, %v9702
      %v9842 = vsel %vm2958, %v9704, %v9706
      %v9843 = vsel %vm2958, %v9708, %v9710
      %v9844 = vsel %vm2958, %v9712, %v9714
      %v9845 = vsel %vm2958, %v9716, %v9718
      %v9846 = vsel %vm2958, %v9720, %v9722
      %v9847 = vsel %vm2958, %v9724, %v9726
      %v9848 = vsel %vm2958, %v9728, %v9730
      %v9849 = vsel %vm2958, %v9732, %v9734
      %v9850 = vsel %vm2958, %v9736, %v9738
      %v9851 = vsel %vm2958, %v9740, %v9742
      %v9852 = vsel %vm2958, %v9744, %v9746
      %v9853 = vsel %vm2958, %v9748, %v9750
      %v9854 = vsel %vm2958, %v9752, %v9754
      %v9855 = vsel %vm2958, %v9756, %v9758
      %v9856 = vsel %vm2958, %v9760, %v9762
      %v9857 = vsel %vm2958, %v9764, %v9766
      %v9858 = vsel %vm2958, %v9768, %v9770
      %v9859 = vsel %vm2958, %v9772, %v9774
      %v9860 = vsel %vm2958, %v9776, %v9778
      %v9861 = vsel %vm2958, %v9780, %v9782
      %v9862 = vsel %vm2958, %v9784, %v9786
      %v9863 = vsel %vm2958, %v9788, %v9790
      %v9864 = vsel %vm2958, %v9792, %v9794
      %v9865 = vsel %vm2958, %v9796, %v9798
      %v9866 = vsel %vm2958, %v9800, %v9802
      %9995 = vrot.lane.b32.xlu0 %v9291, 31
      %v9996 = vpop.permute.xlu0 %9995
      %9997 = vrot.lane.b32.xlu0 %v9293, 31
      %v9998 = vpop.permute.xlu0 %9997
      %9999 = vrot.lane.b32.xlu0 %v9295, 31
      %v10000 = vpop.permute.xlu0 %9999
      %10001 = vrot.lane.b32.xlu0 %v9297, 31
      %v10002 = vpop.permute.xlu0 %10001
      %10003 = vrot.lane.b32.xlu0 %v9299, 31
      %v10004 = vpop.permute.xlu0 %10003
      %10005 = vrot.lane.b32.xlu0 %v9301, 31
      %v10006 = vpop.permute.xlu0 %10005
      %10007 = vrot.lane.b32.xlu0 %v9303, 31
      %v10008 = vpop.permute.xlu0 %10007
      %10009 = vrot.lane.b32.xlu0 %v9305, 31
      %v10010 = vpop.permute.xlu0 %10009
      %10011 = vrot.lane.b32.xlu0 %v9307, 31
      %v10012 = vpop.permute.xlu0 %10011
      %10013 = vrot.lane.b32.xlu0 %v9309, 31
      %v10014 = vpop.permute.xlu0 %10013
      %10015 = vrot.lane.b32.xlu0 %v9311, 31
      %v10016 = vpop.permute.xlu0 %10015
      %10017 = vrot.lane.b32.xlu0 %v9313, 31
      %v10018 = vpop.permute.xlu0 %10017
      %10019 = vrot.lane.b32.xlu0 %v9315, 31
      %v10020 = vpop.permute.xlu0 %10019
      %10021 = vrot.lane.b32.xlu0 %v9317, 31
      %v10022 = vpop.permute.xlu0 %10021
      %10023 = vrot.lane.b32.xlu0 %v9319, 31
      %v10024 = vpop.permute.xlu0 %10023
      %10025 = vrot.lane.b32.xlu0 %v9321, 31
      %v10026 = vpop.permute.xlu0 %10025
      %10027 = vrot.lane.b32.xlu0 %v9323, 31
      %v10028 = vpop.permute.xlu0 %10027
      %10029 = vrot.lane.b32.xlu0 %v9325, 31
      %v10030 = vpop.permute.xlu0 %10029
      %10031 = vrot.lane.b32.xlu0 %v9327, 31
      %v10032 = vpop.permute.xlu0 %10031
      %10033 = vrot.lane.b32.xlu0 %v9329, 31
      %v10034 = vpop.permute.xlu0 %10033
      %10035 = vrot.lane.b32.xlu0 %v9331, 31
      %v10036 = vpop.permute.xlu0 %10035
      %10037 = vrot.lane.b32.xlu0 %v9333, 31
      %v10038 = vpop.permute.xlu0 %10037
      %10039 = vrot.lane.b32.xlu0 %v9335, 31
      %v10040 = vpop.permute.xlu0 %10039
      %10041 = vrot.lane.b32.xlu0 %v9337, 31
      %v10042 = vpop.permute.xlu0 %10041
      %10043 = vrot.lane.b32.xlu0 %v9339, 31
      %v10044 = vpop.permute.xlu0 %10043
      %10045 = vrot.lane.b32.xlu0 %v9341, 31
      %v10046 = vpop.permute.xlu0 %10045
      %10047 = vrot.lane.b32.xlu0 %v9343, 31
      %v10048 = vpop.permute.xlu0 %10047
      %10049 = vrot.lane.b32.xlu0 %v9345, 31
      %v10050 = vpop.permute.xlu0 %10049
      %10051 = vrot.lane.b32.xlu0 %v9347, 31
      %v10052 = vpop.permute.xlu0 %10051
      %10053 = vrot.lane.b32.xlu0 %v9349, 31
      %v10054 = vpop.permute.xlu0 %10053
      %10055 = vrot.lane.b32.xlu0 %v9351, 31
      %v10056 = vpop.permute.xlu0 %10055
      %10057 = vrot.lane.b32.xlu0 %v9353, 31
      %v10058 = vpop.permute.xlu0 %10057
      %10059 = vrot.lane.b32.xlu0 %v9355, 31
      %v10060 = vpop.permute.xlu0 %10059
      %10061 = vrot.lane.b32.xlu0 %v9357, 31
      %v10062 = vpop.permute.xlu0 %10061
      %10063 = vrot.lane.b32.xlu0 %v9359, 31
      %v10064 = vpop.permute.xlu0 %10063
      %10065 = vrot.lane.b32.xlu0 %v9361, 31
      %v10066 = vpop.permute.xlu0 %10065
      %10067 = vrot.lane.b32.xlu0 %v9363, 31
      %v10068 = vpop.permute.xlu0 %10067
      %10069 = vrot.lane.b32.xlu0 %v9365, 31
      %v10070 = vpop.permute.xlu0 %10069
      %10071 = vrot.lane.b32.xlu0 %v9367, 31
      %v10072 = vpop.permute.xlu0 %10071
      %10073 = vrot.lane.b32.xlu0 %v9369, 31
      %v10074 = vpop.permute.xlu0 %10073
      %10075 = vrot.lane.b32.xlu0 %v9371, 31
      %v10076 = vpop.permute.xlu0 %10075
      %10077 = vrot.lane.b32.xlu0 %v9373, 31
      %v10078 = vpop.permute.xlu0 %10077
      %10079 = vrot.lane.b32.xlu0 %v9375, 31
      %v10080 = vpop.permute.xlu0 %10079
      %10081 = vrot.lane.b32.xlu0 %v9377, 31
      %v10082 = vpop.permute.xlu0 %10081
      %10083 = vrot.lane.b32.xlu0 %v9379, 31
      %v10084 = vpop.permute.xlu0 %10083
      %10085 = vrot.lane.b32.xlu0 %v9381, 31
      %v10086 = vpop.permute.xlu0 %10085
      %10087 = vrot.lane.b32.xlu0 %v9383, 31
      %v10088 = vpop.permute.xlu0 %10087
      %10089 = vrot.lane.b32.xlu0 %v9385, 31
      %v10090 = vpop.permute.xlu0 %10089
      %10091 = vrot.lane.b32.xlu0 %v9387, 31
      %v10092 = vpop.permute.xlu0 %10091
      %10093 = vrot.lane.b32.xlu0 %v9389, 31
      %v10094 = vpop.permute.xlu0 %10093
      %10095 = vrot.lane.b32.xlu0 %v9391, 31
      %v10096 = vpop.permute.xlu0 %10095
      %10097 = vrot.lane.b32.xlu0 %v9393, 31
      %v10098 = vpop.permute.xlu0 %10097
      %10099 = vrot.lane.b32.xlu0 %v9395, 31
      %v10100 = vpop.permute.xlu0 %10099
      %10101 = vrot.lane.b32.xlu0 %v9397, 31
      %v10102 = vpop.permute.xlu0 %10101
      %10103 = vrot.lane.b32.xlu0 %v9399, 31
      %v10104 = vpop.permute.xlu0 %10103
      %10105 = vrot.lane.b32.xlu0 %v9401, 31
      %v10106 = vpop.permute.xlu0 %10105
      %10107 = vrot.lane.b32.xlu0 %v9403, 31
      %v10108 = vpop.permute.xlu0 %10107
      %10109 = vrot.lane.b32.xlu0 %v9405, 31
      %v10110 = vpop.permute.xlu0 %10109
      %10111 = vrot.lane.b32.xlu0 %v9407, 31
      %v10112 = vpop.permute.xlu0 %10111
      %10113 = vrot.lane.b32.xlu0 %v9409, 31
      %v10114 = vpop.permute.xlu0 %10113
      %10115 = vrot.lane.b32.xlu0 %v9411, 31
      %v10116 = vpop.permute.xlu0 %10115
      %10117 = vrot.lane.b32.xlu0 %v9413, 31
      %v10118 = vpop.permute.xlu0 %10117
      %10119 = vrot.lane.b32.xlu0 %v9415, 31
      %v10120 = vpop.permute.xlu0 %10119
      %10121 = vrot.lane.b32.xlu0 %v9417, 31
      %v10122 = vpop.permute.xlu0 %10121
      %vm10187 = vcmask 252928
      %v10188 = vsel %vm10187, %v9550, %v9996
      %v10189 = vsel %vm10187, %v9554, %v9998
      %v10190 = vsel %vm10187, %v9558, %v10000
      %v10191 = vsel %vm10187, %v9562, %v10002
      %v10192 = vsel %vm10187, %v9566, %v10004
      %v10193 = vsel %vm10187, %v9570, %v10006
      %v10194 = vsel %vm10187, %v9574, %v10008
      %v10195 = vsel %vm10187, %v9578, %v10010
      %v10196 = vsel %vm10187, %v9582, %v10012
      %v10197 = vsel %vm10187, %v9586, %v10014
      %v10198 = vsel %vm10187, %v9590, %v10016
      %v10199 = vsel %vm10187, %v9594, %v10018
      %v10200 = vsel %vm10187, %v9598, %v10020
      %v10201 = vsel %vm10187, %v9602, %v10022
      %v10202 = vsel %vm10187, %v9606, %v10024
      %v10203 = vsel %vm10187, %v9610, %v10026
      %v10204 = vsel %vm10187, %v9614, %v10028
      %v10205 = vsel %vm10187, %v9618, %v10030
      %v10206 = vsel %vm10187, %v9622, %v10032
      %v10207 = vsel %vm10187, %v9626, %v10034
      %v10208 = vsel %vm10187, %v9630, %v10036
      %v10209 = vsel %vm10187, %v9634, %v10038
      %v10210 = vsel %vm10187, %v9638, %v10040
      %v10211 = vsel %vm10187, %v9642, %v10042
      %v10212 = vsel %vm10187, %v9646, %v10044
      %v10213 = vsel %vm10187, %v9650, %v10046
      %v10214 = vsel %vm10187, %v9654, %v10048
      %v10215 = vsel %vm10187, %v9658, %v10050
      %v10216 = vsel %vm10187, %v9662, %v10052
      %v10217 = vsel %vm10187, %v9666, %v10054
      %v10218 = vsel %vm10187, %v9670, %v10056
      %v10219 = vsel %vm10187, %v9674, %v10058
      %v10220 = vsel %vm10187, %v9678, %v10060
      %v10221 = vsel %vm10187, %v9682, %v10062
      %v10222 = vsel %vm10187, %v9686, %v10064
      %v10223 = vsel %vm10187, %v9690, %v10066
      %v10224 = vsel %vm10187, %v9694, %v10068
      %v10225 = vsel %vm10187, %v9698, %v10070
      %v10226 = vsel %vm10187, %v9702, %v10072
      %v10227 = vsel %vm10187, %v9706, %v10074
      %v10228 = vsel %vm10187, %v9710, %v10076
      %v10229 = vsel %vm10187, %v9714, %v10078
      %v10230 = vsel %vm10187, %v9718, %v10080
      %v10231 = vsel %vm10187, %v9722, %v10082
      %v10232 = vsel %vm10187, %v9726, %v10084
      %v10233 = vsel %vm10187, %v9730, %v10086
      %v10234 = vsel %vm10187, %v9734, %v10088
      %v10235 = vsel %vm10187, %v9738, %v10090
      %v10236 = vsel %vm10187, %v9742, %v10092
      %v10237 = vsel %vm10187, %v9746, %v10094
      %v10238 = vsel %vm10187, %v9750, %v10096
      %v10239 = vsel %vm10187, %v9754, %v10098
      %v10240 = vsel %vm10187, %v9758, %v10100
      %v10241 = vsel %vm10187, %v9762, %v10102
      %v10242 = vsel %vm10187, %v9766, %v10104
      %v10243 = vsel %vm10187, %v9770, %v10106
      %v10244 = vsel %vm10187, %v9774, %v10108
      %v10245 = vsel %vm10187, %v9778, %v10110
      %v10246 = vsel %vm10187, %v9782, %v10112
      %v10247 = vsel %vm10187, %v9786, %v10114
      %v10248 = vsel %vm10187, %v9790, %v10116
      %v10249 = vsel %vm10187, %v9794, %v10118
      %v10250 = vsel %vm10187, %v9798, %v10120
      %v10251 = vsel %vm10187, %v9802, %v10122
      %v10252 = vmax.f32 %v9291, %v9803
      %v10253 = vmax.f32 %v9292, %v10188
      %v10254 = vmax.f32 %v9293, %v9804
      %v10255 = vmax.f32 %v9294, %v10189
      %v10256 = vmax.f32 %v9295, %v9805
      %v10257 = vmax.f32 %v9296, %v10190
      %v10258 = vmax.f32 %v9297, %v9806
      %v10259 = vmax.f32 %v9298, %v10191
      %v10260 = vmax.f32 %v9299, %v9807
      %v10261 = vmax.f32 %v9300, %v10192
      %v10262 = vmax.f32 %v9301, %v9808
      %v10263 = vmax.f32 %v9302, %v10193
      %v10264 = vmax.f32 %v9303, %v9809
      %v10265 = vmax.f32 %v9304, %v10194
      %v10266 = vmax.f32 %v9305, %v9810
      %v10267 = vmax.f32 %v9306, %v10195
      %v10268 = vmax.f32 %v9307, %v9811
      %v10269 = vmax.f32 %v9308, %v10196
      %v10270 = vmax.f32 %v9309, %v9812
      %v10271 = vmax.f32 %v9310, %v10197
      %v10272 = vmax.f32 %v9311, %v9813
      %v10273 = vmax.f32 %v9312, %v10198
      %v10274 = vmax.f32 %v9313, %v9814
      %v10275 = vmax.f32 %v9314, %v10199
      %v10276 = vmax.f32 %v9315, %v9815
      %v10277 = vmax.f32 %v9316, %v10200
      %v10278 = vmax.f32 %v9317, %v9816
      %v10279 = vmax.f32 %v9318, %v10201
      %v10280 = vmax.f32 %v9319, %v9817
      %v10281 = vmax.f32 %v9320, %v10202
      %v10282 = vmax.f32 %v9321, %v9818
      %v10283 = vmax.f32 %v9322, %v10203
      %v10284 = vmax.f32 %v9323, %v9819
      %v10285 = vmax.f32 %v9324, %v10204
      %v10286 = vmax.f32 %v9325, %v9820
      %v10287 = vmax.f32 %v9326, %v10205
      %v10288 = vmax.f32 %v9327, %v9821
      %v10289 = vmax.f32 %v9328, %v10206
      %v10290 = vmax.f32 %v9329, %v9822
      %v10291 = vmax.f32 %v9330, %v10207
      %v10292 = vmax.f32 %v9331, %v9823
      %v10293 = vmax.f32 %v9332, %v10208
      %v10294 = vmax.f32 %v9333, %v9824
      %v10295 = vmax.f32 %v9334, %v10209
      %v10296 = vmax.f32 %v9335, %v9825
      %v10297 = vmax.f32 %v9336, %v10210
      %v10298 = vmax.f32 %v9337, %v9826
      %v10299 = vmax.f32 %v9338, %v10211
      %v10300 = vmax.f32 %v9339, %v9827
      %v10301 = vmax.f32 %v9340, %v10212
      %v10302 = vmax.f32 %v9341, %v9828
      %v10303 = vmax.f32 %v9342, %v10213
      %v10304 = vmax.f32 %v9343, %v9829
      %v10305 = vmax.f32 %v9344, %v10214
      %v10306 = vmax.f32 %v9345, %v9830
      %v10307 = vmax.f32 %v9346, %v10215
      %v10308 = vmax.f32 %v9347, %v9831
      %v10309 = vmax.f32 %v9348, %v10216
      %v10310 = vmax.f32 %v9349, %v9832
      %v10311 = vmax.f32 %v9350, %v10217
      %v10312 = vmax.f32 %v9351, %v9833
      %v10313 = vmax.f32 %v9352, %v10218
      %v10314 = vmax.f32 %v9353, %v9834
      %v10315 = vmax.f32 %v9354, %v10219
      %v10316 = vmax.f32 %v9355, %v9835
      %v10317 = vmax.f32 %v9356, %v10220
      %v10318 = vmax.f32 %v9357, %v9836
      %v10319 = vmax.f32 %v9358, %v10221
      %v10320 = vmax.f32 %v9359, %v9837
      %v10321 = vmax.f32 %v9360, %v10222
      %v10322 = vmax.f32 %v9361, %v9838
      %v10323 = vmax.f32 %v9362, %v10223
      %v10324 = vmax.f32 %v9363, %v9839
      %v10325 = vmax.f32 %v9364, %v10224
      %v10326 = vmax.f32 %v9365, %v9840
      %v10327 = vmax.f32 %v9366, %v10225
      %v10328 = vmax.f32 %v9367, %v9841
      %v10329 = vmax.f32 %v9368, %v10226
      %v10330 = vmax.f32 %v9369, %v9842
      %v10331 = vmax.f32 %v9370, %v10227
      %v10332 = vmax.f32 %v9371, %v9843
      %v10333 = vmax.f32 %v9372, %v10228
      %v10334 = vmax.f32 %v9373, %v9844
      %v10335 = vmax.f32 %v9374, %v10229
      %v10336 = vmax.f32 %v9375, %v9845
      %v10337 = vmax.f32 %v9376, %v10230
      %v10338 = vmax.f32 %v9377, %v9846
      %v10339 = vmax.f32 %v9378, %v10231
      %v10340 = vmax.f32 %v9379, %v9847
      %v10341 = vmax.f32 %v9380, %v10232
      %v10342 = vmax.f32 %v9381, %v9848
      %v10343 = vmax.f32 %v9382, %v10233
      %v10344 = vmax.f32 %v9383, %v9849
      %v10345 = vmax.f32 %v9384, %v10234
      %v10346 = vmax.f32 %v9385, %v9850
      %v10347 = vmax.f32 %v9386, %v10235
      %v10348 = vmax.f32 %v9387, %v9851
      %v10349 = vmax.f32 %v9388, %v10236
      %v10350 = vmax.f32 %v9389, %v9852
      %v10351 = vmax.f32 %v9390, %v10237
      %v10352 = vmax.f32 %v9391, %v9853
      %v10353 = vmax.f32 %v9392, %v10238
      %v10354 = vmax.f32 %v9393, %v9854
      %v10355 = vmax.f32 %v9394, %v10239
      %v10356 = vmax.f32 %v9395, %v9855
      %v10357 = vmax.f32 %v9396, %v10240
      %v10358 = vmax.f32 %v9397, %v9856
      %v10359 = vmax.f32 %v9398, %v10241
      %v10360 = vmax.f32 %v9399, %v9857
      %v10361 = vmax.f32 %v9400, %v10242
      %v10362 = vmax.f32 %v9401, %v9858
      %v10363 = vmax.f32 %v9402, %v10243
      %v10364 = vmax.f32 %v9403, %v9859
      %v10365 = vmax.f32 %v9404, %v10244
      %v10366 = vmax.f32 %v9405, %v9860
      %v10367 = vmax.f32 %v9406, %v10245
      %v10368 = vmax.f32 %v9407, %v9861
      %v10369 = vmax.f32 %v9408, %v10246
      %v10370 = vmax.f32 %v9409, %v9862
      %v10371 = vmax.f32 %v9410, %v10247
      %v10372 = vmax.f32 %v9411, %v9863
      %v10373 = vmax.f32 %v9412, %v10248
      %v10374 = vmax.f32 %v9413, %v9864
      %v10375 = vmax.f32 %v9414, %v10249
      %v10376 = vmax.f32 %v9415, %v9865
      %v10377 = vmax.f32 %v9416, %v10250
      %v10378 = vmax.f32 %v9417, %v9866
      %v10379 = vmax.f32 %v9418, %v10251
      %v10508 = vrot.slane %v10252, 2
      %v10509 = vrot.slane %v10254, 2
      %v10510 = vsel %vm649, %v10508, %v10509
      %v10511 = vrot.slane %v10253, 2
      %v10512 = vrot.slane %v10255, 2
      %v10513 = vsel %vm649, %v10511, %v10512
      %v10514 = vrot.slane %v10256, 2
      %v10515 = vsel %vm649, %v10509, %v10514
      %v10516 = vrot.slane %v10257, 2
      %v10517 = vsel %vm649, %v10512, %v10516
      %v10518 = vrot.slane %v10258, 2
      %v10519 = vsel %vm649, %v10514, %v10518
      %v10520 = vrot.slane %v10259, 2
      %v10521 = vsel %vm649, %v10516, %v10520
      %v10522 = vrot.slane %v10260, 2
      %v10523 = vrot.slane %v10262, 2
      %v10524 = vsel %vm649, %v10522, %v10523
      %v10525 = vrot.slane %v10261, 2
      %v10526 = vrot.slane %v10263, 2
      %v10527 = vsel %vm649, %v10525, %v10526
      %v10528 = vrot.slane %v10264, 2
      %v10529 = vsel %vm649, %v10523, %v10528
      %v10530 = vrot.slane %v10265, 2
      %v10531 = vsel %vm649, %v10526, %v10530
      %v10532 = vrot.slane %v10266, 2
      %v10533 = vsel %vm649, %v10528, %v10532
      %v10534 = vrot.slane %v10267, 2
      %v10535 = vsel %vm649, %v10530, %v10534
      %v10536 = vrot.slane %v10268, 2
      %v10537 = vrot.slane %v10270, 2
      %v10538 = vsel %vm649, %v10536, %v10537
      %v10539 = vrot.slane %v10269, 2
      %v10540 = vrot.slane %v10271, 2
      %v10541 = vsel %vm649, %v10539, %v10540
      %v10542 = vrot.slane %v10272, 2
      %v10543 = vsel %vm649, %v10537, %v10542
      %v10544 = vrot.slane %v10273, 2
      %v10545 = vsel %vm649, %v10540, %v10544
      %v10546 = vrot.slane %v10274, 2
      %v10547 = vsel %vm649, %v10542, %v10546
      %v10548 = vrot.slane %v10275, 2
      %v10549 = vsel %vm649, %v10544, %v10548
      %v10550 = vrot.slane %v10276, 2
      %v10551 = vrot.slane %v10278, 2
      %v10552 = vsel %vm649, %v10550, %v10551
      %v10553 = vrot.slane %v10277, 2
      %v10554 = vrot.slane %v10279, 2
      %v10555 = vsel %vm649, %v10553, %v10554
      %v10556 = vrot.slane %v10280, 2
      %v10557 = vsel %vm649, %v10551, %v10556
      %v10558 = vrot.slane %v10281, 2
      %v10559 = vsel %vm649, %v10554, %v10558
      %v10560 = vrot.slane %v10282, 2
      %v10561 = vsel %vm649, %v10556, %v10560
      %v10562 = vrot.slane %v10283, 2
      %v10563 = vsel %vm649, %v10558, %v10562
      %v10564 = vrot.slane %v10284, 2
      %v10565 = vrot.slane %v10286, 2
      %v10566 = vsel %vm649, %v10564, %v10565
      %v10567 = vrot.slane %v10285, 2
      %v10568 = vrot.slane %v10287, 2
      %v10569 = vsel %vm649, %v10567, %v10568
      %v10570 = vrot.slane %v10288, 2
      %v10571 = vsel %vm649, %v10565, %v10570
      %v10572 = vrot.slane %v10289, 2
      %v10573 = vsel %vm649, %v10568, %v10572
      %v10574 = vrot.slane %v10290, 2
      %v10575 = vsel %vm649, %v10570, %v10574
      %v10576 = vrot.slane %v10291, 2
      %v10577 = vsel %vm649, %v10572, %v10576
      %v10578 = vrot.slane %v10292, 2
      %v10579 = vrot.slane %v10294, 2
      %v10580 = vsel %vm649, %v10578, %v10579
      %v10581 = vrot.slane %v10293, 2
      %v10582 = vrot.slane %v10295, 2
      %v10583 = vsel %vm649, %v10581, %v10582
      %v10584 = vrot.slane %v10296, 2
      %v10585 = vsel %vm649, %v10579, %v10584
      %v10586 = vrot.slane %v10297, 2
      %v10587 = vsel %vm649, %v10582, %v10586
      %v10588 = vrot.slane %v10298, 2
      %v10589 = vsel %vm649, %v10584, %v10588
      %v10590 = vrot.slane %v10299, 2
      %v10591 = vsel %vm649, %v10586, %v10590
      %v10592 = vrot.slane %v10300, 2
      %v10593 = vrot.slane %v10302, 2
      %v10594 = vsel %vm649, %v10592, %v10593
      %v10595 = vrot.slane %v10301, 2
      %v10596 = vrot.slane %v10303, 2
      %v10597 = vsel %vm649, %v10595, %v10596
      %v10598 = vrot.slane %v10304, 2
      %v10599 = vsel %vm649, %v10593, %v10598
      %v10600 = vrot.slane %v10305, 2
      %v10601 = vsel %vm649, %v10596, %v10600
      %v10602 = vrot.slane %v10306, 2
      %v10603 = vsel %vm649, %v10598, %v10602
      %v10604 = vrot.slane %v10307, 2
      %v10605 = vsel %vm649, %v10600, %v10604
      %v10606 = vrot.slane %v10308, 2
      %v10607 = vrot.slane %v10310, 2
      %v10608 = vsel %vm649, %v10606, %v10607
      %v10609 = vrot.slane %v10309, 2
      %v10610 = vrot.slane %v10311, 2
      %v10611 = vsel %vm649, %v10609, %v10610
      %v10612 = vrot.slane %v10312, 2
      %v10613 = vsel %vm649, %v10607, %v10612
      %v10614 = vrot.slane %v10313, 2
      %v10615 = vsel %vm649, %v10610, %v10614
      %v10616 = vrot.slane %v10314, 2
      %v10617 = vsel %vm649, %v10612, %v10616
      %v10618 = vrot.slane %v10315, 2
      %v10619 = vsel %vm649, %v10614, %v10618
      %v10620 = vrot.slane %v10316, 2
      %v10621 = vrot.slane %v10318, 2
      %v10622 = vsel %vm649, %v10620, %v10621
      %v10623 = vrot.slane %v10317, 2
      %v10624 = vrot.slane %v10319, 2
      %v10625 = vsel %vm649, %v10623, %v10624
      %v10626 = vrot.slane %v10320, 2
      %v10627 = vsel %vm649, %v10621, %v10626
      %v10628 = vrot.slane %v10321, 2
      %v10629 = vsel %vm649, %v10624, %v10628
      %v10630 = vrot.slane %v10322, 2
      %v10631 = vsel %vm649, %v10626, %v10630
      %v10632 = vrot.slane %v10323, 2
      %v10633 = vsel %vm649, %v10628, %v10632
      %v10634 = vrot.slane %v10324, 2
      %v10635 = vrot.slane %v10326, 2
      %v10636 = vsel %vm649, %v10634, %v10635
      %v10637 = vrot.slane %v10325, 2
      %v10638 = vrot.slane %v10327, 2
      %v10639 = vsel %vm649, %v10637, %v10638
      %v10640 = vrot.slane %v10328, 2
      %v10641 = vsel %vm649, %v10635, %v10640
      %v10642 = vrot.slane %v10329, 2
      %v10643 = vsel %vm649, %v10638, %v10642
      %v10644 = vrot.slane %v10330, 2
      %v10645 = vsel %vm649, %v10640, %v10644
      %v10646 = vrot.slane %v10331, 2
      %v10647 = vsel %vm649, %v10642, %v10646
      %v10648 = vrot.slane %v10332, 2
      %v10649 = vrot.slane %v10334, 2
      %v10650 = vsel %vm649, %v10648, %v10649
      %v10651 = vrot.slane %v10333, 2
      %v10652 = vrot.slane %v10335, 2
      %v10653 = vsel %vm649, %v10651, %v10652
      %v10654 = vrot.slane %v10336, 2
      %v10655 = vsel %vm649, %v10649, %v10654
      %v10656 = vrot.slane %v10337, 2
      %v10657 = vsel %vm649, %v10652, %v10656
      %v10658 = vrot.slane %v10338, 2
      %v10659 = vsel %vm649, %v10654, %v10658
      %v10660 = vrot.slane %v10339, 2
      %v10661 = vsel %vm649, %v10656, %v10660
      %v10662 = vrot.slane %v10340, 2
      %v10663 = vrot.slane %v10342, 2
      %v10664 = vsel %vm649, %v10662, %v10663
      %v10665 = vrot.slane %v10341, 2
      %v10666 = vrot.slane %v10343, 2
      %v10667 = vsel %vm649, %v10665, %v10666
      %v10668 = vrot.slane %v10344, 2
      %v10669 = vsel %vm649, %v10663, %v10668
      %v10670 = vrot.slane %v10345, 2
      %v10671 = vsel %vm649, %v10666, %v10670
      %v10672 = vrot.slane %v10346, 2
      %v10673 = vsel %vm649, %v10668, %v10672
      %v10674 = vrot.slane %v10347, 2
      %v10675 = vsel %vm649, %v10670, %v10674
      %v10676 = vrot.slane %v10348, 2
      %v10677 = vrot.slane %v10350, 2
      %v10678 = vsel %vm649, %v10676, %v10677
      %v10679 = vrot.slane %v10349, 2
      %v10680 = vrot.slane %v10351, 2
      %v10681 = vsel %vm649, %v10679, %v10680
      %v10682 = vrot.slane %v10352, 2
      %v10683 = vsel %vm649, %v10677, %v10682
      %v10684 = vrot.slane %v10353, 2
      %v10685 = vsel %vm649, %v10680, %v10684
      %v10686 = vrot.slane %v10354, 2
      %v10687 = vsel %vm649, %v10682, %v10686
      %v10688 = vrot.slane %v10355, 2
      %v10689 = vsel %vm649, %v10684, %v10688
      %v10690 = vrot.slane %v10356, 2
      %v10691 = vrot.slane %v10358, 2
      %v10692 = vsel %vm649, %v10690, %v10691
      %v10693 = vrot.slane %v10357, 2
      %v10694 = vrot.slane %v10359, 2
      %v10695 = vsel %vm649, %v10693, %v10694
      %v10696 = vrot.slane %v10360, 2
      %v10697 = vsel %vm649, %v10691, %v10696
      %v10698 = vrot.slane %v10361, 2
      %v10699 = vsel %vm649, %v10694, %v10698
      %v10700 = vrot.slane %v10362, 2
      %v10701 = vsel %vm649, %v10696, %v10700
      %v10702 = vrot.slane %v10363, 2
      %v10703 = vsel %vm649, %v10698, %v10702
      %v10704 = vrot.slane %v10364, 2
      %v10705 = vrot.slane %v10366, 2
      %v10706 = vsel %vm649, %v10704, %v10705
      %v10707 = vrot.slane %v10365, 2
      %v10708 = vrot.slane %v10367, 2
      %v10709 = vsel %vm649, %v10707, %v10708
      %v10710 = vrot.slane %v10368, 2
      %v10711 = vsel %vm649, %v10705, %v10710
      %v10712 = vrot.slane %v10369, 2
      %v10713 = vsel %vm649, %v10708, %v10712
      %v10714 = vrot.slane %v10370, 2
      %v10715 = vsel %vm649, %v10710, %v10714
      %v10716 = vrot.slane %v10371, 2
      %v10717 = vsel %vm649, %v10712, %v10716
      %v10718 = vrot.slane %v10372, 2
      %v10719 = vrot.slane %v10374, 2
      %v10720 = vsel %vm649, %v10718, %v10719
      %v10721 = vrot.slane %v10373, 2
      %v10722 = vrot.slane %v10375, 2
      %v10723 = vsel %vm649, %v10721, %v10722
      %v10724 = vrot.slane %v10376, 2
      %v10725 = vsel %vm649, %v10719, %v10724
      %v10726 = vrot.slane %v10377, 2
      %v10727 = vsel %vm649, %v10722, %v10726
      %v10728 = vrot.slane %v10378, 2
      %v10729 = vsel %vm649, %v10724, %v10728
      %v10730 = vrot.slane %v10379, 2
      %v10731 = vsel %vm649, %v10726, %v10730
      %v10828 = vmax.f32 %v10252, %v10510
      %v10829 = vmax.f32 %v10253, %v10513
      %v10830 = vmax.f32 %v10254, %v10515
      %v10831 = vmax.f32 %v10255, %v10517
      %v10832 = vmax.f32 %v10256, %v10519
      %v10833 = vmax.f32 %v10257, %v10521
      %v10834 = vmax.f32 %v10260, %v10524
      %v10835 = vmax.f32 %v10261, %v10527
      %v10836 = vmax.f32 %v10262, %v10529
      %v10837 = vmax.f32 %v10263, %v10531
      %v10838 = vmax.f32 %v10264, %v10533
      %v10839 = vmax.f32 %v10265, %v10535
      %v10840 = vmax.f32 %v10268, %v10538
      %v10841 = vmax.f32 %v10269, %v10541
      %v10842 = vmax.f32 %v10270, %v10543
      %v10843 = vmax.f32 %v10271, %v10545
      %v10844 = vmax.f32 %v10272, %v10547
      %v10845 = vmax.f32 %v10273, %v10549
      %v10846 = vmax.f32 %v10276, %v10552
      %v10847 = vmax.f32 %v10277, %v10555
      %v10848 = vmax.f32 %v10278, %v10557
      %v10849 = vmax.f32 %v10279, %v10559
      %v10850 = vmax.f32 %v10280, %v10561
      %v10851 = vmax.f32 %v10281, %v10563
      %v10852 = vmax.f32 %v10284, %v10566
      %v10853 = vmax.f32 %v10285, %v10569
      %v10854 = vmax.f32 %v10286, %v10571
      %v10855 = vmax.f32 %v10287, %v10573
      %v10856 = vmax.f32 %v10288, %v10575
      %v10857 = vmax.f32 %v10289, %v10577
      %v10858 = vmax.f32 %v10292, %v10580
      %v10859 = vmax.f32 %v10293, %v10583
      %v10860 = vmax.f32 %v10294, %v10585
      %v10861 = vmax.f32 %v10295, %v10587
      %v10862 = vmax.f32 %v10296, %v10589
      %v10863 = vmax.f32 %v10297, %v10591
      %v10864 = vmax.f32 %v10300, %v10594
      %v10865 = vmax.f32 %v10301, %v10597
      %v10866 = vmax.f32 %v10302, %v10599
      %v10867 = vmax.f32 %v10303, %v10601
      %v10868 = vmax.f32 %v10304, %v10603
      %v10869 = vmax.f32 %v10305, %v10605
      %v10870 = vmax.f32 %v10308, %v10608
      %v10871 = vmax.f32 %v10309, %v10611
      %v10872 = vmax.f32 %v10310, %v10613
      %v10873 = vmax.f32 %v10311, %v10615
      %v10874 = vmax.f32 %v10312, %v10617
      %v10875 = vmax.f32 %v10313, %v10619
      %v10876 = vmax.f32 %v10316, %v10622
      %v10877 = vmax.f32 %v10317, %v10625
      %v10878 = vmax.f32 %v10318, %v10627
      %v10879 = vmax.f32 %v10319, %v10629
      %v10880 = vmax.f32 %v10320, %v10631
      %v10881 = vmax.f32 %v10321, %v10633
      %v10882 = vmax.f32 %v10324, %v10636
      %v10883 = vmax.f32 %v10325, %v10639
      %v10884 = vmax.f32 %v10326, %v10641
      %v10885 = vmax.f32 %v10327, %v10643
      %v10886 = vmax.f32 %v10328, %v10645
      %v10887 = vmax.f32 %v10329, %v10647
      %v10888 = vmax.f32 %v10332, %v10650
      %v10889 = vmax.f32 %v10333, %v10653
      %v10890 = vmax.f32 %v10334, %v10655
      %v10891 = vmax.f32 %v10335, %v10657
      %v10892 = vmax.f32 %v10336, %v10659
      %v10893 = vmax.f32 %v10337, %v10661
      %v10894 = vmax.f32 %v10340, %v10664
      %v10895 = vmax.f32 %v10341, %v10667
      %v10896 = vmax.f32 %v10342, %v10669
      %v10897 = vmax.f32 %v10343, %v10671
      %v10898 = vmax.f32 %v10344, %v10673
      %v10899 = vmax.f32 %v10345, %v10675
      %v10900 = vmax.f32 %v10348, %v10678
      %v10901 = vmax.f32 %v10349, %v10681
      %v10902 = vmax.f32 %v10350, %v10683
      %v10903 = vmax.f32 %v10351, %v10685
      %v10904 = vmax.f32 %v10352, %v10687
      %v10905 = vmax.f32 %v10353, %v10689
      %v10906 = vmax.f32 %v10356, %v10692
      %v10907 = vmax.f32 %v10357, %v10695
      %v10908 = vmax.f32 %v10358, %v10697
      %v10909 = vmax.f32 %v10359, %v10699
      %v10910 = vmax.f32 %v10360, %v10701
      %v10911 = vmax.f32 %v10361, %v10703
      %v10912 = vmax.f32 %v10364, %v10706
      %v10913 = vmax.f32 %v10365, %v10709
      %v10914 = vmax.f32 %v10366, %v10711
      %v10915 = vmax.f32 %v10367, %v10713
      %v10916 = vmax.f32 %v10368, %v10715
      %v10917 = vmax.f32 %v10369, %v10717
      %v10918 = vmax.f32 %v10372, %v10720
      %v10919 = vmax.f32 %v10373, %v10723
      %v10920 = vmax.f32 %v10374, %v10725
      %v10921 = vmax.f32 %v10375, %v10727
      %v10922 = vmax.f32 %v10376, %v10729
      %v10923 = vmax.f32 %v10377, %v10731
      %v10988 = vrot.slane %v10828, 4
      %v10989 = vrot.slane %v10830, 4
      %v10990 = vsel %vm911, %v10988, %v10989
      %v10991 = vrot.slane %v10829, 4
      %v10992 = vrot.slane %v10831, 4
      %v10993 = vsel %vm911, %v10991, %v10992
      %v10994 = vrot.slane %v10834, 4
      %v10995 = vrot.slane %v10836, 4
      %v10996 = vsel %vm911, %v10994, %v10995
      %v10997 = vrot.slane %v10835, 4
      %v10998 = vrot.slane %v10837, 4
      %v10999 = vsel %vm911, %v10997, %v10998
      %v11000 = vrot.slane %v10840, 4
      %v11001 = vrot.slane %v10842, 4
      %v11002 = vsel %vm911, %v11000, %v11001
      %v11003 = vrot.slane %v10841, 4
      %v11004 = vrot.slane %v10843, 4
      %v11005 = vsel %vm911, %v11003, %v11004
      %v11006 = vrot.slane %v10846, 4
      %v11007 = vrot.slane %v10848, 4
      %v11008 = vsel %vm911, %v11006, %v11007
      %v11009 = vrot.slane %v10847, 4
      %v11010 = vrot.slane %v10849, 4
      %v11011 = vsel %vm911, %v11009, %v11010
      %v11012 = vrot.slane %v10852, 4
      %v11013 = vrot.slane %v10854, 4
      %v11014 = vsel %vm911, %v11012, %v11013
      %v11015 = vrot.slane %v10853, 4
      %v11016 = vrot.slane %v10855, 4
      %v11017 = vsel %vm911, %v11015, %v11016
      %v11018 = vrot.slane %v10858, 4
      %v11019 = vrot.slane %v10860, 4
      %v11020 = vsel %vm911, %v11018, %v11019
      %v11021 = vrot.slane %v10859, 4
      %v11022 = vrot.slane %v10861, 4
      %v11023 = vsel %vm911, %v11021, %v11022
      %v11024 = vrot.slane %v10864, 4
      %v11025 = vrot.slane %v10866, 4
      %v11026 = vsel %vm911, %v11024, %v11025
      %v11027 = vrot.slane %v10865, 4
      %v11028 = vrot.slane %v10867, 4
      %v11029 = vsel %vm911, %v11027, %v11028
      %v11030 = vrot.slane %v10870, 4
      %v11031 = vrot.slane %v10872, 4
      %v11032 = vsel %vm911, %v11030, %v11031
      %v11033 = vrot.slane %v10871, 4
      %v11034 = vrot.slane %v10873, 4
      %v11035 = vsel %vm911, %v11033, %v11034
      %v11036 = vrot.slane %v10876, 4
      %v11037 = vrot.slane %v10878, 4
      %v11038 = vsel %vm911, %v11036, %v11037
      %v11039 = vrot.slane %v10877, 4
      %v11040 = vrot.slane %v10879, 4
      %v11041 = vsel %vm911, %v11039, %v11040
      %v11042 = vrot.slane %v10882, 4
      %v11043 = vrot.slane %v10884, 4
      %v11044 = vsel %vm911, %v11042, %v11043
      %v11045 = vrot.slane %v10883, 4
      %v11046 = vrot.slane %v10885, 4
      %v11047 = vsel %vm911, %v11045, %v11046
      %v11048 = vrot.slane %v10888, 4
      %v11049 = vrot.slane %v10890, 4
      %v11050 = vsel %vm911, %v11048, %v11049
      %v11051 = vrot.slane %v10889, 4
      %v11052 = vrot.slane %v10891, 4
      %v11053 = vsel %vm911, %v11051, %v11052
      %v11054 = vrot.slane %v10894, 4
      %v11055 = vrot.slane %v10896, 4
      %v11056 = vsel %vm911, %v11054, %v11055
      %v11057 = vrot.slane %v10895, 4
      %v11058 = vrot.slane %v10897, 4
      %v11059 = vsel %vm911, %v11057, %v11058
      %v11060 = vrot.slane %v10900, 4
      %v11061 = vrot.slane %v10902, 4
      %v11062 = vsel %vm911, %v11060, %v11061
      %v11063 = vrot.slane %v10901, 4
      %v11064 = vrot.slane %v10903, 4
      %v11065 = vsel %vm911, %v11063, %v11064
      %v11066 = vrot.slane %v10906, 4
      %v11067 = vrot.slane %v10908, 4
      %v11068 = vsel %vm911, %v11066, %v11067
      %v11069 = vrot.slane %v10907, 4
      %v11070 = vrot.slane %v10909, 4
      %v11071 = vsel %vm911, %v11069, %v11070
      %v11072 = vrot.slane %v10912, 4
      %v11073 = vrot.slane %v10914, 4
      %v11074 = vsel %vm911, %v11072, %v11073
      %v11075 = vrot.slane %v10913, 4
      %v11076 = vrot.slane %v10915, 4
      %v11077 = vsel %vm911, %v11075, %v11076
      %v11078 = vrot.slane %v10918, 4
      %v11079 = vrot.slane %v10920, 4
      %v11080 = vsel %vm911, %v11078, %v11079
      %v11081 = vrot.slane %v10919, 4
      %v11082 = vrot.slane %v10921, 4
      %v11083 = vsel %vm911, %v11081, %v11082
      %v11116 = vrot.slane %v10832, 4
      %v11117 = vsel %vm911, %v10989, %v11116
      %v11118 = vrot.slane %v10833, 4
      %v11119 = vsel %vm911, %v10992, %v11118
      %v11120 = vrot.slane %v10838, 4
      %v11121 = vsel %vm911, %v10995, %v11120
      %v11122 = vrot.slane %v10839, 4
      %v11123 = vsel %vm911, %v10998, %v11122
      %v11124 = vrot.slane %v10844, 4
      %v11125 = vsel %vm911, %v11001, %v11124
      %v11126 = vrot.slane %v10845, 4
      %v11127 = vsel %vm911, %v11004, %v11126
      %v11128 = vrot.slane %v10850, 4
      %v11129 = vsel %vm911, %v11007, %v11128
      %v11130 = vrot.slane %v10851, 4
      %v11131 = vsel %vm911, %v11010, %v11130
      %v11132 = vrot.slane %v10856, 4
      %v11133 = vsel %vm911, %v11013, %v11132
      %v11134 = vrot.slane %v10857, 4
      %v11135 = vsel %vm911, %v11016, %v11134
      %v11136 = vrot.slane %v10862, 4
      %v11137 = vsel %vm911, %v11019, %v11136
      %v11138 = vrot.slane %v10863, 4
      %v11139 = vsel %vm911, %v11022, %v11138
      %v11140 = vrot.slane %v10868, 4
      %v11141 = vsel %vm911, %v11025, %v11140
      %v11142 = vrot.slane %v10869, 4
      %v11143 = vsel %vm911, %v11028, %v11142
      %v11144 = vrot.slane %v10874, 4
      %v11145 = vsel %vm911, %v11031, %v11144
      %v11146 = vrot.slane %v10875, 4
      %v11147 = vsel %vm911, %v11034, %v11146
      %v11148 = vrot.slane %v10880, 4
      %v11149 = vsel %vm911, %v11037, %v11148
      %v11150 = vrot.slane %v10881, 4
      %v11151 = vsel %vm911, %v11040, %v11150
      %v11152 = vrot.slane %v10886, 4
      %v11153 = vsel %vm911, %v11043, %v11152
      %v11154 = vrot.slane %v10887, 4
      %v11155 = vsel %vm911, %v11046, %v11154
      %v11156 = vrot.slane %v10892, 4
      %v11157 = vsel %vm911, %v11049, %v11156
      %v11158 = vrot.slane %v10893, 4
      %v11159 = vsel %vm911, %v11052, %v11158
      %v11160 = vrot.slane %v10898, 4
      %v11161 = vsel %vm911, %v11055, %v11160
      %v11162 = vrot.slane %v10899, 4
      %v11163 = vsel %vm911, %v11058, %v11162
      %v11164 = vrot.slane %v10904, 4
      %v11165 = vsel %vm911, %v11061, %v11164
      %v11166 = vrot.slane %v10905, 4
      %v11167 = vsel %vm911, %v11064, %v11166
      %v11168 = vrot.slane %v10910, 4
      %v11169 = vsel %vm911, %v11067, %v11168
      %v11170 = vrot.slane %v10911, 4
      %v11171 = vsel %vm911, %v11070, %v11170
      %v11172 = vrot.slane %v10916, 4
      %v11173 = vsel %vm911, %v11073, %v11172
      %v11174 = vrot.slane %v10917, 4
      %v11175 = vsel %vm911, %v11076, %v11174
      %v11176 = vrot.slane %v10922, 4
      %v11177 = vsel %vm911, %v11079, %v11176
      %v11178 = vrot.slane %v10923, 4
      %v11179 = vsel %vm911, %v11082, %v11178
      %11180 = vrot.lane.b32.xlu0 %v10990, 32
      %v11181 = vpop.permute.xlu0 %11180
      %11182 = vrot.lane.b32.xlu0 %v10993, 32
      %v11183 = vpop.permute.xlu0 %11182
      %11184 = vrot.lane.b32.xlu0 %v10996, 32
      %v11185 = vpop.permute.xlu0 %11184
      %11186 = vrot.lane.b32.xlu0 %v10999, 32
      %v11187 = vpop.permute.xlu0 %11186
      %11188 = vrot.lane.b32.xlu0 %v11002, 32
      %v11189 = vpop.permute.xlu0 %11188
      %11190 = vrot.lane.b32.xlu0 %v11005, 32
      %v11191 = vpop.permute.xlu0 %11190
      %11192 = vrot.lane.b32.xlu0 %v11008, 32
      %v11193 = vpop.permute.xlu0 %11192
      %11194 = vrot.lane.b32.xlu0 %v11011, 32
      %v11195 = vpop.permute.xlu0 %11194
      %11196 = vrot.lane.b32.xlu0 %v11014, 32
      %v11197 = vpop.permute.xlu0 %11196
      %11198 = vrot.lane.b32.xlu0 %v11017, 32
      %v11199 = vpop.permute.xlu0 %11198
      %11200 = vrot.lane.b32.xlu0 %v11020, 32
      %v11201 = vpop.permute.xlu0 %11200
      %11202 = vrot.lane.b32.xlu0 %v11023, 32
      %v11203 = vpop.permute.xlu0 %11202
      %11204 = vrot.lane.b32.xlu0 %v11026, 32
      %v11205 = vpop.permute.xlu0 %11204
      %11206 = vrot.lane.b32.xlu0 %v11029, 32
      %v11207 = vpop.permute.xlu0 %11206
      %11208 = vrot.lane.b32.xlu0 %v11032, 32
      %v11209 = vpop.permute.xlu0 %11208
      %11210 = vrot.lane.b32.xlu0 %v11035, 32
      %v11211 = vpop.permute.xlu0 %11210
      %11212 = vrot.lane.b32.xlu0 %v11038, 32
      %v11213 = vpop.permute.xlu0 %11212
      %11214 = vrot.lane.b32.xlu0 %v11041, 32
      %v11215 = vpop.permute.xlu0 %11214
      %11216 = vrot.lane.b32.xlu0 %v11044, 32
      %v11217 = vpop.permute.xlu0 %11216
      %11218 = vrot.lane.b32.xlu0 %v11047, 32
      %v11219 = vpop.permute.xlu0 %11218
      %11220 = vrot.lane.b32.xlu0 %v11050, 32
      %v11221 = vpop.permute.xlu0 %11220
      %11222 = vrot.lane.b32.xlu0 %v11053, 32
      %v11223 = vpop.permute.xlu0 %11222
      %11224 = vrot.lane.b32.xlu0 %v11056, 32
      %v11225 = vpop.permute.xlu0 %11224
      %11226 = vrot.lane.b32.xlu0 %v11059, 32
      %v11227 = vpop.permute.xlu0 %11226
      %11228 = vrot.lane.b32.xlu0 %v11062, 32
      %v11229 = vpop.permute.xlu0 %11228
      %11230 = vrot.lane.b32.xlu0 %v11065, 32
      %v11231 = vpop.permute.xlu0 %11230
      %11232 = vrot.lane.b32.xlu0 %v11068, 32
      %v11233 = vpop.permute.xlu0 %11232
      %11234 = vrot.lane.b32.xlu0 %v11071, 32
      %v11235 = vpop.permute.xlu0 %11234
      %11236 = vrot.lane.b32.xlu0 %v11074, 32
      %v11237 = vpop.permute.xlu0 %11236
      %11238 = vrot.lane.b32.xlu0 %v11077, 32
      %v11239 = vpop.permute.xlu0 %11238
      %11240 = vrot.lane.b32.xlu0 %v11080, 32
      %v11241 = vpop.permute.xlu0 %11240
      %11242 = vrot.lane.b32.xlu0 %v11083, 32
      %v11243 = vpop.permute.xlu0 %11242
      %v11244 = vsel %vm1621, %v11181, %v11183
      %v11245 = vsel %vm1621, %v11185, %v11187
      %v11246 = vsel %vm1621, %v11189, %v11191
      %v11247 = vsel %vm1621, %v11193, %v11195
      %v11248 = vsel %vm1621, %v11197, %v11199
      %v11249 = vsel %vm1621, %v11201, %v11203
      %v11250 = vsel %vm1621, %v11205, %v11207
      %v11251 = vsel %vm1621, %v11209, %v11211
      %v11252 = vsel %vm1621, %v11213, %v11215
      %v11253 = vsel %vm1621, %v11217, %v11219
      %v11254 = vsel %vm1621, %v11221, %v11223
      %v11255 = vsel %vm1621, %v11225, %v11227
      %v11256 = vsel %vm1621, %v11229, %v11231
      %v11257 = vsel %vm1621, %v11233, %v11235
      %v11258 = vsel %vm1621, %v11237, %v11239
      %v11259 = vsel %vm1621, %v11241, %v11243
      %11292 = vrot.lane.b32.xlu0 %v10830, 64
      %v11293 = vpop.permute.xlu0 %11292
      %11294 = vrot.lane.b32.xlu0 %v10831, 64
      %v11295 = vpop.permute.xlu0 %11294
      %11296 = vrot.lane.b32.xlu0 %v10836, 64
      %v11297 = vpop.permute.xlu0 %11296
      %11298 = vrot.lane.b32.xlu0 %v10837, 64
      %v11299 = vpop.permute.xlu0 %11298
      %11300 = vrot.lane.b32.xlu0 %v10842, 64
      %v11301 = vpop.permute.xlu0 %11300
      %11302 = vrot.lane.b32.xlu0 %v10843, 64
      %v11303 = vpop.permute.xlu0 %11302
      %11304 = vrot.lane.b32.xlu0 %v10848, 64
      %v11305 = vpop.permute.xlu0 %11304
      %11306 = vrot.lane.b32.xlu0 %v10849, 64
      %v11307 = vpop.permute.xlu0 %11306
      %11308 = vrot.lane.b32.xlu0 %v10854, 64
      %v11309 = vpop.permute.xlu0 %11308
      %11310 = vrot.lane.b32.xlu0 %v10855, 64
      %v11311 = vpop.permute.xlu0 %11310
      %11312 = vrot.lane.b32.xlu0 %v10860, 64
      %v11313 = vpop.permute.xlu0 %11312
      %11314 = vrot.lane.b32.xlu0 %v10861, 64
      %v11315 = vpop.permute.xlu0 %11314
      %11316 = vrot.lane.b32.xlu0 %v10866, 64
      %v11317 = vpop.permute.xlu0 %11316
      %11318 = vrot.lane.b32.xlu0 %v10867, 64
      %v11319 = vpop.permute.xlu0 %11318
      %11320 = vrot.lane.b32.xlu0 %v10872, 64
      %v11321 = vpop.permute.xlu0 %11320
      %11322 = vrot.lane.b32.xlu0 %v10873, 64
      %v11323 = vpop.permute.xlu0 %11322
      %11324 = vrot.lane.b32.xlu0 %v10878, 64
      %v11325 = vpop.permute.xlu0 %11324
      %11326 = vrot.lane.b32.xlu0 %v10879, 64
      %v11327 = vpop.permute.xlu0 %11326
      %11328 = vrot.lane.b32.xlu0 %v10884, 64
      %v11329 = vpop.permute.xlu0 %11328
      %11330 = vrot.lane.b32.xlu0 %v10885, 64
      %v11331 = vpop.permute.xlu0 %11330
      %11332 = vrot.lane.b32.xlu0 %v10890, 64
      %v11333 = vpop.permute.xlu0 %11332
      %11334 = vrot.lane.b32.xlu0 %v10891, 64
      %v11335 = vpop.permute.xlu0 %11334
      %11336 = vrot.lane.b32.xlu0 %v10896, 64
      %v11337 = vpop.permute.xlu0 %11336
      %11338 = vrot.lane.b32.xlu0 %v10897, 64
      %v11339 = vpop.permute.xlu0 %11338
      %11340 = vrot.lane.b32.xlu0 %v10902, 64
      %v11341 = vpop.permute.xlu0 %11340
      %11342 = vrot.lane.b32.xlu0 %v10903, 64
      %v11343 = vpop.permute.xlu0 %11342
      %11344 = vrot.lane.b32.xlu0 %v10908, 64
      %v11345 = vpop.permute.xlu0 %11344
      %11346 = vrot.lane.b32.xlu0 %v10909, 64
      %v11347 = vpop.permute.xlu0 %11346
      %11348 = vrot.lane.b32.xlu0 %v10914, 64
      %v11349 = vpop.permute.xlu0 %11348
      %11350 = vrot.lane.b32.xlu0 %v10915, 64
      %v11351 = vpop.permute.xlu0 %11350
      %11352 = vrot.lane.b32.xlu0 %v10920, 64
      %v11353 = vpop.permute.xlu0 %11352
      %11354 = vrot.lane.b32.xlu0 %v10921, 64
      %v11355 = vpop.permute.xlu0 %11354
      %v11356 = vsel %vm1686, %v11293, %v11295
      %v11357 = vsel %vm1686, %v11297, %v11299
      %v11358 = vsel %vm1686, %v11301, %v11303
      %v11359 = vsel %vm1686, %v11305, %v11307
      %v11360 = vsel %vm1686, %v11309, %v11311
      %v11361 = vsel %vm1686, %v11313, %v11315
      %v11362 = vsel %vm1686, %v11317, %v11319
      %v11363 = vsel %vm1686, %v11321, %v11323
      %v11364 = vsel %vm1686, %v11325, %v11327
      %v11365 = vsel %vm1686, %v11329, %v11331
      %v11366 = vsel %vm1686, %v11333, %v11335
      %v11367 = vsel %vm1686, %v11337, %v11339
      %v11368 = vsel %vm1686, %v11341, %v11343
      %v11369 = vsel %vm1686, %v11345, %v11347
      %v11370 = vsel %vm1686, %v11349, %v11351
      %v11371 = vsel %vm1686, %v11353, %v11355
      %11404 = vrot.lane.b32.xlu0 %v11117, 96
      %v11405 = vpop.permute.xlu0 %11404
      %11406 = vrot.lane.b32.xlu0 %v11119, 96
      %v11407 = vpop.permute.xlu0 %11406
      %11408 = vrot.lane.b32.xlu0 %v11121, 96
      %v11409 = vpop.permute.xlu0 %11408
      %11410 = vrot.lane.b32.xlu0 %v11123, 96
      %v11411 = vpop.permute.xlu0 %11410
      %11412 = vrot.lane.b32.xlu0 %v11125, 96
      %v11413 = vpop.permute.xlu0 %11412
      %11414 = vrot.lane.b32.xlu0 %v11127, 96
      %v11415 = vpop.permute.xlu0 %11414
      %11416 = vrot.lane.b32.xlu0 %v11129, 96
      %v11417 = vpop.permute.xlu0 %11416
      %11418 = vrot.lane.b32.xlu0 %v11131, 96
      %v11419 = vpop.permute.xlu0 %11418
      %11420 = vrot.lane.b32.xlu0 %v11133, 96
      %v11421 = vpop.permute.xlu0 %11420
      %11422 = vrot.lane.b32.xlu0 %v11135, 96
      %v11423 = vpop.permute.xlu0 %11422
      %11424 = vrot.lane.b32.xlu0 %v11137, 96
      %v11425 = vpop.permute.xlu0 %11424
      %11426 = vrot.lane.b32.xlu0 %v11139, 96
      %v11427 = vpop.permute.xlu0 %11426
      %11428 = vrot.lane.b32.xlu0 %v11141, 96
      %v11429 = vpop.permute.xlu0 %11428
      %11430 = vrot.lane.b32.xlu0 %v11143, 96
      %v11431 = vpop.permute.xlu0 %11430
      %11432 = vrot.lane.b32.xlu0 %v11145, 96
      %v11433 = vpop.permute.xlu0 %11432
      %11434 = vrot.lane.b32.xlu0 %v11147, 96
      %v11435 = vpop.permute.xlu0 %11434
      %11436 = vrot.lane.b32.xlu0 %v11149, 96
      %v11437 = vpop.permute.xlu0 %11436
      %11438 = vrot.lane.b32.xlu0 %v11151, 96
      %v11439 = vpop.permute.xlu0 %11438
      %11440 = vrot.lane.b32.xlu0 %v11153, 96
      %v11441 = vpop.permute.xlu0 %11440
      %11442 = vrot.lane.b32.xlu0 %v11155, 96
      %v11443 = vpop.permute.xlu0 %11442
      %11444 = vrot.lane.b32.xlu0 %v11157, 96
      %v11445 = vpop.permute.xlu0 %11444
      %11446 = vrot.lane.b32.xlu0 %v11159, 96
      %v11447 = vpop.permute.xlu0 %11446
      %11448 = vrot.lane.b32.xlu0 %v11161, 96
      %v11449 = vpop.permute.xlu0 %11448
      %11450 = vrot.lane.b32.xlu0 %v11163, 96
      %v11451 = vpop.permute.xlu0 %11450
      %11452 = vrot.lane.b32.xlu0 %v11165, 96
      %v11453 = vpop.permute.xlu0 %11452
      %11454 = vrot.lane.b32.xlu0 %v11167, 96
      %v11455 = vpop.permute.xlu0 %11454
      %11456 = vrot.lane.b32.xlu0 %v11169, 96
      %v11457 = vpop.permute.xlu0 %11456
      %11458 = vrot.lane.b32.xlu0 %v11171, 96
      %v11459 = vpop.permute.xlu0 %11458
      %11460 = vrot.lane.b32.xlu0 %v11173, 96
      %v11461 = vpop.permute.xlu0 %11460
      %11462 = vrot.lane.b32.xlu0 %v11175, 96
      %v11463 = vpop.permute.xlu0 %11462
      %11464 = vrot.lane.b32.xlu0 %v11177, 96
      %v11465 = vpop.permute.xlu0 %11464
      %11466 = vrot.lane.b32.xlu0 %v11179, 96
      %v11467 = vpop.permute.xlu0 %11466
      %v11468 = vsel %vm1751, %v11405, %v11407
      %v11469 = vsel %vm1751, %v11409, %v11411
      %v11470 = vsel %vm1751, %v11413, %v11415
      %v11471 = vsel %vm1751, %v11417, %v11419
      %v11472 = vsel %vm1751, %v11421, %v11423
      %v11473 = vsel %vm1751, %v11425, %v11427
      %v11474 = vsel %vm1751, %v11429, %v11431
      %v11475 = vsel %vm1751, %v11433, %v11435
      %v11476 = vsel %vm1751, %v11437, %v11439
      %v11477 = vsel %vm1751, %v11441, %v11443
      %v11478 = vsel %vm1751, %v11445, %v11447
      %v11479 = vsel %vm1751, %v11449, %v11451
      %v11480 = vsel %vm1751, %v11453, %v11455
      %v11481 = vsel %vm1751, %v11457, %v11459
      %v11482 = vsel %vm1751, %v11461, %v11463
      %v11483 = vsel %vm1751, %v11465, %v11467
      %v11502 = vsel %vm1621, %v10829, %v11181
      %v11503 = vsel %vm1621, %v10835, %v11185
      %v11504 = vsel %vm1621, %v10841, %v11189
      %v11505 = vsel %vm1621, %v10847, %v11193
      %v11506 = vsel %vm1621, %v10853, %v11197
      %v11507 = vsel %vm1621, %v10859, %v11201
      %v11508 = vsel %vm1621, %v10865, %v11205
      %v11509 = vsel %vm1621, %v10871, %v11209
      %v11510 = vsel %vm1621, %v10877, %v11213
      %v11511 = vsel %vm1621, %v10883, %v11217
      %v11512 = vsel %vm1621, %v10889, %v11221
      %v11513 = vsel %vm1621, %v10895, %v11225
      %v11514 = vsel %vm1621, %v10901, %v11229
      %v11515 = vsel %vm1621, %v10907, %v11233
      %v11516 = vsel %vm1621, %v10913, %v11237
      %v11517 = vsel %vm1621, %v10919, %v11241
      %v11518 = vsel %vm1686, %v11244, %v11293
      %v11519 = vsel %vm1686, %v11245, %v11297
      %v11520 = vsel %vm1686, %v11246, %v11301
      %v11521 = vsel %vm1686, %v11247, %v11305
      %v11522 = vsel %vm1686, %v11248, %v11309
      %v11523 = vsel %vm1686, %v11249, %v11313
      %v11524 = vsel %vm1686, %v11250, %v11317
      %v11525 = vsel %vm1686, %v11251, %v11321
      %v11526 = vsel %vm1686, %v11252, %v11325
      %v11527 = vsel %vm1686, %v11253, %v11329
      %v11528 = vsel %vm1686, %v11254, %v11333
      %v11529 = vsel %vm1686, %v11255, %v11337
      %v11530 = vsel %vm1686, %v11256, %v11341
      %v11531 = vsel %vm1686, %v11257, %v11345
      %v11532 = vsel %vm1686, %v11258, %v11349
      %v11533 = vsel %vm1686, %v11259, %v11353
      %v11534 = vsel %vm1751, %v11356, %v11405
      %v11535 = vsel %vm1751, %v11357, %v11409
      %v11536 = vsel %vm1751, %v11358, %v11413
      %v11537 = vsel %vm1751, %v11359, %v11417
      %v11538 = vsel %vm1751, %v11360, %v11421
      %v11539 = vsel %vm1751, %v11361, %v11425
      %v11540 = vsel %vm1751, %v11362, %v11429
      %v11541 = vsel %vm1751, %v11363, %v11433
      %v11542 = vsel %vm1751, %v11364, %v11437
      %v11543 = vsel %vm1751, %v11365, %v11441
      %v11544 = vsel %vm1751, %v11366, %v11445
      %v11545 = vsel %vm1751, %v11367, %v11449
      %v11546 = vsel %vm1751, %v11368, %v11453
      %v11547 = vsel %vm1751, %v11369, %v11457
      %v11548 = vsel %vm1751, %v11370, %v11461
      %v11549 = vsel %vm1751, %v11371, %v11465
      %v11553 = vrot.slane %v10834, 7
      %v11554 = vrot.slane %v11503, 7
      %v11555 = vrot.slane %v11519, 7
      %v11556 = vrot.slane %v11535, 7
      %v11557 = vrot.slane %v11469, 7
      %v11558 = vrot.slane %v10838, 7
      %v11559 = vrot.slane %v10839, 7
      %v11570 = vrot.slane %v10840, 6
      %v11571 = vrot.slane %v11504, 6
      %v11572 = vrot.slane %v11520, 6
      %v11573 = vrot.slane %v11536, 6
      %v11574 = vrot.slane %v11470, 6
      %v11575 = vrot.slane %v10844, 6
      %v11576 = vrot.slane %v10845, 6
      %v11587 = vrot.slane %v10846, 5
      %v11588 = vrot.slane %v11505, 5
      %v11589 = vrot.slane %v11521, 5
      %v11590 = vrot.slane %v11537, 5
      %v11591 = vrot.slane %v11471, 5
      %v11592 = vrot.slane %v10850, 5
      %v11593 = vrot.slane %v10851, 5
      %v11604 = vrot.slane %v11506, 4
      %v11605 = vrot.slane %v11522, 4
      %v11606 = vrot.slane %v11538, 4
      %v11607 = vrot.slane %v11472, 4
      %v11618 = vrot.slane %v10858, 3
      %v11619 = vrot.slane %v11507, 3
      %v11620 = vrot.slane %v11523, 3
      %v11621 = vrot.slane %v11539, 3
      %v11622 = vrot.slane %v11473, 3
      %v11623 = vrot.slane %v10862, 3
      %v11624 = vrot.slane %v10863, 3
      %v11635 = vrot.slane %v10864, 2
      %v11636 = vrot.slane %v11508, 2
      %v11637 = vrot.slane %v11524, 2
      %v11638 = vrot.slane %v11540, 2
      %v11639 = vrot.slane %v11474, 2
      %v11640 = vrot.slane %v10868, 2
      %v11641 = vrot.slane %v10869, 2
      %v11652 = vrot.slane %v10870, 1
      %v11653 = vrot.slane %v11509, 1
      %v11654 = vrot.slane %v11525, 1
      %v11655 = vrot.slane %v11541, 1
      %v11656 = vrot.slane %v11475, 1
      %v11657 = vrot.slane %v10874, 1
      %v11658 = vrot.slane %v10875, 1
      %v11669 = vrot.slane %v10882, 7
      %v11670 = vrot.slane %v11511, 7
      %v11671 = vrot.slane %v11527, 7
      %v11672 = vrot.slane %v11543, 7
      %v11673 = vrot.slane %v11477, 7
      %v11674 = vrot.slane %v10886, 7
      %v11675 = vrot.slane %v10887, 7
      %v11686 = vrot.slane %v10888, 6
      %v11687 = vrot.slane %v11512, 6
      %v11688 = vrot.slane %v11528, 6
      %v11689 = vrot.slane %v11544, 6
      %v11690 = vrot.slane %v11478, 6
      %v11691 = vrot.slane %v10892, 6
      %v11692 = vrot.slane %v10893, 6
      %v11703 = vrot.slane %v10894, 5
      %v11704 = vrot.slane %v11513, 5
      %v11705 = vrot.slane %v11529, 5
      %v11706 = vrot.slane %v11545, 5
      %v11707 = vrot.slane %v11479, 5
      %v11708 = vrot.slane %v10898, 5
      %v11709 = vrot.slane %v10899, 5
      %v11720 = vrot.slane %v11514, 4
      %v11721 = vrot.slane %v11530, 4
      %v11722 = vrot.slane %v11546, 4
      %v11723 = vrot.slane %v11480, 4
      %v11734 = vrot.slane %v10906, 3
      %v11735 = vrot.slane %v11515, 3
      %v11736 = vrot.slane %v11531, 3
      %v11737 = vrot.slane %v11547, 3
      %v11738 = vrot.slane %v11481, 3
      %v11739 = vrot.slane %v10910, 3
      %v11740 = vrot.slane %v10911, 3
      %v11751 = vrot.slane %v10912, 2
      %v11752 = vrot.slane %v11516, 2
      %v11753 = vrot.slane %v11532, 2
      %v11754 = vrot.slane %v11548, 2
      %v11755 = vrot.slane %v11482, 2
      %v11756 = vrot.slane %v10916, 2
      %v11757 = vrot.slane %v10917, 2
      %v11768 = vrot.slane %v10918, 1
      %v11769 = vrot.slane %v11517, 1
      %v11770 = vrot.slane %v11533, 1
      %v11771 = vrot.slane %v11549, 1
      %v11772 = vrot.slane %v11483, 1
      %v11773 = vrot.slane %v10922, 1
      %v11774 = vrot.slane %v10923, 1
      %vm11782 = vcmask 1040384
      %v11783 = vsel %vm11782, %v10828, %v11553
      %v11784 = vsel %vm11782, %v11502, %v11554
      %v11785 = vsel %vm11782, %v11518, %v11555
      %v11786 = vsel %vm11782, %v11534, %v11556
      %v11787 = vsel %vm11782, %v11468, %v11557
      %v11788 = vsel %vm11782, %v10832, %v11558
      %v11789 = vsel %vm11782, %v10833, %v11559
      %v11790 = vsel %vm4826, %v11783, %v11570
      %v11791 = vsel %vm4826, %v11784, %v11571
      %v11792 = vsel %vm4826, %v11785, %v11572
      %v11793 = vsel %vm4826, %v11786, %v11573
      %v11794 = vsel %vm4826, %v11787, %v11574
      %v11795 = vsel %vm4826, %v11788, %v11575
      %v11796 = vsel %vm4826, %v11789, %v11576
      %vm11797 = vcmask 1042432
      %v11798 = vsel %vm11797, %v11790, %v11587
      %v11799 = vsel %vm11797, %v11791, %v11588
      %v11800 = vsel %vm11797, %v11792, %v11589
      %v11801 = vsel %vm11797, %v11793, %v11590
      %v11802 = vsel %vm11797, %v11794, %v11591
      %v11803 = vsel %vm11797, %v11795, %v11592
      %v11804 = vsel %vm11797, %v11796, %v11593
      %v11805 = vsel %vm911, %v11798, %v11012
      %v11806 = vsel %vm911, %v11799, %v11604
      %v11807 = vsel %vm911, %v11800, %v11605
      %v11808 = vsel %vm911, %v11801, %v11606
      %v11809 = vsel %vm911, %v11802, %v11607
      %v11810 = vsel %vm911, %v11803, %v11132
      %v11811 = vsel %vm911, %v11804, %v11134
      %v11812 = vsel %vm780, %v11805, %v11618
      %v11813 = vsel %vm780, %v11806, %v11619
      %v11814 = vsel %vm780, %v11807, %v11620
      %v11815 = vsel %vm780, %v11808, %v11621
      %v11816 = vsel %vm780, %v11809, %v11622
      %v11817 = vsel %vm780, %v11810, %v11623
      %v11818 = vsel %vm780, %v11811, %v11624
      %v11819 = vsel %vm649, %v11812, %v11635
      %v11820 = vsel %vm649, %v11813, %v11636
      %v11821 = vsel %vm649, %v11814, %v11637
      %v11822 = vsel %vm649, %v11815, %v11638
      %v11823 = vsel %vm649, %v11816, %v11639
      %v11824 = vsel %vm649, %v11817, %v11640
      %v11825 = vsel %vm649, %v11818, %v11641
      %v11826 = vsel %vm518, %v11819, %v11652
      %v11827 = vsel %vm518, %v11820, %v11653
      %v11828 = vsel %vm518, %v11821, %v11654
      %v11829 = vsel %vm518, %v11822, %v11655
      %v11830 = vsel %vm518, %v11823, %v11656
      %v11831 = vsel %vm518, %v11824, %v11657
      %v11832 = vsel %vm518, %v11825, %v11658
      %v11833 = vsel %vm11782, %v10876, %v11669
      %v11834 = vsel %vm11782, %v11510, %v11670
      %v11835 = vsel %vm11782, %v11526, %v11671
      %v11836 = vsel %vm11782, %v11542, %v11672
      %v11837 = vsel %vm11782, %v11476, %v11673
      %v11838 = vsel %vm11782, %v10880, %v11674
      %v11839 = vsel %vm11782, %v10881, %v11675
      %v11840 = vsel %vm4826, %v11833, %v11686
      %v11841 = vsel %vm4826, %v11834, %v11687
      %v11842 = vsel %vm4826, %v11835, %v11688
      %v11843 = vsel %vm4826, %v11836, %v11689
      %v11844 = vsel %vm4826, %v11837, %v11690
      %v11845 = vsel %vm4826, %v11838, %v11691
      %v11846 = vsel %vm4826, %v11839, %v11692
      %v11847 = vsel %vm11797, %v11840, %v11703
      %v11848 = vsel %vm11797, %v11841, %v11704
      %v11849 = vsel %vm11797, %v11842, %v11705
      %v11850 = vsel %vm11797, %v11843, %v11706
      %v11851 = vsel %vm11797, %v11844, %v11707
      %v11852 = vsel %vm11797, %v11845, %v11708
      %v11853 = vsel %vm11797, %v11846, %v11709
      %v11854 = vsel %vm911, %v11847, %v11060
      %v11855 = vsel %vm911, %v11848, %v11720
      %v11856 = vsel %vm911, %v11849, %v11721
      %v11857 = vsel %vm911, %v11850, %v11722
      %v11858 = vsel %vm911, %v11851, %v11723
      %v11859 = vsel %vm911, %v11852, %v11164
      %v11860 = vsel %vm911, %v11853, %v11166
      %v11861 = vsel %vm780, %v11854, %v11734
      %v11862 = vsel %vm780, %v11855, %v11735
      %v11863 = vsel %vm780, %v11856, %v11736
      %v11864 = vsel %vm780, %v11857, %v11737
      %v11865 = vsel %vm780, %v11858, %v11738
      %v11866 = vsel %vm780, %v11859, %v11739
      %v11867 = vsel %vm780, %v11860, %v11740
      %v11868 = vsel %vm649, %v11861, %v11751
      %v11869 = vsel %vm649, %v11862, %v11752
      %v11870 = vsel %vm649, %v11863, %v11753
      %v11871 = vsel %vm649, %v11864, %v11754
      %v11872 = vsel %vm649, %v11865, %v11755
      %v11873 = vsel %vm649, %v11866, %v11756
      %v11874 = vsel %vm649, %v11867, %v11757
      %v11875 = vsel %vm518, %v11868, %v11768
      %v11876 = vsel %vm518, %v11869, %v11769
      %v11877 = vsel %vm518, %v11870, %v11770
      %v11878 = vsel %vm518, %v11871, %v11771
      %v11879 = vsel %vm518, %v11872, %v11772
      %v11880 = vsel %vm518, %v11873, %v11773
      %v11881 = vsel %vm518, %v11874, %v11774
      %v11882 = vld [vmem:[%s5] sm:$0xff]
      %v11883 = vld [vmem:[%s5 + $0x8] sm:$0xff]
      %v11884 = vld [vmem:[%s5 + $0x10] sm:$0xff]
      %v11885 = vld [vmem:[%s5 + $0x18] sm:$0xff]
      %v11886 = vld [vmem:[%s5 + $0x20] sm:$0xff]
      %v11887 = vld [vmem:[%s5 + $0x28] sm:$0xff]
      %v11888 = vld [vmem:[%s5 + $0x30] sm:$0xff]
      %v11889 = vld [vmem:[%s5 + $0x38] sm:$0xff]
      %v11890 = vld [vmem:[%s5 + $0x40] sm:$0xff]
      %v11891 = vld [vmem:[%s5 + $0x48] sm:$0xff]
      %v11892 = vld [vmem:[%s5 + $0x50] sm:$0xff]
      %v11893 = vld [vmem:[%s5 + $0x58] sm:$0xff]
      %v11894 = vld [vmem:[%s5 + $0x60] sm:$0xff]
      %v11895 = vld [vmem:[%s5 + $0x68] sm:$0xff]
      %v11896 = vld [vmem:[%s5 + $0x70] sm:$0xff]
      %v11897 = vld [vmem:[%s5 + $0x78] sm:$0xff]
      %v11898 = vld [vmem:[%s5 + $0x80] sm:$0xff]
      %v11899 = vld [vmem:[%s5 + $0x88] sm:$0xff]
      %v11900 = vld [vmem:[%s5 + $0x90] sm:$0xff]
      %v11901 = vld [vmem:[%s5 + $0x98] sm:$0xff]
      %v11902 = vld [vmem:[%s5 + $0xa0] sm:$0xff]
      %v11903 = vld [vmem:[%s5 + $0xa8] sm:$0xff]
      %v11904 = vld [vmem:[%s5 + $0xb0] sm:$0xff]
      %v11905 = vld [vmem:[%s5 + $0xb8] sm:$0xff]
      %v11906 = vld [vmem:[%s5 + $0xc0] sm:$0xff]
      %v11907 = vld [vmem:[%s5 + $0xc8] sm:$0xff]
      %v11908 = vld [vmem:[%s5 + $0xd0] sm:$0xff]
      %v11909 = vld [vmem:[%s5 + $0xd8] sm:$0xff]
      %v11910 = vld [vmem:[%s5 + $0xe0] sm:$0xff]
      %v11911 = vld [vmem:[%s5 + $0xe8] sm:$0xff]
      %v11912 = vld [vmem:[%s5 + $0xf0] sm:$0xff]
      %v11913 = vld [vmem:[%s5 + $0xf8] sm:$0xff]
      %v11914 = vld [vmem:[%s5 + $0x100] sm:$0xff]
      %v11915 = vld [vmem:[%s5 + $0x108] sm:$0xff]
      %v11916 = vld [vmem:[%s5 + $0x110] sm:$0xff]
      %v11917 = vld [vmem:[%s5 + $0x118] sm:$0xff]
      %v11918 = vld [vmem:[%s5 + $0x120] sm:$0xff]
      %v11919 = vld [vmem:[%s5 + $0x128] sm:$0xff]
      %v11920 = vld [vmem:[%s5 + $0x130] sm:$0xff]
      %v11921 = vld [vmem:[%s5 + $0x138] sm:$0xff]
      %v11922 = vld [vmem:[%s5 + $0x140] sm:$0xff]
      %v11923 = vld [vmem:[%s5 + $0x148] sm:$0xff]
      %v11924 = vld [vmem:[%s5 + $0x150] sm:$0xff]
      %v11925 = vld [vmem:[%s5 + $0x158] sm:$0xff]
      %v11926 = vld [vmem:[%s5 + $0x160] sm:$0xff]
      %v11927 = vld [vmem:[%s5 + $0x168] sm:$0xff]
      %v11928 = vld [vmem:[%s5 + $0x170] sm:$0xff]
      %v11929 = vld [vmem:[%s5 + $0x178] sm:$0xff]
      %v11930 = vld [vmem:[%s5 + $0x180] sm:$0xff]
      %v11931 = vld [vmem:[%s5 + $0x188] sm:$0xff]
      %v11932 = vld [vmem:[%s5 + $0x190] sm:$0xff]
      %v11933 = vld [vmem:[%s5 + $0x198] sm:$0xff]
      %v11934 = vld [vmem:[%s5 + $0x1a0] sm:$0xff]
      %v11935 = vld [vmem:[%s5 + $0x1a8] sm:$0xff]
      %v11936 = vld [vmem:[%s5 + $0x1b0] sm:$0xff]
      %v11937 = vld [vmem:[%s5 + $0x1b8] sm:$0xff]
      %v11938 = vld [vmem:[%s5 + $0x1c0] sm:$0xff]
      %v11939 = vld [vmem:[%s5 + $0x1c8] sm:$0xff]
      %v11940 = vld [vmem:[%s5 + $0x1d0] sm:$0xff]
      %v11941 = vld [vmem:[%s5 + $0x1d8] sm:$0xff]
      %v11942 = vld [vmem:[%s5 + $0x1e0] sm:$0xff]
      %v11943 = vld [vmem:[%s5 + $0x1e8] sm:$0xff]
      %v11944 = vld [vmem:[%s5 + $0x1f0] sm:$0xff]
      %v11945 = vld [vmem:[%s5 + $0x1f8] sm:$0xff]
      %v11946 = vld [vmem:[%s5 + $0x200] sm:$0xff]
      %v11947 = vld [vmem:[%s5 + $0x208] sm:$0xff]
      %v11948 = vld [vmem:[%s5 + $0x210] sm:$0xff]
      %v11949 = vld [vmem:[%s5 + $0x218] sm:$0xff]
      %v11950 = vld [vmem:[%s5 + $0x220] sm:$0xff]
      %v11951 = vld [vmem:[%s5 + $0x228] sm:$0xff]
      %v11952 = vld [vmem:[%s5 + $0x230] sm:$0xff]
      %v11953 = vld [vmem:[%s5 + $0x238] sm:$0xff]
      %v11954 = vld [vmem:[%s5 + $0x240] sm:$0xff]
      %v11955 = vld [vmem:[%s5 + $0x248] sm:$0xff]
      %v11956 = vld [vmem:[%s5 + $0x250] sm:$0xff]
      %v11957 = vld [vmem:[%s5 + $0x258] sm:$0xff]
      %v11958 = vld [vmem:[%s5 + $0x260] sm:$0xff]
      %v11959 = vld [vmem:[%s5 + $0x268] sm:$0xff]
      %v11960 = vld [vmem:[%s5 + $0x270] sm:$0xff]
      %v11961 = vld [vmem:[%s5 + $0x278] sm:$0xff]
      %v11962 = vld [vmem:[%s5 + $0x280] sm:$0xff]
      %v11963 = vld [vmem:[%s5 + $0x288] sm:$0xff]
      %v11964 = vld [vmem:[%s5 + $0x290] sm:$0xff]
      %v11965 = vld [vmem:[%s5 + $0x298] sm:$0xff]
      %v11966 = vld [vmem:[%s5 + $0x2a0] sm:$0xff]
      %v11967 = vld [vmem:[%s5 + $0x2a8] sm:$0xff]
      %v11968 = vld [vmem:[%s5 + $0x2b0] sm:$0xff]
      %v11969 = vld [vmem:[%s5 + $0x2b8] sm:$0xff]
      %v11970 = vld [vmem:[%s5 + $0x2c0] sm:$0xff]
      %v11971 = vld [vmem:[%s5 + $0x2c8] sm:$0xff]
      %v11972 = vld [vmem:[%s5 + $0x2d0] sm:$0xff]
      %v11973 = vld [vmem:[%s5 + $0x2d8] sm:$0xff]
      %v11974 = vld [vmem:[%s5 + $0x2e0] sm:$0xff]
      %v11975 = vld [vmem:[%s5 + $0x2e8] sm:$0xff]
      %v11976 = vld [vmem:[%s5 + $0x2f0] sm:$0xff]
      %v11977 = vld [vmem:[%s5 + $0x2f8] sm:$0xff]
      %v11978 = vld [vmem:[%s5 + $0x300] sm:$0xff]
      %v11979 = vld [vmem:[%s5 + $0x308] sm:$0xff]
      %v11980 = vld [vmem:[%s5 + $0x310] sm:$0xff]
      %v11981 = vld [vmem:[%s5 + $0x318] sm:$0xff]
      %v11982 = vld [vmem:[%s6] sm:$0x1]
      %v11984 = vlaneseq
      %v11985 = vshrl.u32 %v11984, 7
      %v11986 = vsub.s32 0, %v11985
      %v11987 = vrot.slane %v11982, %v11986
      %v11990 = vsel %vm1621, %v11832, 0
      %v11993 = vsel %vm1621, %v11881, 0
      %11995 = vmatprep.subr.mxu0 0.0
      %11996 = vmatpush1.msra.mxu0 %v11882
      %11997 = vmatprep.subr.mxu0 0.0
      %11998 = vmatpush1.msra.mxu0 %v11883
      %11999 = vmatprep.subr.mxu0 0.0
      %12000 = vmatpush1.msra.mxu0 %v11884
      %12001 = vmatprep.subr.mxu0 0.0
      %12002 = vmatpush1.msra.mxu0 %v11885
      %12003 = vmatprep.subr.mxu0 0.0
      %12004 = vmatpush1.msra.mxu0 %v11886
      %12005 = vmatprep.subr.mxu0 0.0
      %12006 = vmatpush1.msra.mxu0 %v11887
      %12007 = vmatprep.subr.mxu0 0.0
      %12008 = vmatpush1.msra.mxu0 %v11888
      %12009 = vmatprep.subr.mxu0 0.0
      %12010 = vmatpush1.msra.mxu0 %v11889
      %12011 = vmatprep.subr.mxu0 0.0
      %12012 = vmatpush1.msra.mxu0 %v11890
      %12013 = vmatprep.subr.mxu0 0.0
      %12014 = vmatpush1.msra.mxu0 %v11891
      %12015 = vmatprep.subr.mxu0 0.0
      %12016 = vmatpush1.msra.mxu0 %v11892
      %12017 = vmatprep.subr.mxu0 0.0
      %12018 = vmatpush1.msra.mxu0 %v11893
      %12019 = vmatprep.subr.mxu0 0.0
      %12020 = vmatpush1.msra.mxu0 %v11894
      %12021 = vmatprep.subr.mxu0 0.0
      %12022 = vmatpush1.msra.mxu0 %v11895
      %12023 = vmatprep.subr.mxu0 0.0
      %12024 = vmatpush1.msra.mxu0 %v11896
      %12025 = vmatprep.subr.mxu0 0.0
      %12026 = vmatpush1.msra.mxu0 %v11897
      %12027 = vmatprep.subr.mxu0 0.0
      %12028 = vmatpush1.msra.mxu0 %v11898
      %12029 = vmatprep.subr.mxu0 0.0
      %12030 = vmatpush1.msra.mxu0 %v11899
      %12031 = vmatprep.subr.mxu0 0.0
      %12032 = vmatpush1.msra.mxu0 %v11900
      %12033 = vmatprep.subr.mxu0 0.0
      %12034 = vmatpush1.msra.mxu0 %v11901
      %12035 = vmatprep.subr.mxu0 0.0
      %12036 = vmatpush1.msra.mxu0 %v11902
      %12037 = vmatprep.subr.mxu0 0.0
      %12038 = vmatpush1.msra.mxu0 %v11903
      %12039 = vmatprep.subr.mxu0 0.0
      %12040 = vmatpush1.msra.mxu0 %v11904
      %12041 = vmatprep.subr.mxu0 0.0
      %12042 = vmatpush1.msra.mxu0 %v11905
      %12043 = vmatprep.subr.mxu0 0.0
      %12044 = vmatpush1.msra.mxu0 %v11906
      %12045 = vmatprep.subr.mxu0 0.0
      %12046 = vmatpush1.msra.mxu0 %v11907
      %12047 = vmatprep.subr.mxu0 0.0
      %12048 = vmatpush1.msra.mxu0 %v11908
      %12049 = vmatprep.subr.mxu0 0.0
      %12050 = vmatpush1.msra.mxu0 %v11909
      %12051 = vmatprep.subr.mxu0 0.0
      %12052 = vmatpush1.msra.mxu0 %v11910
      %12053 = vmatprep.subr.mxu0 0.0
      %12054 = vmatpush1.msra.mxu0 %v11911
      %12055 = vmatprep.subr.mxu0 0.0
      %12056 = vmatpush1.msra.mxu0 %v11912
      %12057 = vmatprep.subr.mxu0 0.0
      %12058 = vmatpush1.msra.mxu0 %v11913
      %12059 = vmatprep.mubr.f32.mxu0 %v11827
      %12060 = vmatmul.mubr.f32.gmra.mrb[0].mxu0 %v11826
      %v12061 = vpop.f32.mrb[0].mxu0
      %v12062 = vadd.f32 %v11987, %v12061
      %v12063 = vpop.f32.mrb[0].mxu0
      %12064 = vmatprep.mubr.f32.mxu0 %v11876
      %12065 = vmatmul.mubr.f32.gmra.mrb[0].mxu0 %v11875
      %v12066 = vpop.f32.mrb[0].mxu0
      %v12067 = vadd.f32 %v11987, %v12066
      %v12068 = vpop.f32.mrb[0].mxu0
      %12069 = vdwg.mxu0
      %12070 = vmatprep.subr.mxu0 0.0
      %12071 = vmatpush1.msra.mxu0 %v11914
      %12072 = vmatprep.subr.mxu0 0.0
      %12073 = vmatpush1.msra.mxu0 %v11915
      %12074 = vmatprep.subr.mxu0 0.0
      %12075 = vmatpush1.msra.mxu0 %v11916
      %12076 = vmatprep.subr.mxu0 0.0
      %12077 = vmatpush1.msra.mxu0 %v11917
      %12078 = vmatprep.subr.mxu0 0.0
      %12079 = vmatpush1.msra.mxu0 %v11918
      %12080 = vmatprep.subr.mxu0 0.0
      %12081 = vmatpush1.msra.mxu0 %v11919
      %12082 = vmatprep.subr.mxu0 0.0
      %12083 = vmatpush1.msra.mxu0 %v11920
      %12084 = vmatprep.subr.mxu0 0.0
      %12085 = vmatpush1.msra.mxu0 %v11921
      %12086 = vmatprep.subr.mxu0 0.0
      %12087 = vmatpush1.msra.mxu0 %v11922
      %12088 = vmatprep.subr.mxu0 0.0
      %12089 = vmatpush1.msra.mxu0 %v11923
      %12090 = vmatprep.subr.mxu0 0.0
      %12091 = vmatpush1.msra.mxu0 %v11924
      %12092 = vmatprep.subr.mxu0 0.0
      %12093 = vmatpush1.msra.mxu0 %v11925
      %12094 = vmatprep.subr.mxu0 0.0
      %12095 = vmatpush1.msra.mxu0 %v11926
      %12096 = vmatprep.subr.mxu0 0.0
      %12097 = vmatpush1.msra.mxu0 %v11927
      %12098 = vmatprep.subr.mxu0 0.0
      %12099 = vmatpush1.msra.mxu0 %v11928
      %12100 = vmatprep.subr.mxu0 0.0
      %12101 = vmatpush1.msra.mxu0 %v11929
      %12102 = vmatprep.subr.mxu0 0.0
      %12103 = vmatpush1.msra.mxu0 %v11930
      %12104 = vmatprep.subr.mxu0 0.0
      %12105 = vmatpush1.msra.mxu0 %v11931
      %12106 = vmatprep.subr.mxu0 0.0
      %12107 = vmatpush1.msra.mxu0 %v11932
      %12108 = vmatprep.subr.mxu0 0.0
      %12109 = vmatpush1.msra.mxu0 %v11933
      %12110 = vmatprep.subr.mxu0 0.0
      %12111 = vmatpush1.msra.mxu0 %v11934
      %12112 = vmatprep.subr.mxu0 0.0
      %12113 = vmatpush1.msra.mxu0 %v11935
      %12114 = vmatprep.subr.mxu0 0.0
      %12115 = vmatpush1.msra.mxu0 %v11936
      %12116 = vmatprep.subr.mxu0 0.0
      %12117 = vmatpush1.msra.mxu0 %v11937
      %12118 = vmatprep.subr.mxu0 0.0
      %12119 = vmatpush1.msra.mxu0 %v11938
      %12120 = vmatprep.subr.mxu0 0.0
      %12121 = vmatpush1.msra.mxu0 %v11939
      %12122 = vmatprep.subr.mxu0 0.0
      %12123 = vmatpush1.msra.mxu0 %v11940
      %12124 = vmatprep.subr.mxu0 0.0
      %12125 = vmatpush1.msra.mxu0 %v11941
      %12126 = vmatprep.subr.mxu0 0.0
      %12127 = vmatpush1.msra.mxu0 %v11942
      %12128 = vmatprep.subr.mxu0 0.0
      %12129 = vmatpush1.msra.mxu0 %v11943
      %12130 = vmatprep.subr.mxu0 0.0
      %12131 = vmatpush1.msra.mxu0 %v11944
      %12132 = vmatprep.subr.mxu0 0.0
      %12133 = vmatpush1.msra.mxu0 %v11945
      %12134 = vmatprep.mubr.f32.mxu0 %v11829
      %12135 = vmatmul.mubr.f32.gmra.mrb[0].mxu0 %v11828
      %v12136 = vpop.f32.mrb[0].mxu0
      %v12137 = vadd.f32 %v12062, %v12136
      %v12138 = vpop.f32.mrb[0].mxu0
      %12139 = vmatprep.mubr.f32.mxu0 %v11878
      %12140 = vmatmul.mubr.f32.gmra.mrb[0].mxu0 %v11877
      %v12141 = vpop.f32.mrb[0].mxu0
      %v12142 = vadd.f32 %v12067, %v12141
      %v12143 = vpop.f32.mrb[0].mxu0
      %12144 = vdwg.mxu0
      %12145 = vmatprep.subr.mxu0 0.0
      %12146 = vmatpush1.msra.mxu0 %v11946
      %12147 = vmatprep.subr.mxu0 0.0
      %12148 = vmatpush1.msra.mxu0 %v11947
      %12149 = vmatprep.subr.mxu0 0.0
      %12150 = vmatpush1.msra.mxu0 %v11948
      %12151 = vmatprep.subr.mxu0 0.0
      %12152 = vmatpush1.msra.mxu0 %v11949
      %12153 = vmatprep.subr.mxu0 0.0
      %12154 = vmatpush1.msra.mxu0 %v11950
      %12155 = vmatprep.subr.mxu0 0.0
      %12156 = vmatpush1.msra.mxu0 %v11951
      %12157 = vmatprep.subr.mxu0 0.0
      %12158 = vmatpush1.msra.mxu0 %v11952
      %12159 = vmatprep.subr.mxu0 0.0
      %12160 = vmatpush1.msra.mxu0 %v11953
      %12161 = vmatprep.subr.mxu0 0.0
      %12162 = vmatpush1.msra.mxu0 %v11954
      %12163 = vmatprep.subr.mxu0 0.0
      %12164 = vmatpush1.msra.mxu0 %v11955
      %12165 = vmatprep.subr.mxu0 0.0
      %12166 = vmatpush1.msra.mxu0 %v11956
      %12167 = vmatprep.subr.mxu0 0.0
      %12168 = vmatpush1.msra.mxu0 %v11957
      %12169 = vmatprep.subr.mxu0 0.0
      %12170 = vmatpush1.msra.mxu0 %v11958
      %12171 = vmatprep.subr.mxu0 0.0
      %12172 = vmatpush1.msra.mxu0 %v11959
      %12173 = vmatprep.subr.mxu0 0.0
      %12174 = vmatpush1.msra.mxu0 %v11960
      %12175 = vmatprep.subr.mxu0 0.0
      %12176 = vmatpush1.msra.mxu0 %v11961
      %12177 = vmatprep.subr.mxu0 0.0
      %12178 = vmatpush1.msra.mxu0 %v11962
      %12179 = vmatprep.subr.mxu0 0.0
      %12180 = vmatpush1.msra.mxu0 %v11963
      %12181 = vmatprep.subr.mxu0 0.0
      %12182 = vmatpush1.msra.mxu0 %v11964
      %12183 = vmatprep.subr.mxu0 0.0
      %12184 = vmatpush1.msra.mxu0 %v11965
      %12185 = vmatprep.subr.mxu0 0.0
      %12186 = vmatpush1.msra.mxu0 %v11966
      %12187 = vmatprep.subr.mxu0 0.0
      %12188 = vmatpush1.msra.mxu0 %v11967
      %12189 = vmatprep.subr.mxu0 0.0
      %12190 = vmatpush1.msra.mxu0 %v11968
      %12191 = vmatprep.subr.mxu0 0.0
      %12192 = vmatpush1.msra.mxu0 %v11969
      %12193 = vmatprep.subr.mxu0 0.0
      %12194 = vmatpush1.msra.mxu0 %v11970
      %12195 = vmatprep.subr.mxu0 0.0
      %12196 = vmatpush1.msra.mxu0 %v11971
      %12197 = vmatprep.subr.mxu0 0.0
      %12198 = vmatpush1.msra.mxu0 %v11972
      %12199 = vmatprep.subr.mxu0 0.0
      %12200 = vmatpush1.msra.mxu0 %v11973
      %12201 = vmatprep.subr.mxu0 0.0
      %12202 = vmatpush1.msra.mxu0 %v11974
      %12203 = vmatprep.subr.mxu0 0.0
      %12204 = vmatpush1.msra.mxu0 %v11975
      %12205 = vmatprep.subr.mxu0 0.0
      %12206 = vmatpush1.msra.mxu0 %v11976
      %12207 = vmatprep.subr.mxu0 0.0
      %12208 = vmatpush1.msra.mxu0 %v11977
      %12209 = vmatprep.mubr.f32.mxu0 %v11831
      %12210 = vmatmul.mubr.f32.gmra.mrb[0].mxu0 %v11830
      %v12211 = vpop.f32.mrb[0].mxu0
      %v12212 = vadd.f32 %v12137, %v12211
      %v12213 = vpop.f32.mrb[0].mxu0
      %12214 = vmatprep.mubr.f32.mxu0 %v11880
      %12215 = vmatmul.mubr.f32.gmra.mrb[0].mxu0 %v11879
      %v12216 = vpop.f32.mrb[0].mxu0
      %v12217 = vadd.f32 %v12142, %v12216
      %v12218 = vpop.f32.mrb[0].mxu0
      %12219 = vdwg.mxu0
      %12220 = vmatprep.subr.mxu0 0.0
      %12221 = vmatpush1.msra.mxu0 %v11978
      %12222 = vmatprep.subr.mxu0 0.0
      %12223 = vmatpush1.msra.mxu0 %v11979
      %12224 = vmatprep.subr.mxu0 0.0
      %12225 = vmatpush1.msra.mxu0 %v11980
      %12226 = vmatprep.subr.mxu0 0.0
      %12227 = vmatpush1.msra.mxu0 %v11981
      %12228 = vmatprep.subr.mxu0 0.0
      %12229 = vmatpush1.msra.mxu0 0.0
      %12230 = vmatprep.subr.mxu0 0.0
      %12231 = vmatpush1.msra.mxu0 0.0
      %12232 = vmatprep.subr.mxu0 0.0
      %12233 = vmatpush1.msra.mxu0 0.0
      %12234 = vmatprep.subr.mxu0 0.0
      %12235 = vmatpush1.msra.mxu0 0.0
      %12236 = vmatprep.subr.mxu0 0.0
      %12237 = vmatpush1.msra.mxu0 0.0
      %12238 = vmatprep.subr.mxu0 0.0
      %12239 = vmatpush1.msra.mxu0 0.0
      %12240 = vmatprep.subr.mxu0 0.0
      %12241 = vmatpush1.msra.mxu0 0.0
      %12242 = vmatprep.subr.mxu0 0.0
      %12243 = vmatpush1.msra.mxu0 0.0
      %12244 = vmatprep.subr.mxu0 0.0
      %12245 = vmatpush1.msra.mxu0 0.0
      %12246 = vmatprep.subr.mxu0 0.0
      %12247 = vmatpush1.msra.mxu0 0.0
      %12248 = vmatprep.subr.mxu0 0.0
      %12249 = vmatpush1.msra.mxu0 0.0
      %12250 = vmatprep.subr.mxu0 0.0
      %12251 = vmatpush1.msra.mxu0 0.0
      %12252 = vmatprep.subr.mxu0 0.0
      %12253 = vmatpush1.msra.mxu0 0.0
      %12254 = vmatprep.subr.mxu0 0.0
      %12255 = vmatpush1.msra.mxu0 0.0
      %12256 = vmatprep.subr.mxu0 0.0
      %12257 = vmatpush1.msra.mxu0 0.0
      %12258 = vmatprep.subr.mxu0 0.0
      %12259 = vmatpush1.msra.mxu0 0.0
      %12260 = vmatprep.subr.mxu0 0.0
      %12261 = vmatpush1.msra.mxu0 0.0
      %12262 = vmatprep.subr.mxu0 0.0
      %12263 = vmatpush1.msra.mxu0 0.0
      %12264 = vmatprep.subr.mxu0 0.0
      %12265 = vmatpush1.msra.mxu0 0.0
      %12266 = vmatprep.subr.mxu0 0.0
      %12267 = vmatpush1.msra.mxu0 0.0
      %12268 = vmatprep.subr.mxu0 0.0
      %12269 = vmatpush1.msra.mxu0 0.0
      %12270 = vmatprep.subr.mxu0 0.0
      %12271 = vmatpush1.msra.mxu0 0.0
      %12272 = vmatprep.subr.mxu0 0.0
      %12273 = vmatpush1.msra.mxu0 0.0
      %12274 = vmatprep.subr.mxu0 0.0
      %12275 = vmatpush1.msra.mxu0 0.0
      %12276 = vmatprep.subr.mxu0 0.0
      %12277 = vmatpush1.msra.mxu0 0.0
      %12278 = vmatprep.subr.mxu0 0.0
      %12279 = vmatpush1.msra.mxu0 0.0
      %12280 = vmatprep.subr.mxu0 0.0
      %12281 = vmatpush1.msra.mxu0 0.0
      %12282 = vmatprep.subr.mxu0 0.0
      %12283 = vmatpush1.msra.mxu0 0.0
      %12284 = vmatprep.mubr.f32.mxu0 0.0
      %12285 = vmatmul.mubr.f32.gmra.mrb[0].mxu0 %v11990
      %v12286 = vpop.f32.mrb[0].mxu0
      %v12287 = vadd.f32 %v12212, %v12286
      %v12288 = vpop.f32.mrb[0].mxu0
      %12289 = vmatprep.mubr.f32.mxu0 0.0
      %12290 = vmatmul.mubr.f32.gmra.mrb[0].mxu0 %v11993
      %v12291 = vpop.f32.mrb[0].mxu0
      %v12292 = vadd.f32 %v12217, %v12291
      %v12293 = vpop.f32.mrb[0].mxu0
      %12294 = vdwg.mxu0
      %v12295 = vmax.f32 %v12287, 0.0
      %v12296 = vmax.f32 %v12292, 0.0
      %v12297 = vld [vmem:[%s7] sm:$0xff]
      %v12298 = vld [vmem:[%s7 + $0x8] sm:$0xff]
      %v12299 = vld [vmem:[%s7 + $0x10] sm:$0xff]
      %v12300 = vld [vmem:[%s7 + $0x18] sm:$0xff]
      %v12301 = vld [vmem:[%s7 + $0x20] sm:$0xff]
      %v12302 = vld [vmem:[%s7 + $0x28] sm:$0xff]
      %v12303 = vld [vmem:[%s7 + $0x30] sm:$0xff]
      %v12304 = vld [vmem:[%s7 + $0x38] sm:$0xff]
      %v12305 = vld [vmem:[%s7 + $0x40] sm:$0xff]
      %v12306 = vld [vmem:[%s7 + $0x48] sm:$0xff]
      %v12307 = vld [vmem:[%s7 + $0x50] sm:$0xff]
      %v12308 = vld [vmem:[%s7 + $0x58] sm:$0xff]
      %v12309 = vld [vmem:[%s7 + $0x60] sm:$0xff]
      %v12310 = vld [vmem:[%s7 + $0x68] sm:$0xff]
      %v12311 = vld [vmem:[%s7 + $0x70] sm:$0xff]
      %v12312 = vld [vmem:[%s7 + $0x78] sm:$0xff]
      %v12313 = vld [vmem:[%s8] sm:$0x1]
      %v12315 = vlaneseq
      %v12316 = vshrl.u32 %v12315, 7
      %v12317 = vsub.s32 0, %v12316
      %v12318 = vrot.slane %v12313, %v12317
      %12320 = vmatprep.subr.mxu0 0.0
      %12321 = vmatpush1.msra.mxu0 %v12297
      %12322 = vmatprep.subr.mxu0 0.0
      %12323 = vmatpush1.msra.mxu0 %v12298
      %12324 = vmatprep.subr.mxu0 0.0
      %12325 = vmatpush1.msra.mxu0 %v12299
      %12326 = vmatprep.subr.mxu0 0.0
      %12327 = vmatpush1.msra.mxu0 %v12300
      %12328 = vmatprep.subr.mxu0 0.0
      %12329 = vmatpush1.msra.mxu0 %v12301
      %12330 = vmatprep.subr.mxu0 0.0
      %12331 = vmatpush1.msra.mxu0 %v12302
      %12332 = vmatprep.subr.mxu0 0.0
      %12333 = vmatpush1.msra.mxu0 %v12303
      %12334 = vmatprep.subr.mxu0 0.0
      %12335 = vmatpush1.msra.mxu0 %v12304
      %12336 = vmatprep.subr.mxu0 0.0
      %12337 = vmatpush1.msra.mxu0 %v12305
      %12338 = vmatprep.subr.mxu0 0.0
      %12339 = vmatpush1.msra.mxu0 %v12306
      %12340 = vmatprep.subr.mxu0 0.0
      %12341 = vmatpush1.msra.mxu0 %v12307
      %12342 = vmatprep.subr.mxu0 0.0
      %12343 = vmatpush1.msra.mxu0 %v12308
      %12344 = vmatprep.subr.mxu0 0.0
      %12345 = vmatpush1.msra.mxu0 %v12309
      %12346 = vmatprep.subr.mxu0 0.0
      %12347 = vmatpush1.msra.mxu0 %v12310
      %12348 = vmatprep.subr.mxu0 0.0
      %12349 = vmatpush1.msra.mxu0 %v12311
      %12350 = vmatprep.subr.mxu0 0.0
      %12351 = vmatpush1.msra.mxu0 %v12312
      %12352 = vmatprep.subr.mxu0 0.0
      %12353 = vmatpush1.msra.mxu0 0.0
      %12354 = vmatprep.subr.mxu0 0.0
      %12355 = vmatpush1.msra.mxu0 0.0
      %12356 = vmatprep.subr.mxu0 0.0
      %12357 = vmatpush1.msra.mxu0 0.0
      %12358 = vmatprep.subr.mxu0 0.0
      %12359 = vmatpush1.msra.mxu0 0.0
      %12360 = vmatprep.subr.mxu0 0.0
      %12361 = vmatpush1.msra.mxu0 0.0
      %12362 = vmatprep.subr.mxu0 0.0
      %12363 = vmatpush1.msra.mxu0 0.0
      %12364 = vmatprep.subr.mxu0 0.0
      %12365 = vmatpush1.msra.mxu0 0.0
      %12366 = vmatprep.subr.mxu0 0.0
      %12367 = vmatpush1.msra.mxu0 0.0
      %12368 = vmatprep.subr.mxu0 0.0
      %12369 = vmatpush1.msra.mxu0 0.0
      %12370 = vmatprep.subr.mxu0 0.0
      %12371 = vmatpush1.msra.mxu0 0.0
      %12372 = vmatprep.subr.mxu0 0.0
      %12373 = vmatpush1.msra.mxu0 0.0
      %12374 = vmatprep.subr.mxu0 0.0
      %12375 = vmatpush1.msra.mxu0 0.0
      %12376 = vmatprep.subr.mxu0 0.0
      %12377 = vmatpush1.msra.mxu0 0.0
      %12378 = vmatprep.subr.mxu0 0.0
      %12379 = vmatpush1.msra.mxu0 0.0
      %12380 = vmatprep.subr.mxu0 0.0
      %12381 = vmatpush1.msra.mxu0 0.0
      %12382 = vmatprep.subr.mxu0 0.0
      %12383 = vmatpush1.msra.mxu0 0.0
      %12384 = vmatprep.mubr.f32.mxu0 0.0
      %12385 = vmatmul.mubr.f32.gmra.mrb[0].mxu0 %v12295
      %v12386 = vpop.f32.mrb[0].mxu0
      %v12387 = vadd.f32 %v12318, %v12386
      %v12388 = vpop.f32.mrb[0].mxu0
      %12389 = vmatprep.mubr.f32.mxu0 0.0
      %12390 = vmatmul.mubr.f32.gmra.mrb[0].mxu0 %v12296
      %v12391 = vpop.f32.mrb[0].mxu0
      %v12392 = vadd.f32 %v12318, %v12391
      %v12393 = vpop.f32.mrb[0].mxu0
      %12394 = vdwg.mxu0
      %v12395 = vmax.f32 %v12387, 0.0
      %v12396 = vmax.f32 %v12392, 0.0
      %v12397 = vld [vmem:[%s9] sm:$0xff]
      %v12398 = vld [vmem:[%s9 + $0x8] sm:$0xff]
      %v12399 = vld [vmem:[%s9 + $0x10] sm:$0xff]
      %v12400 = vld [vmem:[%s9 + $0x18] sm:$0xff]
      %v12401 = vld [vmem:[%s9 + $0x20] sm:$0xff]
      %v12402 = vld [vmem:[%s9 + $0x28] sm:$0xff]
      %v12403 = vld [vmem:[%s9 + $0x30] sm:$0xff]
      %v12404 = vld [vmem:[%s9 + $0x38] sm:$0xff]
      %v12405 = vld [vmem:[%s9 + $0x40] sm:$0xff]
      %v12406 = vld [vmem:[%s9 + $0x48] sm:$0xff]
      %v12407 = vld [vmem:[%s9 + $0x50] sm:$0xff]
      %v12408 = vld [vmem:[%s9 + $0x58] sm:$0xff]
      %v12409 = vld [vmem:[%s9 + $0x60] sm:$0xff]
      %v12410 = vld [vmem:[%s9 + $0x68] sm:$0xff]
      %v12411 = vld [vmem:[%s9 + $0x70] sm:$0xff]
      %v12412 = vld [vmem:[%s9 + $0x78] sm:$0xff]
      %v12413 = vld [vmem:[%s10] sm:$0x1]
      %v12415 = vlaneseq
      %v12416 = vshrl.u32 %v12415, 7
      %v12417 = vsub.s32 0, %v12416
      %v12418 = vrot.slane %v12413, %v12417
      %12420 = vmatprep.subr.mxu0 0.0
      %12421 = vmatpush1.msra.mxu0 %v12397
      %12422 = vmatprep.subr.mxu0 0.0
      %12423 = vmatpush1.msra.mxu0 %v12398
      %12424 = vmatprep.subr.mxu0 0.0
      %12425 = vmatpush1.msra.mxu0 %v12399
      %12426 = vmatprep.subr.mxu0 0.0
      %12427 = vmatpush1.msra.mxu0 %v12400
      %12428 = vmatprep.subr.mxu0 0.0
      %12429 = vmatpush1.msra.mxu0 %v12401
      %12430 = vmatprep.subr.mxu0 0.0
      %12431 = vmatpush1.msra.mxu0 %v12402
      %12432 = vmatprep.subr.mxu0 0.0
      %12433 = vmatpush1.msra.mxu0 %v12403
      %12434 = vmatprep.subr.mxu0 0.0
      %12435 = vmatpush1.msra.mxu0 %v12404
      %12436 = vmatprep.subr.mxu0 0.0
      %12437 = vmatpush1.msra.mxu0 %v12405
      %12438 = vmatprep.subr.mxu0 0.0
      %12439 = vmatpush1.msra.mxu0 %v12406
      %12440 = vmatprep.subr.mxu0 0.0
      %12441 = vmatpush1.msra.mxu0 %v12407
      %12442 = vmatprep.subr.mxu0 0.0
      %12443 = vmatpush1.msra.mxu0 %v12408
      %12444 = vmatprep.subr.mxu0 0.0
      %12445 = vmatpush1.msra.mxu0 %v12409
      %12446 = vmatprep.subr.mxu0 0.0
      %12447 = vmatpush1.msra.mxu0 %v12410
      %12448 = vmatprep.subr.mxu0 0.0
      %12449 = vmatpush1.msra.mxu0 %v12411
      %12450 = vmatprep.subr.mxu0 0.0
      %12451 = vmatpush1.msra.mxu0 %v12412
      %12452 = vmatprep.subr.mxu0 0.0
      %12453 = vmatpush1.msra.mxu0 0.0
      %12454 = vmatprep.subr.mxu0 0.0
      %12455 = vmatpush1.msra.mxu0 0.0
      %12456 = vmatprep.subr.mxu0 0.0
      %12457 = vmatpush1.msra.mxu0 0.0
      %12458 = vmatprep.subr.mxu0 0.0
      %12459 = vmatpush1.msra.mxu0 0.0
      %12460 = vmatprep.subr.mxu0 0.0
      %12461 = vmatpush1.msra.mxu0 0.0
      %12462 = vmatprep.subr.mxu0 0.0
      %12463 = vmatpush1.msra.mxu0 0.0
      %12464 = vmatprep.subr.mxu0 0.0
      %12465 = vmatpush1.msra.mxu0 0.0
      %12466 = vmatprep.subr.mxu0 0.0
      %12467 = vmatpush1.msra.mxu0 0.0
      %12468 = vmatprep.subr.mxu0 0.0
      %12469 = vmatpush1.msra.mxu0 0.0
      %12470 = vmatprep.subr.mxu0 0.0
      %12471 = vmatpush1.msra.mxu0 0.0
      %12472 = vmatprep.subr.mxu0 0.0
      %12473 = vmatpush1.msra.mxu0 0.0
      %12474 = vmatprep.subr.mxu0 0.0
      %12475 = vmatpush1.msra.mxu0 0.0
      %12476 = vmatprep.subr.mxu0 0.0
      %12477 = vmatpush1.msra.mxu0 0.0
      %12478 = vmatprep.subr.mxu0 0.0
      %12479 = vmatpush1.msra.mxu0 0.0
      %12480 = vmatprep.subr.mxu0 0.0
      %12481 = vmatpush1.msra.mxu0 0.0
      %12482 = vmatprep.subr.mxu0 0.0
      %12483 = vmatpush1.msra.mxu0 0.0
      %12484 = vmatprep.mubr.f32.mxu0 0.0
      %12485 = vmatmul.mubr.f32.gmra.mrb[0].mxu0 %v12395
      %v12486 = vpop.f32.mrb[0].mxu0
      %v12487 = vadd.f32 %v12418, %v12486
      %v12488 = vpop.f32.mrb[0].mxu0
      %12489 = vmatprep.mubr.f32.mxu0 0.0
      %12490 = vmatmul.mubr.f32.gmra.mrb[0].mxu0 %v12396
      %v12491 = vpop.f32.mrb[0].mxu0
      %v12492 = vadd.f32 %v12418, %v12491
      %v12493 = vpop.f32.mrb[0].mxu0
      %12494 = vdwg.mxu0
      %12495 = vst [vmem:[%s388] sm:$0xff] %v12487
      %12496 = vst [vmem:[%s388 + $0x8] sm:$0xff] %v12492
      %s12497 = smul.u32 2, %s22
      %p12498 = scmp.lt.s32.totalorder %s12497, 3
      %s12499 = scalar_select %p12498, %s12497, 3
      %s12500 = smul.addr %s12499, 8
      %s12501 = scalar_lea.vmem %s11, %s12500
      // Predicated region
      $region65: #{lenet_forward.1} parent=63 // pred_check
        %p12502 = pneg %p276
      $region66: #{lenet_forward.1} parent=63 // pred_check_branch
        %12504 = sbr.rel (%p12502) target = $region68
      $region67: #{lenet_forward.1} parent=63 // pred_region
        %s12505 = smul.u32 2, %s22
      $region68: #{lenet_forward.1} parent=63 // pred_fallthru
        _
    $region64: #{lenet_forward.1} parent=5 // pred_fallthru
      _
    %p12506 = scmp.le.s32.totalorder 2, %s17
    // Predicated region
    $region69: #{lenet_forward.1} parent=5 // pred_check
      %p12507 = pneg %p12506
    $region70: #{lenet_forward.1} parent=5 // pred_check_branch
      %12509 = sbr.rel (%p12507) target = $region72
    $region71: #{lenet_forward.1} parent=5 // pred_region
      %s12510 = ssub.s32 %s17, 2
      // Predicated region
      $region73: #{lenet_forward.1} parent=71 // pred_check
        %p12511 = pneg %p282
      $region74: #{lenet_forward.1} parent=71 // pred_check_branch
        %12513 = sbr.rel (%p12511) target = $region76
      $region75: #{lenet_forward.1} parent=71 // pred_region
        %s12514 = smul.u32 2, %s23
        %p12515 = scmp.lt.s32.totalorder %s12514, 3
        %s12516 = scalar_select %p12515, %s12514, 3
        %s12517 = smul.addr %s12516, 8
        %s12518 = scalar_lea.vmem %s11, %s12517
      $region76: #{lenet_forward.1} parent=71 // pred_fallthru
        _
    $region72: #{lenet_forward.1} parent=5 // pred_fallthru
      _
  $region6: #{lenet_forward.1} parent=0 // loop_footer
    %s21 = sadd.s32 1, %s17
  $region7: #{lenet_forward.1} parent=0 // loop_footer_branch
    %16 = sbr.rel target = $region3
  $region8: #{lenet_forward.1} parent=0 // loop_exit
    _

</llo_original>
